<compile_context>
chip_gen: v6e
topology: v6e:2x2x1
jax: 0.10.0
libtpu: 0.0.40
codegen_flags: <defaults>
</compile_context>

<pallas_src>
import math

import jax
import jax.numpy as jnp
from jax.experimental import pallas as pl
from jax.experimental.pallas import tpu as pltpu


# ---------------------------------------------------------------------------
# wrapper-side weight preprocessing (pure layout plumbing, plain JAX, run once)
# ---------------------------------------------------------------------------

def _conv_band_matrix(w_k3, in_hw, stride, in_layout="nhwc", out_layout="nhwc"):
    """Full block-Toeplitz matrix of a 3x3 / pad-1 conv as ONE matmul.

    w_k3: (3, 3, Cin, Cout) weights indexed [ky, kx, ci, co].
    Returns (mat, (Ho, Wo)) with mat of shape (H*W*Cin, Ho*Wo*Cout) such that
      flat_out = flat_in @ mat
    reproduces the conv (zero padding folded in as structural zeros).
    `in_layout` / `out_layout` choose whether the flat axis is ordered
    (h, w, c) ("nhwc") or (c, h, w) ("nchw").
    """
    h, w = in_hw
    cin, cout = w_k3.shape[2], w_k3.shape[3]
    ho = (h + 2 - 3) // stride + 1
    wo = (w + 2 - 3) // stride + 1
    ky = jnp.arange(h)[:, None] - stride * jnp.arange(ho)[None, :] + 1   # (h, ho)
    kx = jnp.arange(w)[:, None] - stride * jnp.arange(wo)[None, :] + 1   # (w, wo)
    vy = (ky >= 0) & (ky <= 2)
    vx = (kx >= 0) & (kx <= 2)
    taps = w_k3[jnp.clip(ky, 0, 2)[:, :, None, None],
                jnp.clip(kx, 0, 2)[None, None, :, :]]     # (h, ho, w, wo, ci, co)
    taps = jnp.where((vy[:, :, None, None] & vx[None, None, :, :])[..., None, None],
                     taps, 0.0)
    in_perm = (0, 2, 4) if in_layout == "nhwc" else (4, 0, 2)
    out_perm = (1, 3, 5) if out_layout == "nhwc" else (5, 1, 3)
    mat = jnp.transpose(taps, in_perm + out_perm).reshape(h * w * cin,
                                                          ho * wo * cout)
    return mat.astype(jnp.float32), (ho, wo)


def _fold_expand(s, c):
    """0/1 per-channel fold (s*c, c) and expand (c, s*c) matrices for an
    (h, w, c)-flattened lane axis (lane = spatial*c + channel)."""
    fold = (jnp.arange(s * c)[:, None] % c == jnp.arange(c)[None, :])
    fold = fold.astype(jnp.float32)
    return fold, fold.T


def prepare_downsample_params(params, input_hw):
    """Turn the PyTorch-style parameter pytree into the kernel operand tuple."""
    h, w = input_hw

    def k3(w_oihw):
        # OIHW -> (ky, kx, ci, co)
        return jnp.transpose(w_oihw, (2, 3, 1, 0)).astype(jnp.float32)

    def res_stage(res_params, hw):
        mats = jnp.stack([_conv_band_matrix(k3(p[name]), hw, 1)[0]
                          for p in res_params for name in ("w1", "w2")])
        bns = jnp.stack([jnp.stack([p["g1"], p["b1"], p["g2"], p["b2"]])
                         for p in res_params]).astype(jnp.float32)
        return mats, bns

    c_mid = params["conv1_w"].shape[0]
    c_out = params["conv2_w"].shape[0]
    # AvgPool2d(3, s=2, p=1, count_include_pad=True) == depthwise conv, w = I/9
    pool_w = jnp.broadcast_to(jnp.eye(c_out, dtype=jnp.float32) / 9.0,
                              (3, 3, c_out, c_out))

    c1, hw1 = _conv_band_matrix(k3(params["conv1_w"]), (h, w), 2, in_layout="nchw")
    rw1, rb1 = res_stage(params["res1"], hw1)
    c2, hw2 = _conv_band_matrix(k3(params["conv2_w"]), hw1, 2)
    rw2, rb2 = res_stage(params["res2"], hw2)
    p1, hw3 = _conv_band_matrix(pool_w, hw2, 2)
    rw3, rb3 = res_stage(params["res3"], hw3)
    p2, _ = _conv_band_matrix(pool_w, hw3, 2, out_layout="nchw")

    f1, e1 = _fold_expand(hw1[0] * hw1[1], c_mid)
    f2, e2 = _fold_expand(hw2[0] * hw2[1], c_out)
    f3, e3 = _fold_expand(hw3[0] * hw3[1], c_out)

    return (c1, c2, p1, p2, rw1, rb1, rw2, rb2, rw3, rb3,
            f1, e1, f2, e2, f3, e3)


# ---------------------------------------------------------------------------
# the single fused kernel
# ---------------------------------------------------------------------------

def _make_downsample_kernel(n, n_res, stage_sc, stage_c, eps):
    # per-stage 1 / (N * H * W) for BN statistics (python floats at trace time)
    inv_cnt = tuple(1.0 / (n * (sc // c)) for sc, c in zip(stage_sc, stage_c))

    def kernel(x_ref, c1_ref, c2_ref, p1_ref, p2_ref,
               rw1_ref, rb1_ref, rw2_ref, rb2_ref, rw3_ref, rb3_ref,
               f1_ref, e1_ref, f2_ref, e2_ref, f3_ref, e3_ref, o_ref):

        def batchnorm(y, gamma, beta, fold, expand, inv):
            # training-mode BN, one-pass sum / sum-of-squares in f32
            s = jnp.dot(jnp.sum(y, axis=0, keepdims=True), fold,
                        preferred_element_type=jnp.float32) * inv     # mean  (1,C)
            q = jnp.dot(jnp.sum(y * y, axis=0, keepdims=True), fold,
                        preferred_element_type=jnp.float32) * inv     # E[y^2](1,C)
            rstd = jax.lax.rsqrt(q - s * s + eps)
            scale_c = gamma * rstd                                    # (1, C)
            shift_c = beta - s * scale_c                              # (1, C)
            scale = jnp.dot(scale_c, expand, preferred_element_type=jnp.float32)
            shift = jnp.dot(shift_c, expand, preferred_element_type=jnp.float32)
            return y * scale + shift

        def resblock(x2, w1, w2, bnp, fold, expand, inv):
            out = jnp.dot(x2, w1, preferred_element_type=jnp.float32)
            out = jnp.maximum(
                batchnorm(out, bnp[0:1, :], bnp[1:2, :], fold, expand, inv), 0.0)
            out = jnp.dot(out, w2, preferred_element_type=jnp.float32)
            out = batchnorm(out, bnp[2:3, :], bnp[3:4, :], fold, expand, inv) + x2
            return jnp.maximum(out, 0.0)

        act = x_ref[...].astype(jnp.float32)          # (N, C_in*H*W), NCHW-flat

        stage_down = (c1_ref, c2_ref, p1_ref)         # stride-2 conv / conv / pool
        stage_rw = (rw1_ref, rw2_ref, rw3_ref)
        stage_rb = (rb1_ref, rb2_ref, rb3_ref)
        stage_fold = (f1_ref, f2_ref, f3_ref)
        stage_exp = (e1_ref, e2_ref, e3_ref)

        for st in range(3):
            act = jnp.dot(act, stage_down[st][...],
                          preferred_element_type=jnp.float32)
            fold = stage_fold[st][...]
            expand = stage_exp[st][...]
            for i in range(n_res[st]):
                act = resblock(act, stage_rw[st][2 * i], stage_rw[st][2 * i + 1],
                               stage_rb[st][i], fold, expand, inv_cnt[st])

        # final AvgPool, emitted NCHW-flat
        act = jnp.dot(act, p2_ref[...], preferred_element_type=jnp.float32)
        o_ref[...] = act.astype(o_ref.dtype)

    return kernel


def _half(v):  # 3x3 / stride-2 / pad-1 output size
    return (v + 2 - 3) // 2 + 1


@jax.jit
def downsample_forward(x_nchw, prep):
    (c1, c2, p1, p2, rw1, rb1, rw2, rb2, rw3, rb3,
     f1, e1, f2, e2, f3, e3) = prep
    n, c_in, h, w = x_nchw.shape
    c_out = rb3.shape[-1]
    ho = _half(_half(_half(_half(h))))
    wo = _half(_half(_half(_half(w))))

    n_res = (rb1.shape[0], rb2.shape[0], rb3.shape[0])
    stage_sc = (rw1.shape[-1], rw2.shape[-1], rw3.shape[-1])
    stage_c = (rb1.shape[-1], rb2.shape[-1], rb3.shape[-1])

    x2d = x_nchw.reshape(n, c_in * h * w).astype(jnp.float32)
    operands = (x2d, c1, c2, p1, p2, rw1, rb1, rw2, rb2, rw3, rb3,
                f1, e1, f2, e2, f3, e3)

    # size the VMEM limit from the actual operand/output bytes (with headroom)
    out_bytes = n * int(p2.shape[-1]) * 4
    total = sum(int(a.size) * a.dtype.itemsize for a in operands) + out_bytes
    vmem_limit = int(min(100 * 2 ** 20, max(16 * 2 ** 20, 4 * total)))

    out2d = pl.pallas_call(
        _make_downsample_kernel(n, n_res, stage_sc, stage_c, eps=1e-5),
        out_shape=jax.ShapeDtypeStruct((n, int(p2.shape[-1])), x_nchw.dtype),
        in_specs=[pl.BlockSpec(memory_space=pltpu.MemorySpace.VMEM)] * len(operands),
        out_specs=pl.BlockSpec(memory_space=pltpu.MemorySpace.VMEM),
        compiler_params=pltpu.CompilerParams(vmem_limit_bytes=vmem_limit),
    )(*operands)
    return out2d.reshape(n, c_out, ho, wo)           # already NCHW ordered


# ---------------------------------------------------------------------------
# pure-JAX reference mirroring the PyTorch forward (training-mode BN)
# ---------------------------------------------------------------------------

def _ref_conv(x, w, stride):
    return jax.lax.conv_general_dilated(
        x, w, window_strides=(stride, stride), padding=((1, 1), (1, 1)),
        dimension_numbers=("NCHW", "OIHW", "NCHW"),
        precision=jax.lax.Precision.HIGHEST)


def _ref_bn(y, g, b, eps=1e-5):
    mean = y.mean(axis=(0, 2, 3), keepdims=True)
    var = ((y - mean) ** 2).mean(axis=(0, 2, 3), keepdims=True)
    return ((y - mean) * jax.lax.rsqrt(var + eps) * g.reshape(1, -1, 1, 1)
            + b.reshape(1, -1, 1, 1))


def _ref_resblock(x, p):
    out = jax.nn.relu(_ref_bn(_ref_conv(x, p["w1"], 1), p["g1"], p["b1"]))
    out = _ref_bn(_ref_conv(out, p["w2"], 1), p["g2"], p["b2"]) + x
    return jax.nn.relu(out)


def _ref_pool(x):
    s = jax.lax.reduce_window(x, 0.0, jax.lax.add, (1, 1, 3, 3),
                              (1, 1, 2, 2), ((0, 0), (0, 0), (1, 1), (1, 1)))
    return s / 9.0


def _ref_downsample(x, params):
    out = _ref_conv(x, params["conv1_w"], 2)
    for p in params["res1"]:
        out = _ref_resblock(out, p)
    out = _ref_conv(out, params["conv2_w"], 2)
    for p in params["res2"]:
        out = _ref_resblock(out, p)
    out = _ref_pool(out)
    for p in params["res3"]:
        out = _ref_resblock(out, p)
    return _ref_pool(out)


# ---------------------------------------------------------------------------
# main
# ---------------------------------------------------------------------------

def _res_params(key, c):
    ks = jax.random.split(key, 6)
    bound = 1.0 / math.sqrt(c * 9)
    return dict(
        w1=jax.random.uniform(ks[0], (c, c, 3, 3), jnp.float32, -bound, bound),
        w2=jax.random.uniform(ks[1], (c, c, 3, 3), jnp.float32, -bound, bound),
        g1=1.0 + 0.1 * jax.random.normal(ks[2], (c,), jnp.float32),
        b1=0.1 * jax.random.normal(ks[3], (c,), jnp.float32),
        g2=1.0 + 0.1 * jax.random.normal(ks[4], (c,), jnp.float32),
        b2=0.1 * jax.random.normal(ks[5], (c,), jnp.float32),
    )


if __name__ == "__main__":
    N, C_IN, H, W = 2, 4, 16, 16
    C_OUT = 8
    C_MID = C_OUT // 2

    key = jax.random.PRNGKey(0)
    kx, kc1, kc2, *kres = jax.random.split(key, 11)

    x = jax.random.normal(kx, (N, C_IN, H, W), dtype=jnp.float32)
    params = dict(
        conv1_w=jax.random.uniform(kc1, (C_MID, C_IN, 3, 3), jnp.float32,
                                   -1.0 / math.sqrt(C_IN * 9),
                                   1.0 / math.sqrt(C_IN * 9)),
        conv2_w=jax.random.uniform(kc2, (C_OUT, C_MID, 3, 3), jnp.float32,
                                   -1.0 / math.sqrt(C_MID * 9),
                                   1.0 / math.sqrt(C_MID * 9)),
        res1=[_res_params(kres[i], C_MID) for i in range(2)],
        res2=[_res_params(kres[2 + i], C_OUT) for i in range(3)],
        res3=[_res_params(kres[5 + i], C_OUT) for i in range(3)],
    )

    prep = prepare_downsample_params(params, (H, W))   # one-time weight prep
    out = jax.block_until_ready(downsample_forward(x, prep))
    ref = _ref_downsample(x, params)

    assert out.shape == (N, C_OUT, 1, 1), out.shape
    err = float(jnp.max(jnp.abs(out - ref)))
    assert jnp.allclose(out, ref, atol=2e-3, rtol=2e-3), f"max abs err {err}"

    print("KERNEL_OK")
</pallas_src>

<mosaic_0001>
module attributes {stable_mosaic.version = 11 : i64} {
  func.func @kernel(%arg0: memref<2x1024xf32, #tpu.memory_space<vmem>>, %arg1: memref<1024x256xf32, #tpu.memory_space<vmem>>, %arg2: memref<256x128xf32, #tpu.memory_space<vmem>>, %arg3: memref<128x32xf32, #tpu.memory_space<vmem>>, %arg4: memref<32x8xf32, #tpu.memory_space<vmem>>, %arg5: memref<4x256x256xf32, #tpu.memory_space<vmem>>, %arg6: memref<2x4x4xf32, #tpu.memory_space<vmem>>, %arg7: memref<6x128x128xf32, #tpu.memory_space<vmem>>, %arg8: memref<3x4x8xf32, #tpu.memory_space<vmem>>, %arg9: memref<6x32x32xf32, #tpu.memory_space<vmem>>, %arg10: memref<3x4x8xf32, #tpu.memory_space<vmem>>, %arg11: memref<256x4xf32, #tpu.memory_space<vmem>>, %arg12: memref<4x256xf32, #tpu.memory_space<vmem>>, %arg13: memref<128x8xf32, #tpu.memory_space<vmem>>, %arg14: memref<8x128xf32, #tpu.memory_space<vmem>>, %arg15: memref<32x8xf32, #tpu.memory_space<vmem>>, %arg16: memref<8x32xf32, #tpu.memory_space<vmem>>, %arg17: memref<2x8xf32, #tpu.memory_space<vmem>>) attributes {dimension_semantics = [], scalar_prefetch = 0 : i64, scratch_operands = 0 : i64, tpu.core_type = #tpu.core_type<tc>} {
    %c0 = arith.constant 0 : index
    %c0_0 = arith.constant 0 : index
    %0 = vector.load %arg0[%c0, %c0_0] : memref<2x1024xf32, #tpu.memory_space<vmem>>, vector<2x1024xf32>
    %c0_1 = arith.constant 0 : index
    %c0_2 = arith.constant 0 : index
    %1 = vector.load %arg1[%c0_1, %c0_2] : memref<1024x256xf32, #tpu.memory_space<vmem>>, vector<1024x256xf32>
    %cst = arith.constant dense<0.000000e+00> : vector<2x256xf32>
    %2 = tpu.matmul %0, %1, %cst {dimension_numbers = #tpu.dot_dimension_numbers<[1], [0], [0], [1], [0, 0, 1, 1], [], []>} : vector<2x1024xf32>, vector<1024x256xf32>, vector<2x256xf32> -> vector<2x256xf32>
    %c0_3 = arith.constant 0 : index
    %c0_4 = arith.constant 0 : index
    %3 = vector.load %arg11[%c0_3, %c0_4] : memref<256x4xf32, #tpu.memory_space<vmem>>, vector<256x4xf32>
    %c0_5 = arith.constant 0 : index
    %c0_6 = arith.constant 0 : index
    %4 = vector.load %arg12[%c0_5, %c0_6] : memref<4x256xf32, #tpu.memory_space<vmem>>, vector<4x256xf32>
    %c0_7 = arith.constant 0 : index
    %c0_8 = arith.constant 0 : index
    %c0_9 = arith.constant 0 : index
    %5 = vector.load %arg5[%c0_7, %c0_8, %c0_9] : memref<4x256x256xf32, #tpu.memory_space<vmem>>, vector<1x256x256xf32>
    %6 = vector.shape_cast %5 : vector<1x256x256xf32> to vector<256x256xf32>
    %c1 = arith.constant 1 : index
    %c0_10 = arith.constant 0 : index
    %c0_11 = arith.constant 0 : index
    %7 = vector.load %arg5[%c1, %c0_10, %c0_11] : memref<4x256x256xf32, #tpu.memory_space<vmem>>, vector<1x256x256xf32>
    %8 = vector.shape_cast %7 : vector<1x256x256xf32> to vector<256x256xf32>
    %c0_12 = arith.constant 0 : index
    %c0_13 = arith.constant 0 : index
    %c0_14 = arith.constant 0 : index
    %9 = vector.load %arg6[%c0_12, %c0_13, %c0_14] : memref<2x4x4xf32, #tpu.memory_space<vmem>>, vector<1x4x4xf32>
    %10 = vector.shape_cast %9 : vector<1x4x4xf32> to vector<4x4xf32>
    %cst_15 = arith.constant dense<0.000000e+00> : vector<2x256xf32>
    %11 = tpu.matmul %2, %6, %cst_15 {dimension_numbers = #tpu.dot_dimension_numbers<[1], [0], [0], [1], [0, 0, 1, 1], [], []>} : vector<2x256xf32>, vector<256x256xf32>, vector<2x256xf32> -> vector<2x256xf32>
    %12 = vector.extract_strided_slice %10 {offsets = [0, 0], sizes = [1, 4], strides = [1, 1]} : vector<4x4xf32> to vector<1x4xf32>
    %13 = vector.extract_strided_slice %10 {offsets = [1, 0], sizes = [1, 4], strides = [1, 1]} : vector<4x4xf32> to vector<1x4xf32>
    %cst_16 = arith.constant dense<0.000000e+00> : vector<256xf32>
    %14 = vector.multi_reduction <add>, %11, %cst_16 [0] : vector<2x256xf32> to vector<256xf32>
    %15 = vector.shape_cast %14 : vector<256xf32> to vector<1x256xf32>
    %cst_17 = arith.constant dense<0.000000e+00> : vector<1x4xf32>
    %16 = tpu.matmul %15, %3, %cst_17 {dimension_numbers = #tpu.dot_dimension_numbers<[1], [0], [0], [1], [0, 0, 1, 1], [], []>} : vector<1x256xf32>, vector<256x4xf32>, vector<1x4xf32> -> vector<1x4xf32>
    %cst_18 = arith.constant 7.812500e-03 : f32
    %17 = vector.broadcast %cst_18 : f32 to vector<1x4xf32>
    %18 = arith.mulf %16, %17 : vector<1x4xf32>
    %19 = arith.mulf %11, %11 : vector<2x256xf32>
    %cst_19 = arith.constant dense<0.000000e+00> : vector<256xf32>
    %20 = vector.multi_reduction <add>, %19, %cst_19 [0] : vector<2x256xf32> to vector<256xf32>
    %21 = vector.shape_cast %20 : vector<256xf32> to vector<1x256xf32>
    %cst_20 = arith.constant dense<0.000000e+00> : vector<1x4xf32>
    %22 = tpu.matmul %21, %3, %cst_20 {dimension_numbers = #tpu.dot_dimension_numbers<[1], [0], [0], [1], [0, 0, 1, 1], [], []>} : vector<1x256xf32>, vector<256x4xf32>, vector<1x4xf32> -> vector<1x4xf32>
    %cst_21 = arith.constant 7.812500e-03 : f32
    %23 = vector.broadcast %cst_21 : f32 to vector<1x4xf32>
    %24 = arith.mulf %22, %23 : vector<1x4xf32>
    %25 = arith.mulf %18, %18 : vector<1x4xf32>
    %26 = arith.subf %24, %25 : vector<1x4xf32>
    %cst_22 = arith.constant 9.99999974E-6 : f32
    %27 = vector.broadcast %cst_22 : f32 to vector<1x4xf32>
    %28 = arith.addf %26, %27 : vector<1x4xf32>
    %29 = math.rsqrt %28 : vector<1x4xf32>
    %30 = arith.mulf %12, %29 : vector<1x4xf32>
    %31 = arith.mulf %18, %30 : vector<1x4xf32>
    %32 = arith.subf %13, %31 : vector<1x4xf32>
    %cst_23 = arith.constant dense<0.000000e+00> : vector<1x256xf32>
    %33 = tpu.matmul %30, %4, %cst_23 {dimension_numbers = #tpu.dot_dimension_numbers<[1], [0], [0], [1], [0, 0, 1, 1], [], []>} : vector<1x4xf32>, vector<4x256xf32>, vector<1x256xf32> -> vector<1x256xf32>
    %cst_24 = arith.constant dense<0.000000e+00> : vector<1x256xf32>
    %34 = tpu.matmul %32, %4, %cst_24 {dimension_numbers = #tpu.dot_dimension_numbers<[1], [0], [0], [1], [0, 0, 1, 1], [], []>} : vector<1x4xf32>, vector<4x256xf32>, vector<1x256xf32> -> vector<1x256xf32>
    %35 = vector.broadcast %33 : vector<1x256xf32> to vector<2x256xf32>
    %36 = arith.mulf %11, %35 : vector<2x256xf32>
    %37 = vector.broadcast %34 : vector<1x256xf32> to vector<2x256xf32>
    %38 = arith.addf %36, %37 : vector<2x256xf32>
    %cst_25 = arith.constant 0.000000e+00 : f32
    %39 = vector.broadcast %cst_25 : f32 to vector<2x256xf32>
    %40 = arith.maximumf %38, %39 : vector<2x256xf32>
    %cst_26 = arith.constant dense<0.000000e+00> : vector<2x256xf32>
    %41 = tpu.matmul %40, %8, %cst_26 {dimension_numbers = #tpu.dot_dimension_numbers<[1], [0], [0], [1], [0, 0, 1, 1], [], []>} : vector<2x256xf32>, vector<256x256xf32>, vector<2x256xf32> -> vector<2x256xf32>
    %42 = vector.extract_strided_slice %10 {offsets = [2, 0], sizes = [1, 4], strides = [1, 1]} : vector<4x4xf32> to vector<1x4xf32>
    %43 = vector.extract_strided_slice %10 {offsets = [3, 0], sizes = [1, 4], strides = [1, 1]} : vector<4x4xf32> to vector<1x4xf32>
    %cst_27 = arith.constant dense<0.000000e+00> : vector<256xf32>
    %44 = vector.multi_reduction <add>, %41, %cst_27 [0] : vector<2x256xf32> to vector<256xf32>
    %45 = vector.shape_cast %44 : vector<256xf32> to vector<1x256xf32>
    %cst_28 = arith.constant dense<0.000000e+00> : vector<1x4xf32>
    %46 = tpu.matmul %45, %3, %cst_28 {dimension_numbers = #tpu.dot_dimension_numbers<[1], [0], [0], [1], [0, 0, 1, 1], [], []>} : vector<1x256xf32>, vector<256x4xf32>, vector<1x4xf32> -> vector<1x4xf32>
    %cst_29 = arith.constant 7.812500e-03 : f32
    %47 = vector.broadcast %cst_29 : f32 to vector<1x4xf32>
    %48 = arith.mulf %46, %47 : vector<1x4xf32>
    %49 = arith.mulf %41, %41 : vector<2x256xf32>
    %cst_30 = arith.constant dense<0.000000e+00> : vector<256xf32>
    %50 = vector.multi_reduction <add>, %49, %cst_30 [0] : vector<2x256xf32> to vector<256xf32>
    %51 = vector.shape_cast %50 : vector<256xf32> to vector<1x256xf32>
    %cst_31 = arith.constant dense<0.000000e+00> : vector<1x4xf32>
    %52 = tpu.matmul %51, %3, %cst_31 {dimension_numbers = #tpu.dot_dimension_numbers<[1], [0], [0], [1], [0, 0, 1, 1], [], []>} : vector<1x256xf32>, vector<256x4xf32>, vector<1x4xf32> -> vector<1x4xf32>
    %cst_32 = arith.constant 7.812500e-03 : f32
    %53 = vector.broadcast %cst_32 : f32 to vector<1x4xf32>
    %54 = arith.mulf %52, %53 : vector<1x4xf32>
    %55 = arith.mulf %48, %48 : vector<1x4xf32>
    %56 = arith.subf %54, %55 : vector<1x4xf32>
    %cst_33 = arith.constant 9.99999974E-6 : f32
    %57 = vector.broadcast %cst_33 : f32 to vector<1x4xf32>
    %58 = arith.addf %56, %57 : vector<1x4xf32>
    %59 = math.rsqrt %58 : vector<1x4xf32>
    %60 = arith.mulf %42, %59 : vector<1x4xf32>
    %61 = arith.mulf %48, %60 : vector<1x4xf32>
    %62 = arith.subf %43, %61 : vector<1x4xf32>
    %cst_34 = arith.constant dense<0.000000e+00> : vector<1x256xf32>
    %63 = tpu.matmul %60, %4, %cst_34 {dimension_numbers = #tpu.dot_dimension_numbers<[1], [0], [0], [1], [0, 0, 1, 1], [], []>} : vector<1x4xf32>, vector<4x256xf32>, vector<1x256xf32> -> vector<1x256xf32>
    %cst_35 = arith.constant dense<0.000000e+00> : vector<1x256xf32>
    %64 = tpu.matmul %62, %4, %cst_35 {dimension_numbers = #tpu.dot_dimension_numbers<[1], [0], [0], [1], [0, 0, 1, 1], [], []>} : vector<1x4xf32>, vector<4x256xf32>, vector<1x256xf32> -> vector<1x256xf32>
    %65 = vector.broadcast %63 : vector<1x256xf32> to vector<2x256xf32>
    %66 = arith.mulf %41, %65 : vector<2x256xf32>
    %67 = vector.broadcast %64 : vector<1x256xf32> to vector<2x256xf32>
    %68 = arith.addf %66, %67 : vector<2x256xf32>
    %69 = arith.addf %68, %2 : vector<2x256xf32>
    %cst_36 = arith.constant 0.000000e+00 : f32
    %70 = vector.broadcast %cst_36 : f32 to vector<2x256xf32>
    %71 = arith.maximumf %69, %70 : vector<2x256xf32>
    %c2 = arith.constant 2 : index
    %c0_37 = arith.constant 0 : index
    %c0_38 = arith.constant 0 : index
    %72 = vector.load %arg5[%c2, %c0_37, %c0_38] : memref<4x256x256xf32, #tpu.memory_space<vmem>>, vector<1x256x256xf32>
    %73 = vector.shape_cast %72 : vector<1x256x256xf32> to vector<256x256xf32>
    %c3 = arith.constant 3 : index
    %c0_39 = arith.constant 0 : index
    %c0_40 = arith.constant 0 : index
    %74 = vector.load %arg5[%c3, %c0_39, %c0_40] : memref<4x256x256xf32, #tpu.memory_space<vmem>>, vector<1x256x256xf32>
    %75 = vector.shape_cast %74 : vector<1x256x256xf32> to vector<256x256xf32>
    %c1_41 = arith.constant 1 : index
    %c0_42 = arith.constant 0 : index
    %c0_43 = arith.constant 0 : index
    %76 = vector.load %arg6[%c1_41, %c0_42, %c0_43] : memref<2x4x4xf32, #tpu.memory_space<vmem>>, vector<1x4x4xf32>
    %77 = vector.shape_cast %76 : vector<1x4x4xf32> to vector<4x4xf32>
    %cst_44 = arith.constant dense<0.000000e+00> : vector<2x256xf32>
    %78 = tpu.matmul %71, %73, %cst_44 {dimension_numbers = #tpu.dot_dimension_numbers<[1], [0], [0], [1], [0, 0, 1, 1], [], []>} : vector<2x256xf32>, vector<256x256xf32>, vector<2x256xf32> -> vector<2x256xf32>
    %79 = vector.extract_strided_slice %77 {offsets = [0, 0], sizes = [1, 4], strides = [1, 1]} : vector<4x4xf32> to vector<1x4xf32>
    %80 = vector.extract_strided_slice %77 {offsets = [1, 0], sizes = [1, 4], strides = [1, 1]} : vector<4x4xf32> to vector<1x4xf32>
    %cst_45 = arith.constant dense<0.000000e+00> : vector<256xf32>
    %81 = vector.multi_reduction <add>, %78, %cst_45 [0] : vector<2x256xf32> to vector<256xf32>
    %82 = vector.shape_cast %81 : vector<256xf32> to vector<1x256xf32>
    %cst_46 = arith.constant dense<0.000000e+00> : vector<1x4xf32>
    %83 = tpu.matmul %82, %3, %cst_46 {dimension_numbers = #tpu.dot_dimension_numbers<[1], [0], [0], [1], [0, 0, 1, 1], [], []>} : vector<1x256xf32>, vector<256x4xf32>, vector<1x4xf32> -> vector<1x4xf32>
    %cst_47 = arith.constant 7.812500e-03 : f32
    %84 = vector.broadcast %cst_47 : f32 to vector<1x4xf32>
    %85 = arith.mulf %83, %84 : vector<1x4xf32>
    %86 = arith.mulf %78, %78 : vector<2x256xf32>
    %cst_48 = arith.constant dense<0.000000e+00> : vector<256xf32>
    %87 = vector.multi_reduction <add>, %86, %cst_48 [0] : vector<2x256xf32> to vector<256xf32>
    %88 = vector.shape_cast %87 : vector<256xf32> to vector<1x256xf32>
    %cst_49 = arith.constant dense<0.000000e+00> : vector<1x4xf32>
    %89 = tpu.matmul %88, %3, %cst_49 {dimension_numbers = #tpu.dot_dimension_numbers<[1], [0], [0], [1], [0, 0, 1, 1], [], []>} : vector<1x256xf32>, vector<256x4xf32>, vector<1x4xf32> -> vector<1x4xf32>
    %cst_50 = arith.constant 7.812500e-03 : f32
    %90 = vector.broadcast %cst_50 : f32 to vector<1x4xf32>
    %91 = arith.mulf %89, %90 : vector<1x4xf32>
    %92 = arith.mulf %85, %85 : vector<1x4xf32>
    %93 = arith.subf %91, %92 : vector<1x4xf32>
    %cst_51 = arith.constant 9.99999974E-6 : f32
    %94 = vector.broadcast %cst_51 : f32 to vector<1x4xf32>
    %95 = arith.addf %93, %94 : vector<1x4xf32>
    %96 = math.rsqrt %95 : vector<1x4xf32>
    %97 = arith.mulf %79, %96 : vector<1x4xf32>
    %98 = arith.mulf %85, %97 : vector<1x4xf32>
    %99 = arith.subf %80, %98 : vector<1x4xf32>
    %cst_52 = arith.constant dense<0.000000e+00> : vector<1x256xf32>
    %100 = tpu.matmul %97, %4, %cst_52 {dimension_numbers = #tpu.dot_dimension_numbers<[1], [0], [0], [1], [0, 0, 1, 1], [], []>} : vector<1x4xf32>, vector<4x256xf32>, vector<1x256xf32> -> vector<1x256xf32>
    %cst_53 = arith.constant dense<0.000000e+00> : vector<1x256xf32>
    %101 = tpu.matmul %99, %4, %cst_53 {dimension_numbers = #tpu.dot_dimension_numbers<[1], [0], [0], [1], [0, 0, 1, 1], [], []>} : vector<1x4xf32>, vector<4x256xf32>, vector<1x256xf32> -> vector<1x256xf32>
    %102 = vector.broadcast %100 : vector<1x256xf32> to vector<2x256xf32>
    %103 = arith.mulf %78, %102 : vector<2x256xf32>
    %104 = vector.broadcast %101 : vector<1x256xf32> to vector<2x256xf32>
    %105 = arith.addf %103, %104 : vector<2x256xf32>
    %cst_54 = arith.constant 0.000000e+00 : f32
    %106 = vector.broadcast %cst_54 : f32 to vector<2x256xf32>
    %107 = arith.maximumf %105, %106 : vector<2x256xf32>
    %cst_55 = arith.constant dense<0.000000e+00> : vector<2x256xf32>
    %108 = tpu.matmul %107, %75, %cst_55 {dimension_numbers = #tpu.dot_dimension_numbers<[1], [0], [0], [1], [0, 0, 1, 1], [], []>} : vector<2x256xf32>, vector<256x256xf32>, vector<2x256xf32> -> vector<2x256xf32>
    %109 = vector.extract_strided_slice %77 {offsets = [2, 0], sizes = [1, 4], strides = [1, 1]} : vector<4x4xf32> to vector<1x4xf32>
    %110 = vector.extract_strided_slice %77 {offsets = [3, 0], sizes = [1, 4], strides = [1, 1]} : vector<4x4xf32> to vector<1x4xf32>
    %cst_56 = arith.constant dense<0.000000e+00> : vector<256xf32>
    %111 = vector.multi_reduction <add>, %108, %cst_56 [0] : vector<2x256xf32> to vector<256xf32>
    %112 = vector.shape_cast %111 : vector<256xf32> to vector<1x256xf32>
    %cst_57 = arith.constant dense<0.000000e+00> : vector<1x4xf32>
    %113 = tpu.matmul %112, %3, %cst_57 {dimension_numbers = #tpu.dot_dimension_numbers<[1], [0], [0], [1], [0, 0, 1, 1], [], []>} : vector<1x256xf32>, vector<256x4xf32>, vector<1x4xf32> -> vector<1x4xf32>
    %cst_58 = arith.constant 7.812500e-03 : f32
    %114 = vector.broadcast %cst_58 : f32 to vector<1x4xf32>
    %115 = arith.mulf %113, %114 : vector<1x4xf32>
    %116 = arith.mulf %108, %108 : vector<2x256xf32>
    %cst_59 = arith.constant dense<0.000000e+00> : vector<256xf32>
    %117 = vector.multi_reduction <add>, %116, %cst_59 [0] : vector<2x256xf32> to vector<256xf32>
    %118 = vector.shape_cast %117 : vector<256xf32> to vector<1x256xf32>
    %cst_60 = arith.constant dense<0.000000e+00> : vector<1x4xf32>
    %119 = tpu.matmul %118, %3, %cst_60 {dimension_numbers = #tpu.dot_dimension_numbers<[1], [0], [0], [1], [0, 0, 1, 1], [], []>} : vector<1x256xf32>, vector<256x4xf32>, vector<1x4xf32> -> vector<1x4xf32>
    %cst_61 = arith.constant 7.812500e-03 : f32
    %120 = vector.broadcast %cst_61 : f32 to vector<1x4xf32>
    %121 = arith.mulf %119, %120 : vector<1x4xf32>
    %122 = arith.mulf %115, %115 : vector<1x4xf32>
    %123 = arith.subf %121, %122 : vector<1x4xf32>
    %cst_62 = arith.constant 9.99999974E-6 : f32
    %124 = vector.broadcast %cst_62 : f32 to vector<1x4xf32>
    %125 = arith.addf %123, %124 : vector<1x4xf32>
    %126 = math.rsqrt %125 : vector<1x4xf32>
    %127 = arith.mulf %109, %126 : vector<1x4xf32>
    %128 = arith.mulf %115, %127 : vector<1x4xf32>
    %129 = arith.subf %110, %128 : vector<1x4xf32>
    %cst_63 = arith.constant dense<0.000000e+00> : vector<1x256xf32>
    %130 = tpu.matmul %127, %4, %cst_63 {dimension_numbers = #tpu.dot_dimension_numbers<[1], [0], [0], [1], [0, 0, 1, 1], [], []>} : vector<1x4xf32>, vector<4x256xf32>, vector<1x256xf32> -> vector<1x256xf32>
    %cst_64 = arith.constant dense<0.000000e+00> : vector<1x256xf32>
    %131 = tpu.matmul %129, %4, %cst_64 {dimension_numbers = #tpu.dot_dimension_numbers<[1], [0], [0], [1], [0, 0, 1, 1], [], []>} : vector<1x4xf32>, vector<4x256xf32>, vector<1x256xf32> -> vector<1x256xf32>
    %132 = vector.broadcast %130 : vector<1x256xf32> to vector<2x256xf32>
    %133 = arith.mulf %108, %132 : vector<2x256xf32>
    %134 = vector.broadcast %131 : vector<1x256xf32> to vector<2x256xf32>
    %135 = arith.addf %133, %134 : vector<2x256xf32>
    %136 = arith.addf %135, %71 : vector<2x256xf32>
    %cst_65 = arith.constant 0.000000e+00 : f32
    %137 = vector.broadcast %cst_65 : f32 to vector<2x256xf32>
    %138 = arith.maximumf %136, %137 : vector<2x256xf32>
    %c0_66 = arith.constant 0 : index
    %c0_67 = arith.constant 0 : index
    %139 = vector.load %arg2[%c0_66, %c0_67] : memref<256x128xf32, #tpu.memory_space<vmem>>, vector<256x128xf32>
    %cst_68 = arith.constant dense<0.000000e+00> : vector<2x128xf32>
    %140 = tpu.matmul %138, %139, %cst_68 {dimension_numbers = #tpu.dot_dimension_numbers<[1], [0], [0], [1], [0, 0, 1, 1], [], []>} : vector<2x256xf32>, vector<256x128xf32>, vector<2x128xf32> -> vector<2x128xf32>
    %c0_69 = arith.constant 0 : index
    %c0_70 = arith.constant 0 : index
    %141 = vector.load %arg13[%c0_69, %c0_70] : memref<128x8xf32, #tpu.memory_space<vmem>>, vector<128x8xf32>
    %c0_71 = arith.constant 0 : index
    %c0_72 = arith.constant 0 : index
    %142 = vector.load %arg14[%c0_71, %c0_72] : memref<8x128xf32, #tpu.memory_space<vmem>>, vector<8x128xf32>
    %c0_73 = arith.constant 0 : index
    %c0_74 = arith.constant 0 : index
    %c0_75 = arith.constant 0 : index
    %143 = vector.load %arg7[%c0_73, %c0_74, %c0_75] : memref<6x128x128xf32, #tpu.memory_space<vmem>>, vector<1x128x128xf32>
    %144 = vector.shape_cast %143 : vector<1x128x128xf32> to vector<128x128xf32>
    %c1_76 = arith.constant 1 : index
    %c0_77 = arith.constant 0 : index
    %c0_78 = arith.constant 0 : index
    %145 = vector.load %arg7[%c1_76, %c0_77, %c0_78] : memref<6x128x128xf32, #tpu.memory_space<vmem>>, vector<1x128x128xf32>
    %146 = vector.shape_cast %145 : vector<1x128x128xf32> to vector<128x128xf32>
    %c0_79 = arith.constant 0 : index
    %c0_80 = arith.constant 0 : index
    %c0_81 = arith.constant 0 : index
    %147 = vector.load %arg8[%c0_79, %c0_80, %c0_81] : memref<3x4x8xf32, #tpu.memory_space<vmem>>, vector<1x4x8xf32>
    %148 = vector.shape_cast %147 : vector<1x4x8xf32> to vector<4x8xf32>
    %cst_82 = arith.constant dense<0.000000e+00> : vector<2x128xf32>
    %149 = tpu.matmul %140, %144, %cst_82 {dimension_numbers = #tpu.dot_dimension_numbers<[1], [0], [0], [1], [0, 0, 1, 1], [], []>} : vector<2x128xf32>, vector<128x128xf32>, vector<2x128xf32> -> vector<2x128xf32>
    %150 = vector.extract_strided_slice %148 {offsets = [0, 0], sizes = [1, 8], strides = [1, 1]} : vector<4x8xf32> to vector<1x8xf32>
    %151 = vector.extract_strided_slice %148 {offsets = [1, 0], sizes = [1, 8], strides = [1, 1]} : vector<4x8xf32> to vector<1x8xf32>
    %cst_83 = arith.constant dense<0.000000e+00> : vector<128xf32>
    %152 = vector.multi_reduction <add>, %149, %cst_83 [0] : vector<2x128xf32> to vector<128xf32>
    %153 = vector.shape_cast %152 : vector<128xf32> to vector<1x128xf32>
    %cst_84 = arith.constant dense<0.000000e+00> : vector<1x8xf32>
    %154 = tpu.matmul %153, %141, %cst_84 {dimension_numbers = #tpu.dot_dimension_numbers<[1], [0], [0], [1], [0, 0, 1, 1], [], []>} : vector<1x128xf32>, vector<128x8xf32>, vector<1x8xf32> -> vector<1x8xf32>
    %cst_85 = arith.constant 3.125000e-02 : f32
    %155 = vector.broadcast %cst_85 : f32 to vector<1x8xf32>
    %156 = arith.mulf %154, %155 : vector<1x8xf32>
    %157 = arith.mulf %149, %149 : vector<2x128xf32>
    %cst_86 = arith.constant dense<0.000000e+00> : vector<128xf32>
    %158 = vector.multi_reduction <add>, %157, %cst_86 [0] : vector<2x128xf32> to vector<128xf32>
    %159 = vector.shape_cast %158 : vector<128xf32> to vector<1x128xf32>
    %cst_87 = arith.constant dense<0.000000e+00> : vector<1x8xf32>
    %160 = tpu.matmul %159, %141, %cst_87 {dimension_numbers = #tpu.dot_dimension_numbers<[1], [0], [0], [1], [0, 0, 1, 1], [], []>} : vector<1x128xf32>, vector<128x8xf32>, vector<1x8xf32> -> vector<1x8xf32>
    %cst_88 = arith.constant 3.125000e-02 : f32
    %161 = vector.broadcast %cst_88 : f32 to vector<1x8xf32>
    %162 = arith.mulf %160, %161 : vector<1x8xf32>
    %163 = arith.mulf %156, %156 : vector<1x8xf32>
    %164 = arith.subf %162, %163 : vector<1x8xf32>
    %cst_89 = arith.constant 9.99999974E-6 : f32
    %165 = vector.broadcast %cst_89 : f32 to vector<1x8xf32>
    %166 = arith.addf %164, %165 : vector<1x8xf32>
    %167 = math.rsqrt %166 : vector<1x8xf32>
    %168 = arith.mulf %150, %167 : vector<1x8xf32>
    %169 = arith.mulf %156, %168 : vector<1x8xf32>
    %170 = arith.subf %151, %169 : vector<1x8xf32>
    %cst_90 = arith.constant dense<0.000000e+00> : vector<1x128xf32>
    %171 = tpu.matmul %168, %142, %cst_90 {dimension_numbers = #tpu.dot_dimension_numbers<[1], [0], [0], [1], [0, 0, 1, 1], [], []>} : vector<1x8xf32>, vector<8x128xf32>, vector<1x128xf32> -> vector<1x128xf32>
    %cst_91 = arith.constant dense<0.000000e+00> : vector<1x128xf32>
    %172 = tpu.matmul %170, %142, %cst_91 {dimension_numbers = #tpu.dot_dimension_numbers<[1], [0], [0], [1], [0, 0, 1, 1], [], []>} : vector<1x8xf32>, vector<8x128xf32>, vector<1x128xf32> -> vector<1x128xf32>
    %173 = vector.broadcast %171 : vector<1x128xf32> to vector<2x128xf32>
    %174 = arith.mulf %149, %173 : vector<2x128xf32>
    %175 = vector.broadcast %172 : vector<1x128xf32> to vector<2x128xf32>
    %176 = arith.addf %174, %175 : vector<2x128xf32>
    %cst_92 = arith.constant 0.000000e+00 : f32
    %177 = vector.broadcast %cst_92 : f32 to vector<2x128xf32>
    %178 = arith.maximumf %176, %177 : vector<2x128xf32>
    %cst_93 = arith.constant dense<0.000000e+00> : vector<2x128xf32>
    %179 = tpu.matmul %178, %146, %cst_93 {dimension_numbers = #tpu.dot_dimension_numbers<[1], [0], [0], [1], [0, 0, 1, 1], [], []>} : vector<2x128xf32>, vector<128x128xf32>, vector<2x128xf32> -> vector<2x128xf32>
    %180 = vector.extract_strided_slice %148 {offsets = [2, 0], sizes = [1, 8], strides = [1, 1]} : vector<4x8xf32> to vector<1x8xf32>
    %181 = vector.extract_strided_slice %148 {offsets = [3, 0], sizes = [1, 8], strides = [1, 1]} : vector<4x8xf32> to vector<1x8xf32>
    %cst_94 = arith.constant dense<0.000000e+00> : vector<128xf32>
    %182 = vector.multi_reduction <add>, %179, %cst_94 [0] : vector<2x128xf32> to vector<128xf32>
    %183 = vector.shape_cast %182 : vector<128xf32> to vector<1x128xf32>
    %cst_95 = arith.constant dense<0.000000e+00> : vector<1x8xf32>
    %184 = tpu.matmul %183, %141, %cst_95 {dimension_numbers = #tpu.dot_dimension_numbers<[1], [0], [0], [1], [0, 0, 1, 1], [], []>} : vector<1x128xf32>, vector<128x8xf32>, vector<1x8xf32> -> vector<1x8xf32>
    %cst_96 = arith.constant 3.125000e-02 : f32
    %185 = vector.broadcast %cst_96 : f32 to vector<1x8xf32>
    %186 = arith.mulf %184, %185 : vector<1x8xf32>
    %187 = arith.mulf %179, %179 : vector<2x128xf32>
    %cst_97 = arith.constant dense<0.000000e+00> : vector<128xf32>
    %188 = vector.multi_reduction <add>, %187, %cst_97 [0] : vector<2x128xf32> to vector<128xf32>
    %189 = vector.shape_cast %188 : vector<128xf32> to vector<1x128xf32>
    %cst_98 = arith.constant dense<0.000000e+00> : vector<1x8xf32>
    %190 = tpu.matmul %189, %141, %cst_98 {dimension_numbers = #tpu.dot_dimension_numbers<[1], [0], [0], [1], [0, 0, 1, 1], [], []>} : vector<1x128xf32>, vector<128x8xf32>, vector<1x8xf32> -> vector<1x8xf32>
    %cst_99 = arith.constant 3.125000e-02 : f32
    %191 = vector.broadcast %cst_99 : f32 to vector<1x8xf32>
    %192 = arith.mulf %190, %191 : vector<1x8xf32>
    %193 = arith.mulf %186, %186 : vector<1x8xf32>
    %194 = arith.subf %192, %193 : vector<1x8xf32>
    %cst_100 = arith.constant 9.99999974E-6 : f32
    %195 = vector.broadcast %cst_100 : f32 to vector<1x8xf32>
    %196 = arith.addf %194, %195 : vector<1x8xf32>
    %197 = math.rsqrt %196 : vector<1x8xf32>
    %198 = arith.mulf %180, %197 : vector<1x8xf32>
    %199 = arith.mulf %186, %198 : vector<1x8xf32>
    %200 = arith.subf %181, %199 : vector<1x8xf32>
    %cst_101 = arith.constant dense<0.000000e+00> : vector<1x128xf32>
    %201 = tpu.matmul %198, %142, %cst_101 {dimension_numbers = #tpu.dot_dimension_numbers<[1], [0], [0], [1], [0, 0, 1, 1], [], []>} : vector<1x8xf32>, vector<8x128xf32>, vector<1x128xf32> -> vector<1x128xf32>
    %cst_102 = arith.constant dense<0.000000e+00> : vector<1x128xf32>
    %202 = tpu.matmul %200, %142, %cst_102 {dimension_numbers = #tpu.dot_dimension_numbers<[1], [0], [0], [1], [0, 0, 1, 1], [], []>} : vector<1x8xf32>, vector<8x128xf32>, vector<1x128xf32> -> vector<1x128xf32>
    %203 = vector.broadcast %201 : vector<1x128xf32> to vector<2x128xf32>
    %204 = arith.mulf %179, %203 : vector<2x128xf32>
    %205 = vector.broadcast %202 : vector<1x128xf32> to vector<2x128xf32>
    %206 = arith.addf %204, %205 : vector<2x128xf32>
    %207 = arith.addf %206, %140 : vector<2x128xf32>
    %cst_103 = arith.constant 0.000000e+00 : f32
    %208 = vector.broadcast %cst_103 : f32 to vector<2x128xf32>
    %209 = arith.maximumf %207, %208 : vector<2x128xf32>
    %c2_104 = arith.constant 2 : index
    %c0_105 = arith.constant 0 : index
    %c0_106 = arith.constant 0 : index
    %210 = vector.load %arg7[%c2_104, %c0_105, %c0_106] : memref<6x128x128xf32, #tpu.memory_space<vmem>>, vector<1x128x128xf32>
    %211 = vector.shape_cast %210 : vector<1x128x128xf32> to vector<128x128xf32>
    %c3_107 = arith.constant 3 : index
    %c0_108 = arith.constant 0 : index
    %c0_109 = arith.constant 0 : index
    %212 = vector.load %arg7[%c3_107, %c0_108, %c0_109] : memref<6x128x128xf32, #tpu.memory_space<vmem>>, vector<1x128x128xf32>
    %213 = vector.shape_cast %212 : vector<1x128x128xf32> to vector<128x128xf32>
    %c1_110 = arith.constant 1 : index
    %c0_111 = arith.constant 0 : index
    %c0_112 = arith.constant 0 : index
    %214 = vector.load %arg8[%c1_110, %c0_111, %c0_112] : memref<3x4x8xf32, #tpu.memory_space<vmem>>, vector<1x4x8xf32>
    %215 = vector.shape_cast %214 : vector<1x4x8xf32> to vector<4x8xf32>
    %cst_113 = arith.constant dense<0.000000e+00> : vector<2x128xf32>
    %216 = tpu.matmul %209, %211, %cst_113 {dimension_numbers = #tpu.dot_dimension_numbers<[1], [0], [0], [1], [0, 0, 1, 1], [], []>} : vector<2x128xf32>, vector<128x128xf32>, vector<2x128xf32> -> vector<2x128xf32>
    %217 = vector.extract_strided_slice %215 {offsets = [0, 0], sizes = [1, 8], strides = [1, 1]} : vector<4x8xf32> to vector<1x8xf32>
    %218 = vector.extract_strided_slice %215 {offsets = [1, 0], sizes = [1, 8], strides = [1, 1]} : vector<4x8xf32> to vector<1x8xf32>
    %cst_114 = arith.constant dense<0.000000e+00> : vector<128xf32>
    %219 = vector.multi_reduction <add>, %216, %cst_114 [0] : vector<2x128xf32> to vector<128xf32>
    %220 = vector.shape_cast %219 : vector<128xf32> to vector<1x128xf32>
    %cst_115 = arith.constant dense<0.000000e+00> : vector<1x8xf32>
    %221 = tpu.matmul %220, %141, %cst_115 {dimension_numbers = #tpu.dot_dimension_numbers<[1], [0], [0], [1], [0, 0, 1, 1], [], []>} : vector<1x128xf32>, vector<128x8xf32>, vector<1x8xf32> -> vector<1x8xf32>
    %cst_116 = arith.constant 3.125000e-02 : f32
    %222 = vector.broadcast %cst_116 : f32 to vector<1x8xf32>
    %223 = arith.mulf %221, %222 : vector<1x8xf32>
    %224 = arith.mulf %216, %216 : vector<2x128xf32>
    %cst_117 = arith.constant dense<0.000000e+00> : vector<128xf32>
    %225 = vector.multi_reduction <add>, %224, %cst_117 [0] : vector<2x128xf32> to vector<128xf32>
    %226 = vector.shape_cast %225 : vector<128xf32> to vector<1x128xf32>
    %cst_118 = arith.constant dense<0.000000e+00> : vector<1x8xf32>
    %227 = tpu.matmul %226, %141, %cst_118 {dimension_numbers = #tpu.dot_dimension_numbers<[1], [0], [0], [1], [0, 0, 1, 1], [], []>} : vector<1x128xf32>, vector<128x8xf32>, vector<1x8xf32> -> vector<1x8xf32>
    %cst_119 = arith.constant 3.125000e-02 : f32
    %228 = vector.broadcast %cst_119 : f32 to vector<1x8xf32>
    %229 = arith.mulf %227, %228 : vector<1x8xf32>
    %230 = arith.mulf %223, %223 : vector<1x8xf32>
    %231 = arith.subf %229, %230 : vector<1x8xf32>
    %cst_120 = arith.constant 9.99999974E-6 : f32
    %232 = vector.broadcast %cst_120 : f32 to vector<1x8xf32>
    %233 = arith.addf %231, %232 : vector<1x8xf32>
    %234 = math.rsqrt %233 : vector<1x8xf32>
    %235 = arith.mulf %217, %234 : vector<1x8xf32>
    %236 = arith.mulf %223, %235 : vector<1x8xf32>
    %237 = arith.subf %218, %236 : vector<1x8xf32>
    %cst_121 = arith.constant dense<0.000000e+00> : vector<1x128xf32>
    %238 = tpu.matmul %235, %142, %cst_121 {dimension_numbers = #tpu.dot_dimension_numbers<[1], [0], [0], [1], [0, 0, 1, 1], [], []>} : vector<1x8xf32>, vector<8x128xf32>, vector<1x128xf32> -> vector<1x128xf32>
    %cst_122 = arith.constant dense<0.000000e+00> : vector<1x128xf32>
    %239 = tpu.matmul %237, %142, %cst_122 {dimension_numbers = #tpu.dot_dimension_numbers<[1], [0], [0], [1], [0, 0, 1, 1], [], []>} : vector<1x8xf32>, vector<8x128xf32>, vector<1x128xf32> -> vector<1x128xf32>
    %240 = vector.broadcast %238 : vector<1x128xf32> to vector<2x128xf32>
    %241 = arith.mulf %216, %240 : vector<2x128xf32>
    %242 = vector.broadcast %239 : vector<1x128xf32> to vector<2x128xf32>
    %243 = arith.addf %241, %242 : vector<2x128xf32>
    %cst_123 = arith.constant 0.000000e+00 : f32
    %244 = vector.broadcast %cst_123 : f32 to vector<2x128xf32>
    %245 = arith.maximumf %243, %244 : vector<2x128xf32>
    %cst_124 = arith.constant dense<0.000000e+00> : vector<2x128xf32>
    %246 = tpu.matmul %245, %213, %cst_124 {dimension_numbers = #tpu.dot_dimension_numbers<[1], [0], [0], [1], [0, 0, 1, 1], [], []>} : vector<2x128xf32>, vector<128x128xf32>, vector<2x128xf32> -> vector<2x128xf32>
    %247 = vector.extract_strided_slice %215 {offsets = [2, 0], sizes = [1, 8], strides = [1, 1]} : vector<4x8xf32> to vector<1x8xf32>
    %248 = vector.extract_strided_slice %215 {offsets = [3, 0], sizes = [1, 8], strides = [1, 1]} : vector<4x8xf32> to vector<1x8xf32>
    %cst_125 = arith.constant dense<0.000000e+00> : vector<128xf32>
    %249 = vector.multi_reduction <add>, %246, %cst_125 [0] : vector<2x128xf32> to vector<128xf32>
    %250 = vector.shape_cast %249 : vector<128xf32> to vector<1x128xf32>
    %cst_126 = arith.constant dense<0.000000e+00> : vector<1x8xf32>
    %251 = tpu.matmul %250, %141, %cst_126 {dimension_numbers = #tpu.dot_dimension_numbers<[1], [0], [0], [1], [0, 0, 1, 1], [], []>} : vector<1x128xf32>, vector<128x8xf32>, vector<1x8xf32> -> vector<1x8xf32>
    %cst_127 = arith.constant 3.125000e-02 : f32
    %252 = vector.broadcast %cst_127 : f32 to vector<1x8xf32>
    %253 = arith.mulf %251, %252 : vector<1x8xf32>
    %254 = arith.mulf %246, %246 : vector<2x128xf32>
    %cst_128 = arith.constant dense<0.000000e+00> : vector<128xf32>
    %255 = vector.multi_reduction <add>, %254, %cst_128 [0] : vector<2x128xf32> to vector<128xf32>
    %256 = vector.shape_cast %255 : vector<128xf32> to vector<1x128xf32>
    %cst_129 = arith.constant dense<0.000000e+00> : vector<1x8xf32>
    %257 = tpu.matmul %256, %141, %cst_129 {dimension_numbers = #tpu.dot_dimension_numbers<[1], [0], [0], [1], [0, 0, 1, 1], [], []>} : vector<1x128xf32>, vector<128x8xf32>, vector<1x8xf32> -> vector<1x8xf32>
    %cst_130 = arith.constant 3.125000e-02 : f32
    %258 = vector.broadcast %cst_130 : f32 to vector<1x8xf32>
    %259 = arith.mulf %257, %258 : vector<1x8xf32>
    %260 = arith.mulf %253, %253 : vector<1x8xf32>
    %261 = arith.subf %259, %260 : vector<1x8xf32>
    %cst_131 = arith.constant 9.99999974E-6 : f32
    %262 = vector.broadcast %cst_131 : f32 to vector<1x8xf32>
    %263 = arith.addf %261, %262 : vector<1x8xf32>
    %264 = math.rsqrt %263 : vector<1x8xf32>
    %265 = arith.mulf %247, %264 : vector<1x8xf32>
    %266 = arith.mulf %253, %265 : vector<1x8xf32>
    %267 = arith.subf %248, %266 : vector<1x8xf32>
    %cst_132 = arith.constant dense<0.000000e+00> : vector<1x128xf32>
    %268 = tpu.matmul %265, %142, %cst_132 {dimension_numbers = #tpu.dot_dimension_numbers<[1], [0], [0], [1], [0, 0, 1, 1], [], []>} : vector<1x8xf32>, vector<8x128xf32>, vector<1x128xf32> -> vector<1x128xf32>
    %cst_133 = arith.constant dense<0.000000e+00> : vector<1x128xf32>
    %269 = tpu.matmul %267, %142, %cst_133 {dimension_numbers = #tpu.dot_dimension_numbers<[1], [0], [0], [1], [0, 0, 1, 1], [], []>} : vector<1x8xf32>, vector<8x128xf32>, vector<1x128xf32> -> vector<1x128xf32>
    %270 = vector.broadcast %268 : vector<1x128xf32> to vector<2x128xf32>
    %271 = arith.mulf %246, %270 : vector<2x128xf32>
    %272 = vector.broadcast %269 : vector<1x128xf32> to vector<2x128xf32>
    %273 = arith.addf %271, %272 : vector<2x128xf32>
    %274 = arith.addf %273, %209 : vector<2x128xf32>
    %cst_134 = arith.constant 0.000000e+00 : f32
    %275 = vector.broadcast %cst_134 : f32 to vector<2x128xf32>
    %276 = arith.maximumf %274, %275 : vector<2x128xf32>
    %c4 = arith.constant 4 : index
    %c0_135 = arith.constant 0 : index
    %c0_136 = arith.constant 0 : index
    %277 = vector.load %arg7[%c4, %c0_135, %c0_136] : memref<6x128x128xf32, #tpu.memory_space<vmem>>, vector<1x128x128xf32>
    %278 = vector.shape_cast %277 : vector<1x128x128xf32> to vector<128x128xf32>
    %c5 = arith.constant 5 : index
    %c0_137 = arith.constant 0 : index
    %c0_138 = arith.constant 0 : index
    %279 = vector.load %arg7[%c5, %c0_137, %c0_138] : memref<6x128x128xf32, #tpu.memory_space<vmem>>, vector<1x128x128xf32>
    %280 = vector.shape_cast %279 : vector<1x128x128xf32> to vector<128x128xf32>
    %c2_139 = arith.constant 2 : index
    %c0_140 = arith.constant 0 : index
    %c0_141 = arith.constant 0 : index
    %281 = vector.load %arg8[%c2_139, %c0_140, %c0_141] : memref<3x4x8xf32, #tpu.memory_space<vmem>>, vector<1x4x8xf32>
    %282 = vector.shape_cast %281 : vector<1x4x8xf32> to vector<4x8xf32>
    %cst_142 = arith.constant dense<0.000000e+00> : vector<2x128xf32>
    %283 = tpu.matmul %276, %278, %cst_142 {dimension_numbers = #tpu.dot_dimension_numbers<[1], [0], [0], [1], [0, 0, 1, 1], [], []>} : vector<2x128xf32>, vector<128x128xf32>, vector<2x128xf32> -> vector<2x128xf32>
    %284 = vector.extract_strided_slice %282 {offsets = [0, 0], sizes = [1, 8], strides = [1, 1]} : vector<4x8xf32> to vector<1x8xf32>
    %285 = vector.extract_strided_slice %282 {offsets = [1, 0], sizes = [1, 8], strides = [1, 1]} : vector<4x8xf32> to vector<1x8xf32>
    %cst_143 = arith.constant dense<0.000000e+00> : vector<128xf32>
    %286 = vector.multi_reduction <add>, %283, %cst_143 [0] : vector<2x128xf32> to vector<128xf32>
    %287 = vector.shape_cast %286 : vector<128xf32> to vector<1x128xf32>
    %cst_144 = arith.constant dense<0.000000e+00> : vector<1x8xf32>
    %288 = tpu.matmul %287, %141, %cst_144 {dimension_numbers = #tpu.dot_dimension_numbers<[1], [0], [0], [1], [0, 0, 1, 1], [], []>} : vector<1x128xf32>, vector<128x8xf32>, vector<1x8xf32> -> vector<1x8xf32>
    %cst_145 = arith.constant 3.125000e-02 : f32
    %289 = vector.broadcast %cst_145 : f32 to vector<1x8xf32>
    %290 = arith.mulf %288, %289 : vector<1x8xf32>
    %291 = arith.mulf %283, %283 : vector<2x128xf32>
    %cst_146 = arith.constant dense<0.000000e+00> : vector<128xf32>
    %292 = vector.multi_reduction <add>, %291, %cst_146 [0] : vector<2x128xf32> to vector<128xf32>
    %293 = vector.shape_cast %292 : vector<128xf32> to vector<1x128xf32>
    %cst_147 = arith.constant dense<0.000000e+00> : vector<1x8xf32>
    %294 = tpu.matmul %293, %141, %cst_147 {dimension_numbers = #tpu.dot_dimension_numbers<[1], [0], [0], [1], [0, 0, 1, 1], [], []>} : vector<1x128xf32>, vector<128x8xf32>, vector<1x8xf32> -> vector<1x8xf32>
    %cst_148 = arith.constant 3.125000e-02 : f32
    %295 = vector.broadcast %cst_148 : f32 to vector<1x8xf32>
    %296 = arith.mulf %294, %295 : vector<1x8xf32>
    %297 = arith.mulf %290, %290 : vector<1x8xf32>
    %298 = arith.subf %296, %297 : vector<1x8xf32>
    %cst_149 = arith.constant 9.99999974E-6 : f32
    %299 = vector.broadcast %cst_149 : f32 to vector<1x8xf32>
    %300 = arith.addf %298, %299 : vector<1x8xf32>
    %301 = math.rsqrt %300 : vector<1x8xf32>
    %302 = arith.mulf %284, %301 : vector<1x8xf32>
    %303 = arith.mulf %290, %302 : vector<1x8xf32>
    %304 = arith.subf %285, %303 : vector<1x8xf32>
    %cst_150 = arith.constant dense<0.000000e+00> : vector<1x128xf32>
    %305 = tpu.matmul %302, %142, %cst_150 {dimension_numbers = #tpu.dot_dimension_numbers<[1], [0], [0], [1], [0, 0, 1, 1], [], []>} : vector<1x8xf32>, vector<8x128xf32>, vector<1x128xf32> -> vector<1x128xf32>
    %cst_151 = arith.constant dense<0.000000e+00> : vector<1x128xf32>
    %306 = tpu.matmul %304, %142, %cst_151 {dimension_numbers = #tpu.dot_dimension_numbers<[1], [0], [0], [1], [0, 0, 1, 1], [], []>} : vector<1x8xf32>, vector<8x128xf32>, vector<1x128xf32> -> vector<1x128xf32>
    %307 = vector.broadcast %305 : vector<1x128xf32> to vector<2x128xf32>
    %308 = arith.mulf %283, %307 : vector<2x128xf32>
    %309 = vector.broadcast %306 : vector<1x128xf32> to vector<2x128xf32>
    %310 = arith.addf %308, %309 : vector<2x128xf32>
    %cst_152 = arith.constant 0.000000e+00 : f32
    %311 = vector.broadcast %cst_152 : f32 to vector<2x128xf32>
    %312 = arith.maximumf %310, %311 : vector<2x128xf32>
    %cst_153 = arith.constant dense<0.000000e+00> : vector<2x128xf32>
    %313 = tpu.matmul %312, %280, %cst_153 {dimension_numbers = #tpu.dot_dimension_numbers<[1], [0], [0], [1], [0, 0, 1, 1], [], []>} : vector<2x128xf32>, vector<128x128xf32>, vector<2x128xf32> -> vector<2x128xf32>
    %314 = vector.extract_strided_slice %282 {offsets = [2, 0], sizes = [1, 8], strides = [1, 1]} : vector<4x8xf32> to vector<1x8xf32>
    %315 = vector.extract_strided_slice %282 {offsets = [3, 0], sizes = [1, 8], strides = [1, 1]} : vector<4x8xf32> to vector<1x8xf32>
    %cst_154 = arith.constant dense<0.000000e+00> : vector<128xf32>
    %316 = vector.multi_reduction <add>, %313, %cst_154 [0] : vector<2x128xf32> to vector<128xf32>
    %317 = vector.shape_cast %316 : vector<128xf32> to vector<1x128xf32>
    %cst_155 = arith.constant dense<0.000000e+00> : vector<1x8xf32>
    %318 = tpu.matmul %317, %141, %cst_155 {dimension_numbers = #tpu.dot_dimension_numbers<[1], [0], [0], [1], [0, 0, 1, 1], [], []>} : vector<1x128xf32>, vector<128x8xf32>, vector<1x8xf32> -> vector<1x8xf32>
    %cst_156 = arith.constant 3.125000e-02 : f32
    %319 = vector.broadcast %cst_156 : f32 to vector<1x8xf32>
    %320 = arith.mulf %318, %319 : vector<1x8xf32>
    %321 = arith.mulf %313, %313 : vector<2x128xf32>
    %cst_157 = arith.constant dense<0.000000e+00> : vector<128xf32>
    %322 = vector.multi_reduction <add>, %321, %cst_157 [0] : vector<2x128xf32> to vector<128xf32>
    %323 = vector.shape_cast %322 : vector<128xf32> to vector<1x128xf32>
    %cst_158 = arith.constant dense<0.000000e+00> : vector<1x8xf32>
    %324 = tpu.matmul %323, %141, %cst_158 {dimension_numbers = #tpu.dot_dimension_numbers<[1], [0], [0], [1], [0, 0, 1, 1], [], []>} : vector<1x128xf32>, vector<128x8xf32>, vector<1x8xf32> -> vector<1x8xf32>
    %cst_159 = arith.constant 3.125000e-02 : f32
    %325 = vector.broadcast %cst_159 : f32 to vector<1x8xf32>
    %326 = arith.mulf %324, %325 : vector<1x8xf32>
    %327 = arith.mulf %320, %320 : vector<1x8xf32>
    %328 = arith.subf %326, %327 : vector<1x8xf32>
    %cst_160 = arith.constant 9.99999974E-6 : f32
    %329 = vector.broadcast %cst_160 : f32 to vector<1x8xf32>
    %330 = arith.addf %328, %329 : vector<1x8xf32>
    %331 = math.rsqrt %330 : vector<1x8xf32>
    %332 = arith.mulf %314, %331 : vector<1x8xf32>
    %333 = arith.mulf %320, %332 : vector<1x8xf32>
    %334 = arith.subf %315, %333 : vector<1x8xf32>
    %cst_161 = arith.constant dense<0.000000e+00> : vector<1x128xf32>
    %335 = tpu.matmul %332, %142, %cst_161 {dimension_numbers = #tpu.dot_dimension_numbers<[1], [0], [0], [1], [0, 0, 1, 1], [], []>} : vector<1x8xf32>, vector<8x128xf32>, vector<1x128xf32> -> vector<1x128xf32>
    %cst_162 = arith.constant dense<0.000000e+00> : vector<1x128xf32>
    %336 = tpu.matmul %334, %142, %cst_162 {dimension_numbers = #tpu.dot_dimension_numbers<[1], [0], [0], [1], [0, 0, 1, 1], [], []>} : vector<1x8xf32>, vector<8x128xf32>, vector<1x128xf32> -> vector<1x128xf32>
    %337 = vector.broadcast %335 : vector<1x128xf32> to vector<2x128xf32>
    %338 = arith.mulf %313, %337 : vector<2x128xf32>
    %339 = vector.broadcast %336 : vector<1x128xf32> to vector<2x128xf32>
    %340 = arith.addf %338, %339 : vector<2x128xf32>
    %341 = arith.addf %340, %276 : vector<2x128xf32>
    %cst_163 = arith.constant 0.000000e+00 : f32
    %342 = vector.broadcast %cst_163 : f32 to vector<2x128xf32>
    %343 = arith.maximumf %341, %342 : vector<2x128xf32>
    %c0_164 = arith.constant 0 : index
    %c0_165 = arith.constant 0 : index
    %344 = vector.load %arg3[%c0_164, %c0_165] : memref<128x32xf32, #tpu.memory_space<vmem>>, vector<128x32xf32>
    %cst_166 = arith.constant dense<0.000000e+00> : vector<2x32xf32>
    %345 = tpu.matmul %343, %344, %cst_166 {dimension_numbers = #tpu.dot_dimension_numbers<[1], [0], [0], [1], [0, 0, 1, 1], [], []>} : vector<2x128xf32>, vector<128x32xf32>, vector<2x32xf32> -> vector<2x32xf32>
    %c0_167 = arith.constant 0 : index
    %c0_168 = arith.constant 0 : index
    %346 = vector.load %arg15[%c0_167, %c0_168] : memref<32x8xf32, #tpu.memory_space<vmem>>, vector<32x8xf32>
    %c0_169 = arith.constant 0 : index
    %c0_170 = arith.constant 0 : index
    %347 = vector.load %arg16[%c0_169, %c0_170] : memref<8x32xf32, #tpu.memory_space<vmem>>, vector<8x32xf32>
    %c0_171 = arith.constant 0 : index
    %c0_172 = arith.constant 0 : index
    %c0_173 = arith.constant 0 : index
    %348 = vector.load %arg9[%c0_171, %c0_172, %c0_173] : memref<6x32x32xf32, #tpu.memory_space<vmem>>, vector<1x32x32xf32>
    %349 = vector.shape_cast %348 : vector<1x32x32xf32> to vector<32x32xf32>
    %c1_174 = arith.constant 1 : index
    %c0_175 = arith.constant 0 : index
    %c0_176 = arith.constant 0 : index
    %350 = vector.load %arg9[%c1_174, %c0_175, %c0_176] : memref<6x32x32xf32, #tpu.memory_space<vmem>>, vector<1x32x32xf32>
    %351 = vector.shape_cast %350 : vector<1x32x32xf32> to vector<32x32xf32>
    %c0_177 = arith.constant 0 : index
    %c0_178 = arith.constant 0 : index
    %c0_179 = arith.constant 0 : index
    %352 = vector.load %arg10[%c0_177, %c0_178, %c0_179] : memref<3x4x8xf32, #tpu.memory_space<vmem>>, vector<1x4x8xf32>
    %353 = vector.shape_cast %352 : vector<1x4x8xf32> to vector<4x8xf32>
    %cst_180 = arith.constant dense<0.000000e+00> : vector<2x32xf32>
    %354 = tpu.matmul %345, %349, %cst_180 {dimension_numbers = #tpu.dot_dimension_numbers<[1], [0], [0], [1], [0, 0, 1, 1], [], []>} : vector<2x32xf32>, vector<32x32xf32>, vector<2x32xf32> -> vector<2x32xf32>
    %355 = vector.extract_strided_slice %353 {offsets = [0, 0], sizes = [1, 8], strides = [1, 1]} : vector<4x8xf32> to vector<1x8xf32>
    %356 = vector.extract_strided_slice %353 {offsets = [1, 0], sizes = [1, 8], strides = [1, 1]} : vector<4x8xf32> to vector<1x8xf32>
    %cst_181 = arith.constant dense<0.000000e+00> : vector<32xf32>
    %357 = vector.multi_reduction <add>, %354, %cst_181 [0] : vector<2x32xf32> to vector<32xf32>
    %358 = vector.shape_cast %357 : vector<32xf32> to vector<1x32xf32>
    %cst_182 = arith.constant dense<0.000000e+00> : vector<1x8xf32>
    %359 = tpu.matmul %358, %346, %cst_182 {dimension_numbers = #tpu.dot_dimension_numbers<[1], [0], [0], [1], [0, 0, 1, 1], [], []>} : vector<1x32xf32>, vector<32x8xf32>, vector<1x8xf32> -> vector<1x8xf32>
    %cst_183 = arith.constant 1.250000e-01 : f32
    %360 = vector.broadcast %cst_183 : f32 to vector<1x8xf32>
    %361 = arith.mulf %359, %360 : vector<1x8xf32>
    %362 = arith.mulf %354, %354 : vector<2x32xf32>
    %cst_184 = arith.constant dense<0.000000e+00> : vector<32xf32>
    %363 = vector.multi_reduction <add>, %362, %cst_184 [0] : vector<2x32xf32> to vector<32xf32>
    %364 = vector.shape_cast %363 : vector<32xf32> to vector<1x32xf32>
    %cst_185 = arith.constant dense<0.000000e+00> : vector<1x8xf32>
    %365 = tpu.matmul %364, %346, %cst_185 {dimension_numbers = #tpu.dot_dimension_numbers<[1], [0], [0], [1], [0, 0, 1, 1], [], []>} : vector<1x32xf32>, vector<32x8xf32>, vector<1x8xf32> -> vector<1x8xf32>
    %cst_186 = arith.constant 1.250000e-01 : f32
    %366 = vector.broadcast %cst_186 : f32 to vector<1x8xf32>
    %367 = arith.mulf %365, %366 : vector<1x8xf32>
    %368 = arith.mulf %361, %361 : vector<1x8xf32>
    %369 = arith.subf %367, %368 : vector<1x8xf32>
    %cst_187 = arith.constant 9.99999974E-6 : f32
    %370 = vector.broadcast %cst_187 : f32 to vector<1x8xf32>
    %371 = arith.addf %369, %370 : vector<1x8xf32>
    %372 = math.rsqrt %371 : vector<1x8xf32>
    %373 = arith.mulf %355, %372 : vector<1x8xf32>
    %374 = arith.mulf %361, %373 : vector<1x8xf32>
    %375 = arith.subf %356, %374 : vector<1x8xf32>
    %cst_188 = arith.constant dense<0.000000e+00> : vector<1x32xf32>
    %376 = tpu.matmul %373, %347, %cst_188 {dimension_numbers = #tpu.dot_dimension_numbers<[1], [0], [0], [1], [0, 0, 1, 1], [], []>} : vector<1x8xf32>, vector<8x32xf32>, vector<1x32xf32> -> vector<1x32xf32>
    %cst_189 = arith.constant dense<0.000000e+00> : vector<1x32xf32>
    %377 = tpu.matmul %375, %347, %cst_189 {dimension_numbers = #tpu.dot_dimension_numbers<[1], [0], [0], [1], [0, 0, 1, 1], [], []>} : vector<1x8xf32>, vector<8x32xf32>, vector<1x32xf32> -> vector<1x32xf32>
    %378 = vector.broadcast %376 : vector<1x32xf32> to vector<2x32xf32>
    %379 = arith.mulf %354, %378 : vector<2x32xf32>
    %380 = vector.broadcast %377 : vector<1x32xf32> to vector<2x32xf32>
    %381 = arith.addf %379, %380 : vector<2x32xf32>
    %cst_190 = arith.constant 0.000000e+00 : f32
    %382 = vector.broadcast %cst_190 : f32 to vector<2x32xf32>
    %383 = arith.maximumf %381, %382 : vector<2x32xf32>
    %cst_191 = arith.constant dense<0.000000e+00> : vector<2x32xf32>
    %384 = tpu.matmul %383, %351, %cst_191 {dimension_numbers = #tpu.dot_dimension_numbers<[1], [0], [0], [1], [0, 0, 1, 1], [], []>} : vector<2x32xf32>, vector<32x32xf32>, vector<2x32xf32> -> vector<2x32xf32>
    %385 = vector.extract_strided_slice %353 {offsets = [2, 0], sizes = [1, 8], strides = [1, 1]} : vector<4x8xf32> to vector<1x8xf32>
    %386 = vector.extract_strided_slice %353 {offsets = [3, 0], sizes = [1, 8], strides = [1, 1]} : vector<4x8xf32> to vector<1x8xf32>
    %cst_192 = arith.constant dense<0.000000e+00> : vector<32xf32>
    %387 = vector.multi_reduction <add>, %384, %cst_192 [0] : vector<2x32xf32> to vector<32xf32>
    %388 = vector.shape_cast %387 : vector<32xf32> to vector<1x32xf32>
    %cst_193 = arith.constant dense<0.000000e+00> : vector<1x8xf32>
    %389 = tpu.matmul %388, %346, %cst_193 {dimension_numbers = #tpu.dot_dimension_numbers<[1], [0], [0], [1], [0, 0, 1, 1], [], []>} : vector<1x32xf32>, vector<32x8xf32>, vector<1x8xf32> -> vector<1x8xf32>
    %cst_194 = arith.constant 1.250000e-01 : f32
    %390 = vector.broadcast %cst_194 : f32 to vector<1x8xf32>
    %391 = arith.mulf %389, %390 : vector<1x8xf32>
    %392 = arith.mulf %384, %384 : vector<2x32xf32>
    %cst_195 = arith.constant dense<0.000000e+00> : vector<32xf32>
    %393 = vector.multi_reduction <add>, %392, %cst_195 [0] : vector<2x32xf32> to vector<32xf32>
    %394 = vector.shape_cast %393 : vector<32xf32> to vector<1x32xf32>
    %cst_196 = arith.constant dense<0.000000e+00> : vector<1x8xf32>
    %395 = tpu.matmul %394, %346, %cst_196 {dimension_numbers = #tpu.dot_dimension_numbers<[1], [0], [0], [1], [0, 0, 1, 1], [], []>} : vector<1x32xf32>, vector<32x8xf32>, vector<1x8xf32> -> vector<1x8xf32>
    %cst_197 = arith.constant 1.250000e-01 : f32
    %396 = vector.broadcast %cst_197 : f32 to vector<1x8xf32>
    %397 = arith.mulf %395, %396 : vector<1x8xf32>
    %398 = arith.mulf %391, %391 : vector<1x8xf32>
    %399 = arith.subf %397, %398 : vector<1x8xf32>
    %cst_198 = arith.constant 9.99999974E-6 : f32
    %400 = vector.broadcast %cst_198 : f32 to vector<1x8xf32>
    %401 = arith.addf %399, %400 : vector<1x8xf32>
    %402 = math.rsqrt %401 : vector<1x8xf32>
    %403 = arith.mulf %385, %402 : vector<1x8xf32>
    %404 = arith.mulf %391, %403 : vector<1x8xf32>
    %405 = arith.subf %386, %404 : vector<1x8xf32>
    %cst_199 = arith.constant dense<0.000000e+00> : vector<1x32xf32>
    %406 = tpu.matmul %403, %347, %cst_199 {dimension_numbers = #tpu.dot_dimension_numbers<[1], [0], [0], [1], [0, 0, 1, 1], [], []>} : vector<1x8xf32>, vector<8x32xf32>, vector<1x32xf32> -> vector<1x32xf32>
    %cst_200 = arith.constant dense<0.000000e+00> : vector<1x32xf32>
    %407 = tpu.matmul %405, %347, %cst_200 {dimension_numbers = #tpu.dot_dimension_numbers<[1], [0], [0], [1], [0, 0, 1, 1], [], []>} : vector<1x8xf32>, vector<8x32xf32>, vector<1x32xf32> -> vector<1x32xf32>
    %408 = vector.broadcast %406 : vector<1x32xf32> to vector<2x32xf32>
    %409 = arith.mulf %384, %408 : vector<2x32xf32>
    %410 = vector.broadcast %407 : vector<1x32xf32> to vector<2x32xf32>
    %411 = arith.addf %409, %410 : vector<2x32xf32>
    %412 = arith.addf %411, %345 : vector<2x32xf32>
    %cst_201 = arith.constant 0.000000e+00 : f32
    %413 = vector.broadcast %cst_201 : f32 to vector<2x32xf32>
    %414 = arith.maximumf %412, %413 : vector<2x32xf32>
    %c2_202 = arith.constant 2 : index
    %c0_203 = arith.constant 0 : index
    %c0_204 = arith.constant 0 : index
    %415 = vector.load %arg9[%c2_202, %c0_203, %c0_204] : memref<6x32x32xf32, #tpu.memory_space<vmem>>, vector<1x32x32xf32>
    %416 = vector.shape_cast %415 : vector<1x32x32xf32> to vector<32x32xf32>
    %c3_205 = arith.constant 3 : index
    %c0_206 = arith.constant 0 : index
    %c0_207 = arith.constant 0 : index
    %417 = vector.load %arg9[%c3_205, %c0_206, %c0_207] : memref<6x32x32xf32, #tpu.memory_space<vmem>>, vector<1x32x32xf32>
    %418 = vector.shape_cast %417 : vector<1x32x32xf32> to vector<32x32xf32>
    %c1_208 = arith.constant 1 : index
    %c0_209 = arith.constant 0 : index
    %c0_210 = arith.constant 0 : index
    %419 = vector.load %arg10[%c1_208, %c0_209, %c0_210] : memref<3x4x8xf32, #tpu.memory_space<vmem>>, vector<1x4x8xf32>
    %420 = vector.shape_cast %419 : vector<1x4x8xf32> to vector<4x8xf32>
    %cst_211 = arith.constant dense<0.000000e+00> : vector<2x32xf32>
    %421 = tpu.matmul %414, %416, %cst_211 {dimension_numbers = #tpu.dot_dimension_numbers<[1], [0], [0], [1], [0, 0, 1, 1], [], []>} : vector<2x32xf32>, vector<32x32xf32>, vector<2x32xf32> -> vector<2x32xf32>
    %422 = vector.extract_strided_slice %420 {offsets = [0, 0], sizes = [1, 8], strides = [1, 1]} : vector<4x8xf32> to vector<1x8xf32>
    %423 = vector.extract_strided_slice %420 {offsets = [1, 0], sizes = [1, 8], strides = [1, 1]} : vector<4x8xf32> to vector<1x8xf32>
    %cst_212 = arith.constant dense<0.000000e+00> : vector<32xf32>
    %424 = vector.multi_reduction <add>, %421, %cst_212 [0] : vector<2x32xf32> to vector<32xf32>
    %425 = vector.shape_cast %424 : vector<32xf32> to vector<1x32xf32>
    %cst_213 = arith.constant dense<0.000000e+00> : vector<1x8xf32>
    %426 = tpu.matmul %425, %346, %cst_213 {dimension_numbers = #tpu.dot_dimension_numbers<[1], [0], [0], [1], [0, 0, 1, 1], [], []>} : vector<1x32xf32>, vector<32x8xf32>, vector<1x8xf32> -> vector<1x8xf32>
    %cst_214 = arith.constant 1.250000e-01 : f32
    %427 = vector.broadcast %cst_214 : f32 to vector<1x8xf32>
    %428 = arith.mulf %426, %427 : vector<1x8xf32>
    %429 = arith.mulf %421, %421 : vector<2x32xf32>
    %cst_215 = arith.constant dense<0.000000e+00> : vector<32xf32>
    %430 = vector.multi_reduction <add>, %429, %cst_215 [0] : vector<2x32xf32> to vector<32xf32>
    %431 = vector.shape_cast %430 : vector<32xf32> to vector<1x32xf32>
    %cst_216 = arith.constant dense<0.000000e+00> : vector<1x8xf32>
    %432 = tpu.matmul %431, %346, %cst_216 {dimension_numbers = #tpu.dot_dimension_numbers<[1], [0], [0], [1], [0, 0, 1, 1], [], []>} : vector<1x32xf32>, vector<32x8xf32>, vector<1x8xf32> -> vector<1x8xf32>
    %cst_217 = arith.constant 1.250000e-01 : f32
    %433 = vector.broadcast %cst_217 : f32 to vector<1x8xf32>
    %434 = arith.mulf %432, %433 : vector<1x8xf32>
    %435 = arith.mulf %428, %428 : vector<1x8xf32>
    %436 = arith.subf %434, %435 : vector<1x8xf32>
    %cst_218 = arith.constant 9.99999974E-6 : f32
    %437 = vector.broadcast %cst_218 : f32 to vector<1x8xf32>
    %438 = arith.addf %436, %437 : vector<1x8xf32>
    %439 = math.rsqrt %438 : vector<1x8xf32>
    %440 = arith.mulf %422, %439 : vector<1x8xf32>
    %441 = arith.mulf %428, %440 : vector<1x8xf32>
    %442 = arith.subf %423, %441 : vector<1x8xf32>
    %cst_219 = arith.constant dense<0.000000e+00> : vector<1x32xf32>
    %443 = tpu.matmul %440, %347, %cst_219 {dimension_numbers = #tpu.dot_dimension_numbers<[1], [0], [0], [1], [0, 0, 1, 1], [], []>} : vector<1x8xf32>, vector<8x32xf32>, vector<1x32xf32> -> vector<1x32xf32>
    %cst_220 = arith.constant dense<0.000000e+00> : vector<1x32xf32>
    %444 = tpu.matmul %442, %347, %cst_220 {dimension_numbers = #tpu.dot_dimension_numbers<[1], [0], [0], [1], [0, 0, 1, 1], [], []>} : vector<1x8xf32>, vector<8x32xf32>, vector<1x32xf32> -> vector<1x32xf32>
    %445 = vector.broadcast %443 : vector<1x32xf32> to vector<2x32xf32>
    %446 = arith.mulf %421, %445 : vector<2x32xf32>
    %447 = vector.broadcast %444 : vector<1x32xf32> to vector<2x32xf32>
    %448 = arith.addf %446, %447 : vector<2x32xf32>
    %cst_221 = arith.constant 0.000000e+00 : f32
    %449 = vector.broadcast %cst_221 : f32 to vector<2x32xf32>
    %450 = arith.maximumf %448, %449 : vector<2x32xf32>
    %cst_222 = arith.constant dense<0.000000e+00> : vector<2x32xf32>
    %451 = tpu.matmul %450, %418, %cst_222 {dimension_numbers = #tpu.dot_dimension_numbers<[1], [0], [0], [1], [0, 0, 1, 1], [], []>} : vector<2x32xf32>, vector<32x32xf32>, vector<2x32xf32> -> vector<2x32xf32>
    %452 = vector.extract_strided_slice %420 {offsets = [2, 0], sizes = [1, 8], strides = [1, 1]} : vector<4x8xf32> to vector<1x8xf32>
    %453 = vector.extract_strided_slice %420 {offsets = [3, 0], sizes = [1, 8], strides = [1, 1]} : vector<4x8xf32> to vector<1x8xf32>
    %cst_223 = arith.constant dense<0.000000e+00> : vector<32xf32>
    %454 = vector.multi_reduction <add>, %451, %cst_223 [0] : vector<2x32xf32> to vector<32xf32>
    %455 = vector.shape_cast %454 : vector<32xf32> to vector<1x32xf32>
    %cst_224 = arith.constant dense<0.000000e+00> : vector<1x8xf32>
    %456 = tpu.matmul %455, %346, %cst_224 {dimension_numbers = #tpu.dot_dimension_numbers<[1], [0], [0], [1], [0, 0, 1, 1], [], []>} : vector<1x32xf32>, vector<32x8xf32>, vector<1x8xf32> -> vector<1x8xf32>
    %cst_225 = arith.constant 1.250000e-01 : f32
    %457 = vector.broadcast %cst_225 : f32 to vector<1x8xf32>
    %458 = arith.mulf %456, %457 : vector<1x8xf32>
    %459 = arith.mulf %451, %451 : vector<2x32xf32>
    %cst_226 = arith.constant dense<0.000000e+00> : vector<32xf32>
    %460 = vector.multi_reduction <add>, %459, %cst_226 [0] : vector<2x32xf32> to vector<32xf32>
    %461 = vector.shape_cast %460 : vector<32xf32> to vector<1x32xf32>
    %cst_227 = arith.constant dense<0.000000e+00> : vector<1x8xf32>
    %462 = tpu.matmul %461, %346, %cst_227 {dimension_numbers = #tpu.dot_dimension_numbers<[1], [0], [0], [1], [0, 0, 1, 1], [], []>} : vector<1x32xf32>, vector<32x8xf32>, vector<1x8xf32> -> vector<1x8xf32>
    %cst_228 = arith.constant 1.250000e-01 : f32
    %463 = vector.broadcast %cst_228 : f32 to vector<1x8xf32>
    %464 = arith.mulf %462, %463 : vector<1x8xf32>
    %465 = arith.mulf %458, %458 : vector<1x8xf32>
    %466 = arith.subf %464, %465 : vector<1x8xf32>
    %cst_229 = arith.constant 9.99999974E-6 : f32
    %467 = vector.broadcast %cst_229 : f32 to vector<1x8xf32>
    %468 = arith.addf %466, %467 : vector<1x8xf32>
    %469 = math.rsqrt %468 : vector<1x8xf32>
    %470 = arith.mulf %452, %469 : vector<1x8xf32>
    %471 = arith.mulf %458, %470 : vector<1x8xf32>
    %472 = arith.subf %453, %471 : vector<1x8xf32>
    %cst_230 = arith.constant dense<0.000000e+00> : vector<1x32xf32>
    %473 = tpu.matmul %470, %347, %cst_230 {dimension_numbers = #tpu.dot_dimension_numbers<[1], [0], [0], [1], [0, 0, 1, 1], [], []>} : vector<1x8xf32>, vector<8x32xf32>, vector<1x32xf32> -> vector<1x32xf32>
    %cst_231 = arith.constant dense<0.000000e+00> : vector<1x32xf32>
    %474 = tpu.matmul %472, %347, %cst_231 {dimension_numbers = #tpu.dot_dimension_numbers<[1], [0], [0], [1], [0, 0, 1, 1], [], []>} : vector<1x8xf32>, vector<8x32xf32>, vector<1x32xf32> -> vector<1x32xf32>
    %475 = vector.broadcast %473 : vector<1x32xf32> to vector<2x32xf32>
    %476 = arith.mulf %451, %475 : vector<2x32xf32>
    %477 = vector.broadcast %474 : vector<1x32xf32> to vector<2x32xf32>
    %478 = arith.addf %476, %477 : vector<2x32xf32>
    %479 = arith.addf %478, %414 : vector<2x32xf32>
    %cst_232 = arith.constant 0.000000e+00 : f32
    %480 = vector.broadcast %cst_232 : f32 to vector<2x32xf32>
    %481 = arith.maximumf %479, %480 : vector<2x32xf32>
    %c4_233 = arith.constant 4 : index
    %c0_234 = arith.constant 0 : index
    %c0_235 = arith.constant 0 : index
    %482 = vector.load %arg9[%c4_233, %c0_234, %c0_235] : memref<6x32x32xf32, #tpu.memory_space<vmem>>, vector<1x32x32xf32>
    %483 = vector.shape_cast %482 : vector<1x32x32xf32> to vector<32x32xf32>
    %c5_236 = arith.constant 5 : index
    %c0_237 = arith.constant 0 : index
    %c0_238 = arith.constant 0 : index
    %484 = vector.load %arg9[%c5_236, %c0_237, %c0_238] : memref<6x32x32xf32, #tpu.memory_space<vmem>>, vector<1x32x32xf32>
    %485 = vector.shape_cast %484 : vector<1x32x32xf32> to vector<32x32xf32>
    %c2_239 = arith.constant 2 : index
    %c0_240 = arith.constant 0 : index
    %c0_241 = arith.constant 0 : index
    %486 = vector.load %arg10[%c2_239, %c0_240, %c0_241] : memref<3x4x8xf32, #tpu.memory_space<vmem>>, vector<1x4x8xf32>
    %487 = vector.shape_cast %486 : vector<1x4x8xf32> to vector<4x8xf32>
    %cst_242 = arith.constant dense<0.000000e+00> : vector<2x32xf32>
    %488 = tpu.matmul %481, %483, %cst_242 {dimension_numbers = #tpu.dot_dimension_numbers<[1], [0], [0], [1], [0, 0, 1, 1], [], []>} : vector<2x32xf32>, vector<32x32xf32>, vector<2x32xf32> -> vector<2x32xf32>
    %489 = vector.extract_strided_slice %487 {offsets = [0, 0], sizes = [1, 8], strides = [1, 1]} : vector<4x8xf32> to vector<1x8xf32>
    %490 = vector.extract_strided_slice %487 {offsets = [1, 0], sizes = [1, 8], strides = [1, 1]} : vector<4x8xf32> to vector<1x8xf32>
    %cst_243 = arith.constant dense<0.000000e+00> : vector<32xf32>
    %491 = vector.multi_reduction <add>, %488, %cst_243 [0] : vector<2x32xf32> to vector<32xf32>
    %492 = vector.shape_cast %491 : vector<32xf32> to vector<1x32xf32>
    %cst_244 = arith.constant dense<0.000000e+00> : vector<1x8xf32>
    %493 = tpu.matmul %492, %346, %cst_244 {dimension_numbers = #tpu.dot_dimension_numbers<[1], [0], [0], [1], [0, 0, 1, 1], [], []>} : vector<1x32xf32>, vector<32x8xf32>, vector<1x8xf32> -> vector<1x8xf32>
    %cst_245 = arith.constant 1.250000e-01 : f32
    %494 = vector.broadcast %cst_245 : f32 to vector<1x8xf32>
    %495 = arith.mulf %493, %494 : vector<1x8xf32>
    %496 = arith.mulf %488, %488 : vector<2x32xf32>
    %cst_246 = arith.constant dense<0.000000e+00> : vector<32xf32>
    %497 = vector.multi_reduction <add>, %496, %cst_246 [0] : vector<2x32xf32> to vector<32xf32>
    %498 = vector.shape_cast %497 : vector<32xf32> to vector<1x32xf32>
    %cst_247 = arith.constant dense<0.000000e+00> : vector<1x8xf32>
    %499 = tpu.matmul %498, %346, %cst_247 {dimension_numbers = #tpu.dot_dimension_numbers<[1], [0], [0], [1], [0, 0, 1, 1], [], []>} : vector<1x32xf32>, vector<32x8xf32>, vector<1x8xf32> -> vector<1x8xf32>
    %cst_248 = arith.constant 1.250000e-01 : f32
    %500 = vector.broadcast %cst_248 : f32 to vector<1x8xf32>
    %501 = arith.mulf %499, %500 : vector<1x8xf32>
    %502 = arith.mulf %495, %495 : vector<1x8xf32>
    %503 = arith.subf %501, %502 : vector<1x8xf32>
    %cst_249 = arith.constant 9.99999974E-6 : f32
    %504 = vector.broadcast %cst_249 : f32 to vector<1x8xf32>
    %505 = arith.addf %503, %504 : vector<1x8xf32>
    %506 = math.rsqrt %505 : vector<1x8xf32>
    %507 = arith.mulf %489, %506 : vector<1x8xf32>
    %508 = arith.mulf %495, %507 : vector<1x8xf32>
    %509 = arith.subf %490, %508 : vector<1x8xf32>
    %cst_250 = arith.constant dense<0.000000e+00> : vector<1x32xf32>
    %510 = tpu.matmul %507, %347, %cst_250 {dimension_numbers = #tpu.dot_dimension_numbers<[1], [0], [0], [1], [0, 0, 1, 1], [], []>} : vector<1x8xf32>, vector<8x32xf32>, vector<1x32xf32> -> vector<1x32xf32>
    %cst_251 = arith.constant dense<0.000000e+00> : vector<1x32xf32>
    %511 = tpu.matmul %509, %347, %cst_251 {dimension_numbers = #tpu.dot_dimension_numbers<[1], [0], [0], [1], [0, 0, 1, 1], [], []>} : vector<1x8xf32>, vector<8x32xf32>, vector<1x32xf32> -> vector<1x32xf32>
    %512 = vector.broadcast %510 : vector<1x32xf32> to vector<2x32xf32>
    %513 = arith.mulf %488, %512 : vector<2x32xf32>
    %514 = vector.broadcast %511 : vector<1x32xf32> to vector<2x32xf32>
    %515 = arith.addf %513, %514 : vector<2x32xf32>
    %cst_252 = arith.constant 0.000000e+00 : f32
    %516 = vector.broadcast %cst_252 : f32 to vector<2x32xf32>
    %517 = arith.maximumf %515, %516 : vector<2x32xf32>
    %cst_253 = arith.constant dense<0.000000e+00> : vector<2x32xf32>
    %518 = tpu.matmul %517, %485, %cst_253 {dimension_numbers = #tpu.dot_dimension_numbers<[1], [0], [0], [1], [0, 0, 1, 1], [], []>} : vector<2x32xf32>, vector<32x32xf32>, vector<2x32xf32> -> vector<2x32xf32>
    %519 = vector.extract_strided_slice %487 {offsets = [2, 0], sizes = [1, 8], strides = [1, 1]} : vector<4x8xf32> to vector<1x8xf32>
    %520 = vector.extract_strided_slice %487 {offsets = [3, 0], sizes = [1, 8], strides = [1, 1]} : vector<4x8xf32> to vector<1x8xf32>
    %cst_254 = arith.constant dense<0.000000e+00> : vector<32xf32>
    %521 = vector.multi_reduction <add>, %518, %cst_254 [0] : vector<2x32xf32> to vector<32xf32>
    %522 = vector.shape_cast %521 : vector<32xf32> to vector<1x32xf32>
    %cst_255 = arith.constant dense<0.000000e+00> : vector<1x8xf32>
    %523 = tpu.matmul %522, %346, %cst_255 {dimension_numbers = #tpu.dot_dimension_numbers<[1], [0], [0], [1], [0, 0, 1, 1], [], []>} : vector<1x32xf32>, vector<32x8xf32>, vector<1x8xf32> -> vector<1x8xf32>
    %cst_256 = arith.constant 1.250000e-01 : f32
    %524 = vector.broadcast %cst_256 : f32 to vector<1x8xf32>
    %525 = arith.mulf %523, %524 : vector<1x8xf32>
    %526 = arith.mulf %518, %518 : vector<2x32xf32>
    %cst_257 = arith.constant dense<0.000000e+00> : vector<32xf32>
    %527 = vector.multi_reduction <add>, %526, %cst_257 [0] : vector<2x32xf32> to vector<32xf32>
    %528 = vector.shape_cast %527 : vector<32xf32> to vector<1x32xf32>
    %cst_258 = arith.constant dense<0.000000e+00> : vector<1x8xf32>
    %529 = tpu.matmul %528, %346, %cst_258 {dimension_numbers = #tpu.dot_dimension_numbers<[1], [0], [0], [1], [0, 0, 1, 1], [], []>} : vector<1x32xf32>, vector<32x8xf32>, vector<1x8xf32> -> vector<1x8xf32>
    %cst_259 = arith.constant 1.250000e-01 : f32
    %530 = vector.broadcast %cst_259 : f32 to vector<1x8xf32>
    %531 = arith.mulf %529, %530 : vector<1x8xf32>
    %532 = arith.mulf %525, %525 : vector<1x8xf32>
    %533 = arith.subf %531, %532 : vector<1x8xf32>
    %cst_260 = arith.constant 9.99999974E-6 : f32
    %534 = vector.broadcast %cst_260 : f32 to vector<1x8xf32>
    %535 = arith.addf %533, %534 : vector<1x8xf32>
    %536 = math.rsqrt %535 : vector<1x8xf32>
    %537 = arith.mulf %519, %536 : vector<1x8xf32>
    %538 = arith.mulf %525, %537 : vector<1x8xf32>
    %539 = arith.subf %520, %538 : vector<1x8xf32>
    %cst_261 = arith.constant dense<0.000000e+00> : vector<1x32xf32>
    %540 = tpu.matmul %537, %347, %cst_261 {dimension_numbers = #tpu.dot_dimension_numbers<[1], [0], [0], [1], [0, 0, 1, 1], [], []>} : vector<1x8xf32>, vector<8x32xf32>, vector<1x32xf32> -> vector<1x32xf32>
    %cst_262 = arith.constant dense<0.000000e+00> : vector<1x32xf32>
    %541 = tpu.matmul %539, %347, %cst_262 {dimension_numbers = #tpu.dot_dimension_numbers<[1], [0], [0], [1], [0, 0, 1, 1], [], []>} : vector<1x8xf32>, vector<8x32xf32>, vector<1x32xf32> -> vector<1x32xf32>
    %542 = vector.broadcast %540 : vector<1x32xf32> to vector<2x32xf32>
    %543 = arith.mulf %518, %542 : vector<2x32xf32>
    %544 = vector.broadcast %541 : vector<1x32xf32> to vector<2x32xf32>
    %545 = arith.addf %543, %544 : vector<2x32xf32>
    %546 = arith.addf %545, %481 : vector<2x32xf32>
    %cst_263 = arith.constant 0.000000e+00 : f32
    %547 = vector.broadcast %cst_263 : f32 to vector<2x32xf32>
    %548 = arith.maximumf %546, %547 : vector<2x32xf32>
    %c0_264 = arith.constant 0 : index
    %c0_265 = arith.constant 0 : index
    %549 = vector.load %arg4[%c0_264, %c0_265] : memref<32x8xf32, #tpu.memory_space<vmem>>, vector<32x8xf32>
    %cst_266 = arith.constant dense<0.000000e+00> : vector<2x8xf32>
    %550 = tpu.matmul %548, %549, %cst_266 {dimension_numbers = #tpu.dot_dimension_numbers<[1], [0], [0], [1], [0, 0, 1, 1], [], []>} : vector<2x32xf32>, vector<32x8xf32>, vector<2x8xf32> -> vector<2x8xf32>
    %c0_267 = arith.constant 0 : index
    %c0_268 = arith.constant 0 : index
    %551 = vector.load %arg17[%c0_267, %c0_268] : memref<2x8xf32, #tpu.memory_space<vmem>>, vector<2x8xf32>
    tpu.vector_store %arg17[%c0_267, %c0_268], %550 {strides = array<i32>} : memref<2x8xf32, #tpu.memory_space<vmem>>, vector<2x8xf32>,
    return
  }
}

</mosaic_0001>

<llo_original>
// kernel: downsample_forward.1
$region0: #{downsample_forward.1}
  #allocation0 [shape = 'u32[]', space=smem, size = 0x4, offset = 0x4, fixed_abs, tag = 'smem constant byte address 0x4 - core index']
  #allocation1 [shape = 'u32[144,128]{1,0:T(1,128)}', space=vmem, size = 0x12000, scoped, tag = 'internal scratch']
  %s0 = inlined_call_operand.vmem [shape: f32[2,1024], index: 0, kind: input, shape index: {}]
  %s1 = inlined_call_operand.hbm [shape: f32[1024,256], index: 1, kind: input, shape index: {}]
  %s2 = inlined_call_operand.hbm [shape: f32[256,128], index: 2, kind: input, shape index: {}]
  %s3 = inlined_call_operand.vmem [shape: f32[128,32], index: 3, kind: input, shape index: {}]
  %s4 = inlined_call_operand.vmem [shape: f32[32,8], index: 4, kind: input, shape index: {}]
  %s5 = inlined_call_operand.hbm [shape: f32[4,256,256], index: 5, kind: input, shape index: {}]
  %s6 = inlined_call_operand.hbm [shape: f32[2,4,4], index: 6, kind: input, shape index: {}]
  %s7 = inlined_call_operand.vmem [shape: f32[6,128,128], index: 7, kind: input, shape index: {}]
  %s8 = inlined_call_operand.vmem [shape: f32[3,4,8], index: 8, kind: input, shape index: {}]
  %s9 = inlined_call_operand.hbm [shape: f32[6,32,32], index: 9, kind: input, shape index: {}]
  %s10 = inlined_call_operand.vmem [shape: f32[3,4,8], index: 10, kind: input, shape index: {}]
  %s11 = inlined_call_operand.vmem [shape: f32[256,4], index: 11, kind: input, shape index: {}]
  %s12 = inlined_call_operand.vmem [shape: f32[4,256], index: 12, kind: input, shape index: {}]
  %s13 = inlined_call_operand.vmem [shape: f32[128,8], index: 13, kind: input, shape index: {}]
  %s14 = inlined_call_operand.hbm [shape: f32[8,128], index: 14, kind: input, shape index: {}]
  %s15 = inlined_call_operand.vmem [shape: f32[32,8], index: 15, kind: input, shape index: {}]
  %s16 = inlined_call_operand.vmem [shape: f32[8,32], index: 16, kind: input, shape index: {}]
  %s17 = inlined_call_operand.hbm [shape: f32[2,8], index: 17, kind: output, shape index: {}]
  %s18 = sld [smem:[#allocation0]]
  $region102: #{downsample_forward.1} parent=0
    _
  %s20 = ssub.s32 1, %s18
  %s21 = scalar_select 0, %s20, %s18
  $region1: #{downsample_forward.1} parent=0
    #allocation2 [shape = 'u8[1048576]{0}', space=vmem, size = 0x100000, scoped, tag = 'input window, operand 1, single buffered']
    #allocation3 [shape = 's32[1]{0}', space=sflag, size = 0x4, scoped, tag = 'scoped memory for downsample_forward.1']
    #allocation4 [shape = 's32[1]{0}', space=sflag, size = 0x4, scoped, tag = 'scoped memory for downsample_forward.1']
    #allocation5 [shape = 'u8[131072]{0}', space=vmem, size = 0x20000, scoped, tag = 'input window, operand 2, single buffered']
    #allocation6 [shape = 's32[1]{0}', space=sflag, size = 0x4, scoped, tag = 'scoped memory for downsample_forward.1']
    #allocation7 [shape = 'u8[1048576]{0}', space=vmem, size = 0x100000, scoped, tag = 'input window, operand 5, single buffered']
    #allocation8 [shape = 'u8[4096]{0}', space=vmem, size = 0x1000, scoped, tag = 'input window, operand 6, single buffered']
    #allocation9 [shape = 's32[1]{0}', space=sflag, size = 0x4, scoped, tag = 'scoped memory for downsample_forward.1']
    #allocation10 [shape = 'u8[98304]{0}', space=vmem, size = 0x18000, scoped, tag = 'input window, operand 9, single buffered']
    #allocation11 [shape = 'u8[4096]{0}', space=vmem, size = 0x1000, scoped, tag = 'input window, operand 14, single buffered']
    #allocation12 [shape = 's32[1]{0}', space=sflag, size = 0x4, scoped, tag = 'scoped memory for downsample_forward.1']
    #allocation13 [shape = 'u8[1024]{0}', space=vmem, size = 0x400, scoped, tag = 'output window, operand 0, single buffered']
    %22 = vsyncpa [#allocation3], 0
    %23 = vsyncpa [#allocation6], 0
    %24 = vsyncpa [#allocation9], 0
    %25 = vsyncpa [#allocation12], 0
    %26 = vsyncpa [#allocation4], 0
    // Predicated region
    $region2: #{downsample_forward.1} parent=1 // pred_check
      _
    $region3: #{downsample_forward.1} parent=1 // pred_check_branch
      %28 = sbr.rel (0) target = $region5
    $region4: #{downsample_forward.1} parent=1 // pred_region
      _
    $region5: #{downsample_forward.1} parent=1 // pred_fallthru
      _
    // Predicated region
    $region6: #{downsample_forward.1} parent=1 // pred_check
      _
    $region7: #{downsample_forward.1} parent=1 // pred_check_branch
      %30 = sbr.rel (0) target = $region9
    $region8: #{downsample_forward.1} parent=1 // pred_region
      %s32 = ssub.s32 32768, 32768
      %33 = vsyncadd [#allocation3], %s32
      %s34 = sshll.u32 [#allocation2], 4
      %s35 = int_to_ptr.vmem [resolvable:$true] %s34
      %40 = dma.hbm_to_vmem [thread:$0]  %s1, 32768, %s35, [#allocation3], 256, 256, 16
    $region9: #{downsample_forward.1} parent=1 // pred_fallthru
      _
    // Predicated region
    $region10: #{downsample_forward.1} parent=1 // pred_check
      _
    $region11: #{downsample_forward.1} parent=1 // pred_check_branch
      %42 = sbr.rel (0) target = $region13
    $region12: #{downsample_forward.1} parent=1 // pred_region
      %s44 = ssub.s32 4096, 4096
      %45 = vsyncadd [#allocation6], %s44
      %s46 = sshll.u32 [#allocation5], 4
      %s47 = int_to_ptr.vmem [resolvable:$true] %s46
      %52 = dma.hbm_to_vmem [thread:$0]  %s2, 4096, %s47, [#allocation6], 128, 128, 8
    $region13: #{downsample_forward.1} parent=1 // pred_fallthru
      _
    // Predicated region
    $region14: #{downsample_forward.1} parent=1 // pred_check
      _
    $region15: #{downsample_forward.1} parent=1 // pred_check_branch
      %54 = sbr.rel (0) target = $region17
    $region16: #{downsample_forward.1} parent=1 // pred_region
      _
    $region17: #{downsample_forward.1} parent=1 // pred_fallthru
      _
    // Predicated region
    $region18: #{downsample_forward.1} parent=1 // pred_check
      _
    $region19: #{downsample_forward.1} parent=1 // pred_check_branch
      %56 = sbr.rel (0) target = $region21
    $region20: #{downsample_forward.1} parent=1 // pred_region
      _
    $region21: #{downsample_forward.1} parent=1 // pred_fallthru
      _
    // Predicated region
    $region22: #{downsample_forward.1} parent=1 // pred_check
      _
    $region23: #{downsample_forward.1} parent=1 // pred_check_branch
      %58 = sbr.rel (0) target = $region25
    $region24: #{downsample_forward.1} parent=1 // pred_region
      %s60 = ssub.s32 32768, 32768
      %61 = vsyncadd [#allocation6], %s60
      %s62 = sshll.u32 [#allocation7], 4
      %s63 = int_to_ptr.vmem [resolvable:$true] %s62
      %68 = dma.hbm_to_vmem [thread:$0]  %s5, 32768, %s63, [#allocation6], 256, 256, 16
    $region25: #{downsample_forward.1} parent=1 // pred_fallthru
      _
    // Predicated region
    $region26: #{downsample_forward.1} parent=1 // pred_check
      _
    $region27: #{downsample_forward.1} parent=1 // pred_check_branch
      %70 = sbr.rel (0) target = $region29
    $region28: #{downsample_forward.1} parent=1 // pred_region
      %s72 = ssub.s32 128, 128
      %73 = vsyncadd [#allocation9], %s72
      %s74 = sshll.u32 [#allocation8], 4
      %s75 = int_to_ptr.vmem [resolvable:$true] %s74
      %80 = dma.hbm_to_vmem [thread:$0]  %s6, 128, %s75, [#allocation9], 64, 64, 4
    $region29: #{downsample_forward.1} parent=1 // pred_fallthru
      _
    // Predicated region
    $region30: #{downsample_forward.1} parent=1 // pred_check
      _
    $region31: #{downsample_forward.1} parent=1 // pred_check_branch
      %82 = sbr.rel (0) target = $region33
    $region32: #{downsample_forward.1} parent=1 // pred_region
      _
    $region33: #{downsample_forward.1} parent=1 // pred_fallthru
      _
    // Predicated region
    $region34: #{downsample_forward.1} parent=1 // pred_check
      _
    $region35: #{downsample_forward.1} parent=1 // pred_check_branch
      %84 = sbr.rel (0) target = $region37
    $region36: #{downsample_forward.1} parent=1 // pred_region
      _
    $region37: #{downsample_forward.1} parent=1 // pred_fallthru
      _
    // Predicated region
    $region38: #{downsample_forward.1} parent=1 // pred_check
      _
    $region39: #{downsample_forward.1} parent=1 // pred_check_branch
      %86 = sbr.rel (0) target = $region41
    $region40: #{downsample_forward.1} parent=1 // pred_region
      %s88 = ssub.s32 3072, 3072
      %89 = vsyncadd [#allocation9], %s88
      %s90 = sshll.u32 [#allocation10], 4
      %s91 = int_to_ptr.vmem [resolvable:$true] %s90
      %96 = dma.hbm_to_vmem [thread:$0]  %s9, 3072, %s91, [#allocation9], 128, 128, 8
    $region41: #{downsample_forward.1} parent=1 // pred_fallthru
      _
    // Predicated region
    $region42: #{downsample_forward.1} parent=1 // pred_check
      _
    $region43: #{downsample_forward.1} parent=1 // pred_check_branch
      %98 = sbr.rel (0) target = $region45
    $region44: #{downsample_forward.1} parent=1 // pred_region
      _
    $region45: #{downsample_forward.1} parent=1 // pred_fallthru
      _
    // Predicated region
    $region46: #{downsample_forward.1} parent=1 // pred_check
      _
    $region47: #{downsample_forward.1} parent=1 // pred_check_branch
      %100 = sbr.rel (0) target = $region49
    $region48: #{downsample_forward.1} parent=1 // pred_region
      _
    $region49: #{downsample_forward.1} parent=1 // pred_fallthru
      _
    // Predicated region
    $region50: #{downsample_forward.1} parent=1 // pred_check
      _
    $region51: #{downsample_forward.1} parent=1 // pred_check_branch
      %102 = sbr.rel (0) target = $region53
    $region52: #{downsample_forward.1} parent=1 // pred_region
      _
    $region53: #{downsample_forward.1} parent=1 // pred_fallthru
      _
    // Predicated region
    $region54: #{downsample_forward.1} parent=1 // pred_check
      _
    $region55: #{downsample_forward.1} parent=1 // pred_check_branch
      %104 = sbr.rel (0) target = $region57
    $region56: #{downsample_forward.1} parent=1 // pred_region
      _
    $region57: #{downsample_forward.1} parent=1 // pred_fallthru
      _
    // Predicated region
    $region58: #{downsample_forward.1} parent=1 // pred_check
      _
    $region59: #{downsample_forward.1} parent=1 // pred_check_branch
      %106 = sbr.rel (0) target = $region61
    $region60: #{downsample_forward.1} parent=1 // pred_region
      %s108 = ssub.s32 128, 128
      %109 = vsyncadd [#allocation12], %s108
      %s111 = sshll.u32 [#allocation11], 4
      %s112 = int_to_ptr.vmem [resolvable:$true] %s111
      %114 = dma.hbm_to_vmem [thread:$0]  %s14, 128, %s112, [#allocation12]
    $region61: #{downsample_forward.1} parent=1 // pred_fallthru
      _
    // Predicated region
    $region62: #{downsample_forward.1} parent=1 // pred_check
      _
    $region63: #{downsample_forward.1} parent=1 // pred_check_branch
      %116 = sbr.rel (0) target = $region65
    $region64: #{downsample_forward.1} parent=1 // pred_region
      _
    $region65: #{downsample_forward.1} parent=1 // pred_fallthru
      _
    // Predicated region
    $region66: #{downsample_forward.1} parent=1 // pred_check
      _
    $region67: #{downsample_forward.1} parent=1 // pred_check_branch
      %118 = sbr.rel (0) target = $region69
    $region68: #{downsample_forward.1} parent=1 // pred_region
      _
    $region69: #{downsample_forward.1} parent=1 // pred_fallthru
      _
    // Predicated region
    $region70: #{downsample_forward.1} parent=1 // pred_check
      _
    $region71: #{downsample_forward.1} parent=1 // pred_check_branch
      %120 = sbr.rel (0) target = $region73
    $region72: #{downsample_forward.1} parent=1 // pred_region
      %121 = dma.done [#allocation3], 32768
    $region73: #{downsample_forward.1} parent=1 // pred_fallthru
      _
    // Predicated region
    $region74: #{downsample_forward.1} parent=1 // pred_check
      _
    $region75: #{downsample_forward.1} parent=1 // pred_check_branch
      %123 = sbr.rel (0) target = $region77
    $region76: #{downsample_forward.1} parent=1 // pred_region
      %124 = dma.done [#allocation6], 4096
    $region77: #{downsample_forward.1} parent=1 // pred_fallthru
      _
    // Predicated region
    $region78: #{downsample_forward.1} parent=1 // pred_check
      _
    $region79: #{downsample_forward.1} parent=1 // pred_check_branch
      %126 = sbr.rel (0) target = $region81
    $region80: #{downsample_forward.1} parent=1 // pred_region
      %127 = dma.done [#allocation6], 32768
    $region81: #{downsample_forward.1} parent=1 // pred_fallthru
      _
    // Predicated region
    $region82: #{downsample_forward.1} parent=1 // pred_check
      _
    $region83: #{downsample_forward.1} parent=1 // pred_check_branch
      %129 = sbr.rel (0) target = $region85
    $region84: #{downsample_forward.1} parent=1 // pred_region
      %130 = dma.done [#allocation9], 128
    $region85: #{downsample_forward.1} parent=1 // pred_fallthru
      _
    // Predicated region
    $region86: #{downsample_forward.1} parent=1 // pred_check
      _
    $region87: #{downsample_forward.1} parent=1 // pred_check_branch
      %132 = sbr.rel (0) target = $region89
    $region88: #{downsample_forward.1} parent=1 // pred_region
      %133 = dma.done [#allocation9], 3072
    $region89: #{downsample_forward.1} parent=1 // pred_fallthru
      _
    // Predicated region
    $region90: #{downsample_forward.1} parent=1 // pred_check
      _
    $region91: #{downsample_forward.1} parent=1 // pred_check_branch
      %135 = sbr.rel (0) target = $region93
    $region92: #{downsample_forward.1} parent=1 // pred_region
      %136 = dma.done [#allocation12], 128
    $region93: #{downsample_forward.1} parent=1 // pred_fallthru
      _
    %v137 = vld [vmem:[%s0] sm:$0xff]
    %v138 = vld [vmem:[%s0 + $0x8] sm:$0xff]
    %v139 = vld [vmem:[#allocation2] sm:$0xff]
    %v140 = vld [vmem:[#allocation2 + $0x8] sm:$0xff]
    %v141 = vld [vmem:[#allocation2 + $0x10] sm:$0xff]
    %v142 = vld [vmem:[#allocation2 + $0x18] sm:$0xff]
    %v143 = vld [vmem:[#allocation2 + $0x20] sm:$0xff]
    %v144 = vld [vmem:[#allocation2 + $0x28] sm:$0xff]
    %v145 = vld [vmem:[#allocation2 + $0x30] sm:$0xff]
    %v146 = vld [vmem:[#allocation2 + $0x38] sm:$0xff]
    %v147 = vld [vmem:[#allocation2 + $0x40] sm:$0xff]
    %v148 = vld [vmem:[#allocation2 + $0x48] sm:$0xff]
    %v149 = vld [vmem:[#allocation2 + $0x50] sm:$0xff]
    %v150 = vld [vmem:[#allocation2 + $0x58] sm:$0xff]
    %v151 = vld [vmem:[#allocation2 + $0x60] sm:$0xff]
    %v152 = vld [vmem:[#allocation2 + $0x68] sm:$0xff]
    %v153 = vld [vmem:[#allocation2 + $0x70] sm:$0xff]
    %v154 = vld [vmem:[#allocation2 + $0x78] sm:$0xff]
    %v155 = vld [vmem:[#allocation2 + $0x80] sm:$0xff]
    %v156 = vld [vmem:[#allocation2 + $0x88] sm:$0xff]
    %v157 = vld [vmem:[#allocation2 + $0x90] sm:$0xff]
    %v158 = vld [vmem:[#allocation2 + $0x98] sm:$0xff]
    %v159 = vld [vmem:[#allocation2 + $0xa0] sm:$0xff]
    %v160 = vld [vmem:[#allocation2 + $0xa8] sm:$0xff]
    %v161 = vld [vmem:[#allocation2 + $0xb0] sm:$0xff]
    %v162 = vld [vmem:[#allocation2 + $0xb8] sm:$0xff]
    %v163 = vld [vmem:[#allocation2 + $0xc0] sm:$0xff]
    %v164 = vld [vmem:[#allocation2 + $0xc8] sm:$0xff]
    %v165 = vld [vmem:[#allocation2 + $0xd0] sm:$0xff]
    %v166 = vld [vmem:[#allocation2 + $0xd8] sm:$0xff]
    %v167 = vld [vmem:[#allocation2 + $0xe0] sm:$0xff]
    %v168 = vld [vmem:[#allocation2 + $0xe8] sm:$0xff]
    %v169 = vld [vmem:[#allocation2 + $0xf0] sm:$0xff]
    %v170 = vld [vmem:[#allocation2 + $0xf8] sm:$0xff]
    %v171 = vld [vmem:[#allocation2 + $0x100] sm:$0xff]
    %v172 = vld [vmem:[#allocation2 + $0x108] sm:$0xff]
    %v173 = vld [vmem:[#allocation2 + $0x110] sm:$0xff]
    %v174 = vld [vmem:[#allocation2 + $0x118] sm:$0xff]
    %v175 = vld [vmem:[#allocation2 + $0x120] sm:$0xff]
    %v176 = vld [vmem:[#allocation2 + $0x128] sm:$0xff]
    %v177 = vld [vmem:[#allocation2 + $0x130] sm:$0xff]
    %v178 = vld [vmem:[#allocation2 + $0x138] sm:$0xff]
    %v179 = vld [vmem:[#allocation2 + $0x140] sm:$0xff]
    %v180 = vld [vmem:[#allocation2 + $0x148] sm:$0xff]
    %v181 = vld [vmem:[#allocation2 + $0x150] sm:$0xff]
    %v182 = vld [vmem:[#allocation2 + $0x158] sm:$0xff]
    %v183 = vld [vmem:[#allocation2 + $0x160] sm:$0xff]
    %v184 = vld [vmem:[#allocation2 + $0x168] sm:$0xff]
    %v185 = vld [vmem:[#allocation2 + $0x170] sm:$0xff]
    %v186 = vld [vmem:[#allocation2 + $0x178] sm:$0xff]
    %v187 = vld [vmem:[#allocation2 + $0x180] sm:$0xff]
    %v188 = vld [vmem:[#allocation2 + $0x188] sm:$0xff]
    %v189 = vld [vmem:[#allocation2 + $0x190] sm:$0xff]
    %v190 = vld [vmem:[#allocation2 + $0x198] sm:$0xff]
    %v191 = vld [vmem:[#allocation2 + $0x1a0] sm:$0xff]
    %v192 = vld [vmem:[#allocation2 + $0x1a8] sm:$0xff]
    %v193 = vld [vmem:[#allocation2 + $0x1b0] sm:$0xff]
    %v194 = vld [vmem:[#allocation2 + $0x1b8] sm:$0xff]
    %v195 = vld [vmem:[#allocation2 + $0x1c0] sm:$0xff]
    %v196 = vld [vmem:[#allocation2 + $0x1c8] sm:$0xff]
    %v197 = vld [vmem:[#allocation2 + $0x1d0] sm:$0xff]
    %v198 = vld [vmem:[#allocation2 + $0x1d8] sm:$0xff]
    %v199 = vld [vmem:[#allocation2 + $0x1e0] sm:$0xff]
    %v200 = vld [vmem:[#allocation2 + $0x1e8] sm:$0xff]
    %v201 = vld [vmem:[#allocation2 + $0x1f0] sm:$0xff]
    %v202 = vld [vmem:[#allocation2 + $0x1f8] sm:$0xff]
    %v203 = vld [vmem:[#allocation2 + $0x200] sm:$0xff]
    %v204 = vld [vmem:[#allocation2 + $0x208] sm:$0xff]
    %v205 = vld [vmem:[#allocation2 + $0x210] sm:$0xff]
    %v206 = vld [vmem:[#allocation2 + $0x218] sm:$0xff]
    %v207 = vld [vmem:[#allocation2 + $0x220] sm:$0xff]
    %v208 = vld [vmem:[#allocation2 + $0x228] sm:$0xff]
    %v209 = vld [vmem:[#allocation2 + $0x230] sm:$0xff]
    %v210 = vld [vmem:[#allocation2 + $0x238] sm:$0xff]
    %v211 = vld [vmem:[#allocation2 + $0x240] sm:$0xff]
    %v212 = vld [vmem:[#allocation2 + $0x248] sm:$0xff]
    %v213 = vld [vmem:[#allocation2 + $0x250] sm:$0xff]
    %v214 = vld [vmem:[#allocation2 + $0x258] sm:$0xff]
    %v215 = vld [vmem:[#allocation2 + $0x260] sm:$0xff]
    %v216 = vld [vmem:[#allocation2 + $0x268] sm:$0xff]
    %v217 = vld [vmem:[#allocation2 + $0x270] sm:$0xff]
    %v218 = vld [vmem:[#allocation2 + $0x278] sm:$0xff]
    %v219 = vld [vmem:[#allocation2 + $0x280] sm:$0xff]
    %v220 = vld [vmem:[#allocation2 + $0x288] sm:$0xff]
    %v221 = vld [vmem:[#allocation2 + $0x290] sm:$0xff]
    %v222 = vld [vmem:[#allocation2 + $0x298] sm:$0xff]
    %v223 = vld [vmem:[#allocation2 + $0x2a0] sm:$0xff]
    %v224 = vld [vmem:[#allocation2 + $0x2a8] sm:$0xff]
    %v225 = vld [vmem:[#allocation2 + $0x2b0] sm:$0xff]
    %v226 = vld [vmem:[#allocation2 + $0x2b8] sm:$0xff]
    %v227 = vld [vmem:[#allocation2 + $0x2c0] sm:$0xff]
    %v228 = vld [vmem:[#allocation2 + $0x2c8] sm:$0xff]
    %v229 = vld [vmem:[#allocation2 + $0x2d0] sm:$0xff]
    %v230 = vld [vmem:[#allocation2 + $0x2d8] sm:$0xff]
    %v231 = vld [vmem:[#allocation2 + $0x2e0] sm:$0xff]
    %v232 = vld [vmem:[#allocation2 + $0x2e8] sm:$0xff]
    %v233 = vld [vmem:[#allocation2 + $0x2f0] sm:$0xff]
    %v234 = vld [vmem:[#allocation2 + $0x2f8] sm:$0xff]
    %v235 = vld [vmem:[#allocation2 + $0x300] sm:$0xff]
    %v236 = vld [vmem:[#allocation2 + $0x308] sm:$0xff]
    %v237 = vld [vmem:[#allocation2 + $0x310] sm:$0xff]
    %v238 = vld [vmem:[#allocation2 + $0x318] sm:$0xff]
    %v239 = vld [vmem:[#allocation2 + $0x320] sm:$0xff]
    %v240 = vld [vmem:[#allocation2 + $0x328] sm:$0xff]
    %v241 = vld [vmem:[#allocation2 + $0x330] sm:$0xff]
    %v242 = vld [vmem:[#allocation2 + $0x338] sm:$0xff]
    %v243 = vld [vmem:[#allocation2 + $0x340] sm:$0xff]
    %v244 = vld [vmem:[#allocation2 + $0x348] sm:$0xff]
    %v245 = vld [vmem:[#allocation2 + $0x350] sm:$0xff]
    %v246 = vld [vmem:[#allocation2 + $0x358] sm:$0xff]
    %v247 = vld [vmem:[#allocation2 + $0x360] sm:$0xff]
    %v248 = vld [vmem:[#allocation2 + $0x368] sm:$0xff]
    %v249 = vld [vmem:[#allocation2 + $0x370] sm:$0xff]
    %v250 = vld [vmem:[#allocation2 + $0x378] sm:$0xff]
    %v251 = vld [vmem:[#allocation2 + $0x380] sm:$0xff]
    %v252 = vld [vmem:[#allocation2 + $0x388] sm:$0xff]
    %v253 = vld [vmem:[#allocation2 + $0x390] sm:$0xff]
    %v254 = vld [vmem:[#allocation2 + $0x398] sm:$0xff]
    %v255 = vld [vmem:[#allocation2 + $0x3a0] sm:$0xff]
    %v256 = vld [vmem:[#allocation2 + $0x3a8] sm:$0xff]
    %v257 = vld [vmem:[#allocation2 + $0x3b0] sm:$0xff]
    %v258 = vld [vmem:[#allocation2 + $0x3b8] sm:$0xff]
    %v259 = vld [vmem:[#allocation2 + $0x3c0] sm:$0xff]
    %v260 = vld [vmem:[#allocation2 + $0x3c8] sm:$0xff]
    %v261 = vld [vmem:[#allocation2 + $0x3d0] sm:$0xff]
    %v262 = vld [vmem:[#allocation2 + $0x3d8] sm:$0xff]
    %v263 = vld [vmem:[#allocation2 + $0x3e0] sm:$0xff]
    %v264 = vld [vmem:[#allocation2 + $0x3e8] sm:$0xff]
    %v265 = vld [vmem:[#allocation2 + $0x3f0] sm:$0xff]
    %v266 = vld [vmem:[#allocation2 + $0x3f8] sm:$0xff]
    %v267 = vld [vmem:[#allocation2 + $0x400] sm:$0xff]
    %v268 = vld [vmem:[#allocation2 + $0x408] sm:$0xff]
    %v269 = vld [vmem:[#allocation2 + $0x410] sm:$0xff]
    %v270 = vld [vmem:[#allocation2 + $0x418] sm:$0xff]
    %v271 = vld [vmem:[#allocation2 + $0x420] sm:$0xff]
    %v272 = vld [vmem:[#allocation2 + $0x428] sm:$0xff]
    %v273 = vld [vmem:[#allocation2 + $0x430] sm:$0xff]
    %v274 = vld [vmem:[#allocation2 + $0x438] sm:$0xff]
    %v275 = vld [vmem:[#allocation2 + $0x440] sm:$0xff]
    %v276 = vld [vmem:[#allocation2 + $0x448] sm:$0xff]
    %v277 = vld [vmem:[#allocation2 + $0x450] sm:$0xff]
    %v278 = vld [vmem:[#allocation2 + $0x458] sm:$0xff]
    %v279 = vld [vmem:[#allocation2 + $0x460] sm:$0xff]
    %v280 = vld [vmem:[#allocation2 + $0x468] sm:$0xff]
    %v281 = vld [vmem:[#allocation2 + $0x470] sm:$0xff]
    %v282 = vld [vmem:[#allocation2 + $0x478] sm:$0xff]
    %v283 = vld [vmem:[#allocation2 + $0x480] sm:$0xff]
    %v284 = vld [vmem:[#allocation2 + $0x488] sm:$0xff]
    %v285 = vld [vmem:[#allocation2 + $0x490] sm:$0xff]
    %v286 = vld [vmem:[#allocation2 + $0x498] sm:$0xff]
    %v287 = vld [vmem:[#allocation2 + $0x4a0] sm:$0xff]
    %v288 = vld [vmem:[#allocation2 + $0x4a8] sm:$0xff]
    %v289 = vld [vmem:[#allocation2 + $0x4b0] sm:$0xff]
    %v290 = vld [vmem:[#allocation2 + $0x4b8] sm:$0xff]
    %v291 = vld [vmem:[#allocation2 + $0x4c0] sm:$0xff]
    %v292 = vld [vmem:[#allocation2 + $0x4c8] sm:$0xff]
    %v293 = vld [vmem:[#allocation2 + $0x4d0] sm:$0xff]
    %v294 = vld [vmem:[#allocation2 + $0x4d8] sm:$0xff]
    %v295 = vld [vmem:[#allocation2 + $0x4e0] sm:$0xff]
    %v296 = vld [vmem:[#allocation2 + $0x4e8] sm:$0xff]
    %v297 = vld [vmem:[#allocation2 + $0x4f0] sm:$0xff]
    %v298 = vld [vmem:[#allocation2 + $0x4f8] sm:$0xff]
    %v299 = vld [vmem:[#allocation2 + $0x500] sm:$0xff]
    %v300 = vld [vmem:[#allocation2 + $0x508] sm:$0xff]
    %v301 = vld [vmem:[#allocation2 + $0x510] sm:$0xff]
    %v302 = vld [vmem:[#allocation2 + $0x518] sm:$0xff]
    %v303 = vld [vmem:[#allocation2 + $0x520] sm:$0xff]
    %v304 = vld [vmem:[#allocation2 + $0x528] sm:$0xff]
    %v305 = vld [vmem:[#allocation2 + $0x530] sm:$0xff]
    %v306 = vld [vmem:[#allocation2 + $0x538] sm:$0xff]
    %v307 = vld [vmem:[#allocation2 + $0x540] sm:$0xff]
    %v308 = vld [vmem:[#allocation2 + $0x548] sm:$0xff]
    %v309 = vld [vmem:[#allocation2 + $0x550] sm:$0xff]
    %v310 = vld [vmem:[#allocation2 + $0x558] sm:$0xff]
    %v311 = vld [vmem:[#allocation2 + $0x560] sm:$0xff]
    %v312 = vld [vmem:[#allocation2 + $0x568] sm:$0xff]
    %v313 = vld [vmem:[#allocation2 + $0x570] sm:$0xff]
    %v314 = vld [vmem:[#allocation2 + $0x578] sm:$0xff]
    %v315 = vld [vmem:[#allocation2 + $0x580] sm:$0xff]
    %v316 = vld [vmem:[#allocation2 + $0x588] sm:$0xff]
    %v317 = vld [vmem:[#allocation2 + $0x590] sm:$0xff]
    %v318 = vld [vmem:[#allocation2 + $0x598] sm:$0xff]
    %v319 = vld [vmem:[#allocation2 + $0x5a0] sm:$0xff]
    %v320 = vld [vmem:[#allocation2 + $0x5a8] sm:$0xff]
    %v321 = vld [vmem:[#allocation2 + $0x5b0] sm:$0xff]
    %v322 = vld [vmem:[#allocation2 + $0x5b8] sm:$0xff]
    %v323 = vld [vmem:[#allocation2 + $0x5c0] sm:$0xff]
    %v324 = vld [vmem:[#allocation2 + $0x5c8] sm:$0xff]
    %v325 = vld [vmem:[#allocation2 + $0x5d0] sm:$0xff]
    %v326 = vld [vmem:[#allocation2 + $0x5d8] sm:$0xff]
    %v327 = vld [vmem:[#allocation2 + $0x5e0] sm:$0xff]
    %v328 = vld [vmem:[#allocation2 + $0x5e8] sm:$0xff]
    %v329 = vld [vmem:[#allocation2 + $0x5f0] sm:$0xff]
    %v330 = vld [vmem:[#allocation2 + $0x5f8] sm:$0xff]
    %v331 = vld [vmem:[#allocation2 + $0x600] sm:$0xff]
    %v332 = vld [vmem:[#allocation2 + $0x608] sm:$0xff]
    %v333 = vld [vmem:[#allocation2 + $0x610] sm:$0xff]
    %v334 = vld [vmem:[#allocation2 + $0x618] sm:$0xff]
    %v335 = vld [vmem:[#allocation2 + $0x620] sm:$0xff]
    %v336 = vld [vmem:[#allocation2 + $0x628] sm:$0xff]
    %v337 = vld [vmem:[#allocation2 + $0x630] sm:$0xff]
    %v338 = vld [vmem:[#allocation2 + $0x638] sm:$0xff]
    %v339 = vld [vmem:[#allocation2 + $0x640] sm:$0xff]
    %v340 = vld [vmem:[#allocation2 + $0x648] sm:$0xff]
    %v341 = vld [vmem:[#allocation2 + $0x650] sm:$0xff]
    %v342 = vld [vmem:[#allocation2 + $0x658] sm:$0xff]
    %v343 = vld [vmem:[#allocation2 + $0x660] sm:$0xff]
    %v344 = vld [vmem:[#allocation2 + $0x668] sm:$0xff]
    %v345 = vld [vmem:[#allocation2 + $0x670] sm:$0xff]
    %v346 = vld [vmem:[#allocation2 + $0x678] sm:$0xff]
    %v347 = vld [vmem:[#allocation2 + $0x680] sm:$0xff]
    %v348 = vld [vmem:[#allocation2 + $0x688] sm:$0xff]
    %v349 = vld [vmem:[#allocation2 + $0x690] sm:$0xff]
    %v350 = vld [vmem:[#allocation2 + $0x698] sm:$0xff]
    %v351 = vld [vmem:[#allocation2 + $0x6a0] sm:$0xff]
    %v352 = vld [vmem:[#allocation2 + $0x6a8] sm:$0xff]
    %v353 = vld [vmem:[#allocation2 + $0x6b0] sm:$0xff]
    %v354 = vld [vmem:[#allocation2 + $0x6b8] sm:$0xff]
    %v355 = vld [vmem:[#allocation2 + $0x6c0] sm:$0xff]
    %v356 = vld [vmem:[#allocation2 + $0x6c8] sm:$0xff]
    %v357 = vld [vmem:[#allocation2 + $0x6d0] sm:$0xff]
    %v358 = vld [vmem:[#allocation2 + $0x6d8] sm:$0xff]
    %v359 = vld [vmem:[#allocation2 + $0x6e0] sm:$0xff]
    %v360 = vld [vmem:[#allocation2 + $0x6e8] sm:$0xff]
    %v361 = vld [vmem:[#allocation2 + $0x6f0] sm:$0xff]
    %v362 = vld [vmem:[#allocation2 + $0x6f8] sm:$0xff]
    %v363 = vld [vmem:[#allocation2 + $0x700] sm:$0xff]
    %v364 = vld [vmem:[#allocation2 + $0x708] sm:$0xff]
    %v365 = vld [vmem:[#allocation2 + $0x710] sm:$0xff]
    %v366 = vld [vmem:[#allocation2 + $0x718] sm:$0xff]
    %v367 = vld [vmem:[#allocation2 + $0x720] sm:$0xff]
    %v368 = vld [vmem:[#allocation2 + $0x728] sm:$0xff]
    %v369 = vld [vmem:[#allocation2 + $0x730] sm:$0xff]
    %v370 = vld [vmem:[#allocation2 + $0x738] sm:$0xff]
    %v371 = vld [vmem:[#allocation2 + $0x740] sm:$0xff]
    %v372 = vld [vmem:[#allocation2 + $0x748] sm:$0xff]
    %v373 = vld [vmem:[#allocation2 + $0x750] sm:$0xff]
    %v374 = vld [vmem:[#allocation2 + $0x758] sm:$0xff]
    %v375 = vld [vmem:[#allocation2 + $0x760] sm:$0xff]
    %v376 = vld [vmem:[#allocation2 + $0x768] sm:$0xff]
    %v377 = vld [vmem:[#allocation2 + $0x770] sm:$0xff]
    %v378 = vld [vmem:[#allocation2 + $0x778] sm:$0xff]
    %v379 = vld [vmem:[#allocation2 + $0x780] sm:$0xff]
    %v380 = vld [vmem:[#allocation2 + $0x788] sm:$0xff]
    %v381 = vld [vmem:[#allocation2 + $0x790] sm:$0xff]
    %v382 = vld [vmem:[#allocation2 + $0x798] sm:$0xff]
    %v383 = vld [vmem:[#allocation2 + $0x7a0] sm:$0xff]
    %v384 = vld [vmem:[#allocation2 + $0x7a8] sm:$0xff]
    %v385 = vld [vmem:[#allocation2 + $0x7b0] sm:$0xff]
    %v386 = vld [vmem:[#allocation2 + $0x7b8] sm:$0xff]
    %v387 = vld [vmem:[#allocation2 + $0x7c0] sm:$0xff]
    %v388 = vld [vmem:[#allocation2 + $0x7c8] sm:$0xff]
    %v389 = vld [vmem:[#allocation2 + $0x7d0] sm:$0xff]
    %v390 = vld [vmem:[#allocation2 + $0x7d8] sm:$0xff]
    %v391 = vld [vmem:[#allocation2 + $0x7e0] sm:$0xff]
    %v392 = vld [vmem:[#allocation2 + $0x7e8] sm:$0xff]
    %v393 = vld [vmem:[#allocation2 + $0x7f0] sm:$0xff]
    %v394 = vld [vmem:[#allocation2 + $0x7f8] sm:$0xff]
    %v397 = vcombine.high %v137, %v137
    %v399 = vunpack.c.l.s4 1983009808
    %v400 = vunpack.c.0.s8 %v399
    %v401 = vlaneseq
    %v402 = vshrl.u32 %v401, 7
    %v403 = vsub.s32 %v400, %v402
    %v404 = vrot.slane %v137, %v403
    %v406 = vunpack.c.l.s4 1983009808
    %v407 = vunpack.c.0.s8 %v406
    %v408 = vlaneseq
    %v409 = vshrl.u32 %v408, 7
    %v410 = vsub.s32 %v407, %v409
    %v411 = vrot.slane %v397, %v410
    %v412 = vcombine.high %v404, %v404
    %v413 = vcombine.high %v411, %v411
    %v414 = vcombine.high %v138, %v138
    %v416 = vunpack.c.l.s4 1983009808
    %v417 = vunpack.c.0.s8 %v416
    %v418 = vlaneseq
    %v419 = vshrl.u32 %v418, 7
    %v420 = vsub.s32 %v417, %v419
    %v421 = vrot.slane %v138, %v420
    %v423 = vunpack.c.l.s4 1983009808
    %v424 = vunpack.c.0.s8 %v423
    %v425 = vlaneseq
    %v426 = vshrl.u32 %v425, 7
    %v427 = vsub.s32 %v424, %v426
    %v428 = vrot.slane %v414, %v427
    %v429 = vcombine.high %v421, %v421
    %v430 = vcombine.high %v428, %v428
    %439 = vmatprep.subr.mxu0 %v170
    %440 = vmatpush1.msra.mxu0 %v169
    %441 = vmatprep.subr.mxu0 %v168
    %442 = vmatpush1.msra.mxu0 %v167
    %443 = vmatprep.subr.mxu0 %v166
    %444 = vmatpush1.msra.mxu0 %v165
    %445 = vmatprep.subr.mxu0 %v164
    %446 = vmatpush1.msra.mxu0 %v163
    %447 = vmatprep.subr.mxu0 %v162
    %448 = vmatpush1.msra.mxu0 %v161
    %449 = vmatprep.subr.mxu0 %v160
    %450 = vmatpush1.msra.mxu0 %v159
    %451 = vmatprep.subr.mxu0 %v158
    %452 = vmatpush1.msra.mxu0 %v157
    %453 = vmatprep.subr.mxu0 %v156
    %454 = vmatpush1.msra.mxu0 %v155
    %455 = vmatprep.subr.mxu0 %v154
    %456 = vmatpush1.msra.mxu0 %v153
    %457 = vmatprep.subr.mxu0 %v152
    %458 = vmatpush1.msra.mxu0 %v151
    %459 = vmatprep.subr.mxu0 %v150
    %460 = vmatpush1.msra.mxu0 %v149
    %461 = vmatprep.subr.mxu0 %v148
    %462 = vmatpush1.msra.mxu0 %v147
    %463 = vmatprep.subr.mxu0 %v146
    %464 = vmatpush1.msra.mxu0 %v145
    %465 = vmatprep.subr.mxu0 %v144
    %466 = vmatpush1.msra.mxu0 %v143
    %467 = vmatprep.subr.mxu0 %v142
    %468 = vmatpush1.msra.mxu0 %v141
    %469 = vmatprep.subr.mxu0 %v140
    %470 = vmatpush1.msra.mxu0 %v139
    %471 = vmatprep.subr.mxu0 %v202
    %472 = vmatpush2.msra.mxu0 %v201
    %473 = vmatprep.subr.mxu0 %v200
    %474 = vmatpush2.msra.mxu0 %v199
    %475 = vmatprep.subr.mxu0 %v198
    %476 = vmatpush2.msra.mxu0 %v197
    %477 = vmatprep.subr.mxu0 %v196
    %478 = vmatpush2.msra.mxu0 %v195
    %479 = vmatprep.subr.mxu0 %v194
    %480 = vmatpush2.msra.mxu0 %v193
    %481 = vmatprep.subr.mxu0 %v192
    %482 = vmatpush2.msra.mxu0 %v191
    %483 = vmatprep.subr.mxu0 %v190
    %484 = vmatpush2.msra.mxu0 %v189
    %485 = vmatprep.subr.mxu0 %v188
    %486 = vmatpush2.msra.mxu0 %v187
    %487 = vmatprep.subr.mxu0 %v186
    %488 = vmatpush2.msra.mxu0 %v185
    %489 = vmatprep.subr.mxu0 %v184
    %490 = vmatpush2.msra.mxu0 %v183
    %491 = vmatprep.subr.mxu0 %v182
    %492 = vmatpush2.msra.mxu0 %v181
    %493 = vmatprep.subr.mxu0 %v180
    %494 = vmatpush2.msra.mxu0 %v179
    %495 = vmatprep.subr.mxu0 %v178
    %496 = vmatpush2.msra.mxu0 %v177
    %497 = vmatprep.subr.mxu0 %v176
    %498 = vmatpush2.msra.mxu0 %v175
    %499 = vmatprep.subr.mxu0 %v174
    %500 = vmatpush2.msra.mxu0 %v173
    %501 = vmatprep.subr.mxu0 %v172
    %502 = vmatpush2.msra.mxu0 %v171
    %503 = vmatprep.mubr.f32.mxu0 %v412
    %504 = vmatmul.mubr.f32.gmra.mxu0 %v404
    %v505 = vpop.f32.mrf.mxu0
    %v506 = vadd.f32 0.0, %v505
    %v507 = vpop.f32.mrf.mxu0
    %v508 = vadd.f32 0.0, %v507
    %509 = vdwg.mxu0
    %510 = vmatprep.subr.mxu0 %v234
    %511 = vmatpush1.msra.mxu0 %v233
    %512 = vmatprep.subr.mxu0 %v232
    %513 = vmatpush1.msra.mxu0 %v231
    %514 = vmatprep.subr.mxu0 %v230
    %515 = vmatpush1.msra.mxu0 %v229
    %516 = vmatprep.subr.mxu0 %v228
    %517 = vmatpush1.msra.mxu0 %v227
    %518 = vmatprep.subr.mxu0 %v226
    %519 = vmatpush1.msra.mxu0 %v225
    %520 = vmatprep.subr.mxu0 %v224
    %521 = vmatpush1.msra.mxu0 %v223
    %522 = vmatprep.subr.mxu0 %v222
    %523 = vmatpush1.msra.mxu0 %v221
    %524 = vmatprep.subr.mxu0 %v220
    %525 = vmatpush1.msra.mxu0 %v219
    %526 = vmatprep.subr.mxu0 %v218
    %527 = vmatpush1.msra.mxu0 %v217
    %528 = vmatprep.subr.mxu0 %v216
    %529 = vmatpush1.msra.mxu0 %v215
    %530 = vmatprep.subr.mxu0 %v214
    %531 = vmatpush1.msra.mxu0 %v213
    %532 = vmatprep.subr.mxu0 %v212
    %533 = vmatpush1.msra.mxu0 %v211
    %534 = vmatprep.subr.mxu0 %v210
    %535 = vmatpush1.msra.mxu0 %v209
    %536 = vmatprep.subr.mxu0 %v208
    %537 = vmatpush1.msra.mxu0 %v207
    %538 = vmatprep.subr.mxu0 %v206
    %539 = vmatpush1.msra.mxu0 %v205
    %540 = vmatprep.subr.mxu0 %v204
    %541 = vmatpush1.msra.mxu0 %v203
    %542 = vmatprep.subr.mxu0 %v266
    %543 = vmatpush2.msra.mxu0 %v265
    %544 = vmatprep.subr.mxu0 %v264
    %545 = vmatpush2.msra.mxu0 %v263
    %546 = vmatprep.subr.mxu0 %v262
    %547 = vmatpush2.msra.mxu0 %v261
    %548 = vmatprep.subr.mxu0 %v260
    %549 = vmatpush2.msra.mxu0 %v259
    %550 = vmatprep.subr.mxu0 %v258
    %551 = vmatpush2.msra.mxu0 %v257
    %552 = vmatprep.subr.mxu0 %v256
    %553 = vmatpush2.msra.mxu0 %v255
    %554 = vmatprep.subr.mxu0 %v254
    %555 = vmatpush2.msra.mxu0 %v253
    %556 = vmatprep.subr.mxu0 %v252
    %557 = vmatpush2.msra.mxu0 %v251
    %558 = vmatprep.subr.mxu0 %v250
    %559 = vmatpush2.msra.mxu0 %v249
    %560 = vmatprep.subr.mxu0 %v248
    %561 = vmatpush2.msra.mxu0 %v247
    %562 = vmatprep.subr.mxu0 %v246
    %563 = vmatpush2.msra.mxu0 %v245
    %564 = vmatprep.subr.mxu0 %v244
    %565 = vmatpush2.msra.mxu0 %v243
    %566 = vmatprep.subr.mxu0 %v242
    %567 = vmatpush2.msra.mxu0 %v241
    %568 = vmatprep.subr.mxu0 %v240
    %569 = vmatpush2.msra.mxu0 %v239
    %570 = vmatprep.subr.mxu0 %v238
    %571 = vmatpush2.msra.mxu0 %v237
    %572 = vmatprep.subr.mxu0 %v236
    %573 = vmatpush2.msra.mxu0 %v235
    %574 = vmatprep.mubr.f32.mxu0 %v413
    %575 = vmatmul.mubr.f32.gmra.mxu0 %v411
    %v576 = vpop.f32.mrf.mxu0
    %v577 = vadd.f32 %v506, %v576
    %v578 = vpop.f32.mrf.mxu0
    %v579 = vadd.f32 %v508, %v578
    %580 = vdwg.mxu0
    %581 = vmatprep.subr.mxu0 %v298
    %582 = vmatpush1.msra.mxu0 %v297
    %583 = vmatprep.subr.mxu0 %v296
    %584 = vmatpush1.msra.mxu0 %v295
    %585 = vmatprep.subr.mxu0 %v294
    %586 = vmatpush1.msra.mxu0 %v293
    %587 = vmatprep.subr.mxu0 %v292
    %588 = vmatpush1.msra.mxu0 %v291
    %589 = vmatprep.subr.mxu0 %v290
    %590 = vmatpush1.msra.mxu0 %v289
    %591 = vmatprep.subr.mxu0 %v288
    %592 = vmatpush1.msra.mxu0 %v287
    %593 = vmatprep.subr.mxu0 %v286
    %594 = vmatpush1.msra.mxu0 %v285
    %595 = vmatprep.subr.mxu0 %v284
    %596 = vmatpush1.msra.mxu0 %v283
    %597 = vmatprep.subr.mxu0 %v282
    %598 = vmatpush1.msra.mxu0 %v281
    %599 = vmatprep.subr.mxu0 %v280
    %600 = vmatpush1.msra.mxu0 %v279
    %601 = vmatprep.subr.mxu0 %v278
    %602 = vmatpush1.msra.mxu0 %v277
    %603 = vmatprep.subr.mxu0 %v276
    %604 = vmatpush1.msra.mxu0 %v275
    %605 = vmatprep.subr.mxu0 %v274
    %606 = vmatpush1.msra.mxu0 %v273
    %607 = vmatprep.subr.mxu0 %v272
    %608 = vmatpush1.msra.mxu0 %v271
    %609 = vmatprep.subr.mxu0 %v270
    %610 = vmatpush1.msra.mxu0 %v269
    %611 = vmatprep.subr.mxu0 %v268
    %612 = vmatpush1.msra.mxu0 %v267
    %613 = vmatprep.subr.mxu0 %v330
    %614 = vmatpush2.msra.mxu0 %v329
    %615 = vmatprep.subr.mxu0 %v328
    %616 = vmatpush2.msra.mxu0 %v327
    %617 = vmatprep.subr.mxu0 %v326
    %618 = vmatpush2.msra.mxu0 %v325
    %619 = vmatprep.subr.mxu0 %v324
    %620 = vmatpush2.msra.mxu0 %v323
    %621 = vmatprep.subr.mxu0 %v322
    %622 = vmatpush2.msra.mxu0 %v321
    %623 = vmatprep.subr.mxu0 %v320
    %624 = vmatpush2.msra.mxu0 %v319
    %625 = vmatprep.subr.mxu0 %v318
    %626 = vmatpush2.msra.mxu0 %v317
    %627 = vmatprep.subr.mxu0 %v316
    %628 = vmatpush2.msra.mxu0 %v315
    %629 = vmatprep.subr.mxu0 %v314
    %630 = vmatpush2.msra.mxu0 %v313
    %631 = vmatprep.subr.mxu0 %v312
    %632 = vmatpush2.msra.mxu0 %v311
    %633 = vmatprep.subr.mxu0 %v310
    %634 = vmatpush2.msra.mxu0 %v309
    %635 = vmatprep.subr.mxu0 %v308
    %636 = vmatpush2.msra.mxu0 %v307
    %637 = vmatprep.subr.mxu0 %v306
    %638 = vmatpush2.msra.mxu0 %v305
    %639 = vmatprep.subr.mxu0 %v304
    %640 = vmatpush2.msra.mxu0 %v303
    %641 = vmatprep.subr.mxu0 %v302
    %642 = vmatpush2.msra.mxu0 %v301
    %643 = vmatprep.subr.mxu0 %v300
    %644 = vmatpush2.msra.mxu0 %v299
    %645 = vmatprep.mubr.f32.mxu0 %v429
    %646 = vmatmul.mubr.f32.gmra.mxu0 %v421
    %v647 = vpop.f32.mrf.mxu0
    %v648 = vadd.f32 %v577, %v647
    %v649 = vpop.f32.mrf.mxu0
    %v650 = vadd.f32 %v579, %v649
    %651 = vdwg.mxu0
    %652 = vmatprep.subr.mxu0 %v362
    %653 = vmatpush1.msra.mxu0 %v361
    %654 = vmatprep.subr.mxu0 %v360
    %655 = vmatpush1.msra.mxu0 %v359
    %656 = vmatprep.subr.mxu0 %v358
    %657 = vmatpush1.msra.mxu0 %v357
    %658 = vmatprep.subr.mxu0 %v356
    %659 = vmatpush1.msra.mxu0 %v355
    %660 = vmatprep.subr.mxu0 %v354
    %661 = vmatpush1.msra.mxu0 %v353
    %662 = vmatprep.subr.mxu0 %v352
    %663 = vmatpush1.msra.mxu0 %v351
    %664 = vmatprep.subr.mxu0 %v350
    %665 = vmatpush1.msra.mxu0 %v349
    %666 = vmatprep.subr.mxu0 %v348
    %667 = vmatpush1.msra.mxu0 %v347
    %668 = vmatprep.subr.mxu0 %v346
    %669 = vmatpush1.msra.mxu0 %v345
    %670 = vmatprep.subr.mxu0 %v344
    %671 = vmatpush1.msra.mxu0 %v343
    %672 = vmatprep.subr.mxu0 %v342
    %673 = vmatpush1.msra.mxu0 %v341
    %674 = vmatprep.subr.mxu0 %v340
    %675 = vmatpush1.msra.mxu0 %v339
    %676 = vmatprep.subr.mxu0 %v338
    %677 = vmatpush1.msra.mxu0 %v337
    %678 = vmatprep.subr.mxu0 %v336
    %679 = vmatpush1.msra.mxu0 %v335
    %680 = vmatprep.subr.mxu0 %v334
    %681 = vmatpush1.msra.mxu0 %v333
    %682 = vmatprep.subr.mxu0 %v332
    %683 = vmatpush1.msra.mxu0 %v331
    %684 = vmatprep.subr.mxu0 %v394
    %685 = vmatpush2.msra.mxu0 %v393
    %686 = vmatprep.subr.mxu0 %v392
    %687 = vmatpush2.msra.mxu0 %v391
    %688 = vmatprep.subr.mxu0 %v390
    %689 = vmatpush2.msra.mxu0 %v389
    %690 = vmatprep.subr.mxu0 %v388
    %691 = vmatpush2.msra.mxu0 %v387
    %692 = vmatprep.subr.mxu0 %v386
    %693 = vmatpush2.msra.mxu0 %v385
    %694 = vmatprep.subr.mxu0 %v384
    %695 = vmatpush2.msra.mxu0 %v383
    %696 = vmatprep.subr.mxu0 %v382
    %697 = vmatpush2.msra.mxu0 %v381
    %698 = vmatprep.subr.mxu0 %v380
    %699 = vmatpush2.msra.mxu0 %v379
    %700 = vmatprep.subr.mxu0 %v378
    %701 = vmatpush2.msra.mxu0 %v377
    %702 = vmatprep.subr.mxu0 %v376
    %703 = vmatpush2.msra.mxu0 %v375
    %704 = vmatprep.subr.mxu0 %v374
    %705 = vmatpush2.msra.mxu0 %v373
    %706 = vmatprep.subr.mxu0 %v372
    %707 = vmatpush2.msra.mxu0 %v371
    %708 = vmatprep.subr.mxu0 %v370
    %709 = vmatpush2.msra.mxu0 %v369
    %710 = vmatprep.subr.mxu0 %v368
    %711 = vmatpush2.msra.mxu0 %v367
    %712 = vmatprep.subr.mxu0 %v366
    %713 = vmatpush2.msra.mxu0 %v365
    %714 = vmatprep.subr.mxu0 %v364
    %715 = vmatpush2.msra.mxu0 %v363
    %716 = vmatprep.mubr.f32.mxu0 %v430
    %717 = vmatmul.mubr.f32.gmra.mxu0 %v428
    %v718 = vpop.f32.mrf.mxu0
    %v719 = vadd.f32 %v648, %v718
    %v720 = vpop.f32.mrf.mxu0
    %v721 = vadd.f32 %v650, %v720
    %722 = vdwg.mxu0
    %v723 = vld [vmem:[%s11] sm:$0xff]
    %v724 = vld [vmem:[%s11 + $0x8] sm:$0xff]
    %v725 = vld [vmem:[%s11 + $0x10] sm:$0xff]
    %v726 = vld [vmem:[%s11 + $0x18] sm:$0xff]
    %v727 = vld [vmem:[%s11 + $0x20] sm:$0xff]
    %v728 = vld [vmem:[%s11 + $0x28] sm:$0xff]
    %v729 = vld [vmem:[%s11 + $0x30] sm:$0xff]
    %v730 = vld [vmem:[%s11 + $0x38] sm:$0xff]
    %v731 = vld [vmem:[%s11 + $0x40] sm:$0xff]
    %v732 = vld [vmem:[%s11 + $0x48] sm:$0xff]
    %v733 = vld [vmem:[%s11 + $0x50] sm:$0xff]
    %v734 = vld [vmem:[%s11 + $0x58] sm:$0xff]
    %v735 = vld [vmem:[%s11 + $0x60] sm:$0xff]
    %v736 = vld [vmem:[%s11 + $0x68] sm:$0xff]
    %v737 = vld [vmem:[%s11 + $0x70] sm:$0xff]
    %v738 = vld [vmem:[%s11 + $0x78] sm:$0xff]
    %v739 = vld [vmem:[%s11 + $0x80] sm:$0xff]
    %v740 = vld [vmem:[%s11 + $0x88] sm:$0xff]
    %v741 = vld [vmem:[%s11 + $0x90] sm:$0xff]
    %v742 = vld [vmem:[%s11 + $0x98] sm:$0xff]
    %v743 = vld [vmem:[%s11 + $0xa0] sm:$0xff]
    %v744 = vld [vmem:[%s11 + $0xa8] sm:$0xff]
    %v745 = vld [vmem:[%s11 + $0xb0] sm:$0xff]
    %v746 = vld [vmem:[%s11 + $0xb8] sm:$0xff]
    %v747 = vld [vmem:[%s11 + $0xc0] sm:$0xff]
    %v748 = vld [vmem:[%s11 + $0xc8] sm:$0xff]
    %v749 = vld [vmem:[%s11 + $0xd0] sm:$0xff]
    %v750 = vld [vmem:[%s11 + $0xd8] sm:$0xff]
    %v751 = vld [vmem:[%s11 + $0xe0] sm:$0xff]
    %v752 = vld [vmem:[%s11 + $0xe8] sm:$0xff]
    %v753 = vld [vmem:[%s11 + $0xf0] sm:$0xff]
    %v754 = vld [vmem:[%s11 + $0xf8] sm:$0xff]
    %v755 = vld [vmem:[%s12] sm:$0xff]
    %v756 = vld [vmem:[#allocation7] sm:$0xff]
    %v757 = vld [vmem:[#allocation7 + $0x8] sm:$0xff]
    %v758 = vld [vmem:[#allocation7 + $0x10] sm:$0xff]
    %v759 = vld [vmem:[#allocation7 + $0x18] sm:$0xff]
    %v760 = vld [vmem:[#allocation7 + $0x20] sm:$0xff]
    %v761 = vld [vmem:[#allocation7 + $0x28] sm:$0xff]
    %v762 = vld [vmem:[#allocation7 + $0x30] sm:$0xff]
    %v763 = vld [vmem:[#allocation7 + $0x38] sm:$0xff]
    %v764 = vld [vmem:[#allocation7 + $0x40] sm:$0xff]
    %v765 = vld [vmem:[#allocation7 + $0x48] sm:$0xff]
    %v766 = vld [vmem:[#allocation7 + $0x50] sm:$0xff]
    %v767 = vld [vmem:[#allocation7 + $0x58] sm:$0xff]
    %v768 = vld [vmem:[#allocation7 + $0x60] sm:$0xff]
    %v769 = vld [vmem:[#allocation7 + $0x68] sm:$0xff]
    %v770 = vld [vmem:[#allocation7 + $0x70] sm:$0xff]
    %v771 = vld [vmem:[#allocation7 + $0x78] sm:$0xff]
    %v772 = vld [vmem:[#allocation7 + $0x80] sm:$0xff]
    %v773 = vld [vmem:[#allocation7 + $0x88] sm:$0xff]
    %v774 = vld [vmem:[#allocation7 + $0x90] sm:$0xff]
    %v775 = vld [vmem:[#allocation7 + $0x98] sm:$0xff]
    %v776 = vld [vmem:[#allocation7 + $0xa0] sm:$0xff]
    %v777 = vld [vmem:[#allocation7 + $0xa8] sm:$0xff]
    %v778 = vld [vmem:[#allocation7 + $0xb0] sm:$0xff]
    %v779 = vld [vmem:[#allocation7 + $0xb8] sm:$0xff]
    %v780 = vld [vmem:[#allocation7 + $0xc0] sm:$0xff]
    %v781 = vld [vmem:[#allocation7 + $0xc8] sm:$0xff]
    %v782 = vld [vmem:[#allocation7 + $0xd0] sm:$0xff]
    %v783 = vld [vmem:[#allocation7 + $0xd8] sm:$0xff]
    %v784 = vld [vmem:[#allocation7 + $0xe0] sm:$0xff]
    %v785 = vld [vmem:[#allocation7 + $0xe8] sm:$0xff]
    %v786 = vld [vmem:[#allocation7 + $0xf0] sm:$0xff]
    %v787 = vld [vmem:[#allocation7 + $0xf8] sm:$0xff]
    %v788 = vld [vmem:[#allocation7 + $0x100] sm:$0xff]
    %v789 = vld [vmem:[#allocation7 + $0x108] sm:$0xff]
    %v790 = vld [vmem:[#allocation7 + $0x110] sm:$0xff]
    %v791 = vld [vmem:[#allocation7 + $0x118] sm:$0xff]
    %v792 = vld [vmem:[#allocation7 + $0x120] sm:$0xff]
    %v793 = vld [vmem:[#allocation7 + $0x128] sm:$0xff]
    %v794 = vld [vmem:[#allocation7 + $0x130] sm:$0xff]
    %v795 = vld [vmem:[#allocation7 + $0x138] sm:$0xff]
    %v796 = vld [vmem:[#allocation7 + $0x140] sm:$0xff]
    %v797 = vld [vmem:[#allocation7 + $0x148] sm:$0xff]
    %v798 = vld [vmem:[#allocation7 + $0x150] sm:$0xff]
    %v799 = vld [vmem:[#allocation7 + $0x158] sm:$0xff]
    %v800 = vld [vmem:[#allocation7 + $0x160] sm:$0xff]
    %v801 = vld [vmem:[#allocation7 + $0x168] sm:$0xff]
    %v802 = vld [vmem:[#allocation7 + $0x170] sm:$0xff]
    %v803 = vld [vmem:[#allocation7 + $0x178] sm:$0xff]
    %v804 = vld [vmem:[#allocation7 + $0x180] sm:$0xff]
    %v805 = vld [vmem:[#allocation7 + $0x188] sm:$0xff]
    %v806 = vld [vmem:[#allocation7 + $0x190] sm:$0xff]
    %v807 = vld [vmem:[#allocation7 + $0x198] sm:$0xff]
    %v808 = vld [vmem:[#allocation7 + $0x1a0] sm:$0xff]
    %v809 = vld [vmem:[#allocation7 + $0x1a8] sm:$0xff]
    %v810 = vld [vmem:[#allocation7 + $0x1b0] sm:$0xff]
    %v811 = vld [vmem:[#allocation7 + $0x1b8] sm:$0xff]
    %v812 = vld [vmem:[#allocation7 + $0x1c0] sm:$0xff]
    %v813 = vld [vmem:[#allocation7 + $0x1c8] sm:$0xff]
    %v814 = vld [vmem:[#allocation7 + $0x1d0] sm:$0xff]
    %v815 = vld [vmem:[#allocation7 + $0x1d8] sm:$0xff]
    %v816 = vld [vmem:[#allocation7 + $0x1e0] sm:$0xff]
    %v817 = vld [vmem:[#allocation7 + $0x1e8] sm:$0xff]
    %v818 = vld [vmem:[#allocation7 + $0x1f0] sm:$0xff]
    %v819 = vld [vmem:[#allocation7 + $0x1f8] sm:$0xff]
    %s820 = scalar_lea.vmem [#allocation7], 512
    %v821 = vld [vmem:[%s820] sm:$0xff]
    %v822 = vld [vmem:[%s820 + $0x8] sm:$0xff]
    %v823 = vld [vmem:[%s820 + $0x10] sm:$0xff]
    %v824 = vld [vmem:[%s820 + $0x18] sm:$0xff]
    %v825 = vld [vmem:[%s820 + $0x20] sm:$0xff]
    %v826 = vld [vmem:[%s820 + $0x28] sm:$0xff]
    %v827 = vld [vmem:[%s820 + $0x30] sm:$0xff]
    %v828 = vld [vmem:[%s820 + $0x38] sm:$0xff]
    %v829 = vld [vmem:[%s820 + $0x40] sm:$0xff]
    %v830 = vld [vmem:[%s820 + $0x48] sm:$0xff]
    %v831 = vld [vmem:[%s820 + $0x50] sm:$0xff]
    %v832 = vld [vmem:[%s820 + $0x58] sm:$0xff]
    %v833 = vld [vmem:[%s820 + $0x60] sm:$0xff]
    %v834 = vld [vmem:[%s820 + $0x68] sm:$0xff]
    %v835 = vld [vmem:[%s820 + $0x70] sm:$0xff]
    %v836 = vld [vmem:[%s820 + $0x78] sm:$0xff]
    %v837 = vld [vmem:[%s820 + $0x80] sm:$0xff]
    %v838 = vld [vmem:[%s820 + $0x88] sm:$0xff]
    %v839 = vld [vmem:[%s820 + $0x90] sm:$0xff]
    %v840 = vld [vmem:[%s820 + $0x98] sm:$0xff]
    %v841 = vld [vmem:[%s820 + $0xa0] sm:$0xff]
    %v842 = vld [vmem:[%s820 + $0xa8] sm:$0xff]
    %v843 = vld [vmem:[%s820 + $0xb0] sm:$0xff]
    %v844 = vld [vmem:[%s820 + $0xb8] sm:$0xff]
    %v845 = vld [vmem:[%s820 + $0xc0] sm:$0xff]
    %v846 = vld [vmem:[%s820 + $0xc8] sm:$0xff]
    %v847 = vld [vmem:[%s820 + $0xd0] sm:$0xff]
    %v848 = vld [vmem:[%s820 + $0xd8] sm:$0xff]
    %v849 = vld [vmem:[%s820 + $0xe0] sm:$0xff]
    %v850 = vld [vmem:[%s820 + $0xe8] sm:$0xff]
    %v851 = vld [vmem:[%s820 + $0xf0] sm:$0xff]
    %v852 = vld [vmem:[%s820 + $0xf8] sm:$0xff]
    %v853 = vld [vmem:[%s820 + $0x100] sm:$0xff]
    %v854 = vld [vmem:[%s820 + $0x108] sm:$0xff]
    %v855 = vld [vmem:[%s820 + $0x110] sm:$0xff]
    %v856 = vld [vmem:[%s820 + $0x118] sm:$0xff]
    %v857 = vld [vmem:[%s820 + $0x120] sm:$0xff]
    %v858 = vld [vmem:[%s820 + $0x128] sm:$0xff]
    %v859 = vld [vmem:[%s820 + $0x130] sm:$0xff]
    %v860 = vld [vmem:[%s820 + $0x138] sm:$0xff]
    %v861 = vld [vmem:[%s820 + $0x140] sm:$0xff]
    %v862 = vld [vmem:[%s820 + $0x148] sm:$0xff]
    %v863 = vld [vmem:[%s820 + $0x150] sm:$0xff]
    %v864 = vld [vmem:[%s820 + $0x158] sm:$0xff]
    %v865 = vld [vmem:[%s820 + $0x160] sm:$0xff]
    %v866 = vld [vmem:[%s820 + $0x168] sm:$0xff]
    %v867 = vld [vmem:[%s820 + $0x170] sm:$0xff]
    %v868 = vld [vmem:[%s820 + $0x178] sm:$0xff]
    %v869 = vld [vmem:[%s820 + $0x180] sm:$0xff]
    %v870 = vld [vmem:[%s820 + $0x188] sm:$0xff]
    %v871 = vld [vmem:[%s820 + $0x190] sm:$0xff]
    %v872 = vld [vmem:[%s820 + $0x198] sm:$0xff]
    %v873 = vld [vmem:[%s820 + $0x1a0] sm:$0xff]
    %v874 = vld [vmem:[%s820 + $0x1a8] sm:$0xff]
    %v875 = vld [vmem:[%s820 + $0x1b0] sm:$0xff]
    %v876 = vld [vmem:[%s820 + $0x1b8] sm:$0xff]
    %v877 = vld [vmem:[%s820 + $0x1c0] sm:$0xff]
    %v878 = vld [vmem:[%s820 + $0x1c8] sm:$0xff]
    %v879 = vld [vmem:[%s820 + $0x1d0] sm:$0xff]
    %v880 = vld [vmem:[%s820 + $0x1d8] sm:$0xff]
    %v881 = vld [vmem:[%s820 + $0x1e0] sm:$0xff]
    %v882 = vld [vmem:[%s820 + $0x1e8] sm:$0xff]
    %v883 = vld [vmem:[%s820 + $0x1f0] sm:$0xff]
    %v884 = vld [vmem:[%s820 + $0x1f8] sm:$0xff]
    %v885 = vld [vmem:[#allocation8] sm:$0xf]
    %886 = vmatprep.subr.mxu0 %v787
    %887 = vmatpush1.msra.mxu0 %v786
    %888 = vmatprep.subr.mxu0 %v785
    %889 = vmatpush1.msra.mxu0 %v784
    %890 = vmatprep.subr.mxu0 %v783
    %891 = vmatpush1.msra.mxu0 %v782
    %892 = vmatprep.subr.mxu0 %v781
    %893 = vmatpush1.msra.mxu0 %v780
    %894 = vmatprep.subr.mxu0 %v779
    %895 = vmatpush1.msra.mxu0 %v778
    %896 = vmatprep.subr.mxu0 %v777
    %897 = vmatpush1.msra.mxu0 %v776
    %898 = vmatprep.subr.mxu0 %v775
    %899 = vmatpush1.msra.mxu0 %v774
    %900 = vmatprep.subr.mxu0 %v773
    %901 = vmatpush1.msra.mxu0 %v772
    %902 = vmatprep.subr.mxu0 %v771
    %903 = vmatpush1.msra.mxu0 %v770
    %904 = vmatprep.subr.mxu0 %v769
    %905 = vmatpush1.msra.mxu0 %v768
    %906 = vmatprep.subr.mxu0 %v767
    %907 = vmatpush1.msra.mxu0 %v766
    %908 = vmatprep.subr.mxu0 %v765
    %909 = vmatpush1.msra.mxu0 %v764
    %910 = vmatprep.subr.mxu0 %v763
    %911 = vmatpush1.msra.mxu0 %v762
    %912 = vmatprep.subr.mxu0 %v761
    %913 = vmatpush1.msra.mxu0 %v760
    %914 = vmatprep.subr.mxu0 %v759
    %915 = vmatpush1.msra.mxu0 %v758
    %916 = vmatprep.subr.mxu0 %v757
    %917 = vmatpush1.msra.mxu0 %v756
    %918 = vmatprep.subr.mxu0 %v819
    %919 = vmatpush2.msra.mxu0 %v818
    %920 = vmatprep.subr.mxu0 %v817
    %921 = vmatpush2.msra.mxu0 %v816
    %922 = vmatprep.subr.mxu0 %v815
    %923 = vmatpush2.msra.mxu0 %v814
    %924 = vmatprep.subr.mxu0 %v813
    %925 = vmatpush2.msra.mxu0 %v812
    %926 = vmatprep.subr.mxu0 %v811
    %927 = vmatpush2.msra.mxu0 %v810
    %928 = vmatprep.subr.mxu0 %v809
    %929 = vmatpush2.msra.mxu0 %v808
    %930 = vmatprep.subr.mxu0 %v807
    %931 = vmatpush2.msra.mxu0 %v806
    %932 = vmatprep.subr.mxu0 %v805
    %933 = vmatpush2.msra.mxu0 %v804
    %934 = vmatprep.subr.mxu0 %v803
    %935 = vmatpush2.msra.mxu0 %v802
    %936 = vmatprep.subr.mxu0 %v801
    %937 = vmatpush2.msra.mxu0 %v800
    %938 = vmatprep.subr.mxu0 %v799
    %939 = vmatpush2.msra.mxu0 %v798
    %940 = vmatprep.subr.mxu0 %v797
    %941 = vmatpush2.msra.mxu0 %v796
    %942 = vmatprep.subr.mxu0 %v795
    %943 = vmatpush2.msra.mxu0 %v794
    %944 = vmatprep.subr.mxu0 %v793
    %945 = vmatpush2.msra.mxu0 %v792
    %946 = vmatprep.subr.mxu0 %v791
    %947 = vmatpush2.msra.mxu0 %v790
    %948 = vmatprep.subr.mxu0 %v789
    %949 = vmatpush2.msra.mxu0 %v788
    %950 = vmatprep.mubr.f32.mxu0 %v721
    %951 = vmatmul.mubr.f32.gmra.mxu0 %v719
    %v952 = vpop.f32.mrf.mxu0
    %v953 = vadd.f32 0.0, %v952
    %v954 = vpop.f32.mrf.mxu0
    %v955 = vadd.f32 0.0, %v954
    %956 = vdwg.mxu0
    %vm957 = vcmask 1041408
    %v958 = vsel %vm957, %v953, 0.0
    %v959 = vrot.slane %v958, 4
    %v960 = vadd.f32 %v958, %v959
    %v961 = vrot.slane %v960, 2
    %v962 = vadd.f32 %v960, %v961
    %v963 = vrot.slane %v962, 1
    %v964 = vadd.f32 %v962, %v963
    %v965 = vsel %vm957, %v955, 0.0
    %v966 = vrot.slane %v965, 4
    %v967 = vadd.f32 %v965, %v966
    %v968 = vrot.slane %v967, 2
    %v969 = vadd.f32 %v967, %v968
    %v970 = vrot.slane %v969, 1
    %v971 = vadd.f32 %v969, %v970
    %972 = vmatprep.subr.mxu0 0.0
    %973 = vmatpush1.msra.mxu0 %v738
    %974 = vmatprep.subr.mxu0 0.0
    %975 = vmatpush1.msra.mxu0 %v737
    %976 = vmatprep.subr.mxu0 0.0
    %977 = vmatpush1.msra.mxu0 %v736
    %978 = vmatprep.subr.mxu0 0.0
    %979 = vmatpush1.msra.mxu0 %v735
    %980 = vmatprep.subr.mxu0 0.0
    %981 = vmatpush1.msra.mxu0 %v734
    %982 = vmatprep.subr.mxu0 0.0
    %983 = vmatpush1.msra.mxu0 %v733
    %984 = vmatprep.subr.mxu0 0.0
    %985 = vmatpush1.msra.mxu0 %v732
    %986 = vmatprep.subr.mxu0 0.0
    %987 = vmatpush1.msra.mxu0 %v731
    %988 = vmatprep.subr.mxu0 0.0
    %989 = vmatpush1.msra.mxu0 %v730
    %990 = vmatprep.subr.mxu0 0.0
    %991 = vmatpush1.msra.mxu0 %v729
    %992 = vmatprep.subr.mxu0 0.0
    %993 = vmatpush1.msra.mxu0 %v728
    %994 = vmatprep.subr.mxu0 0.0
    %995 = vmatpush1.msra.mxu0 %v727
    %996 = vmatprep.subr.mxu0 0.0
    %997 = vmatpush1.msra.mxu0 %v726
    %998 = vmatprep.subr.mxu0 0.0
    %999 = vmatpush1.msra.mxu0 %v725
    %1000 = vmatprep.subr.mxu0 0.0
    %1001 = vmatpush1.msra.mxu0 %v724
    %1002 = vmatprep.subr.mxu0 0.0
    %1003 = vmatpush1.msra.mxu0 %v723
    %1004 = vmatprep.subr.mxu0 0.0
    %1005 = vmatpush2.msra.mxu0 %v754
    %1006 = vmatprep.subr.mxu0 0.0
    %1007 = vmatpush2.msra.mxu0 %v753
    %1008 = vmatprep.subr.mxu0 0.0
    %1009 = vmatpush2.msra.mxu0 %v752
    %1010 = vmatprep.subr.mxu0 0.0
    %1011 = vmatpush2.msra.mxu0 %v751
    %1012 = vmatprep.subr.mxu0 0.0
    %1013 = vmatpush2.msra.mxu0 %v750
    %1014 = vmatprep.subr.mxu0 0.0
    %1015 = vmatpush2.msra.mxu0 %v749
    %1016 = vmatprep.subr.mxu0 0.0
    %1017 = vmatpush2.msra.mxu0 %v748
    %1018 = vmatprep.subr.mxu0 0.0
    %1019 = vmatpush2.msra.mxu0 %v747
    %1020 = vmatprep.subr.mxu0 0.0
    %1021 = vmatpush2.msra.mxu0 %v746
    %1022 = vmatprep.subr.mxu0 0.0
    %1023 = vmatpush2.msra.mxu0 %v745
    %1024 = vmatprep.subr.mxu0 0.0
    %1025 = vmatpush2.msra.mxu0 %v744
    %1026 = vmatprep.subr.mxu0 0.0
    %1027 = vmatpush2.msra.mxu0 %v743
    %1028 = vmatprep.subr.mxu0 0.0
    %1029 = vmatpush2.msra.mxu0 %v742
    %1030 = vmatprep.subr.mxu0 0.0
    %1031 = vmatpush2.msra.mxu0 %v741
    %1032 = vmatprep.subr.mxu0 0.0
    %1033 = vmatpush2.msra.mxu0 %v740
    %1034 = vmatprep.subr.mxu0 0.0
    %1035 = vmatpush2.msra.mxu0 %v739
    %1036 = vmatprep.mubr.f32.mxu0 %v971
    %1037 = vmatmul.mubr.f32.gmra.mxu0 %v964
    %v1038 = vpop.f32.mrf.mxu0
    %v1039 = vadd.f32 0.0, %v1038
    %v1040 = vpop.f32.mrf.mxu0
    %1041 = vdwg.mxu0
    %v1042 = vmul.f32 %v1039, 0.0078125
    %v1043 = vmul.f32 %v953, %v953
    %v1044 = vmul.f32 %v955, %v955
    %v1045 = vsel %vm957, %v1043, 0.0
    %v1046 = vrot.slane %v1045, 4
    %v1047 = vadd.f32 %v1045, %v1046
    %v1048 = vrot.slane %v1047, 2
    %v1049 = vadd.f32 %v1047, %v1048
    %v1050 = vrot.slane %v1049, 1
    %v1051 = vadd.f32 %v1049, %v1050
    %v1052 = vsel %vm957, %v1044, 0.0
    %v1053 = vrot.slane %v1052, 4
    %v1054 = vadd.f32 %v1052, %v1053
    %v1055 = vrot.slane %v1054, 2
    %v1056 = vadd.f32 %v1054, %v1055
    %v1057 = vrot.slane %v1056, 1
    %v1058 = vadd.f32 %v1056, %v1057
    %1059 = vmatprep.subr.mxu0 0.0
    %1060 = vmatpush1.msra.mxu0 %v738
    %1061 = vmatprep.subr.mxu0 0.0
    %1062 = vmatpush1.msra.mxu0 %v737
    %1063 = vmatprep.subr.mxu0 0.0
    %1064 = vmatpush1.msra.mxu0 %v736
    %1065 = vmatprep.subr.mxu0 0.0
    %1066 = vmatpush1.msra.mxu0 %v735
    %1067 = vmatprep.subr.mxu0 0.0
    %1068 = vmatpush1.msra.mxu0 %v734
    %1069 = vmatprep.subr.mxu0 0.0
    %1070 = vmatpush1.msra.mxu0 %v733
    %1071 = vmatprep.subr.mxu0 0.0
    %1072 = vmatpush1.msra.mxu0 %v732
    %1073 = vmatprep.subr.mxu0 0.0
    %1074 = vmatpush1.msra.mxu0 %v731
    %1075 = vmatprep.subr.mxu0 0.0
    %1076 = vmatpush1.msra.mxu0 %v730
    %1077 = vmatprep.subr.mxu0 0.0
    %1078 = vmatpush1.msra.mxu0 %v729
    %1079 = vmatprep.subr.mxu0 0.0
    %1080 = vmatpush1.msra.mxu0 %v728
    %1081 = vmatprep.subr.mxu0 0.0
    %1082 = vmatpush1.msra.mxu0 %v727
    %1083 = vmatprep.subr.mxu0 0.0
    %1084 = vmatpush1.msra.mxu0 %v726
    %1085 = vmatprep.subr.mxu0 0.0
    %1086 = vmatpush1.msra.mxu0 %v725
    %1087 = vmatprep.subr.mxu0 0.0
    %1088 = vmatpush1.msra.mxu0 %v724
    %1089 = vmatprep.subr.mxu0 0.0
    %1090 = vmatpush1.msra.mxu0 %v723
    %1091 = vmatprep.subr.mxu0 0.0
    %1092 = vmatpush2.msra.mxu0 %v754
    %1093 = vmatprep.subr.mxu0 0.0
    %1094 = vmatpush2.msra.mxu0 %v753
    %1095 = vmatprep.subr.mxu0 0.0
    %1096 = vmatpush2.msra.mxu0 %v752
    %1097 = vmatprep.subr.mxu0 0.0
    %1098 = vmatpush2.msra.mxu0 %v751
    %1099 = vmatprep.subr.mxu0 0.0
    %1100 = vmatpush2.msra.mxu0 %v750
    %1101 = vmatprep.subr.mxu0 0.0
    %1102 = vmatpush2.msra.mxu0 %v749
    %1103 = vmatprep.subr.mxu0 0.0
    %1104 = vmatpush2.msra.mxu0 %v748
    %1105 = vmatprep.subr.mxu0 0.0
    %1106 = vmatpush2.msra.mxu0 %v747
    %1107 = vmatprep.subr.mxu0 0.0
    %1108 = vmatpush2.msra.mxu0 %v746
    %1109 = vmatprep.subr.mxu0 0.0
    %1110 = vmatpush2.msra.mxu0 %v745
    %1111 = vmatprep.subr.mxu0 0.0
    %1112 = vmatpush2.msra.mxu0 %v744
    %1113 = vmatprep.subr.mxu0 0.0
    %1114 = vmatpush2.msra.mxu0 %v743
    %1115 = vmatprep.subr.mxu0 0.0
    %1116 = vmatpush2.msra.mxu0 %v742
    %1117 = vmatprep.subr.mxu0 0.0
    %1118 = vmatpush2.msra.mxu0 %v741
    %1119 = vmatprep.subr.mxu0 0.0
    %1120 = vmatpush2.msra.mxu0 %v740
    %1121 = vmatprep.subr.mxu0 0.0
    %1122 = vmatpush2.msra.mxu0 %v739
    %1123 = vmatprep.mubr.f32.mxu0 %v1058
    %1124 = vmatmul.mubr.f32.gmra.mxu0 %v1051
    %v1125 = vpop.f32.mrf.mxu0
    %v1126 = vadd.f32 0.0, %v1125
    %v1127 = vpop.f32.mrf.mxu0
    %1128 = vdwg.mxu0
    %v1129 = vmul.f32 %v1126, 0.0078125
    %v1130 = vmul.f32 %v1042, %v1042
    %v1131 = vsub.f32 %v1129, %v1130
    %v1132 = vadd.f32 %v1131, 1e-05
    %v1133 = vrsqrt.pop %v1132
    %v1134 = vmul.f32 %v885, %v1133
    %v1135 = vmul.f32 %v1042, %v1134
    %v1137 = vrot.slane %v1135, 7
    %v1139 = vsub.f32 %v885, %v1137
    %v1141 = vcombine.high %v755, %v755
    %vm1142 = vcmask 31744
    %v1144 = vsel %vm1142, %v1134, 0
    %vm1146 = vcmask 1043456
    %v1147 = vsel %vm1146, %v755, 0
    %v1149 = vsel %vm1146, %v1141, 0
    %1151 = vmatprep.subr.mxu0 0.0
    %1152 = vmatpush1.msra.mxu0 0.0
    %1153 = vmatprep.subr.mxu0 0.0
    %1154 = vmatpush1.msra.mxu0 0.0
    %1155 = vmatprep.subr.mxu0 0.0
    %1156 = vmatpush1.msra.mxu0 0.0
    %1157 = vmatprep.subr.mxu0 0.0
    %1158 = vmatpush1.msra.mxu0 0.0
    %1159 = vmatprep.subr.mxu0 0.0
    %1160 = vmatpush1.msra.mxu0 0.0
    %1161 = vmatprep.subr.mxu0 0.0
    %1162 = vmatpush1.msra.mxu0 0.0
    %1163 = vmatprep.subr.mxu0 0.0
    %1164 = vmatpush1.msra.mxu0 0.0
    %1165 = vmatprep.subr.mxu0 0.0
    %1166 = vmatpush1.msra.mxu0 0.0
    %1167 = vmatprep.subr.mxu0 0.0
    %1168 = vmatpush1.msra.mxu0 0.0
    %1169 = vmatprep.subr.mxu0 0.0
    %1170 = vmatpush1.msra.mxu0 0.0
    %1171 = vmatprep.subr.mxu0 0.0
    %1172 = vmatpush1.msra.mxu0 0.0
    %1173 = vmatprep.subr.mxu0 0.0
    %1174 = vmatpush1.msra.mxu0 0.0
    %1175 = vmatprep.subr.mxu0 0.0
    %1176 = vmatpush1.msra.mxu0 0.0
    %1177 = vmatprep.subr.mxu0 0.0
    %1178 = vmatpush1.msra.mxu0 0.0
    %1179 = vmatprep.subr.mxu0 0.0
    %1180 = vmatpush1.msra.mxu0 0.0
    %1181 = vmatprep.subr.mxu0 %v1149
    %1182 = vmatpush1.msra.mxu0 %v1147
    %1183 = vmatprep.subr.mxu0 0.0
    %1184 = vmatpush2.msra.mxu0 0.0
    %1185 = vmatprep.subr.mxu0 0.0
    %1186 = vmatpush2.msra.mxu0 0.0
    %1187 = vmatprep.subr.mxu0 0.0
    %1188 = vmatpush2.msra.mxu0 0.0
    %1189 = vmatprep.subr.mxu0 0.0
    %1190 = vmatpush2.msra.mxu0 0.0
    %1191 = vmatprep.subr.mxu0 0.0
    %1192 = vmatpush2.msra.mxu0 0.0
    %1193 = vmatprep.subr.mxu0 0.0
    %1194 = vmatpush2.msra.mxu0 0.0
    %1195 = vmatprep.subr.mxu0 0.0
    %1196 = vmatpush2.msra.mxu0 0.0
    %1197 = vmatprep.subr.mxu0 0.0
    %1198 = vmatpush2.msra.mxu0 0.0
    %1199 = vmatprep.subr.mxu0 0.0
    %1200 = vmatpush2.msra.mxu0 0.0
    %1201 = vmatprep.subr.mxu0 0.0
    %1202 = vmatpush2.msra.mxu0 0.0
    %1203 = vmatprep.subr.mxu0 0.0
    %1204 = vmatpush2.msra.mxu0 0.0
    %1205 = vmatprep.subr.mxu0 0.0
    %1206 = vmatpush2.msra.mxu0 0.0
    %1207 = vmatprep.subr.mxu0 0.0
    %1208 = vmatpush2.msra.mxu0 0.0
    %1209 = vmatprep.subr.mxu0 0.0
    %1210 = vmatpush2.msra.mxu0 0.0
    %1211 = vmatprep.subr.mxu0 0.0
    %1212 = vmatpush2.msra.mxu0 0.0
    %1213 = vmatprep.subr.mxu0 0.0
    %1214 = vmatpush2.msra.mxu0 0.0
    %1215 = vmatprep.mubr.f32.mxu0 0.0
    %1216 = vmatmul.mubr.f32.gmra.mxu0 %v1144
    %v1217 = vpop.f32.mrf.mxu0
    %v1218 = vadd.f32 0.0, %v1217
    %v1219 = vpop.f32.mrf.mxu0
    %v1220 = vadd.f32 0.0, %v1219
    %1221 = vdwg.mxu0
    %v1223 = vrot.slane %v1139, 1
    %v1224 = vsel %vm1142, %v1223, 0
    %1226 = vmatprep.subr.mxu0 0.0
    %1227 = vmatpush1.msra.mxu0 0.0
    %1228 = vmatprep.subr.mxu0 0.0
    %1229 = vmatpush1.msra.mxu0 0.0
    %1230 = vmatprep.subr.mxu0 0.0
    %1231 = vmatpush1.msra.mxu0 0.0
    %1232 = vmatprep.subr.mxu0 0.0
    %1233 = vmatpush1.msra.mxu0 0.0
    %1234 = vmatprep.subr.mxu0 0.0
    %1235 = vmatpush1.msra.mxu0 0.0
    %1236 = vmatprep.subr.mxu0 0.0
    %1237 = vmatpush1.msra.mxu0 0.0
    %1238 = vmatprep.subr.mxu0 0.0
    %1239 = vmatpush1.msra.mxu0 0.0
    %1240 = vmatprep.subr.mxu0 0.0
    %1241 = vmatpush1.msra.mxu0 0.0
    %1242 = vmatprep.subr.mxu0 0.0
    %1243 = vmatpush1.msra.mxu0 0.0
    %1244 = vmatprep.subr.mxu0 0.0
    %1245 = vmatpush1.msra.mxu0 0.0
    %1246 = vmatprep.subr.mxu0 0.0
    %1247 = vmatpush1.msra.mxu0 0.0
    %1248 = vmatprep.subr.mxu0 0.0
    %1249 = vmatpush1.msra.mxu0 0.0
    %1250 = vmatprep.subr.mxu0 0.0
    %1251 = vmatpush1.msra.mxu0 0.0
    %1252 = vmatprep.subr.mxu0 0.0
    %1253 = vmatpush1.msra.mxu0 0.0
    %1254 = vmatprep.subr.mxu0 0.0
    %1255 = vmatpush1.msra.mxu0 0.0
    %1256 = vmatprep.subr.mxu0 %v1149
    %1257 = vmatpush1.msra.mxu0 %v1147
    %1258 = vmatprep.subr.mxu0 0.0
    %1259 = vmatpush2.msra.mxu0 0.0
    %1260 = vmatprep.subr.mxu0 0.0
    %1261 = vmatpush2.msra.mxu0 0.0
    %1262 = vmatprep.subr.mxu0 0.0
    %1263 = vmatpush2.msra.mxu0 0.0
    %1264 = vmatprep.subr.mxu0 0.0
    %1265 = vmatpush2.msra.mxu0 0.0
    %1266 = vmatprep.subr.mxu0 0.0
    %1267 = vmatpush2.msra.mxu0 0.0
    %1268 = vmatprep.subr.mxu0 0.0
    %1269 = vmatpush2.msra.mxu0 0.0
    %1270 = vmatprep.subr.mxu0 0.0
    %1271 = vmatpush2.msra.mxu0 0.0
    %1272 = vmatprep.subr.mxu0 0.0
    %1273 = vmatpush2.msra.mxu0 0.0
    %1274 = vmatprep.subr.mxu0 0.0
    %1275 = vmatpush2.msra.mxu0 0.0
    %1276 = vmatprep.subr.mxu0 0.0
    %1277 = vmatpush2.msra.mxu0 0.0
    %1278 = vmatprep.subr.mxu0 0.0
    %1279 = vmatpush2.msra.mxu0 0.0
    %1280 = vmatprep.subr.mxu0 0.0
    %1281 = vmatpush2.msra.mxu0 0.0
    %1282 = vmatprep.subr.mxu0 0.0
    %1283 = vmatpush2.msra.mxu0 0.0
    %1284 = vmatprep.subr.mxu0 0.0
    %1285 = vmatpush2.msra.mxu0 0.0
    %1286 = vmatprep.subr.mxu0 0.0
    %1287 = vmatpush2.msra.mxu0 0.0
    %1288 = vmatprep.subr.mxu0 0.0
    %1289 = vmatpush2.msra.mxu0 0.0
    %1290 = vmatprep.mubr.f32.mxu0 0.0
    %1291 = vmatmul.mubr.f32.gmra.mxu0 %v1224
    %v1292 = vpop.f32.mrf.mxu0
    %v1293 = vadd.f32 0.0, %v1292
    %v1294 = vpop.f32.mrf.mxu0
    %v1295 = vadd.f32 0.0, %v1294
    %1296 = vdwg.mxu0
    %v1297 = vlaneseq
    %v1298 = vshrl.u32 %v1297, 7
    %v1299 = vsub.s32 0, %v1298
    %v1300 = vrot.slane %v1218, %v1299
    %v1301 = vlaneseq
    %v1302 = vshrl.u32 %v1301, 7
    %v1303 = vsub.s32 0, %v1302
    %v1304 = vrot.slane %v1220, %v1303
    %v1305 = vmul.f32 %v953, %v1300
    %v1306 = vmul.f32 %v955, %v1304
    %v1307 = vlaneseq
    %v1308 = vshrl.u32 %v1307, 7
    %v1309 = vsub.s32 0, %v1308
    %v1310 = vrot.slane %v1293, %v1309
    %v1311 = vlaneseq
    %v1312 = vshrl.u32 %v1311, 7
    %v1313 = vsub.s32 0, %v1312
    %v1314 = vrot.slane %v1295, %v1313
    %v1315 = vadd.f32 %v1305, %v1310
    %v1316 = vadd.f32 %v1306, %v1314
    %v1317 = vmax.f32 %v1315, 0.0
    %v1318 = vmax.f32 %v1316, 0.0
    %1319 = vmatprep.subr.mxu0 %v852
    %1320 = vmatpush1.msra.mxu0 %v851
    %1321 = vmatprep.subr.mxu0 %v850
    %1322 = vmatpush1.msra.mxu0 %v849
    %1323 = vmatprep.subr.mxu0 %v848
    %1324 = vmatpush1.msra.mxu0 %v847
    %1325 = vmatprep.subr.mxu0 %v846
    %1326 = vmatpush1.msra.mxu0 %v845
    %1327 = vmatprep.subr.mxu0 %v844
    %1328 = vmatpush1.msra.mxu0 %v843
    %1329 = vmatprep.subr.mxu0 %v842
    %1330 = vmatpush1.msra.mxu0 %v841
    %1331 = vmatprep.subr.mxu0 %v840
    %1332 = vmatpush1.msra.mxu0 %v839
    %1333 = vmatprep.subr.mxu0 %v838
    %1334 = vmatpush1.msra.mxu0 %v837
    %1335 = vmatprep.subr.mxu0 %v836
    %1336 = vmatpush1.msra.mxu0 %v835
    %1337 = vmatprep.subr.mxu0 %v834
    %1338 = vmatpush1.msra.mxu0 %v833
    %1339 = vmatprep.subr.mxu0 %v832
    %1340 = vmatpush1.msra.mxu0 %v831
    %1341 = vmatprep.subr.mxu0 %v830
    %1342 = vmatpush1.msra.mxu0 %v829
    %1343 = vmatprep.subr.mxu0 %v828
    %1344 = vmatpush1.msra.mxu0 %v827
    %1345 = vmatprep.subr.mxu0 %v826
    %1346 = vmatpush1.msra.mxu0 %v825
    %1347 = vmatprep.subr.mxu0 %v824
    %1348 = vmatpush1.msra.mxu0 %v823
    %1349 = vmatprep.subr.mxu0 %v822
    %1350 = vmatpush1.msra.mxu0 %v821
    %1351 = vmatprep.subr.mxu0 %v884
    %1352 = vmatpush2.msra.mxu0 %v883
    %1353 = vmatprep.subr.mxu0 %v882
    %1354 = vmatpush2.msra.mxu0 %v881
    %1355 = vmatprep.subr.mxu0 %v880
    %1356 = vmatpush2.msra.mxu0 %v879
    %1357 = vmatprep.subr.mxu0 %v878
    %1358 = vmatpush2.msra.mxu0 %v877
    %1359 = vmatprep.subr.mxu0 %v876
    %1360 = vmatpush2.msra.mxu0 %v875
    %1361 = vmatprep.subr.mxu0 %v874
    %1362 = vmatpush2.msra.mxu0 %v873
    %1363 = vmatprep.subr.mxu0 %v872
    %1364 = vmatpush2.msra.mxu0 %v871
    %1365 = vmatprep.subr.mxu0 %v870
    %1366 = vmatpush2.msra.mxu0 %v869
    %1367 = vmatprep.subr.mxu0 %v868
    %1368 = vmatpush2.msra.mxu0 %v867
    %1369 = vmatprep.subr.mxu0 %v866
    %1370 = vmatpush2.msra.mxu0 %v865
    %1371 = vmatprep.subr.mxu0 %v864
    %1372 = vmatpush2.msra.mxu0 %v863
    %1373 = vmatprep.subr.mxu0 %v862
    %1374 = vmatpush2.msra.mxu0 %v861
    %1375 = vmatprep.subr.mxu0 %v860
    %1376 = vmatpush2.msra.mxu0 %v859
    %1377 = vmatprep.subr.mxu0 %v858
    %1378 = vmatpush2.msra.mxu0 %v857
    %1379 = vmatprep.subr.mxu0 %v856
    %1380 = vmatpush2.msra.mxu0 %v855
    %1381 = vmatprep.subr.mxu0 %v854
    %1382 = vmatpush2.msra.mxu0 %v853
    %1383 = vmatprep.mubr.f32.mxu0 %v1318
    %1384 = vmatmul.mubr.f32.gmra.mxu0 %v1317
    %v1385 = vpop.f32.mrf.mxu0
    %v1386 = vadd.f32 0.0, %v1385
    %v1387 = vpop.f32.mrf.mxu0
    %v1388 = vadd.f32 0.0, %v1387
    %1389 = vdwg.mxu0
    %v1390 = vsel %vm957, %v1386, 0.0
    %v1391 = vrot.slane %v1390, 4
    %v1392 = vadd.f32 %v1390, %v1391
    %v1393 = vrot.slane %v1392, 2
    %v1394 = vadd.f32 %v1392, %v1393
    %v1395 = vrot.slane %v1394, 1
    %v1396 = vadd.f32 %v1394, %v1395
    %v1397 = vsel %vm957, %v1388, 0.0
    %v1398 = vrot.slane %v1397, 4
    %v1399 = vadd.f32 %v1397, %v1398
    %v1400 = vrot.slane %v1399, 2
    %v1401 = vadd.f32 %v1399, %v1400
    %v1402 = vrot.slane %v1401, 1
    %v1403 = vadd.f32 %v1401, %v1402
    %1404 = vmatprep.subr.mxu0 0.0
    %1405 = vmatpush1.msra.mxu0 %v738
    %1406 = vmatprep.subr.mxu0 0.0
    %1407 = vmatpush1.msra.mxu0 %v737
    %1408 = vmatprep.subr.mxu0 0.0
    %1409 = vmatpush1.msra.mxu0 %v736
    %1410 = vmatprep.subr.mxu0 0.0
    %1411 = vmatpush1.msra.mxu0 %v735
    %1412 = vmatprep.subr.mxu0 0.0
    %1413 = vmatpush1.msra.mxu0 %v734
    %1414 = vmatprep.subr.mxu0 0.0
    %1415 = vmatpush1.msra.mxu0 %v733
    %1416 = vmatprep.subr.mxu0 0.0
    %1417 = vmatpush1.msra.mxu0 %v732
    %1418 = vmatprep.subr.mxu0 0.0
    %1419 = vmatpush1.msra.mxu0 %v731
    %1420 = vmatprep.subr.mxu0 0.0
    %1421 = vmatpush1.msra.mxu0 %v730
    %1422 = vmatprep.subr.mxu0 0.0
    %1423 = vmatpush1.msra.mxu0 %v729
    %1424 = vmatprep.subr.mxu0 0.0
    %1425 = vmatpush1.msra.mxu0 %v728
    %1426 = vmatprep.subr.mxu0 0.0
    %1427 = vmatpush1.msra.mxu0 %v727
    %1428 = vmatprep.subr.mxu0 0.0
    %1429 = vmatpush1.msra.mxu0 %v726
    %1430 = vmatprep.subr.mxu0 0.0
    %1431 = vmatpush1.msra.mxu0 %v725
    %1432 = vmatprep.subr.mxu0 0.0
    %1433 = vmatpush1.msra.mxu0 %v724
    %1434 = vmatprep.subr.mxu0 0.0
    %1435 = vmatpush1.msra.mxu0 %v723
    %1436 = vmatprep.subr.mxu0 0.0
    %1437 = vmatpush2.msra.mxu0 %v754
    %1438 = vmatprep.subr.mxu0 0.0
    %1439 = vmatpush2.msra.mxu0 %v753
    %1440 = vmatprep.subr.mxu0 0.0
    %1441 = vmatpush2.msra.mxu0 %v752
    %1442 = vmatprep.subr.mxu0 0.0
    %1443 = vmatpush2.msra.mxu0 %v751
    %1444 = vmatprep.subr.mxu0 0.0
    %1445 = vmatpush2.msra.mxu0 %v750
    %1446 = vmatprep.subr.mxu0 0.0
    %1447 = vmatpush2.msra.mxu0 %v749
    %1448 = vmatprep.subr.mxu0 0.0
    %1449 = vmatpush2.msra.mxu0 %v748
    %1450 = vmatprep.subr.mxu0 0.0
    %1451 = vmatpush2.msra.mxu0 %v747
    %1452 = vmatprep.subr.mxu0 0.0
    %1453 = vmatpush2.msra.mxu0 %v746
    %1454 = vmatprep.subr.mxu0 0.0
    %1455 = vmatpush2.msra.mxu0 %v745
    %1456 = vmatprep.subr.mxu0 0.0
    %1457 = vmatpush2.msra.mxu0 %v744
    %1458 = vmatprep.subr.mxu0 0.0
    %1459 = vmatpush2.msra.mxu0 %v743
    %1460 = vmatprep.subr.mxu0 0.0
    %1461 = vmatpush2.msra.mxu0 %v742
    %1462 = vmatprep.subr.mxu0 0.0
    %1463 = vmatpush2.msra.mxu0 %v741
    %1464 = vmatprep.subr.mxu0 0.0
    %1465 = vmatpush2.msra.mxu0 %v740
    %1466 = vmatprep.subr.mxu0 0.0
    %1467 = vmatpush2.msra.mxu0 %v739
    %1468 = vmatprep.mubr.f32.mxu0 %v1403
    %1469 = vmatmul.mubr.f32.gmra.mxu0 %v1396
    %v1470 = vpop.f32.mrf.mxu0
    %v1471 = vadd.f32 0.0, %v1470
    %v1472 = vpop.f32.mrf.mxu0
    %1473 = vdwg.mxu0
    %v1474 = vmul.f32 %v1471, 0.0078125
    %v1475 = vmul.f32 %v1386, %v1386
    %v1476 = vmul.f32 %v1388, %v1388
    %v1477 = vsel %vm957, %v1475, 0.0
    %v1478 = vrot.slane %v1477, 4
    %v1479 = vadd.f32 %v1477, %v1478
    %v1480 = vrot.slane %v1479, 2
    %v1481 = vadd.f32 %v1479, %v1480
    %v1482 = vrot.slane %v1481, 1
    %v1483 = vadd.f32 %v1481, %v1482
    %v1484 = vsel %vm957, %v1476, 0.0
    %v1485 = vrot.slane %v1484, 4
    %v1486 = vadd.f32 %v1484, %v1485
    %v1487 = vrot.slane %v1486, 2
    %v1488 = vadd.f32 %v1486, %v1487
    %v1489 = vrot.slane %v1488, 1
    %v1490 = vadd.f32 %v1488, %v1489
    %1491 = vmatprep.subr.mxu0 0.0
    %1492 = vmatpush1.msra.mxu0 %v738
    %1493 = vmatprep.subr.mxu0 0.0
    %1494 = vmatpush1.msra.mxu0 %v737
    %1495 = vmatprep.subr.mxu0 0.0
    %1496 = vmatpush1.msra.mxu0 %v736
    %1497 = vmatprep.subr.mxu0 0.0
    %1498 = vmatpush1.msra.mxu0 %v735
    %1499 = vmatprep.subr.mxu0 0.0
    %1500 = vmatpush1.msra.mxu0 %v734
    %1501 = vmatprep.subr.mxu0 0.0
    %1502 = vmatpush1.msra.mxu0 %v733
    %1503 = vmatprep.subr.mxu0 0.0
    %1504 = vmatpush1.msra.mxu0 %v732
    %1505 = vmatprep.subr.mxu0 0.0
    %1506 = vmatpush1.msra.mxu0 %v731
    %1507 = vmatprep.subr.mxu0 0.0
    %1508 = vmatpush1.msra.mxu0 %v730
    %1509 = vmatprep.subr.mxu0 0.0
    %1510 = vmatpush1.msra.mxu0 %v729
    %1511 = vmatprep.subr.mxu0 0.0
    %1512 = vmatpush1.msra.mxu0 %v728
    %1513 = vmatprep.subr.mxu0 0.0
    %1514 = vmatpush1.msra.mxu0 %v727
    %1515 = vmatprep.subr.mxu0 0.0
    %1516 = vmatpush1.msra.mxu0 %v726
    %1517 = vmatprep.subr.mxu0 0.0
    %1518 = vmatpush1.msra.mxu0 %v725
    %1519 = vmatprep.subr.mxu0 0.0
    %1520 = vmatpush1.msra.mxu0 %v724
    %1521 = vmatprep.subr.mxu0 0.0
    %1522 = vmatpush1.msra.mxu0 %v723
    %1523 = vmatprep.subr.mxu0 0.0
    %1524 = vmatpush2.msra.mxu0 %v754
    %1525 = vmatprep.subr.mxu0 0.0
    %1526 = vmatpush2.msra.mxu0 %v753
    %1527 = vmatprep.subr.mxu0 0.0
    %1528 = vmatpush2.msra.mxu0 %v752
    %1529 = vmatprep.subr.mxu0 0.0
    %1530 = vmatpush2.msra.mxu0 %v751
    %1531 = vmatprep.subr.mxu0 0.0
    %1532 = vmatpush2.msra.mxu0 %v750
    %1533 = vmatprep.subr.mxu0 0.0
    %1534 = vmatpush2.msra.mxu0 %v749
    %1535 = vmatprep.subr.mxu0 0.0
    %1536 = vmatpush2.msra.mxu0 %v748
    %1537 = vmatprep.subr.mxu0 0.0
    %1538 = vmatpush2.msra.mxu0 %v747
    %1539 = vmatprep.subr.mxu0 0.0
    %1540 = vmatpush2.msra.mxu0 %v746
    %1541 = vmatprep.subr.mxu0 0.0
    %1542 = vmatpush2.msra.mxu0 %v745
    %1543 = vmatprep.subr.mxu0 0.0
    %1544 = vmatpush2.msra.mxu0 %v744
    %1545 = vmatprep.subr.mxu0 0.0
    %1546 = vmatpush2.msra.mxu0 %v743
    %1547 = vmatprep.subr.mxu0 0.0
    %1548 = vmatpush2.msra.mxu0 %v742
    %1549 = vmatprep.subr.mxu0 0.0
    %1550 = vmatpush2.msra.mxu0 %v741
    %1551 = vmatprep.subr.mxu0 0.0
    %1552 = vmatpush2.msra.mxu0 %v740
    %1553 = vmatprep.subr.mxu0 0.0
    %1554 = vmatpush2.msra.mxu0 %v739
    %1555 = vmatprep.mubr.f32.mxu0 %v1490
    %1556 = vmatmul.mubr.f32.gmra.mxu0 %v1483
    %v1557 = vpop.f32.mrf.mxu0
    %v1558 = vadd.f32 0.0, %v1557
    %v1559 = vpop.f32.mrf.mxu0
    %1560 = vdwg.mxu0
    %v1561 = vmul.f32 %v1558, 0.0078125
    %v1562 = vmul.f32 %v1474, %v1474
    %v1563 = vsub.f32 %v1561, %v1562
    %v1564 = vadd.f32 %v1563, 1e-05
    %v1565 = vrsqrt.pop %v1564
    %v1567 = vrot.slane %v1565, 6
    %v1569 = vmul.f32 %v885, %v1567
    %v1571 = vrot.slane %v1569, 2
    %v1573 = vmul.f32 %v1474, %v1571
    %v1575 = vrot.slane %v1573, 5
    %v1577 = vsub.f32 %v885, %v1575
    %v1578 = vsel %vm1142, %v1571, 0
    %1580 = vmatprep.subr.mxu0 0.0
    %1581 = vmatpush1.msra.mxu0 0.0
    %1582 = vmatprep.subr.mxu0 0.0
    %1583 = vmatpush1.msra.mxu0 0.0
    %1584 = vmatprep.subr.mxu0 0.0
    %1585 = vmatpush1.msra.mxu0 0.0
    %1586 = vmatprep.subr.mxu0 0.0
    %1587 = vmatpush1.msra.mxu0 0.0
    %1588 = vmatprep.subr.mxu0 0.0
    %1589 = vmatpush1.msra.mxu0 0.0
    %1590 = vmatprep.subr.mxu0 0.0
    %1591 = vmatpush1.msra.mxu0 0.0
    %1592 = vmatprep.subr.mxu0 0.0
    %1593 = vmatpush1.msra.mxu0 0.0
    %1594 = vmatprep.subr.mxu0 0.0
    %1595 = vmatpush1.msra.mxu0 0.0
    %1596 = vmatprep.subr.mxu0 0.0
    %1597 = vmatpush1.msra.mxu0 0.0
    %1598 = vmatprep.subr.mxu0 0.0
    %1599 = vmatpush1.msra.mxu0 0.0
    %1600 = vmatprep.subr.mxu0 0.0
    %1601 = vmatpush1.msra.mxu0 0.0
    %1602 = vmatprep.subr.mxu0 0.0
    %1603 = vmatpush1.msra.mxu0 0.0
    %1604 = vmatprep.subr.mxu0 0.0
    %1605 = vmatpush1.msra.mxu0 0.0
    %1606 = vmatprep.subr.mxu0 0.0
    %1607 = vmatpush1.msra.mxu0 0.0
    %1608 = vmatprep.subr.mxu0 0.0
    %1609 = vmatpush1.msra.mxu0 0.0
    %1610 = vmatprep.subr.mxu0 %v1149
    %1611 = vmatpush1.msra.mxu0 %v1147
    %1612 = vmatprep.subr.mxu0 0.0
    %1613 = vmatpush2.msra.mxu0 0.0
    %1614 = vmatprep.subr.mxu0 0.0
    %1615 = vmatpush2.msra.mxu0 0.0
    %1616 = vmatprep.subr.mxu0 0.0
    %1617 = vmatpush2.msra.mxu0 0.0
    %1618 = vmatprep.subr.mxu0 0.0
    %1619 = vmatpush2.msra.mxu0 0.0
    %1620 = vmatprep.subr.mxu0 0.0
    %1621 = vmatpush2.msra.mxu0 0.0
    %1622 = vmatprep.subr.mxu0 0.0
    %1623 = vmatpush2.msra.mxu0 0.0
    %1624 = vmatprep.subr.mxu0 0.0
    %1625 = vmatpush2.msra.mxu0 0.0
    %1626 = vmatprep.subr.mxu0 0.0
    %1627 = vmatpush2.msra.mxu0 0.0
    %1628 = vmatprep.subr.mxu0 0.0
    %1629 = vmatpush2.msra.mxu0 0.0
    %1630 = vmatprep.subr.mxu0 0.0
    %1631 = vmatpush2.msra.mxu0 0.0
    %1632 = vmatprep.subr.mxu0 0.0
    %1633 = vmatpush2.msra.mxu0 0.0
    %1634 = vmatprep.subr.mxu0 0.0
    %1635 = vmatpush2.msra.mxu0 0.0
    %1636 = vmatprep.subr.mxu0 0.0
    %1637 = vmatpush2.msra.mxu0 0.0
    %1638 = vmatprep.subr.mxu0 0.0
    %1639 = vmatpush2.msra.mxu0 0.0
    %1640 = vmatprep.subr.mxu0 0.0
    %1641 = vmatpush2.msra.mxu0 0.0
    %1642 = vmatprep.subr.mxu0 0.0
    %1643 = vmatpush2.msra.mxu0 0.0
    %1644 = vmatprep.mubr.f32.mxu0 0.0
    %1645 = vmatmul.mubr.f32.gmra.mxu0 %v1578
    %v1646 = vpop.f32.mrf.mxu0
    %v1647 = vadd.f32 0.0, %v1646
    %v1648 = vpop.f32.mrf.mxu0
    %v1649 = vadd.f32 0.0, %v1648
    %1650 = vdwg.mxu0
    %v1652 = vrot.slane %v1577, 3
    %v1653 = vsel %vm1142, %v1652, 0
    %1655 = vmatprep.subr.mxu0 0.0
    %1656 = vmatpush1.msra.mxu0 0.0
    %1657 = vmatprep.subr.mxu0 0.0
    %1658 = vmatpush1.msra.mxu0 0.0
    %1659 = vmatprep.subr.mxu0 0.0
    %1660 = vmatpush1.msra.mxu0 0.0
    %1661 = vmatprep.subr.mxu0 0.0
    %1662 = vmatpush1.msra.mxu0 0.0
    %1663 = vmatprep.subr.mxu0 0.0
    %1664 = vmatpush1.msra.mxu0 0.0
    %1665 = vmatprep.subr.mxu0 0.0
    %1666 = vmatpush1.msra.mxu0 0.0
    %1667 = vmatprep.subr.mxu0 0.0
    %1668 = vmatpush1.msra.mxu0 0.0
    %1669 = vmatprep.subr.mxu0 0.0
    %1670 = vmatpush1.msra.mxu0 0.0
    %1671 = vmatprep.subr.mxu0 0.0
    %1672 = vmatpush1.msra.mxu0 0.0
    %1673 = vmatprep.subr.mxu0 0.0
    %1674 = vmatpush1.msra.mxu0 0.0
    %1675 = vmatprep.subr.mxu0 0.0
    %1676 = vmatpush1.msra.mxu0 0.0
    %1677 = vmatprep.subr.mxu0 0.0
    %1678 = vmatpush1.msra.mxu0 0.0
    %1679 = vmatprep.subr.mxu0 0.0
    %1680 = vmatpush1.msra.mxu0 0.0
    %1681 = vmatprep.subr.mxu0 0.0
    %1682 = vmatpush1.msra.mxu0 0.0
    %1683 = vmatprep.subr.mxu0 0.0
    %1684 = vmatpush1.msra.mxu0 0.0
    %1685 = vmatprep.subr.mxu0 %v1149
    %1686 = vmatpush1.msra.mxu0 %v1147
    %1687 = vmatprep.subr.mxu0 0.0
    %1688 = vmatpush2.msra.mxu0 0.0
    %1689 = vmatprep.subr.mxu0 0.0
    %1690 = vmatpush2.msra.mxu0 0.0
    %1691 = vmatprep.subr.mxu0 0.0
    %1692 = vmatpush2.msra.mxu0 0.0
    %1693 = vmatprep.subr.mxu0 0.0
    %1694 = vmatpush2.msra.mxu0 0.0
    %1695 = vmatprep.subr.mxu0 0.0
    %1696 = vmatpush2.msra.mxu0 0.0
    %1697 = vmatprep.subr.mxu0 0.0
    %1698 = vmatpush2.msra.mxu0 0.0
    %1699 = vmatprep.subr.mxu0 0.0
    %1700 = vmatpush2.msra.mxu0 0.0
    %1701 = vmatprep.subr.mxu0 0.0
    %1702 = vmatpush2.msra.mxu0 0.0
    %1703 = vmatprep.subr.mxu0 0.0
    %1704 = vmatpush2.msra.mxu0 0.0
    %1705 = vmatprep.subr.mxu0 0.0
    %1706 = vmatpush2.msra.mxu0 0.0
    %1707 = vmatprep.subr.mxu0 0.0
    %1708 = vmatpush2.msra.mxu0 0.0
    %1709 = vmatprep.subr.mxu0 0.0
    %1710 = vmatpush2.msra.mxu0 0.0
    %1711 = vmatprep.subr.mxu0 0.0
    %1712 = vmatpush2.msra.mxu0 0.0
    %1713 = vmatprep.subr.mxu0 0.0
    %1714 = vmatpush2.msra.mxu0 0.0
    %1715 = vmatprep.subr.mxu0 0.0
    %1716 = vmatpush2.msra.mxu0 0.0
    %1717 = vmatprep.subr.mxu0 0.0
    %1718 = vmatpush2.msra.mxu0 0.0
    %1719 = vmatprep.mubr.f32.mxu0 0.0
    %1720 = vmatmul.mubr.f32.gmra.mxu0 %v1653
    %v1721 = vpop.f32.mrf.mxu0
    %v1722 = vadd.f32 0.0, %v1721
    %v1723 = vpop.f32.mrf.mxu0
    %v1724 = vadd.f32 0.0, %v1723
    %1725 = vdwg.mxu0
    %v1726 = vlaneseq
    %v1727 = vshrl.u32 %v1726, 7
    %v1728 = vsub.s32 0, %v1727
    %v1729 = vrot.slane %v1647, %v1728
    %v1730 = vlaneseq
    %v1731 = vshrl.u32 %v1730, 7
    %v1732 = vsub.s32 0, %v1731
    %v1733 = vrot.slane %v1649, %v1732
    %v1734 = vmul.f32 %v1386, %v1729
    %v1735 = vmul.f32 %v1388, %v1733
    %v1736 = vlaneseq
    %v1737 = vshrl.u32 %v1736, 7
    %v1738 = vsub.s32 0, %v1737
    %v1739 = vrot.slane %v1722, %v1738
    %v1740 = vlaneseq
    %v1741 = vshrl.u32 %v1740, 7
    %v1742 = vsub.s32 0, %v1741
    %v1743 = vrot.slane %v1724, %v1742
    %v1744 = vadd.f32 %v1734, %v1739
    %v1745 = vadd.f32 %v1735, %v1743
    %v1746 = vadd.f32 %v1744, %v719
    %v1747 = vadd.f32 %v1745, %v721
    %v1748 = vmax.f32 %v1746, 0.0
    %v1749 = vmax.f32 %v1747, 0.0
    %s1750 = scalar_lea.vmem [#allocation7], 1024
    %v1751 = vld [vmem:[%s1750] sm:$0xff]
    %v1752 = vld [vmem:[%s1750 + $0x8] sm:$0xff]
    %v1753 = vld [vmem:[%s1750 + $0x10] sm:$0xff]
    %v1754 = vld [vmem:[%s1750 + $0x18] sm:$0xff]
    %v1755 = vld [vmem:[%s1750 + $0x20] sm:$0xff]
    %v1756 = vld [vmem:[%s1750 + $0x28] sm:$0xff]
    %v1757 = vld [vmem:[%s1750 + $0x30] sm:$0xff]
    %v1758 = vld [vmem:[%s1750 + $0x38] sm:$0xff]
    %v1759 = vld [vmem:[%s1750 + $0x40] sm:$0xff]
    %v1760 = vld [vmem:[%s1750 + $0x48] sm:$0xff]
    %v1761 = vld [vmem:[%s1750 + $0x50] sm:$0xff]
    %v1762 = vld [vmem:[%s1750 + $0x58] sm:$0xff]
    %v1763 = vld [vmem:[%s1750 + $0x60] sm:$0xff]
    %v1764 = vld [vmem:[%s1750 + $0x68] sm:$0xff]
    %v1765 = vld [vmem:[%s1750 + $0x70] sm:$0xff]
    %v1766 = vld [vmem:[%s1750 + $0x78] sm:$0xff]
    %v1767 = vld [vmem:[%s1750 + $0x80] sm:$0xff]
    %v1768 = vld [vmem:[%s1750 + $0x88] sm:$0xff]
    %v1769 = vld [vmem:[%s1750 + $0x90] sm:$0xff]
    %v1770 = vld [vmem:[%s1750 + $0x98] sm:$0xff]
    %v1771 = vld [vmem:[%s1750 + $0xa0] sm:$0xff]
    %v1772 = vld [vmem:[%s1750 + $0xa8] sm:$0xff]
    %v1773 = vld [vmem:[%s1750 + $0xb0] sm:$0xff]
    %v1774 = vld [vmem:[%s1750 + $0xb8] sm:$0xff]
    %v1775 = vld [vmem:[%s1750 + $0xc0] sm:$0xff]
    %v1776 = vld [vmem:[%s1750 + $0xc8] sm:$0xff]
    %v1777 = vld [vmem:[%s1750 + $0xd0] sm:$0xff]
    %v1778 = vld [vmem:[%s1750 + $0xd8] sm:$0xff]
    %v1779 = vld [vmem:[%s1750 + $0xe0] sm:$0xff]
    %v1780 = vld [vmem:[%s1750 + $0xe8] sm:$0xff]
    %v1781 = vld [vmem:[%s1750 + $0xf0] sm:$0xff]
    %v1782 = vld [vmem:[%s1750 + $0xf8] sm:$0xff]
    %v1783 = vld [vmem:[%s1750 + $0x100] sm:$0xff]
    %v1784 = vld [vmem:[%s1750 + $0x108] sm:$0xff]
    %v1785 = vld [vmem:[%s1750 + $0x110] sm:$0xff]
    %v1786 = vld [vmem:[%s1750 + $0x118] sm:$0xff]
    %v1787 = vld [vmem:[%s1750 + $0x120] sm:$0xff]
    %v1788 = vld [vmem:[%s1750 + $0x128] sm:$0xff]
    %v1789 = vld [vmem:[%s1750 + $0x130] sm:$0xff]
    %v1790 = vld [vmem:[%s1750 + $0x138] sm:$0xff]
    %v1791 = vld [vmem:[%s1750 + $0x140] sm:$0xff]
    %v1792 = vld [vmem:[%s1750 + $0x148] sm:$0xff]
    %v1793 = vld [vmem:[%s1750 + $0x150] sm:$0xff]
    %v1794 = vld [vmem:[%s1750 + $0x158] sm:$0xff]
    %v1795 = vld [vmem:[%s1750 + $0x160] sm:$0xff]
    %v1796 = vld [vmem:[%s1750 + $0x168] sm:$0xff]
    %v1797 = vld [vmem:[%s1750 + $0x170] sm:$0xff]
    %v1798 = vld [vmem:[%s1750 + $0x178] sm:$0xff]
    %v1799 = vld [vmem:[%s1750 + $0x180] sm:$0xff]
    %v1800 = vld [vmem:[%s1750 + $0x188] sm:$0xff]
    %v1801 = vld [vmem:[%s1750 + $0x190] sm:$0xff]
    %v1802 = vld [vmem:[%s1750 + $0x198] sm:$0xff]
    %v1803 = vld [vmem:[%s1750 + $0x1a0] sm:$0xff]
    %v1804 = vld [vmem:[%s1750 + $0x1a8] sm:$0xff]
    %v1805 = vld [vmem:[%s1750 + $0x1b0] sm:$0xff]
    %v1806 = vld [vmem:[%s1750 + $0x1b8] sm:$0xff]
    %v1807 = vld [vmem:[%s1750 + $0x1c0] sm:$0xff]
    %v1808 = vld [vmem:[%s1750 + $0x1c8] sm:$0xff]
    %v1809 = vld [vmem:[%s1750 + $0x1d0] sm:$0xff]
    %v1810 = vld [vmem:[%s1750 + $0x1d8] sm:$0xff]
    %v1811 = vld [vmem:[%s1750 + $0x1e0] sm:$0xff]
    %v1812 = vld [vmem:[%s1750 + $0x1e8] sm:$0xff]
    %v1813 = vld [vmem:[%s1750 + $0x1f0] sm:$0xff]
    %v1814 = vld [vmem:[%s1750 + $0x1f8] sm:$0xff]
    %s1815 = scalar_lea.vmem [#allocation7], 1536
    %v1816 = vld [vmem:[%s1815] sm:$0xff]
    %v1817 = vld [vmem:[%s1815 + $0x8] sm:$0xff]
    %v1818 = vld [vmem:[%s1815 + $0x10] sm:$0xff]
    %v1819 = vld [vmem:[%s1815 + $0x18] sm:$0xff]
    %v1820 = vld [vmem:[%s1815 + $0x20] sm:$0xff]
    %v1821 = vld [vmem:[%s1815 + $0x28] sm:$0xff]
    %v1822 = vld [vmem:[%s1815 + $0x30] sm:$0xff]
    %v1823 = vld [vmem:[%s1815 + $0x38] sm:$0xff]
    %v1824 = vld [vmem:[%s1815 + $0x40] sm:$0xff]
    %v1825 = vld [vmem:[%s1815 + $0x48] sm:$0xff]
    %v1826 = vld [vmem:[%s1815 + $0x50] sm:$0xff]
    %v1827 = vld [vmem:[%s1815 + $0x58] sm:$0xff]
    %v1828 = vld [vmem:[%s1815 + $0x60] sm:$0xff]
    %v1829 = vld [vmem:[%s1815 + $0x68] sm:$0xff]
    %v1830 = vld [vmem:[%s1815 + $0x70] sm:$0xff]
    %v1831 = vld [vmem:[%s1815 + $0x78] sm:$0xff]
    %v1832 = vld [vmem:[%s1815 + $0x80] sm:$0xff]
    %v1833 = vld [vmem:[%s1815 + $0x88] sm:$0xff]
    %v1834 = vld [vmem:[%s1815 + $0x90] sm:$0xff]
    %v1835 = vld [vmem:[%s1815 + $0x98] sm:$0xff]
    %v1836 = vld [vmem:[%s1815 + $0xa0] sm:$0xff]
    %v1837 = vld [vmem:[%s1815 + $0xa8] sm:$0xff]
    %v1838 = vld [vmem:[%s1815 + $0xb0] sm:$0xff]
    %v1839 = vld [vmem:[%s1815 + $0xb8] sm:$0xff]
    %v1840 = vld [vmem:[%s1815 + $0xc0] sm:$0xff]
    %v1841 = vld [vmem:[%s1815 + $0xc8] sm:$0xff]
    %v1842 = vld [vmem:[%s1815 + $0xd0] sm:$0xff]
    %v1843 = vld [vmem:[%s1815 + $0xd8] sm:$0xff]
    %v1844 = vld [vmem:[%s1815 + $0xe0] sm:$0xff]
    %v1845 = vld [vmem:[%s1815 + $0xe8] sm:$0xff]
    %v1846 = vld [vmem:[%s1815 + $0xf0] sm:$0xff]
    %v1847 = vld [vmem:[%s1815 + $0xf8] sm:$0xff]
    %v1848 = vld [vmem:[%s1815 + $0x100] sm:$0xff]
    %v1849 = vld [vmem:[%s1815 + $0x108] sm:$0xff]
    %v1850 = vld [vmem:[%s1815 + $0x110] sm:$0xff]
    %v1851 = vld [vmem:[%s1815 + $0x118] sm:$0xff]
    %v1852 = vld [vmem:[%s1815 + $0x120] sm:$0xff]
    %v1853 = vld [vmem:[%s1815 + $0x128] sm:$0xff]
    %v1854 = vld [vmem:[%s1815 + $0x130] sm:$0xff]
    %v1855 = vld [vmem:[%s1815 + $0x138] sm:$0xff]
    %v1856 = vld [vmem:[%s1815 + $0x140] sm:$0xff]
    %v1857 = vld [vmem:[%s1815 + $0x148] sm:$0xff]
    %v1858 = vld [vmem:[%s1815 + $0x150] sm:$0xff]
    %v1859 = vld [vmem:[%s1815 + $0x158] sm:$0xff]
    %v1860 = vld [vmem:[%s1815 + $0x160] sm:$0xff]
    %v1861 = vld [vmem:[%s1815 + $0x168] sm:$0xff]
    %v1862 = vld [vmem:[%s1815 + $0x170] sm:$0xff]
    %v1863 = vld [vmem:[%s1815 + $0x178] sm:$0xff]
    %v1864 = vld [vmem:[%s1815 + $0x180] sm:$0xff]
    %v1865 = vld [vmem:[%s1815 + $0x188] sm:$0xff]
    %v1866 = vld [vmem:[%s1815 + $0x190] sm:$0xff]
    %v1867 = vld [vmem:[%s1815 + $0x198] sm:$0xff]
    %v1868 = vld [vmem:[%s1815 + $0x1a0] sm:$0xff]
    %v1869 = vld [vmem:[%s1815 + $0x1a8] sm:$0xff]
    %v1870 = vld [vmem:[%s1815 + $0x1b0] sm:$0xff]
    %v1871 = vld [vmem:[%s1815 + $0x1b8] sm:$0xff]
    %v1872 = vld [vmem:[%s1815 + $0x1c0] sm:$0xff]
    %v1873 = vld [vmem:[%s1815 + $0x1c8] sm:$0xff]
    %v1874 = vld [vmem:[%s1815 + $0x1d0] sm:$0xff]
    %v1875 = vld [vmem:[%s1815 + $0x1d8] sm:$0xff]
    %v1876 = vld [vmem:[%s1815 + $0x1e0] sm:$0xff]
    %v1877 = vld [vmem:[%s1815 + $0x1e8] sm:$0xff]
    %v1878 = vld [vmem:[%s1815 + $0x1f0] sm:$0xff]
    %v1879 = vld [vmem:[%s1815 + $0x1f8] sm:$0xff]
    %s1880 = scalar_lea.vmem [#allocation8], 4
    %v1881 = vld [vmem:[%s1880] sm:$0xf]
    %1882 = vmatprep.subr.mxu0 %v1782
    %1883 = vmatpush1.msra.mxu0 %v1781
    %1884 = vmatprep.subr.mxu0 %v1780
    %1885 = vmatpush1.msra.mxu0 %v1779
    %1886 = vmatprep.subr.mxu0 %v1778
    %1887 = vmatpush1.msra.mxu0 %v1777
    %1888 = vmatprep.subr.mxu0 %v1776
    %1889 = vmatpush1.msra.mxu0 %v1775
    %1890 = vmatprep.subr.mxu0 %v1774
    %1891 = vmatpush1.msra.mxu0 %v1773
    %1892 = vmatprep.subr.mxu0 %v1772
    %1893 = vmatpush1.msra.mxu0 %v1771
    %1894 = vmatprep.subr.mxu0 %v1770
    %1895 = vmatpush1.msra.mxu0 %v1769
    %1896 = vmatprep.subr.mxu0 %v1768
    %1897 = vmatpush1.msra.mxu0 %v1767
    %1898 = vmatprep.subr.mxu0 %v1766
    %1899 = vmatpush1.msra.mxu0 %v1765
    %1900 = vmatprep.subr.mxu0 %v1764
    %1901 = vmatpush1.msra.mxu0 %v1763
    %1902 = vmatprep.subr.mxu0 %v1762
    %1903 = vmatpush1.msra.mxu0 %v1761
    %1904 = vmatprep.subr.mxu0 %v1760
    %1905 = vmatpush1.msra.mxu0 %v1759
    %1906 = vmatprep.subr.mxu0 %v1758
    %1907 = vmatpush1.msra.mxu0 %v1757
    %1908 = vmatprep.subr.mxu0 %v1756
    %1909 = vmatpush1.msra.mxu0 %v1755
    %1910 = vmatprep.subr.mxu0 %v1754
    %1911 = vmatpush1.msra.mxu0 %v1753
    %1912 = vmatprep.subr.mxu0 %v1752
    %1913 = vmatpush1.msra.mxu0 %v1751
    %1914 = vmatprep.subr.mxu0 %v1814
    %1915 = vmatpush2.msra.mxu0 %v1813
    %1916 = vmatprep.subr.mxu0 %v1812
    %1917 = vmatpush2.msra.mxu0 %v1811
    %1918 = vmatprep.subr.mxu0 %v1810
    %1919 = vmatpush2.msra.mxu0 %v1809
    %1920 = vmatprep.subr.mxu0 %v1808
    %1921 = vmatpush2.msra.mxu0 %v1807
    %1922 = vmatprep.subr.mxu0 %v1806
    %1923 = vmatpush2.msra.mxu0 %v1805
    %1924 = vmatprep.subr.mxu0 %v1804
    %1925 = vmatpush2.msra.mxu0 %v1803
    %1926 = vmatprep.subr.mxu0 %v1802
    %1927 = vmatpush2.msra.mxu0 %v1801
    %1928 = vmatprep.subr.mxu0 %v1800
    %1929 = vmatpush2.msra.mxu0 %v1799
    %1930 = vmatprep.subr.mxu0 %v1798
    %1931 = vmatpush2.msra.mxu0 %v1797
    %1932 = vmatprep.subr.mxu0 %v1796
    %1933 = vmatpush2.msra.mxu0 %v1795
    %1934 = vmatprep.subr.mxu0 %v1794
    %1935 = vmatpush2.msra.mxu0 %v1793
    %1936 = vmatprep.subr.mxu0 %v1792
    %1937 = vmatpush2.msra.mxu0 %v1791
    %1938 = vmatprep.subr.mxu0 %v1790
    %1939 = vmatpush2.msra.mxu0 %v1789
    %1940 = vmatprep.subr.mxu0 %v1788
    %1941 = vmatpush2.msra.mxu0 %v1787
    %1942 = vmatprep.subr.mxu0 %v1786
    %1943 = vmatpush2.msra.mxu0 %v1785
    %1944 = vmatprep.subr.mxu0 %v1784
    %1945 = vmatpush2.msra.mxu0 %v1783
    %1946 = vmatprep.mubr.f32.mxu0 %v1749
    %1947 = vmatmul.mubr.f32.gmra.mxu0 %v1748
    %v1948 = vpop.f32.mrf.mxu0
    %v1949 = vadd.f32 0.0, %v1948
    %v1950 = vpop.f32.mrf.mxu0
    %v1951 = vadd.f32 0.0, %v1950
    %1952 = vdwg.mxu0
    %v1953 = vsel %vm957, %v1949, 0.0
    %v1954 = vrot.slane %v1953, 4
    %v1955 = vadd.f32 %v1953, %v1954
    %v1956 = vrot.slane %v1955, 2
    %v1957 = vadd.f32 %v1955, %v1956
    %v1958 = vrot.slane %v1957, 1
    %v1959 = vadd.f32 %v1957, %v1958
    %v1960 = vsel %vm957, %v1951, 0.0
    %v1961 = vrot.slane %v1960, 4
    %v1962 = vadd.f32 %v1960, %v1961
    %v1963 = vrot.slane %v1962, 2
    %v1964 = vadd.f32 %v1962, %v1963
    %v1965 = vrot.slane %v1964, 1
    %v1966 = vadd.f32 %v1964, %v1965
    %1967 = vmatprep.subr.mxu0 0.0
    %1968 = vmatpush1.msra.mxu0 %v738
    %1969 = vmatprep.subr.mxu0 0.0
    %1970 = vmatpush1.msra.mxu0 %v737
    %1971 = vmatprep.subr.mxu0 0.0
    %1972 = vmatpush1.msra.mxu0 %v736
    %1973 = vmatprep.subr.mxu0 0.0
    %1974 = vmatpush1.msra.mxu0 %v735
    %1975 = vmatprep.subr.mxu0 0.0
    %1976 = vmatpush1.msra.mxu0 %v734
    %1977 = vmatprep.subr.mxu0 0.0
    %1978 = vmatpush1.msra.mxu0 %v733
    %1979 = vmatprep.subr.mxu0 0.0
    %1980 = vmatpush1.msra.mxu0 %v732
    %1981 = vmatprep.subr.mxu0 0.0
    %1982 = vmatpush1.msra.mxu0 %v731
    %1983 = vmatprep.subr.mxu0 0.0
    %1984 = vmatpush1.msra.mxu0 %v730
    %1985 = vmatprep.subr.mxu0 0.0
    %1986 = vmatpush1.msra.mxu0 %v729
    %1987 = vmatprep.subr.mxu0 0.0
    %1988 = vmatpush1.msra.mxu0 %v728
    %1989 = vmatprep.subr.mxu0 0.0
    %1990 = vmatpush1.msra.mxu0 %v727
    %1991 = vmatprep.subr.mxu0 0.0
    %1992 = vmatpush1.msra.mxu0 %v726
    %1993 = vmatprep.subr.mxu0 0.0
    %1994 = vmatpush1.msra.mxu0 %v725
    %1995 = vmatprep.subr.mxu0 0.0
    %1996 = vmatpush1.msra.mxu0 %v724
    %1997 = vmatprep.subr.mxu0 0.0
    %1998 = vmatpush1.msra.mxu0 %v723
    %1999 = vmatprep.subr.mxu0 0.0
    %2000 = vmatpush2.msra.mxu0 %v754
    %2001 = vmatprep.subr.mxu0 0.0
    %2002 = vmatpush2.msra.mxu0 %v753
    %2003 = vmatprep.subr.mxu0 0.0
    %2004 = vmatpush2.msra.mxu0 %v752
    %2005 = vmatprep.subr.mxu0 0.0
    %2006 = vmatpush2.msra.mxu0 %v751
    %2007 = vmatprep.subr.mxu0 0.0
    %2008 = vmatpush2.msra.mxu0 %v750
    %2009 = vmatprep.subr.mxu0 0.0
    %2010 = vmatpush2.msra.mxu0 %v749
    %2011 = vmatprep.subr.mxu0 0.0
    %2012 = vmatpush2.msra.mxu0 %v748
    %2013 = vmatprep.subr.mxu0 0.0
    %2014 = vmatpush2.msra.mxu0 %v747
    %2015 = vmatprep.subr.mxu0 0.0
    %2016 = vmatpush2.msra.mxu0 %v746
    %2017 = vmatprep.subr.mxu0 0.0
    %2018 = vmatpush2.msra.mxu0 %v745
    %2019 = vmatprep.subr.mxu0 0.0
    %2020 = vmatpush2.msra.mxu0 %v744
    %2021 = vmatprep.subr.mxu0 0.0
    %2022 = vmatpush2.msra.mxu0 %v743
    %2023 = vmatprep.subr.mxu0 0.0
    %2024 = vmatpush2.msra.mxu0 %v742
    %2025 = vmatprep.subr.mxu0 0.0
    %2026 = vmatpush2.msra.mxu0 %v741
    %2027 = vmatprep.subr.mxu0 0.0
    %2028 = vmatpush2.msra.mxu0 %v740
    %2029 = vmatprep.subr.mxu0 0.0
    %2030 = vmatpush2.msra.mxu0 %v739
    %2031 = vmatprep.mubr.f32.mxu0 %v1966
    %2032 = vmatmul.mubr.f32.gmra.mxu0 %v1959
    %v2033 = vpop.f32.mrf.mxu0
    %v2034 = vadd.f32 0.0, %v2033
    %v2035 = vpop.f32.mrf.mxu0
    %2036 = vdwg.mxu0
    %v2037 = vmul.f32 %v2034, 0.0078125
    %v2038 = vmul.f32 %v1949, %v1949
    %v2039 = vmul.f32 %v1951, %v1951
    %v2040 = vsel %vm957, %v2038, 0.0
    %v2041 = vrot.slane %v2040, 4
    %v2042 = vadd.f32 %v2040, %v2041
    %v2043 = vrot.slane %v2042, 2
    %v2044 = vadd.f32 %v2042, %v2043
    %v2045 = vrot.slane %v2044, 1
    %v2046 = vadd.f32 %v2044, %v2045
    %v2047 = vsel %vm957, %v2039, 0.0
    %v2048 = vrot.slane %v2047, 4
    %v2049 = vadd.f32 %v2047, %v2048
    %v2050 = vrot.slane %v2049, 2
    %v2051 = vadd.f32 %v2049, %v2050
    %v2052 = vrot.slane %v2051, 1
    %v2053 = vadd.f32 %v2051, %v2052
    %2054 = vmatprep.subr.mxu0 0.0
    %2055 = vmatpush1.msra.mxu0 %v738
    %2056 = vmatprep.subr.mxu0 0.0
    %2057 = vmatpush1.msra.mxu0 %v737
    %2058 = vmatprep.subr.mxu0 0.0
    %2059 = vmatpush1.msra.mxu0 %v736
    %2060 = vmatprep.subr.mxu0 0.0
    %2061 = vmatpush1.msra.mxu0 %v735
    %2062 = vmatprep.subr.mxu0 0.0
    %2063 = vmatpush1.msra.mxu0 %v734
    %2064 = vmatprep.subr.mxu0 0.0
    %2065 = vmatpush1.msra.mxu0 %v733
    %2066 = vmatprep.subr.mxu0 0.0
    %2067 = vmatpush1.msra.mxu0 %v732
    %2068 = vmatprep.subr.mxu0 0.0
    %2069 = vmatpush1.msra.mxu0 %v731
    %2070 = vmatprep.subr.mxu0 0.0
    %2071 = vmatpush1.msra.mxu0 %v730
    %2072 = vmatprep.subr.mxu0 0.0
    %2073 = vmatpush1.msra.mxu0 %v729
    %2074 = vmatprep.subr.mxu0 0.0
    %2075 = vmatpush1.msra.mxu0 %v728
    %2076 = vmatprep.subr.mxu0 0.0
    %2077 = vmatpush1.msra.mxu0 %v727
    %2078 = vmatprep.subr.mxu0 0.0
    %2079 = vmatpush1.msra.mxu0 %v726
    %2080 = vmatprep.subr.mxu0 0.0
    %2081 = vmatpush1.msra.mxu0 %v725
    %2082 = vmatprep.subr.mxu0 0.0
    %2083 = vmatpush1.msra.mxu0 %v724
    %2084 = vmatprep.subr.mxu0 0.0
    %2085 = vmatpush1.msra.mxu0 %v723
    %2086 = vmatprep.subr.mxu0 0.0
    %2087 = vmatpush2.msra.mxu0 %v754
    %2088 = vmatprep.subr.mxu0 0.0
    %2089 = vmatpush2.msra.mxu0 %v753
    %2090 = vmatprep.subr.mxu0 0.0
    %2091 = vmatpush2.msra.mxu0 %v752
    %2092 = vmatprep.subr.mxu0 0.0
    %2093 = vmatpush2.msra.mxu0 %v751
    %2094 = vmatprep.subr.mxu0 0.0
    %2095 = vmatpush2.msra.mxu0 %v750
    %2096 = vmatprep.subr.mxu0 0.0
    %2097 = vmatpush2.msra.mxu0 %v749
    %2098 = vmatprep.subr.mxu0 0.0
    %2099 = vmatpush2.msra.mxu0 %v748
    %2100 = vmatprep.subr.mxu0 0.0
    %2101 = vmatpush2.msra.mxu0 %v747
    %2102 = vmatprep.subr.mxu0 0.0
    %2103 = vmatpush2.msra.mxu0 %v746
    %2104 = vmatprep.subr.mxu0 0.0
    %2105 = vmatpush2.msra.mxu0 %v745
    %2106 = vmatprep.subr.mxu0 0.0
    %2107 = vmatpush2.msra.mxu0 %v744
    %2108 = vmatprep.subr.mxu0 0.0
    %2109 = vmatpush2.msra.mxu0 %v743
    %2110 = vmatprep.subr.mxu0 0.0
    %2111 = vmatpush2.msra.mxu0 %v742
    %2112 = vmatprep.subr.mxu0 0.0
    %2113 = vmatpush2.msra.mxu0 %v741
    %2114 = vmatprep.subr.mxu0 0.0
    %2115 = vmatpush2.msra.mxu0 %v740
    %2116 = vmatprep.subr.mxu0 0.0
    %2117 = vmatpush2.msra.mxu0 %v739
    %2118 = vmatprep.mubr.f32.mxu0 %v2053
    %2119 = vmatmul.mubr.f32.gmra.mxu0 %v2046
    %v2120 = vpop.f32.mrf.mxu0
    %v2121 = vadd.f32 0.0, %v2120
    %v2122 = vpop.f32.mrf.mxu0
    %2123 = vdwg.mxu0
    %v2124 = vmul.f32 %v2121, 0.0078125
    %v2125 = vmul.f32 %v2037, %v2037
    %v2126 = vsub.f32 %v2124, %v2125
    %v2127 = vadd.f32 %v2126, 1e-05
    %v2128 = vrsqrt.pop %v2127
    %v2129 = vmul.f32 %v1881, %v2128
    %v2130 = vmul.f32 %v2037, %v2129
    %v2132 = vrot.slane %v2130, 7
    %v2134 = vsub.f32 %v1881, %v2132
    %v2136 = vsel %vm1142, %v2129, 0
    %2138 = vmatprep.subr.mxu0 0.0
    %2139 = vmatpush1.msra.mxu0 0.0
    %2140 = vmatprep.subr.mxu0 0.0
    %2141 = vmatpush1.msra.mxu0 0.0
    %2142 = vmatprep.subr.mxu0 0.0
    %2143 = vmatpush1.msra.mxu0 0.0
    %2144 = vmatprep.subr.mxu0 0.0
    %2145 = vmatpush1.msra.mxu0 0.0
    %2146 = vmatprep.subr.mxu0 0.0
    %2147 = vmatpush1.msra.mxu0 0.0
    %2148 = vmatprep.subr.mxu0 0.0
    %2149 = vmatpush1.msra.mxu0 0.0
    %2150 = vmatprep.subr.mxu0 0.0
    %2151 = vmatpush1.msra.mxu0 0.0
    %2152 = vmatprep.subr.mxu0 0.0
    %2153 = vmatpush1.msra.mxu0 0.0
    %2154 = vmatprep.subr.mxu0 0.0
    %2155 = vmatpush1.msra.mxu0 0.0
    %2156 = vmatprep.subr.mxu0 0.0
    %2157 = vmatpush1.msra.mxu0 0.0
    %2158 = vmatprep.subr.mxu0 0.0
    %2159 = vmatpush1.msra.mxu0 0.0
    %2160 = vmatprep.subr.mxu0 0.0
    %2161 = vmatpush1.msra.mxu0 0.0
    %2162 = vmatprep.subr.mxu0 0.0
    %2163 = vmatpush1.msra.mxu0 0.0
    %2164 = vmatprep.subr.mxu0 0.0
    %2165 = vmatpush1.msra.mxu0 0.0
    %2166 = vmatprep.subr.mxu0 0.0
    %2167 = vmatpush1.msra.mxu0 0.0
    %2168 = vmatprep.subr.mxu0 %v1149
    %2169 = vmatpush1.msra.mxu0 %v1147
    %2170 = vmatprep.subr.mxu0 0.0
    %2171 = vmatpush2.msra.mxu0 0.0
    %2172 = vmatprep.subr.mxu0 0.0
    %2173 = vmatpush2.msra.mxu0 0.0
    %2174 = vmatprep.subr.mxu0 0.0
    %2175 = vmatpush2.msra.mxu0 0.0
    %2176 = vmatprep.subr.mxu0 0.0
    %2177 = vmatpush2.msra.mxu0 0.0
    %2178 = vmatprep.subr.mxu0 0.0
    %2179 = vmatpush2.msra.mxu0 0.0
    %2180 = vmatprep.subr.mxu0 0.0
    %2181 = vmatpush2.msra.mxu0 0.0
    %2182 = vmatprep.subr.mxu0 0.0
    %2183 = vmatpush2.msra.mxu0 0.0
    %2184 = vmatprep.subr.mxu0 0.0
    %2185 = vmatpush2.msra.mxu0 0.0
    %2186 = vmatprep.subr.mxu0 0.0
    %2187 = vmatpush2.msra.mxu0 0.0
    %2188 = vmatprep.subr.mxu0 0.0
    %2189 = vmatpush2.msra.mxu0 0.0
    %2190 = vmatprep.subr.mxu0 0.0
    %2191 = vmatpush2.msra.mxu0 0.0
    %2192 = vmatprep.subr.mxu0 0.0
    %2193 = vmatpush2.msra.mxu0 0.0
    %2194 = vmatprep.subr.mxu0 0.0
    %2195 = vmatpush2.msra.mxu0 0.0
    %2196 = vmatprep.subr.mxu0 0.0
    %2197 = vmatpush2.msra.mxu0 0.0
    %2198 = vmatprep.subr.mxu0 0.0
    %2199 = vmatpush2.msra.mxu0 0.0
    %2200 = vmatprep.subr.mxu0 0.0
    %2201 = vmatpush2.msra.mxu0 0.0
    %2202 = vmatprep.mubr.f32.mxu0 0.0
    %2203 = vmatmul.mubr.f32.gmra.mxu0 %v2136
    %v2204 = vpop.f32.mrf.mxu0
    %v2205 = vadd.f32 0.0, %v2204
    %v2206 = vpop.f32.mrf.mxu0
    %v2207 = vadd.f32 0.0, %v2206
    %2208 = vdwg.mxu0
    %v2210 = vrot.slane %v2134, 1
    %v2211 = vsel %vm1142, %v2210, 0
    %2213 = vmatprep.subr.mxu0 0.0
    %2214 = vmatpush1.msra.mxu0 0.0
    %2215 = vmatprep.subr.mxu0 0.0
    %2216 = vmatpush1.msra.mxu0 0.0
    %2217 = vmatprep.subr.mxu0 0.0
    %2218 = vmatpush1.msra.mxu0 0.0
    %2219 = vmatprep.subr.mxu0 0.0
    %2220 = vmatpush1.msra.mxu0 0.0
    %2221 = vmatprep.subr.mxu0 0.0
    %2222 = vmatpush1.msra.mxu0 0.0
    %2223 = vmatprep.subr.mxu0 0.0
    %2224 = vmatpush1.msra.mxu0 0.0
    %2225 = vmatprep.subr.mxu0 0.0
    %2226 = vmatpush1.msra.mxu0 0.0
    %2227 = vmatprep.subr.mxu0 0.0
    %2228 = vmatpush1.msra.mxu0 0.0
    %2229 = vmatprep.subr.mxu0 0.0
    %2230 = vmatpush1.msra.mxu0 0.0
    %2231 = vmatprep.subr.mxu0 0.0
    %2232 = vmatpush1.msra.mxu0 0.0
    %2233 = vmatprep.subr.mxu0 0.0
    %2234 = vmatpush1.msra.mxu0 0.0
    %2235 = vmatprep.subr.mxu0 0.0
    %2236 = vmatpush1.msra.mxu0 0.0
    %2237 = vmatprep.subr.mxu0 0.0
    %2238 = vmatpush1.msra.mxu0 0.0
    %2239 = vmatprep.subr.mxu0 0.0
    %2240 = vmatpush1.msra.mxu0 0.0
    %2241 = vmatprep.subr.mxu0 0.0
    %2242 = vmatpush1.msra.mxu0 0.0
    %2243 = vmatprep.subr.mxu0 %v1149
    %2244 = vmatpush1.msra.mxu0 %v1147
    %2245 = vmatprep.subr.mxu0 0.0
    %2246 = vmatpush2.msra.mxu0 0.0
    %2247 = vmatprep.subr.mxu0 0.0
    %2248 = vmatpush2.msra.mxu0 0.0
    %2249 = vmatprep.subr.mxu0 0.0
    %2250 = vmatpush2.msra.mxu0 0.0
    %2251 = vmatprep.subr.mxu0 0.0
    %2252 = vmatpush2.msra.mxu0 0.0
    %2253 = vmatprep.subr.mxu0 0.0
    %2254 = vmatpush2.msra.mxu0 0.0
    %2255 = vmatprep.subr.mxu0 0.0
    %2256 = vmatpush2.msra.mxu0 0.0
    %2257 = vmatprep.subr.mxu0 0.0
    %2258 = vmatpush2.msra.mxu0 0.0
    %2259 = vmatprep.subr.mxu0 0.0
    %2260 = vmatpush2.msra.mxu0 0.0
    %2261 = vmatprep.subr.mxu0 0.0
    %2262 = vmatpush2.msra.mxu0 0.0
    %2263 = vmatprep.subr.mxu0 0.0
    %2264 = vmatpush2.msra.mxu0 0.0
    %2265 = vmatprep.subr.mxu0 0.0
    %2266 = vmatpush2.msra.mxu0 0.0
    %2267 = vmatprep.subr.mxu0 0.0
    %2268 = vmatpush2.msra.mxu0 0.0
    %2269 = vmatprep.subr.mxu0 0.0
    %2270 = vmatpush2.msra.mxu0 0.0
    %2271 = vmatprep.subr.mxu0 0.0
    %2272 = vmatpush2.msra.mxu0 0.0
    %2273 = vmatprep.subr.mxu0 0.0
    %2274 = vmatpush2.msra.mxu0 0.0
    %2275 = vmatprep.subr.mxu0 0.0
    %2276 = vmatpush2.msra.mxu0 0.0
    %2277 = vmatprep.mubr.f32.mxu0 0.0
    %2278 = vmatmul.mubr.f32.gmra.mxu0 %v2211
    %v2279 = vpop.f32.mrf.mxu0
    %v2280 = vadd.f32 0.0, %v2279
    %v2281 = vpop.f32.mrf.mxu0
    %v2282 = vadd.f32 0.0, %v2281
    %2283 = vdwg.mxu0
    %v2284 = vlaneseq
    %v2285 = vshrl.u32 %v2284, 7
    %v2286 = vsub.s32 0, %v2285
    %v2287 = vrot.slane %v2205, %v2286
    %v2288 = vlaneseq
    %v2289 = vshrl.u32 %v2288, 7
    %v2290 = vsub.s32 0, %v2289
    %v2291 = vrot.slane %v2207, %v2290
    %v2292 = vmul.f32 %v1949, %v2287
    %v2293 = vmul.f32 %v1951, %v2291
    %v2294 = vlaneseq
    %v2295 = vshrl.u32 %v2294, 7
    %v2296 = vsub.s32 0, %v2295
    %v2297 = vrot.slane %v2280, %v2296
    %v2298 = vlaneseq
    %v2299 = vshrl.u32 %v2298, 7
    %v2300 = vsub.s32 0, %v2299
    %v2301 = vrot.slane %v2282, %v2300
    %v2302 = vadd.f32 %v2292, %v2297
    %v2303 = vadd.f32 %v2293, %v2301
    %v2304 = vmax.f32 %v2302, 0.0
    %v2305 = vmax.f32 %v2303, 0.0
    %2306 = vmatprep.subr.mxu0 %v1847
    %2307 = vmatpush1.msra.mxu0 %v1846
    %2308 = vmatprep.subr.mxu0 %v1845
    %2309 = vmatpush1.msra.mxu0 %v1844
    %2310 = vmatprep.subr.mxu0 %v1843
    %2311 = vmatpush1.msra.mxu0 %v1842
    %2312 = vmatprep.subr.mxu0 %v1841
    %2313 = vmatpush1.msra.mxu0 %v1840
    %2314 = vmatprep.subr.mxu0 %v1839
    %2315 = vmatpush1.msra.mxu0 %v1838
    %2316 = vmatprep.subr.mxu0 %v1837
    %2317 = vmatpush1.msra.mxu0 %v1836
    %2318 = vmatprep.subr.mxu0 %v1835
    %2319 = vmatpush1.msra.mxu0 %v1834
    %2320 = vmatprep.subr.mxu0 %v1833
    %2321 = vmatpush1.msra.mxu0 %v1832
    %2322 = vmatprep.subr.mxu0 %v1831
    %2323 = vmatpush1.msra.mxu0 %v1830
    %2324 = vmatprep.subr.mxu0 %v1829
    %2325 = vmatpush1.msra.mxu0 %v1828
    %2326 = vmatprep.subr.mxu0 %v1827
    %2327 = vmatpush1.msra.mxu0 %v1826
    %2328 = vmatprep.subr.mxu0 %v1825
    %2329 = vmatpush1.msra.mxu0 %v1824
    %2330 = vmatprep.subr.mxu0 %v1823
    %2331 = vmatpush1.msra.mxu0 %v1822
    %2332 = vmatprep.subr.mxu0 %v1821
    %2333 = vmatpush1.msra.mxu0 %v1820
    %2334 = vmatprep.subr.mxu0 %v1819
    %2335 = vmatpush1.msra.mxu0 %v1818
    %2336 = vmatprep.subr.mxu0 %v1817
    %2337 = vmatpush1.msra.mxu0 %v1816
    %2338 = vmatprep.subr.mxu0 %v1879
    %2339 = vmatpush2.msra.mxu0 %v1878
    %2340 = vmatprep.subr.mxu0 %v1877
    %2341 = vmatpush2.msra.mxu0 %v1876
    %2342 = vmatprep.subr.mxu0 %v1875
    %2343 = vmatpush2.msra.mxu0 %v1874
    %2344 = vmatprep.subr.mxu0 %v1873
    %2345 = vmatpush2.msra.mxu0 %v1872
    %2346 = vmatprep.subr.mxu0 %v1871
    %2347 = vmatpush2.msra.mxu0 %v1870
    %2348 = vmatprep.subr.mxu0 %v1869
    %2349 = vmatpush2.msra.mxu0 %v1868
    %2350 = vmatprep.subr.mxu0 %v1867
    %2351 = vmatpush2.msra.mxu0 %v1866
    %2352 = vmatprep.subr.mxu0 %v1865
    %2353 = vmatpush2.msra.mxu0 %v1864
    %2354 = vmatprep.subr.mxu0 %v1863
    %2355 = vmatpush2.msra.mxu0 %v1862
    %2356 = vmatprep.subr.mxu0 %v1861
    %2357 = vmatpush2.msra.mxu0 %v1860
    %2358 = vmatprep.subr.mxu0 %v1859
    %2359 = vmatpush2.msra.mxu0 %v1858
    %2360 = vmatprep.subr.mxu0 %v1857
    %2361 = vmatpush2.msra.mxu0 %v1856
    %2362 = vmatprep.subr.mxu0 %v1855
    %2363 = vmatpush2.msra.mxu0 %v1854
    %2364 = vmatprep.subr.mxu0 %v1853
    %2365 = vmatpush2.msra.mxu0 %v1852
    %2366 = vmatprep.subr.mxu0 %v1851
    %2367 = vmatpush2.msra.mxu0 %v1850
    %2368 = vmatprep.subr.mxu0 %v1849
    %2369 = vmatpush2.msra.mxu0 %v1848
    %2370 = vmatprep.mubr.f32.mxu0 %v2305
    %2371 = vmatmul.mubr.f32.gmra.mxu0 %v2304
    %v2372 = vpop.f32.mrf.mxu0
    %v2373 = vadd.f32 0.0, %v2372
    %v2374 = vpop.f32.mrf.mxu0
    %v2375 = vadd.f32 0.0, %v2374
    %2376 = vdwg.mxu0
    %v2377 = vsel %vm957, %v2373, 0.0
    %v2378 = vrot.slane %v2377, 4
    %v2379 = vadd.f32 %v2377, %v2378
    %v2380 = vrot.slane %v2379, 2
    %v2381 = vadd.f32 %v2379, %v2380
    %v2382 = vrot.slane %v2381, 1
    %v2383 = vadd.f32 %v2381, %v2382
    %v2384 = vsel %vm957, %v2375, 0.0
    %v2385 = vrot.slane %v2384, 4
    %v2386 = vadd.f32 %v2384, %v2385
    %v2387 = vrot.slane %v2386, 2
    %v2388 = vadd.f32 %v2386, %v2387
    %v2389 = vrot.slane %v2388, 1
    %v2390 = vadd.f32 %v2388, %v2389
    %2391 = vmatprep.subr.mxu0 0.0
    %2392 = vmatpush1.msra.mxu0 %v738
    %2393 = vmatprep.subr.mxu0 0.0
    %2394 = vmatpush1.msra.mxu0 %v737
    %2395 = vmatprep.subr.mxu0 0.0
    %2396 = vmatpush1.msra.mxu0 %v736
    %2397 = vmatprep.subr.mxu0 0.0
    %2398 = vmatpush1.msra.mxu0 %v735
    %2399 = vmatprep.subr.mxu0 0.0
    %2400 = vmatpush1.msra.mxu0 %v734
    %2401 = vmatprep.subr.mxu0 0.0
    %2402 = vmatpush1.msra.mxu0 %v733
    %2403 = vmatprep.subr.mxu0 0.0
    %2404 = vmatpush1.msra.mxu0 %v732
    %2405 = vmatprep.subr.mxu0 0.0
    %2406 = vmatpush1.msra.mxu0 %v731
    %2407 = vmatprep.subr.mxu0 0.0
    %2408 = vmatpush1.msra.mxu0 %v730
    %2409 = vmatprep.subr.mxu0 0.0
    %2410 = vmatpush1.msra.mxu0 %v729
    %2411 = vmatprep.subr.mxu0 0.0
    %2412 = vmatpush1.msra.mxu0 %v728
    %2413 = vmatprep.subr.mxu0 0.0
    %2414 = vmatpush1.msra.mxu0 %v727
    %2415 = vmatprep.subr.mxu0 0.0
    %2416 = vmatpush1.msra.mxu0 %v726
    %2417 = vmatprep.subr.mxu0 0.0
    %2418 = vmatpush1.msra.mxu0 %v725
    %2419 = vmatprep.subr.mxu0 0.0
    %2420 = vmatpush1.msra.mxu0 %v724
    %2421 = vmatprep.subr.mxu0 0.0
    %2422 = vmatpush1.msra.mxu0 %v723
    %2423 = vmatprep.subr.mxu0 0.0
    %2424 = vmatpush2.msra.mxu0 %v754
    %2425 = vmatprep.subr.mxu0 0.0
    %2426 = vmatpush2.msra.mxu0 %v753
    %2427 = vmatprep.subr.mxu0 0.0
    %2428 = vmatpush2.msra.mxu0 %v752
    %2429 = vmatprep.subr.mxu0 0.0
    %2430 = vmatpush2.msra.mxu0 %v751
    %2431 = vmatprep.subr.mxu0 0.0
    %2432 = vmatpush2.msra.mxu0 %v750
    %2433 = vmatprep.subr.mxu0 0.0
    %2434 = vmatpush2.msra.mxu0 %v749
    %2435 = vmatprep.subr.mxu0 0.0
    %2436 = vmatpush2.msra.mxu0 %v748
    %2437 = vmatprep.subr.mxu0 0.0
    %2438 = vmatpush2.msra.mxu0 %v747
    %2439 = vmatprep.subr.mxu0 0.0
    %2440 = vmatpush2.msra.mxu0 %v746
    %2441 = vmatprep.subr.mxu0 0.0
    %2442 = vmatpush2.msra.mxu0 %v745
    %2443 = vmatprep.subr.mxu0 0.0
    %2444 = vmatpush2.msra.mxu0 %v744
    %2445 = vmatprep.subr.mxu0 0.0
    %2446 = vmatpush2.msra.mxu0 %v743
    %2447 = vmatprep.subr.mxu0 0.0
    %2448 = vmatpush2.msra.mxu0 %v742
    %2449 = vmatprep.subr.mxu0 0.0
    %2450 = vmatpush2.msra.mxu0 %v741
    %2451 = vmatprep.subr.mxu0 0.0
    %2452 = vmatpush2.msra.mxu0 %v740
    %2453 = vmatprep.subr.mxu0 0.0
    %2454 = vmatpush2.msra.mxu0 %v739
    %2455 = vmatprep.mubr.f32.mxu0 %v2390
    %2456 = vmatmul.mubr.f32.gmra.mxu0 %v2383
    %v2457 = vpop.f32.mrf.mxu0
    %v2458 = vadd.f32 0.0, %v2457
    %v2459 = vpop.f32.mrf.mxu0
    %2460 = vdwg.mxu0
    %v2461 = vmul.f32 %v2458, 0.0078125
    %v2462 = vmul.f32 %v2373, %v2373
    %v2463 = vmul.f32 %v2375, %v2375
    %v2464 = vsel %vm957, %v2462, 0.0
    %v2465 = vrot.slane %v2464, 4
    %v2466 = vadd.f32 %v2464, %v2465
    %v2467 = vrot.slane %v2466, 2
    %v2468 = vadd.f32 %v2466, %v2467
    %v2469 = vrot.slane %v2468, 1
    %v2470 = vadd.f32 %v2468, %v2469
    %v2471 = vsel %vm957, %v2463, 0.0
    %v2472 = vrot.slane %v2471, 4
    %v2473 = vadd.f32 %v2471, %v2472
    %v2474 = vrot.slane %v2473, 2
    %v2475 = vadd.f32 %v2473, %v2474
    %v2476 = vrot.slane %v2475, 1
    %v2477 = vadd.f32 %v2475, %v2476
    %2478 = vmatprep.subr.mxu0 0.0
    %2479 = vmatpush1.msra.mxu0 %v738
    %2480 = vmatprep.subr.mxu0 0.0
    %2481 = vmatpush1.msra.mxu0 %v737
    %2482 = vmatprep.subr.mxu0 0.0
    %2483 = vmatpush1.msra.mxu0 %v736
    %2484 = vmatprep.subr.mxu0 0.0
    %2485 = vmatpush1.msra.mxu0 %v735
    %2486 = vmatprep.subr.mxu0 0.0
    %2487 = vmatpush1.msra.mxu0 %v734
    %2488 = vmatprep.subr.mxu0 0.0
    %2489 = vmatpush1.msra.mxu0 %v733
    %2490 = vmatprep.subr.mxu0 0.0
    %2491 = vmatpush1.msra.mxu0 %v732
    %2492 = vmatprep.subr.mxu0 0.0
    %2493 = vmatpush1.msra.mxu0 %v731
    %2494 = vmatprep.subr.mxu0 0.0
    %2495 = vmatpush1.msra.mxu0 %v730
    %2496 = vmatprep.subr.mxu0 0.0
    %2497 = vmatpush1.msra.mxu0 %v729
    %2498 = vmatprep.subr.mxu0 0.0
    %2499 = vmatpush1.msra.mxu0 %v728
    %2500 = vmatprep.subr.mxu0 0.0
    %2501 = vmatpush1.msra.mxu0 %v727
    %2502 = vmatprep.subr.mxu0 0.0
    %2503 = vmatpush1.msra.mxu0 %v726
    %2504 = vmatprep.subr.mxu0 0.0
    %2505 = vmatpush1.msra.mxu0 %v725
    %2506 = vmatprep.subr.mxu0 0.0
    %2507 = vmatpush1.msra.mxu0 %v724
    %2508 = vmatprep.subr.mxu0 0.0
    %2509 = vmatpush1.msra.mxu0 %v723
    %2510 = vmatprep.subr.mxu0 0.0
    %2511 = vmatpush2.msra.mxu0 %v754
    %2512 = vmatprep.subr.mxu0 0.0
    %2513 = vmatpush2.msra.mxu0 %v753
    %2514 = vmatprep.subr.mxu0 0.0
    %2515 = vmatpush2.msra.mxu0 %v752
    %2516 = vmatprep.subr.mxu0 0.0
    %2517 = vmatpush2.msra.mxu0 %v751
    %2518 = vmatprep.subr.mxu0 0.0
    %2519 = vmatpush2.msra.mxu0 %v750
    %2520 = vmatprep.subr.mxu0 0.0
    %2521 = vmatpush2.msra.mxu0 %v749
    %2522 = vmatprep.subr.mxu0 0.0
    %2523 = vmatpush2.msra.mxu0 %v748
    %2524 = vmatprep.subr.mxu0 0.0
    %2525 = vmatpush2.msra.mxu0 %v747
    %2526 = vmatprep.subr.mxu0 0.0
    %2527 = vmatpush2.msra.mxu0 %v746
    %2528 = vmatprep.subr.mxu0 0.0
    %2529 = vmatpush2.msra.mxu0 %v745
    %2530 = vmatprep.subr.mxu0 0.0
    %2531 = vmatpush2.msra.mxu0 %v744
    %2532 = vmatprep.subr.mxu0 0.0
    %2533 = vmatpush2.msra.mxu0 %v743
    %2534 = vmatprep.subr.mxu0 0.0
    %2535 = vmatpush2.msra.mxu0 %v742
    %2536 = vmatprep.subr.mxu0 0.0
    %2537 = vmatpush2.msra.mxu0 %v741
    %2538 = vmatprep.subr.mxu0 0.0
    %2539 = vmatpush2.msra.mxu0 %v740
    %2540 = vmatprep.subr.mxu0 0.0
    %2541 = vmatpush2.msra.mxu0 %v739
    %2542 = vmatprep.mubr.f32.mxu0 %v2477
    %2543 = vmatmul.mubr.f32.gmra.mxu0 %v2470
    %v2544 = vpop.f32.mrf.mxu0
    %v2545 = vadd.f32 0.0, %v2544
    %v2546 = vpop.f32.mrf.mxu0
    %2547 = vdwg.mxu0
    %v2548 = vmul.f32 %v2545, 0.0078125
    %v2549 = vmul.f32 %v2461, %v2461
    %v2550 = vsub.f32 %v2548, %v2549
    %v2551 = vadd.f32 %v2550, 1e-05
    %v2552 = vrsqrt.pop %v2551
    %v2554 = vrot.slane %v2552, 6
    %v2556 = vmul.f32 %v1881, %v2554
    %v2558 = vrot.slane %v2556, 2
    %v2560 = vmul.f32 %v2461, %v2558
    %v2562 = vrot.slane %v2560, 5
    %v2564 = vsub.f32 %v1881, %v2562
    %v2565 = vsel %vm1142, %v2558, 0
    %2567 = vmatprep.subr.mxu0 0.0
    %2568 = vmatpush1.msra.mxu0 0.0
    %2569 = vmatprep.subr.mxu0 0.0
    %2570 = vmatpush1.msra.mxu0 0.0
    %2571 = vmatprep.subr.mxu0 0.0
    %2572 = vmatpush1.msra.mxu0 0.0
    %2573 = vmatprep.subr.mxu0 0.0
    %2574 = vmatpush1.msra.mxu0 0.0
    %2575 = vmatprep.subr.mxu0 0.0
    %2576 = vmatpush1.msra.mxu0 0.0
    %2577 = vmatprep.subr.mxu0 0.0
    %2578 = vmatpush1.msra.mxu0 0.0
    %2579 = vmatprep.subr.mxu0 0.0
    %2580 = vmatpush1.msra.mxu0 0.0
    %2581 = vmatprep.subr.mxu0 0.0
    %2582 = vmatpush1.msra.mxu0 0.0
    %2583 = vmatprep.subr.mxu0 0.0
    %2584 = vmatpush1.msra.mxu0 0.0
    %2585 = vmatprep.subr.mxu0 0.0
    %2586 = vmatpush1.msra.mxu0 0.0
    %2587 = vmatprep.subr.mxu0 0.0
    %2588 = vmatpush1.msra.mxu0 0.0
    %2589 = vmatprep.subr.mxu0 0.0
    %2590 = vmatpush1.msra.mxu0 0.0
    %2591 = vmatprep.subr.mxu0 0.0
    %2592 = vmatpush1.msra.mxu0 0.0
    %2593 = vmatprep.subr.mxu0 0.0
    %2594 = vmatpush1.msra.mxu0 0.0
    %2595 = vmatprep.subr.mxu0 0.0
    %2596 = vmatpush1.msra.mxu0 0.0
    %2597 = vmatprep.subr.mxu0 %v1149
    %2598 = vmatpush1.msra.mxu0 %v1147
    %2599 = vmatprep.subr.mxu0 0.0
    %2600 = vmatpush2.msra.mxu0 0.0
    %2601 = vmatprep.subr.mxu0 0.0
    %2602 = vmatpush2.msra.mxu0 0.0
    %2603 = vmatprep.subr.mxu0 0.0
    %2604 = vmatpush2.msra.mxu0 0.0
    %2605 = vmatprep.subr.mxu0 0.0
    %2606 = vmatpush2.msra.mxu0 0.0
    %2607 = vmatprep.subr.mxu0 0.0
    %2608 = vmatpush2.msra.mxu0 0.0
    %2609 = vmatprep.subr.mxu0 0.0
    %2610 = vmatpush2.msra.mxu0 0.0
    %2611 = vmatprep.subr.mxu0 0.0
    %2612 = vmatpush2.msra.mxu0 0.0
    %2613 = vmatprep.subr.mxu0 0.0
    %2614 = vmatpush2.msra.mxu0 0.0
    %2615 = vmatprep.subr.mxu0 0.0
    %2616 = vmatpush2.msra.mxu0 0.0
    %2617 = vmatprep.subr.mxu0 0.0
    %2618 = vmatpush2.msra.mxu0 0.0
    %2619 = vmatprep.subr.mxu0 0.0
    %2620 = vmatpush2.msra.mxu0 0.0
    %2621 = vmatprep.subr.mxu0 0.0
    %2622 = vmatpush2.msra.mxu0 0.0
    %2623 = vmatprep.subr.mxu0 0.0
    %2624 = vmatpush2.msra.mxu0 0.0
    %2625 = vmatprep.subr.mxu0 0.0
    %2626 = vmatpush2.msra.mxu0 0.0
    %2627 = vmatprep.subr.mxu0 0.0
    %2628 = vmatpush2.msra.mxu0 0.0
    %2629 = vmatprep.subr.mxu0 0.0
    %2630 = vmatpush2.msra.mxu0 0.0
    %2631 = vmatprep.mubr.f32.mxu0 0.0
    %2632 = vmatmul.mubr.f32.gmra.mxu0 %v2565
    %v2633 = vpop.f32.mrf.mxu0
    %v2634 = vadd.f32 0.0, %v2633
    %v2635 = vpop.f32.mrf.mxu0
    %v2636 = vadd.f32 0.0, %v2635
    %2637 = vdwg.mxu0
    %v2639 = vrot.slane %v2564, 3
    %v2640 = vsel %vm1142, %v2639, 0
    %2642 = vmatprep.subr.mxu0 0.0
    %2643 = vmatpush1.msra.mxu0 0.0
    %2644 = vmatprep.subr.mxu0 0.0
    %2645 = vmatpush1.msra.mxu0 0.0
    %2646 = vmatprep.subr.mxu0 0.0
    %2647 = vmatpush1.msra.mxu0 0.0
    %2648 = vmatprep.subr.mxu0 0.0
    %2649 = vmatpush1.msra.mxu0 0.0
    %2650 = vmatprep.subr.mxu0 0.0
    %2651 = vmatpush1.msra.mxu0 0.0
    %2652 = vmatprep.subr.mxu0 0.0
    %2653 = vmatpush1.msra.mxu0 0.0
    %2654 = vmatprep.subr.mxu0 0.0
    %2655 = vmatpush1.msra.mxu0 0.0
    %2656 = vmatprep.subr.mxu0 0.0
    %2657 = vmatpush1.msra.mxu0 0.0
    %2658 = vmatprep.subr.mxu0 0.0
    %2659 = vmatpush1.msra.mxu0 0.0
    %2660 = vmatprep.subr.mxu0 0.0
    %2661 = vmatpush1.msra.mxu0 0.0
    %2662 = vmatprep.subr.mxu0 0.0
    %2663 = vmatpush1.msra.mxu0 0.0
    %2664 = vmatprep.subr.mxu0 0.0
    %2665 = vmatpush1.msra.mxu0 0.0
    %2666 = vmatprep.subr.mxu0 0.0
    %2667 = vmatpush1.msra.mxu0 0.0
    %2668 = vmatprep.subr.mxu0 0.0
    %2669 = vmatpush1.msra.mxu0 0.0
    %2670 = vmatprep.subr.mxu0 0.0
    %2671 = vmatpush1.msra.mxu0 0.0
    %2672 = vmatprep.subr.mxu0 %v1149
    %2673 = vmatpush1.msra.mxu0 %v1147
    %2674 = vmatprep.subr.mxu0 0.0
    %2675 = vmatpush2.msra.mxu0 0.0
    %2676 = vmatprep.subr.mxu0 0.0
    %2677 = vmatpush2.msra.mxu0 0.0
    %2678 = vmatprep.subr.mxu0 0.0
    %2679 = vmatpush2.msra.mxu0 0.0
    %2680 = vmatprep.subr.mxu0 0.0
    %2681 = vmatpush2.msra.mxu0 0.0
    %2682 = vmatprep.subr.mxu0 0.0
    %2683 = vmatpush2.msra.mxu0 0.0
    %2684 = vmatprep.subr.mxu0 0.0
    %2685 = vmatpush2.msra.mxu0 0.0
    %2686 = vmatprep.subr.mxu0 0.0
    %2687 = vmatpush2.msra.mxu0 0.0
    %2688 = vmatprep.subr.mxu0 0.0
    %2689 = vmatpush2.msra.mxu0 0.0
    %2690 = vmatprep.subr.mxu0 0.0
    %2691 = vmatpush2.msra.mxu0 0.0
    %2692 = vmatprep.subr.mxu0 0.0
    %2693 = vmatpush2.msra.mxu0 0.0
    %2694 = vmatprep.subr.mxu0 0.0
    %2695 = vmatpush2.msra.mxu0 0.0
    %2696 = vmatprep.subr.mxu0 0.0
    %2697 = vmatpush2.msra.mxu0 0.0
    %2698 = vmatprep.subr.mxu0 0.0
    %2699 = vmatpush2.msra.mxu0 0.0
    %2700 = vmatprep.subr.mxu0 0.0
    %2701 = vmatpush2.msra.mxu0 0.0
    %2702 = vmatprep.subr.mxu0 0.0
    %2703 = vmatpush2.msra.mxu0 0.0
    %2704 = vmatprep.subr.mxu0 0.0
    %2705 = vmatpush2.msra.mxu0 0.0
    %2706 = vmatprep.mubr.f32.mxu0 0.0
    %2707 = vmatmul.mubr.f32.gmra.mxu0 %v2640
    %v2708 = vpop.f32.mrf.mxu0
    %v2709 = vadd.f32 0.0, %v2708
    %v2710 = vpop.f32.mrf.mxu0
    %v2711 = vadd.f32 0.0, %v2710
    %2712 = vdwg.mxu0
    %v2713 = vlaneseq
    %v2714 = vshrl.u32 %v2713, 7
    %v2715 = vsub.s32 0, %v2714
    %v2716 = vrot.slane %v2634, %v2715
    %v2717 = vlaneseq
    %v2718 = vshrl.u32 %v2717, 7
    %v2719 = vsub.s32 0, %v2718
    %v2720 = vrot.slane %v2636, %v2719
    %v2721 = vmul.f32 %v2373, %v2716
    %v2722 = vmul.f32 %v2375, %v2720
    %v2723 = vlaneseq
    %v2724 = vshrl.u32 %v2723, 7
    %v2725 = vsub.s32 0, %v2724
    %v2726 = vrot.slane %v2709, %v2725
    %v2727 = vlaneseq
    %v2728 = vshrl.u32 %v2727, 7
    %v2729 = vsub.s32 0, %v2728
    %v2730 = vrot.slane %v2711, %v2729
    %v2731 = vadd.f32 %v2721, %v2726
    %v2732 = vadd.f32 %v2722, %v2730
    %v2733 = vadd.f32 %v2731, %v1748
    %v2734 = vadd.f32 %v2732, %v1749
    %v2735 = vmax.f32 %v2733, 0.0
    %v2736 = vmax.f32 %v2734, 0.0
    %v2737 = vld [vmem:[#allocation5] sm:$0xff]
    %v2738 = vld [vmem:[#allocation5 + $0x8] sm:$0xff]
    %v2739 = vld [vmem:[#allocation5 + $0x10] sm:$0xff]
    %v2740 = vld [vmem:[#allocation5 + $0x18] sm:$0xff]
    %v2741 = vld [vmem:[#allocation5 + $0x20] sm:$0xff]
    %v2742 = vld [vmem:[#allocation5 + $0x28] sm:$0xff]
    %v2743 = vld [vmem:[#allocation5 + $0x30] sm:$0xff]
    %v2744 = vld [vmem:[#allocation5 + $0x38] sm:$0xff]
    %v2745 = vld [vmem:[#allocation5 + $0x40] sm:$0xff]
    %v2746 = vld [vmem:[#allocation5 + $0x48] sm:$0xff]
    %v2747 = vld [vmem:[#allocation5 + $0x50] sm:$0xff]
    %v2748 = vld [vmem:[#allocation5 + $0x58] sm:$0xff]
    %v2749 = vld [vmem:[#allocation5 + $0x60] sm:$0xff]
    %v2750 = vld [vmem:[#allocation5 + $0x68] sm:$0xff]
    %v2751 = vld [vmem:[#allocation5 + $0x70] sm:$0xff]
    %v2752 = vld [vmem:[#allocation5 + $0x78] sm:$0xff]
    %v2753 = vld [vmem:[#allocation5 + $0x80] sm:$0xff]
    %v2754 = vld [vmem:[#allocation5 + $0x88] sm:$0xff]
    %v2755 = vld [vmem:[#allocation5 + $0x90] sm:$0xff]
    %v2756 = vld [vmem:[#allocation5 + $0x98] sm:$0xff]
    %v2757 = vld [vmem:[#allocation5 + $0xa0] sm:$0xff]
    %v2758 = vld [vmem:[#allocation5 + $0xa8] sm:$0xff]
    %v2759 = vld [vmem:[#allocation5 + $0xb0] sm:$0xff]
    %v2760 = vld [vmem:[#allocation5 + $0xb8] sm:$0xff]
    %v2761 = vld [vmem:[#allocation5 + $0xc0] sm:$0xff]
    %v2762 = vld [vmem:[#allocation5 + $0xc8] sm:$0xff]
    %v2763 = vld [vmem:[#allocation5 + $0xd0] sm:$0xff]
    %v2764 = vld [vmem:[#allocation5 + $0xd8] sm:$0xff]
    %v2765 = vld [vmem:[#allocation5 + $0xe0] sm:$0xff]
    %v2766 = vld [vmem:[#allocation5 + $0xe8] sm:$0xff]
    %v2767 = vld [vmem:[#allocation5 + $0xf0] sm:$0xff]
    %v2768 = vld [vmem:[#allocation5 + $0xf8] sm:$0xff]
    %2769 = vmatprep.subr.mxu0 0.0
    %2770 = vmatpush1.msra.mxu0 %v2752
    %2771 = vmatprep.subr.mxu0 0.0
    %2772 = vmatpush1.msra.mxu0 %v2751
    %2773 = vmatprep.subr.mxu0 0.0
    %2774 = vmatpush1.msra.mxu0 %v2750
    %2775 = vmatprep.subr.mxu0 0.0
    %2776 = vmatpush1.msra.mxu0 %v2749
    %2777 = vmatprep.subr.mxu0 0.0
    %2778 = vmatpush1.msra.mxu0 %v2748
    %2779 = vmatprep.subr.mxu0 0.0
    %2780 = vmatpush1.msra.mxu0 %v2747
    %2781 = vmatprep.subr.mxu0 0.0
    %2782 = vmatpush1.msra.mxu0 %v2746
    %2783 = vmatprep.subr.mxu0 0.0
    %2784 = vmatpush1.msra.mxu0 %v2745
    %2785 = vmatprep.subr.mxu0 0.0
    %2786 = vmatpush1.msra.mxu0 %v2744
    %2787 = vmatprep.subr.mxu0 0.0
    %2788 = vmatpush1.msra.mxu0 %v2743
    %2789 = vmatprep.subr.mxu0 0.0
    %2790 = vmatpush1.msra.mxu0 %v2742
    %2791 = vmatprep.subr.mxu0 0.0
    %2792 = vmatpush1.msra.mxu0 %v2741
    %2793 = vmatprep.subr.mxu0 0.0
    %2794 = vmatpush1.msra.mxu0 %v2740
    %2795 = vmatprep.subr.mxu0 0.0
    %2796 = vmatpush1.msra.mxu0 %v2739
    %2797 = vmatprep.subr.mxu0 0.0
    %2798 = vmatpush1.msra.mxu0 %v2738
    %2799 = vmatprep.subr.mxu0 0.0
    %2800 = vmatpush1.msra.mxu0 %v2737
    %2801 = vmatprep.subr.mxu0 0.0
    %2802 = vmatpush2.msra.mxu0 %v2768
    %2803 = vmatprep.subr.mxu0 0.0
    %2804 = vmatpush2.msra.mxu0 %v2767
    %2805 = vmatprep.subr.mxu0 0.0
    %2806 = vmatpush2.msra.mxu0 %v2766
    %2807 = vmatprep.subr.mxu0 0.0
    %2808 = vmatpush2.msra.mxu0 %v2765
    %2809 = vmatprep.subr.mxu0 0.0
    %2810 = vmatpush2.msra.mxu0 %v2764
    %2811 = vmatprep.subr.mxu0 0.0
    %2812 = vmatpush2.msra.mxu0 %v2763
    %2813 = vmatprep.subr.mxu0 0.0
    %2814 = vmatpush2.msra.mxu0 %v2762
    %2815 = vmatprep.subr.mxu0 0.0
    %2816 = vmatpush2.msra.mxu0 %v2761
    %2817 = vmatprep.subr.mxu0 0.0
    %2818 = vmatpush2.msra.mxu0 %v2760
    %2819 = vmatprep.subr.mxu0 0.0
    %2820 = vmatpush2.msra.mxu0 %v2759
    %2821 = vmatprep.subr.mxu0 0.0
    %2822 = vmatpush2.msra.mxu0 %v2758
    %2823 = vmatprep.subr.mxu0 0.0
    %2824 = vmatpush2.msra.mxu0 %v2757
    %2825 = vmatprep.subr.mxu0 0.0
    %2826 = vmatpush2.msra.mxu0 %v2756
    %2827 = vmatprep.subr.mxu0 0.0
    %2828 = vmatpush2.msra.mxu0 %v2755
    %2829 = vmatprep.subr.mxu0 0.0
    %2830 = vmatpush2.msra.mxu0 %v2754
    %2831 = vmatprep.subr.mxu0 0.0
    %2832 = vmatpush2.msra.mxu0 %v2753
    %2833 = vmatprep.mubr.f32.mxu0 %v2736
    %2834 = vmatmul.mubr.f32.gmra.mxu0 %v2735
    %v2835 = vpop.f32.mrf.mxu0
    %v2836 = vadd.f32 0.0, %v2835
    %v2837 = vpop.f32.mrf.mxu0
    %2838 = vdwg.mxu0
    %v2839 = vld [vmem:[%s13] sm:$0xff]
    %v2840 = vld [vmem:[%s13 + $0x8] sm:$0xff]
    %v2841 = vld [vmem:[%s13 + $0x10] sm:$0xff]
    %v2842 = vld [vmem:[%s13 + $0x18] sm:$0xff]
    %v2843 = vld [vmem:[%s13 + $0x20] sm:$0xff]
    %v2844 = vld [vmem:[%s13 + $0x28] sm:$0xff]
    %v2845 = vld [vmem:[%s13 + $0x30] sm:$0xff]
    %v2846 = vld [vmem:[%s13 + $0x38] sm:$0xff]
    %v2847 = vld [vmem:[%s13 + $0x40] sm:$0xff]
    %v2848 = vld [vmem:[%s13 + $0x48] sm:$0xff]
    %v2849 = vld [vmem:[%s13 + $0x50] sm:$0xff]
    %v2850 = vld [vmem:[%s13 + $0x58] sm:$0xff]
    %v2851 = vld [vmem:[%s13 + $0x60] sm:$0xff]
    %v2852 = vld [vmem:[%s13 + $0x68] sm:$0xff]
    %v2853 = vld [vmem:[%s13 + $0x70] sm:$0xff]
    %v2854 = vld [vmem:[%s13 + $0x78] sm:$0xff]
    %v2855 = vld [vmem:[#allocation11] sm:$0xff]
    %v2856 = vld [vmem:[%s7] sm:$0xff]
    %v2857 = vld [vmem:[%s7 + $0x8] sm:$0xff]
    %v2858 = vld [vmem:[%s7 + $0x10] sm:$0xff]
    %v2859 = vld [vmem:[%s7 + $0x18] sm:$0xff]
    %v2860 = vld [vmem:[%s7 + $0x20] sm:$0xff]
    %v2861 = vld [vmem:[%s7 + $0x28] sm:$0xff]
    %v2862 = vld [vmem:[%s7 + $0x30] sm:$0xff]
    %v2863 = vld [vmem:[%s7 + $0x38] sm:$0xff]
    %v2864 = vld [vmem:[%s7 + $0x40] sm:$0xff]
    %v2865 = vld [vmem:[%s7 + $0x48] sm:$0xff]
    %v2866 = vld [vmem:[%s7 + $0x50] sm:$0xff]
    %v2867 = vld [vmem:[%s7 + $0x58] sm:$0xff]
    %v2868 = vld [vmem:[%s7 + $0x60] sm:$0xff]
    %v2869 = vld [vmem:[%s7 + $0x68] sm:$0xff]
    %v2870 = vld [vmem:[%s7 + $0x70] sm:$0xff]
    %v2871 = vld [vmem:[%s7 + $0x78] sm:$0xff]
    %s2872 = scalar_lea.vmem %s7, 128
    %v2873 = vld [vmem:[%s2872] sm:$0xff]
    %v2874 = vld [vmem:[%s2872 + $0x8] sm:$0xff]
    %v2875 = vld [vmem:[%s2872 + $0x10] sm:$0xff]
    %v2876 = vld [vmem:[%s2872 + $0x18] sm:$0xff]
    %v2877 = vld [vmem:[%s2872 + $0x20] sm:$0xff]
    %v2878 = vld [vmem:[%s2872 + $0x28] sm:$0xff]
    %v2879 = vld [vmem:[%s2872 + $0x30] sm:$0xff]
    %v2880 = vld [vmem:[%s2872 + $0x38] sm:$0xff]
    %v2881 = vld [vmem:[%s2872 + $0x40] sm:$0xff]
    %v2882 = vld [vmem:[%s2872 + $0x48] sm:$0xff]
    %v2883 = vld [vmem:[%s2872 + $0x50] sm:$0xff]
    %v2884 = vld [vmem:[%s2872 + $0x58] sm:$0xff]
    %v2885 = vld [vmem:[%s2872 + $0x60] sm:$0xff]
    %v2886 = vld [vmem:[%s2872 + $0x68] sm:$0xff]
    %v2887 = vld [vmem:[%s2872 + $0x70] sm:$0xff]
    %v2888 = vld [vmem:[%s2872 + $0x78] sm:$0xff]
    %v2889 = vld [vmem:[%s8] sm:$0xf]
    %2890 = vmatprep.subr.mxu0 0.0
    %2891 = vmatpush1.msra.mxu0 %v2871
    %2892 = vmatprep.subr.mxu0 0.0
    %2893 = vmatpush1.msra.mxu0 %v2870
    %2894 = vmatprep.subr.mxu0 0.0
    %2895 = vmatpush1.msra.mxu0 %v2869
    %2896 = vmatprep.subr.mxu0 0.0
    %2897 = vmatpush1.msra.mxu0 %v2868
    %2898 = vmatprep.subr.mxu0 0.0
    %2899 = vmatpush1.msra.mxu0 %v2867
    %2900 = vmatprep.subr.mxu0 0.0
    %2901 = vmatpush1.msra.mxu0 %v2866
    %2902 = vmatprep.subr.mxu0 0.0
    %2903 = vmatpush1.msra.mxu0 %v2865
    %2904 = vmatprep.subr.mxu0 0.0
    %2905 = vmatpush1.msra.mxu0 %v2864
    %2906 = vmatprep.subr.mxu0 0.0
    %2907 = vmatpush1.msra.mxu0 %v2863
    %2908 = vmatprep.subr.mxu0 0.0
    %2909 = vmatpush1.msra.mxu0 %v2862
    %2910 = vmatprep.subr.mxu0 0.0
    %2911 = vmatpush1.msra.mxu0 %v2861
    %2912 = vmatprep.subr.mxu0 0.0
    %2913 = vmatpush1.msra.mxu0 %v2860
    %2914 = vmatprep.subr.mxu0 0.0
    %2915 = vmatpush1.msra.mxu0 %v2859
    %2916 = vmatprep.subr.mxu0 0.0
    %2917 = vmatpush1.msra.mxu0 %v2858
    %2918 = vmatprep.subr.mxu0 0.0
    %2919 = vmatpush1.msra.mxu0 %v2857
    %2920 = vmatprep.subr.mxu0 0.0
    %2921 = vmatpush1.msra.mxu0 %v2856
    %2922 = vmatprep.subr.mxu0 0.0
    %2923 = vmatpush2.msra.mxu0 0.0
    %2924 = vmatprep.subr.mxu0 0.0
    %2925 = vmatpush2.msra.mxu0 0.0
    %2926 = vmatprep.subr.mxu0 0.0
    %2927 = vmatpush2.msra.mxu0 0.0
    %2928 = vmatprep.subr.mxu0 0.0
    %2929 = vmatpush2.msra.mxu0 0.0
    %2930 = vmatprep.subr.mxu0 0.0
    %2931 = vmatpush2.msra.mxu0 0.0
    %2932 = vmatprep.subr.mxu0 0.0
    %2933 = vmatpush2.msra.mxu0 0.0
    %2934 = vmatprep.subr.mxu0 0.0
    %2935 = vmatpush2.msra.mxu0 0.0
    %2936 = vmatprep.subr.mxu0 0.0
    %2937 = vmatpush2.msra.mxu0 0.0
    %2938 = vmatprep.subr.mxu0 0.0
    %2939 = vmatpush2.msra.mxu0 0.0
    %2940 = vmatprep.subr.mxu0 0.0
    %2941 = vmatpush2.msra.mxu0 0.0
    %2942 = vmatprep.subr.mxu0 0.0
    %2943 = vmatpush2.msra.mxu0 0.0
    %2944 = vmatprep.subr.mxu0 0.0
    %2945 = vmatpush2.msra.mxu0 0.0
    %2946 = vmatprep.subr.mxu0 0.0
    %2947 = vmatpush2.msra.mxu0 0.0
    %2948 = vmatprep.subr.mxu0 0.0
    %2949 = vmatpush2.msra.mxu0 0.0
    %2950 = vmatprep.subr.mxu0 0.0
    %2951 = vmatpush2.msra.mxu0 0.0
    %2952 = vmatprep.subr.mxu0 0.0
    %2953 = vmatpush2.msra.mxu0 0.0
    %2954 = vmatprep.mubr.f32.mxu0 0.0
    %2955 = vmatmul.mubr.f32.gmra.mxu0 %v2836
    %v2956 = vpop.f32.mrf.mxu0
    %v2957 = vadd.f32 0.0, %v2956
    %v2958 = vpop.f32.mrf.mxu0
    %2959 = vdwg.mxu0
    %v2960 = vsel %vm957, %v2957, 0.0
    %v2961 = vrot.slane %v2960, 4
    %v2962 = vadd.f32 %v2960, %v2961
    %v2963 = vrot.slane %v2962, 2
    %v2964 = vadd.f32 %v2962, %v2963
    %v2965 = vrot.slane %v2964, 1
    %v2966 = vadd.f32 %v2964, %v2965
    %2967 = vmatprep.subr.mxu0 0.0
    %2968 = vmatpush1.msra.mxu0 %v2854
    %2969 = vmatprep.subr.mxu0 0.0
    %2970 = vmatpush1.msra.mxu0 %v2853
    %2971 = vmatprep.subr.mxu0 0.0
    %2972 = vmatpush1.msra.mxu0 %v2852
    %2973 = vmatprep.subr.mxu0 0.0
    %2974 = vmatpush1.msra.mxu0 %v2851
    %2975 = vmatprep.subr.mxu0 0.0
    %2976 = vmatpush1.msra.mxu0 %v2850
    %2977 = vmatprep.subr.mxu0 0.0
    %2978 = vmatpush1.msra.mxu0 %v2849
    %2979 = vmatprep.subr.mxu0 0.0
    %2980 = vmatpush1.msra.mxu0 %v2848
    %2981 = vmatprep.subr.mxu0 0.0
    %2982 = vmatpush1.msra.mxu0 %v2847
    %2983 = vmatprep.subr.mxu0 0.0
    %2984 = vmatpush1.msra.mxu0 %v2846
    %2985 = vmatprep.subr.mxu0 0.0
    %2986 = vmatpush1.msra.mxu0 %v2845
    %2987 = vmatprep.subr.mxu0 0.0
    %2988 = vmatpush1.msra.mxu0 %v2844
    %2989 = vmatprep.subr.mxu0 0.0
    %2990 = vmatpush1.msra.mxu0 %v2843
    %2991 = vmatprep.subr.mxu0 0.0
    %2992 = vmatpush1.msra.mxu0 %v2842
    %2993 = vmatprep.subr.mxu0 0.0
    %2994 = vmatpush1.msra.mxu0 %v2841
    %2995 = vmatprep.subr.mxu0 0.0
    %2996 = vmatpush1.msra.mxu0 %v2840
    %2997 = vmatprep.subr.mxu0 0.0
    %2998 = vmatpush1.msra.mxu0 %v2839
    %2999 = vmatprep.subr.mxu0 0.0
    %3000 = vmatpush2.msra.mxu0 0.0
    %3001 = vmatprep.subr.mxu0 0.0
    %3002 = vmatpush2.msra.mxu0 0.0
    %3003 = vmatprep.subr.mxu0 0.0
    %3004 = vmatpush2.msra.mxu0 0.0
    %3005 = vmatprep.subr.mxu0 0.0
    %3006 = vmatpush2.msra.mxu0 0.0
    %3007 = vmatprep.subr.mxu0 0.0
    %3008 = vmatpush2.msra.mxu0 0.0
    %3009 = vmatprep.subr.mxu0 0.0
    %3010 = vmatpush2.msra.mxu0 0.0
    %3011 = vmatprep.subr.mxu0 0.0
    %3012 = vmatpush2.msra.mxu0 0.0
    %3013 = vmatprep.subr.mxu0 0.0
    %3014 = vmatpush2.msra.mxu0 0.0
    %3015 = vmatprep.subr.mxu0 0.0
    %3016 = vmatpush2.msra.mxu0 0.0
    %3017 = vmatprep.subr.mxu0 0.0
    %3018 = vmatpush2.msra.mxu0 0.0
    %3019 = vmatprep.subr.mxu0 0.0
    %3020 = vmatpush2.msra.mxu0 0.0
    %3021 = vmatprep.subr.mxu0 0.0
    %3022 = vmatpush2.msra.mxu0 0.0
    %3023 = vmatprep.subr.mxu0 0.0
    %3024 = vmatpush2.msra.mxu0 0.0
    %3025 = vmatprep.subr.mxu0 0.0
    %3026 = vmatpush2.msra.mxu0 0.0
    %3027 = vmatprep.subr.mxu0 0.0
    %3028 = vmatpush2.msra.mxu0 0.0
    %3029 = vmatprep.subr.mxu0 0.0
    %3030 = vmatpush2.msra.mxu0 0.0
    %3031 = vmatprep.mubr.f32.mxu0 0.0
    %3032 = vmatmul.mubr.f32.gmra.mxu0 %v2966
    %v3033 = vpop.f32.mrf.mxu0
    %v3034 = vadd.f32 0.0, %v3033
    %v3035 = vpop.f32.mrf.mxu0
    %3036 = vdwg.mxu0
    %v3037 = vmul.f32 %v3034, 0.03125
    %v3038 = vmul.f32 %v2957, %v2957
    %v3039 = vsel %vm957, %v3038, 0.0
    %v3040 = vrot.slane %v3039, 4
    %v3041 = vadd.f32 %v3039, %v3040
    %v3042 = vrot.slane %v3041, 2
    %v3043 = vadd.f32 %v3041, %v3042
    %v3044 = vrot.slane %v3043, 1
    %v3045 = vadd.f32 %v3043, %v3044
    %3046 = vmatprep.subr.mxu0 0.0
    %3047 = vmatpush1.msra.mxu0 %v2854
    %3048 = vmatprep.subr.mxu0 0.0
    %3049 = vmatpush1.msra.mxu0 %v2853
    %3050 = vmatprep.subr.mxu0 0.0
    %3051 = vmatpush1.msra.mxu0 %v2852
    %3052 = vmatprep.subr.mxu0 0.0
    %3053 = vmatpush1.msra.mxu0 %v2851
    %3054 = vmatprep.subr.mxu0 0.0
    %3055 = vmatpush1.msra.mxu0 %v2850
    %3056 = vmatprep.subr.mxu0 0.0
    %3057 = vmatpush1.msra.mxu0 %v2849
    %3058 = vmatprep.subr.mxu0 0.0
    %3059 = vmatpush1.msra.mxu0 %v2848
    %3060 = vmatprep.subr.mxu0 0.0
    %3061 = vmatpush1.msra.mxu0 %v2847
    %3062 = vmatprep.subr.mxu0 0.0
    %3063 = vmatpush1.msra.mxu0 %v2846
    %3064 = vmatprep.subr.mxu0 0.0
    %3065 = vmatpush1.msra.mxu0 %v2845
    %3066 = vmatprep.subr.mxu0 0.0
    %3067 = vmatpush1.msra.mxu0 %v2844
    %3068 = vmatprep.subr.mxu0 0.0
    %3069 = vmatpush1.msra.mxu0 %v2843
    %3070 = vmatprep.subr.mxu0 0.0
    %3071 = vmatpush1.msra.mxu0 %v2842
    %3072 = vmatprep.subr.mxu0 0.0
    %3073 = vmatpush1.msra.mxu0 %v2841
    %3074 = vmatprep.subr.mxu0 0.0
    %3075 = vmatpush1.msra.mxu0 %v2840
    %3076 = vmatprep.subr.mxu0 0.0
    %3077 = vmatpush1.msra.mxu0 %v2839
    %3078 = vmatprep.subr.mxu0 0.0
    %3079 = vmatpush2.msra.mxu0 0.0
    %3080 = vmatprep.subr.mxu0 0.0
    %3081 = vmatpush2.msra.mxu0 0.0
    %3082 = vmatprep.subr.mxu0 0.0
    %3083 = vmatpush2.msra.mxu0 0.0
    %3084 = vmatprep.subr.mxu0 0.0
    %3085 = vmatpush2.msra.mxu0 0.0
    %3086 = vmatprep.subr.mxu0 0.0
    %3087 = vmatpush2.msra.mxu0 0.0
    %3088 = vmatprep.subr.mxu0 0.0
    %3089 = vmatpush2.msra.mxu0 0.0
    %3090 = vmatprep.subr.mxu0 0.0
    %3091 = vmatpush2.msra.mxu0 0.0
    %3092 = vmatprep.subr.mxu0 0.0
    %3093 = vmatpush2.msra.mxu0 0.0
    %3094 = vmatprep.subr.mxu0 0.0
    %3095 = vmatpush2.msra.mxu0 0.0
    %3096 = vmatprep.subr.mxu0 0.0
    %3097 = vmatpush2.msra.mxu0 0.0
    %3098 = vmatprep.subr.mxu0 0.0
    %3099 = vmatpush2.msra.mxu0 0.0
    %3100 = vmatprep.subr.mxu0 0.0
    %3101 = vmatpush2.msra.mxu0 0.0
    %3102 = vmatprep.subr.mxu0 0.0
    %3103 = vmatpush2.msra.mxu0 0.0
    %3104 = vmatprep.subr.mxu0 0.0
    %3105 = vmatpush2.msra.mxu0 0.0
    %3106 = vmatprep.subr.mxu0 0.0
    %3107 = vmatpush2.msra.mxu0 0.0
    %3108 = vmatprep.subr.mxu0 0.0
    %3109 = vmatpush2.msra.mxu0 0.0
    %3110 = vmatprep.mubr.f32.mxu0 0.0
    %3111 = vmatmul.mubr.f32.gmra.mxu0 %v3045
    %v3112 = vpop.f32.mrf.mxu0
    %v3113 = vadd.f32 0.0, %v3112
    %v3114 = vpop.f32.mrf.mxu0
    %3115 = vdwg.mxu0
    %v3116 = vmul.f32 %v3113, 0.03125
    %v3117 = vmul.f32 %v3037, %v3037
    %v3118 = vsub.f32 %v3116, %v3117
    %v3119 = vadd.f32 %v3118, 1e-05
    %v3120 = vrsqrt.pop %v3119
    %v3121 = vmul.f32 %v2889, %v3120
    %v3122 = vmul.f32 %v3037, %v3121
    %v3124 = vrot.slane %v3122, 7
    %v3126 = vsub.f32 %v2889, %v3124
    %vm3127 = vcmask 64512
    %v3129 = vsel %vm3127, %v3121, 0
    %3131 = vmatprep.subr.mxu0 0.0
    %3132 = vmatpush1.msra.mxu0 0.0
    %3133 = vmatprep.subr.mxu0 0.0
    %3134 = vmatpush1.msra.mxu0 0.0
    %3135 = vmatprep.subr.mxu0 0.0
    %3136 = vmatpush1.msra.mxu0 0.0
    %3137 = vmatprep.subr.mxu0 0.0
    %3138 = vmatpush1.msra.mxu0 0.0
    %3139 = vmatprep.subr.mxu0 0.0
    %3140 = vmatpush1.msra.mxu0 0.0
    %3141 = vmatprep.subr.mxu0 0.0
    %3142 = vmatpush1.msra.mxu0 0.0
    %3143 = vmatprep.subr.mxu0 0.0
    %3144 = vmatpush1.msra.mxu0 0.0
    %3145 = vmatprep.subr.mxu0 0.0
    %3146 = vmatpush1.msra.mxu0 0.0
    %3147 = vmatprep.subr.mxu0 0.0
    %3148 = vmatpush1.msra.mxu0 0.0
    %3149 = vmatprep.subr.mxu0 0.0
    %3150 = vmatpush1.msra.mxu0 0.0
    %3151 = vmatprep.subr.mxu0 0.0
    %3152 = vmatpush1.msra.mxu0 0.0
    %3153 = vmatprep.subr.mxu0 0.0
    %3154 = vmatpush1.msra.mxu0 0.0
    %3155 = vmatprep.subr.mxu0 0.0
    %3156 = vmatpush1.msra.mxu0 0.0
    %3157 = vmatprep.subr.mxu0 0.0
    %3158 = vmatpush1.msra.mxu0 0.0
    %3159 = vmatprep.subr.mxu0 0.0
    %3160 = vmatpush1.msra.mxu0 0.0
    %3161 = vmatprep.subr.mxu0 0.0
    %3162 = vmatpush1.msra.mxu0 %v2855
    %3163 = vmatprep.subr.mxu0 0.0
    %3164 = vmatpush2.msra.mxu0 0.0
    %3165 = vmatprep.subr.mxu0 0.0
    %3166 = vmatpush2.msra.mxu0 0.0
    %3167 = vmatprep.subr.mxu0 0.0
    %3168 = vmatpush2.msra.mxu0 0.0
    %3169 = vmatprep.subr.mxu0 0.0
    %3170 = vmatpush2.msra.mxu0 0.0
    %3171 = vmatprep.subr.mxu0 0.0
    %3172 = vmatpush2.msra.mxu0 0.0
    %3173 = vmatprep.subr.mxu0 0.0
    %3174 = vmatpush2.msra.mxu0 0.0
    %3175 = vmatprep.subr.mxu0 0.0
    %3176 = vmatpush2.msra.mxu0 0.0
    %3177 = vmatprep.subr.mxu0 0.0
    %3178 = vmatpush2.msra.mxu0 0.0
    %3179 = vmatprep.subr.mxu0 0.0
    %3180 = vmatpush2.msra.mxu0 0.0
    %3181 = vmatprep.subr.mxu0 0.0
    %3182 = vmatpush2.msra.mxu0 0.0
    %3183 = vmatprep.subr.mxu0 0.0
    %3184 = vmatpush2.msra.mxu0 0.0
    %3185 = vmatprep.subr.mxu0 0.0
    %3186 = vmatpush2.msra.mxu0 0.0
    %3187 = vmatprep.subr.mxu0 0.0
    %3188 = vmatpush2.msra.mxu0 0.0
    %3189 = vmatprep.subr.mxu0 0.0
    %3190 = vmatpush2.msra.mxu0 0.0
    %3191 = vmatprep.subr.mxu0 0.0
    %3192 = vmatpush2.msra.mxu0 0.0
    %3193 = vmatprep.subr.mxu0 0.0
    %3194 = vmatpush2.msra.mxu0 0.0
    %3195 = vmatprep.mubr.f32.mxu0 0.0
    %3196 = vmatmul.mubr.f32.gmra.mxu0 %v3129
    %v3197 = vpop.f32.mrf.mxu0
    %v3198 = vadd.f32 0.0, %v3197
    %v3199 = vpop.f32.mrf.mxu0
    %3200 = vdwg.mxu0
    %v3202 = vrot.slane %v3126, 1
    %v3203 = vsel %vm3127, %v3202, 0
    %3205 = vmatprep.subr.mxu0 0.0
    %3206 = vmatpush1.msra.mxu0 0.0
    %3207 = vmatprep.subr.mxu0 0.0
    %3208 = vmatpush1.msra.mxu0 0.0
    %3209 = vmatprep.subr.mxu0 0.0
    %3210 = vmatpush1.msra.mxu0 0.0
    %3211 = vmatprep.subr.mxu0 0.0
    %3212 = vmatpush1.msra.mxu0 0.0
    %3213 = vmatprep.subr.mxu0 0.0
    %3214 = vmatpush1.msra.mxu0 0.0
    %3215 = vmatprep.subr.mxu0 0.0
    %3216 = vmatpush1.msra.mxu0 0.0
    %3217 = vmatprep.subr.mxu0 0.0
    %3218 = vmatpush1.msra.mxu0 0.0
    %3219 = vmatprep.subr.mxu0 0.0
    %3220 = vmatpush1.msra.mxu0 0.0
    %3221 = vmatprep.subr.mxu0 0.0
    %3222 = vmatpush1.msra.mxu0 0.0
    %3223 = vmatprep.subr.mxu0 0.0
    %3224 = vmatpush1.msra.mxu0 0.0
    %3225 = vmatprep.subr.mxu0 0.0
    %3226 = vmatpush1.msra.mxu0 0.0
    %3227 = vmatprep.subr.mxu0 0.0
    %3228 = vmatpush1.msra.mxu0 0.0
    %3229 = vmatprep.subr.mxu0 0.0
    %3230 = vmatpush1.msra.mxu0 0.0
    %3231 = vmatprep.subr.mxu0 0.0
    %3232 = vmatpush1.msra.mxu0 0.0
    %3233 = vmatprep.subr.mxu0 0.0
    %3234 = vmatpush1.msra.mxu0 0.0
    %3235 = vmatprep.subr.mxu0 0.0
    %3236 = vmatpush1.msra.mxu0 %v2855
    %3237 = vmatprep.subr.mxu0 0.0
    %3238 = vmatpush2.msra.mxu0 0.0
    %3239 = vmatprep.subr.mxu0 0.0
    %3240 = vmatpush2.msra.mxu0 0.0
    %3241 = vmatprep.subr.mxu0 0.0
    %3242 = vmatpush2.msra.mxu0 0.0
    %3243 = vmatprep.subr.mxu0 0.0
    %3244 = vmatpush2.msra.mxu0 0.0
    %3245 = vmatprep.subr.mxu0 0.0
    %3246 = vmatpush2.msra.mxu0 0.0
    %3247 = vmatprep.subr.mxu0 0.0
    %3248 = vmatpush2.msra.mxu0 0.0
    %3249 = vmatprep.subr.mxu0 0.0
    %3250 = vmatpush2.msra.mxu0 0.0
    %3251 = vmatprep.subr.mxu0 0.0
    %3252 = vmatpush2.msra.mxu0 0.0
    %3253 = vmatprep.subr.mxu0 0.0
    %3254 = vmatpush2.msra.mxu0 0.0
    %3255 = vmatprep.subr.mxu0 0.0
    %3256 = vmatpush2.msra.mxu0 0.0
    %3257 = vmatprep.subr.mxu0 0.0
    %3258 = vmatpush2.msra.mxu0 0.0
    %3259 = vmatprep.subr.mxu0 0.0
    %3260 = vmatpush2.msra.mxu0 0.0
    %3261 = vmatprep.subr.mxu0 0.0
    %3262 = vmatpush2.msra.mxu0 0.0
    %3263 = vmatprep.subr.mxu0 0.0
    %3264 = vmatpush2.msra.mxu0 0.0
    %3265 = vmatprep.subr.mxu0 0.0
    %3266 = vmatpush2.msra.mxu0 0.0
    %3267 = vmatprep.subr.mxu0 0.0
    %3268 = vmatpush2.msra.mxu0 0.0
    %3269 = vmatprep.mubr.f32.mxu0 0.0
    %3270 = vmatmul.mubr.f32.gmra.mxu0 %v3203
    %v3271 = vpop.f32.mrf.mxu0
    %v3272 = vadd.f32 0.0, %v3271
    %v3273 = vpop.f32.mrf.mxu0
    %3274 = vdwg.mxu0
    %v3275 = vlaneseq
    %v3276 = vshrl.u32 %v3275, 7
    %v3277 = vsub.s32 0, %v3276
    %v3278 = vrot.slane %v3198, %v3277
    %v3279 = vmul.f32 %v2957, %v3278
    %v3280 = vlaneseq
    %v3281 = vshrl.u32 %v3280, 7
    %v3282 = vsub.s32 0, %v3281
    %v3283 = vrot.slane %v3272, %v3282
    %v3284 = vadd.f32 %v3279, %v3283
    %v3285 = vmax.f32 %v3284, 0.0
    %3286 = vmatprep.subr.mxu0 0.0
    %3287 = vmatpush1.msra.mxu0 %v2888
    %3288 = vmatprep.subr.mxu0 0.0
    %3289 = vmatpush1.msra.mxu0 %v2887
    %3290 = vmatprep.subr.mxu0 0.0
    %3291 = vmatpush1.msra.mxu0 %v2886
    %3292 = vmatprep.subr.mxu0 0.0
    %3293 = vmatpush1.msra.mxu0 %v2885
    %3294 = vmatprep.subr.mxu0 0.0
    %3295 = vmatpush1.msra.mxu0 %v2884
    %3296 = vmatprep.subr.mxu0 0.0
    %3297 = vmatpush1.msra.mxu0 %v2883
    %3298 = vmatprep.subr.mxu0 0.0
    %3299 = vmatpush1.msra.mxu0 %v2882
    %3300 = vmatprep.subr.mxu0 0.0
    %3301 = vmatpush1.msra.mxu0 %v2881
    %3302 = vmatprep.subr.mxu0 0.0
    %3303 = vmatpush1.msra.mxu0 %v2880
    %3304 = vmatprep.subr.mxu0 0.0
    %3305 = vmatpush1.msra.mxu0 %v2879
    %3306 = vmatprep.subr.mxu0 0.0
    %3307 = vmatpush1.msra.mxu0 %v2878
    %3308 = vmatprep.subr.mxu0 0.0
    %3309 = vmatpush1.msra.mxu0 %v2877
    %3310 = vmatprep.subr.mxu0 0.0
    %3311 = vmatpush1.msra.mxu0 %v2876
    %3312 = vmatprep.subr.mxu0 0.0
    %3313 = vmatpush1.msra.mxu0 %v2875
    %3314 = vmatprep.subr.mxu0 0.0
    %3315 = vmatpush1.msra.mxu0 %v2874
    %3316 = vmatprep.subr.mxu0 0.0
    %3317 = vmatpush1.msra.mxu0 %v2873
    %3318 = vmatprep.subr.mxu0 0.0
    %3319 = vmatpush2.msra.mxu0 0.0
    %3320 = vmatprep.subr.mxu0 0.0
    %3321 = vmatpush2.msra.mxu0 0.0
    %3322 = vmatprep.subr.mxu0 0.0
    %3323 = vmatpush2.msra.mxu0 0.0
    %3324 = vmatprep.subr.mxu0 0.0
    %3325 = vmatpush2.msra.mxu0 0.0
    %3326 = vmatprep.subr.mxu0 0.0
    %3327 = vmatpush2.msra.mxu0 0.0
    %3328 = vmatprep.subr.mxu0 0.0
    %3329 = vmatpush2.msra.mxu0 0.0
    %3330 = vmatprep.subr.mxu0 0.0
    %3331 = vmatpush2.msra.mxu0 0.0
    %3332 = vmatprep.subr.mxu0 0.0
    %3333 = vmatpush2.msra.mxu0 0.0
    %3334 = vmatprep.subr.mxu0 0.0
    %3335 = vmatpush2.msra.mxu0 0.0
    %3336 = vmatprep.subr.mxu0 0.0
    %3337 = vmatpush2.msra.mxu0 0.0
    %3338 = vmatprep.subr.mxu0 0.0
    %3339 = vmatpush2.msra.mxu0 0.0
    %3340 = vmatprep.subr.mxu0 0.0
    %3341 = vmatpush2.msra.mxu0 0.0
    %3342 = vmatprep.subr.mxu0 0.0
    %3343 = vmatpush2.msra.mxu0 0.0
    %3344 = vmatprep.subr.mxu0 0.0
    %3345 = vmatpush2.msra.mxu0 0.0
    %3346 = vmatprep.subr.mxu0 0.0
    %3347 = vmatpush2.msra.mxu0 0.0
    %3348 = vmatprep.subr.mxu0 0.0
    %3349 = vmatpush2.msra.mxu0 0.0
    %3350 = vmatprep.mubr.f32.mxu0 0.0
    %3351 = vmatmul.mubr.f32.gmra.mxu0 %v3285
    %v3352 = vpop.f32.mrf.mxu0
    %v3353 = vadd.f32 0.0, %v3352
    %v3354 = vpop.f32.mrf.mxu0
    %3355 = vdwg.mxu0
    %v3356 = vsel %vm957, %v3353, 0.0
    %v3357 = vrot.slane %v3356, 4
    %v3358 = vadd.f32 %v3356, %v3357
    %v3359 = vrot.slane %v3358, 2
    %v3360 = vadd.f32 %v3358, %v3359
    %v3361 = vrot.slane %v3360, 1
    %v3362 = vadd.f32 %v3360, %v3361
    %3363 = vmatprep.subr.mxu0 0.0
    %3364 = vmatpush1.msra.mxu0 %v2854
    %3365 = vmatprep.subr.mxu0 0.0
    %3366 = vmatpush1.msra.mxu0 %v2853
    %3367 = vmatprep.subr.mxu0 0.0
    %3368 = vmatpush1.msra.mxu0 %v2852
    %3369 = vmatprep.subr.mxu0 0.0
    %3370 = vmatpush1.msra.mxu0 %v2851
    %3371 = vmatprep.subr.mxu0 0.0
    %3372 = vmatpush1.msra.mxu0 %v2850
    %3373 = vmatprep.subr.mxu0 0.0
    %3374 = vmatpush1.msra.mxu0 %v2849
    %3375 = vmatprep.subr.mxu0 0.0
    %3376 = vmatpush1.msra.mxu0 %v2848
    %3377 = vmatprep.subr.mxu0 0.0
    %3378 = vmatpush1.msra.mxu0 %v2847
    %3379 = vmatprep.subr.mxu0 0.0
    %3380 = vmatpush1.msra.mxu0 %v2846
    %3381 = vmatprep.subr.mxu0 0.0
    %3382 = vmatpush1.msra.mxu0 %v2845
    %3383 = vmatprep.subr.mxu0 0.0
    %3384 = vmatpush1.msra.mxu0 %v2844
    %3385 = vmatprep.subr.mxu0 0.0
    %3386 = vmatpush1.msra.mxu0 %v2843
    %3387 = vmatprep.subr.mxu0 0.0
    %3388 = vmatpush1.msra.mxu0 %v2842
    %3389 = vmatprep.subr.mxu0 0.0
    %3390 = vmatpush1.msra.mxu0 %v2841
    %3391 = vmatprep.subr.mxu0 0.0
    %3392 = vmatpush1.msra.mxu0 %v2840
    %3393 = vmatprep.subr.mxu0 0.0
    %3394 = vmatpush1.msra.mxu0 %v2839
    %3395 = vmatprep.subr.mxu0 0.0
    %3396 = vmatpush2.msra.mxu0 0.0
    %3397 = vmatprep.subr.mxu0 0.0
    %3398 = vmatpush2.msra.mxu0 0.0
    %3399 = vmatprep.subr.mxu0 0.0
    %3400 = vmatpush2.msra.mxu0 0.0
    %3401 = vmatprep.subr.mxu0 0.0
    %3402 = vmatpush2.msra.mxu0 0.0
    %3403 = vmatprep.subr.mxu0 0.0
    %3404 = vmatpush2.msra.mxu0 0.0
    %3405 = vmatprep.subr.mxu0 0.0
    %3406 = vmatpush2.msra.mxu0 0.0
    %3407 = vmatprep.subr.mxu0 0.0
    %3408 = vmatpush2.msra.mxu0 0.0
    %3409 = vmatprep.subr.mxu0 0.0
    %3410 = vmatpush2.msra.mxu0 0.0
    %3411 = vmatprep.subr.mxu0 0.0
    %3412 = vmatpush2.msra.mxu0 0.0
    %3413 = vmatprep.subr.mxu0 0.0
    %3414 = vmatpush2.msra.mxu0 0.0
    %3415 = vmatprep.subr.mxu0 0.0
    %3416 = vmatpush2.msra.mxu0 0.0
    %3417 = vmatprep.subr.mxu0 0.0
    %3418 = vmatpush2.msra.mxu0 0.0
    %3419 = vmatprep.subr.mxu0 0.0
    %3420 = vmatpush2.msra.mxu0 0.0
    %3421 = vmatprep.subr.mxu0 0.0
    %3422 = vmatpush2.msra.mxu0 0.0
    %3423 = vmatprep.subr.mxu0 0.0
    %3424 = vmatpush2.msra.mxu0 0.0
    %3425 = vmatprep.subr.mxu0 0.0
    %3426 = vmatpush2.msra.mxu0 0.0
    %3427 = vmatprep.mubr.f32.mxu0 0.0
    %3428 = vmatmul.mubr.f32.gmra.mxu0 %v3362
    %v3429 = vpop.f32.mrf.mxu0
    %v3430 = vadd.f32 0.0, %v3429
    %v3431 = vpop.f32.mrf.mxu0
    %3432 = vdwg.mxu0
    %v3433 = vmul.f32 %v3430, 0.03125
    %v3434 = vmul.f32 %v3353, %v3353
    %v3435 = vsel %vm957, %v3434, 0.0
    %v3436 = vrot.slane %v3435, 4
    %v3437 = vadd.f32 %v3435, %v3436
    %v3438 = vrot.slane %v3437, 2
    %v3439 = vadd.f32 %v3437, %v3438
    %v3440 = vrot.slane %v3439, 1
    %v3441 = vadd.f32 %v3439, %v3440
    %3442 = vmatprep.subr.mxu0 0.0
    %3443 = vmatpush1.msra.mxu0 %v2854
    %3444 = vmatprep.subr.mxu0 0.0
    %3445 = vmatpush1.msra.mxu0 %v2853
    %3446 = vmatprep.subr.mxu0 0.0
    %3447 = vmatpush1.msra.mxu0 %v2852
    %3448 = vmatprep.subr.mxu0 0.0
    %3449 = vmatpush1.msra.mxu0 %v2851
    %3450 = vmatprep.subr.mxu0 0.0
    %3451 = vmatpush1.msra.mxu0 %v2850
    %3452 = vmatprep.subr.mxu0 0.0
    %3453 = vmatpush1.msra.mxu0 %v2849
    %3454 = vmatprep.subr.mxu0 0.0
    %3455 = vmatpush1.msra.mxu0 %v2848
    %3456 = vmatprep.subr.mxu0 0.0
    %3457 = vmatpush1.msra.mxu0 %v2847
    %3458 = vmatprep.subr.mxu0 0.0
    %3459 = vmatpush1.msra.mxu0 %v2846
    %3460 = vmatprep.subr.mxu0 0.0
    %3461 = vmatpush1.msra.mxu0 %v2845
    %3462 = vmatprep.subr.mxu0 0.0
    %3463 = vmatpush1.msra.mxu0 %v2844
    %3464 = vmatprep.subr.mxu0 0.0
    %3465 = vmatpush1.msra.mxu0 %v2843
    %3466 = vmatprep.subr.mxu0 0.0
    %3467 = vmatpush1.msra.mxu0 %v2842
    %3468 = vmatprep.subr.mxu0 0.0
    %3469 = vmatpush1.msra.mxu0 %v2841
    %3470 = vmatprep.subr.mxu0 0.0
    %3471 = vmatpush1.msra.mxu0 %v2840
    %3472 = vmatprep.subr.mxu0 0.0
    %3473 = vmatpush1.msra.mxu0 %v2839
    %3474 = vmatprep.subr.mxu0 0.0
    %3475 = vmatpush2.msra.mxu0 0.0
    %3476 = vmatprep.subr.mxu0 0.0
    %3477 = vmatpush2.msra.mxu0 0.0
    %3478 = vmatprep.subr.mxu0 0.0
    %3479 = vmatpush2.msra.mxu0 0.0
    %3480 = vmatprep.subr.mxu0 0.0
    %3481 = vmatpush2.msra.mxu0 0.0
    %3482 = vmatprep.subr.mxu0 0.0
    %3483 = vmatpush2.msra.mxu0 0.0
    %3484 = vmatprep.subr.mxu0 0.0
    %3485 = vmatpush2.msra.mxu0 0.0
    %3486 = vmatprep.subr.mxu0 0.0
    %3487 = vmatpush2.msra.mxu0 0.0
    %3488 = vmatprep.subr.mxu0 0.0
    %3489 = vmatpush2.msra.mxu0 0.0
    %3490 = vmatprep.subr.mxu0 0.0
    %3491 = vmatpush2.msra.mxu0 0.0
    %3492 = vmatprep.subr.mxu0 0.0
    %3493 = vmatpush2.msra.mxu0 0.0
    %3494 = vmatprep.subr.mxu0 0.0
    %3495 = vmatpush2.msra.mxu0 0.0
    %3496 = vmatprep.subr.mxu0 0.0
    %3497 = vmatpush2.msra.mxu0 0.0
    %3498 = vmatprep.subr.mxu0 0.0
    %3499 = vmatpush2.msra.mxu0 0.0
    %3500 = vmatprep.subr.mxu0 0.0
    %3501 = vmatpush2.msra.mxu0 0.0
    %3502 = vmatprep.subr.mxu0 0.0
    %3503 = vmatpush2.msra.mxu0 0.0
    %3504 = vmatprep.subr.mxu0 0.0
    %3505 = vmatpush2.msra.mxu0 0.0
    %3506 = vmatprep.mubr.f32.mxu0 0.0
    %3507 = vmatmul.mubr.f32.gmra.mxu0 %v3441
    %v3508 = vpop.f32.mrf.mxu0
    %v3509 = vadd.f32 0.0, %v3508
    %v3510 = vpop.f32.mrf.mxu0
    %3511 = vdwg.mxu0
    %v3512 = vmul.f32 %v3509, 0.03125
    %v3513 = vmul.f32 %v3433, %v3433
    %v3514 = vsub.f32 %v3512, %v3513
    %v3515 = vadd.f32 %v3514, 1e-05
    %v3516 = vrsqrt.pop %v3515
    %v3518 = vrot.slane %v3516, 6
    %v3520 = vmul.f32 %v2889, %v3518
    %v3522 = vrot.slane %v3520, 2
    %v3524 = vmul.f32 %v3433, %v3522
    %v3526 = vrot.slane %v3524, 5
    %v3528 = vsub.f32 %v2889, %v3526
    %v3529 = vsel %vm3127, %v3522, 0
    %3531 = vmatprep.subr.mxu0 0.0
    %3532 = vmatpush1.msra.mxu0 0.0
    %3533 = vmatprep.subr.mxu0 0.0
    %3534 = vmatpush1.msra.mxu0 0.0
    %3535 = vmatprep.subr.mxu0 0.0
    %3536 = vmatpush1.msra.mxu0 0.0
    %3537 = vmatprep.subr.mxu0 0.0
    %3538 = vmatpush1.msra.mxu0 0.0
    %3539 = vmatprep.subr.mxu0 0.0
    %3540 = vmatpush1.msra.mxu0 0.0
    %3541 = vmatprep.subr.mxu0 0.0
    %3542 = vmatpush1.msra.mxu0 0.0
    %3543 = vmatprep.subr.mxu0 0.0
    %3544 = vmatpush1.msra.mxu0 0.0
    %3545 = vmatprep.subr.mxu0 0.0
    %3546 = vmatpush1.msra.mxu0 0.0
    %3547 = vmatprep.subr.mxu0 0.0
    %3548 = vmatpush1.msra.mxu0 0.0
    %3549 = vmatprep.subr.mxu0 0.0
    %3550 = vmatpush1.msra.mxu0 0.0
    %3551 = vmatprep.subr.mxu0 0.0
    %3552 = vmatpush1.msra.mxu0 0.0
    %3553 = vmatprep.subr.mxu0 0.0
    %3554 = vmatpush1.msra.mxu0 0.0
    %3555 = vmatprep.subr.mxu0 0.0
    %3556 = vmatpush1.msra.mxu0 0.0
    %3557 = vmatprep.subr.mxu0 0.0
    %3558 = vmatpush1.msra.mxu0 0.0
    %3559 = vmatprep.subr.mxu0 0.0
    %3560 = vmatpush1.msra.mxu0 0.0
    %3561 = vmatprep.subr.mxu0 0.0
    %3562 = vmatpush1.msra.mxu0 %v2855
    %3563 = vmatprep.subr.mxu0 0.0
    %3564 = vmatpush2.msra.mxu0 0.0
    %3565 = vmatprep.subr.mxu0 0.0
    %3566 = vmatpush2.msra.mxu0 0.0
    %3567 = vmatprep.subr.mxu0 0.0
    %3568 = vmatpush2.msra.mxu0 0.0
    %3569 = vmatprep.subr.mxu0 0.0
    %3570 = vmatpush2.msra.mxu0 0.0
    %3571 = vmatprep.subr.mxu0 0.0
    %3572 = vmatpush2.msra.mxu0 0.0
    %3573 = vmatprep.subr.mxu0 0.0
    %3574 = vmatpush2.msra.mxu0 0.0
    %3575 = vmatprep.subr.mxu0 0.0
    %3576 = vmatpush2.msra.mxu0 0.0
    %3577 = vmatprep.subr.mxu0 0.0
    %3578 = vmatpush2.msra.mxu0 0.0
    %3579 = vmatprep.subr.mxu0 0.0
    %3580 = vmatpush2.msra.mxu0 0.0
    %3581 = vmatprep.subr.mxu0 0.0
    %3582 = vmatpush2.msra.mxu0 0.0
    %3583 = vmatprep.subr.mxu0 0.0
    %3584 = vmatpush2.msra.mxu0 0.0
    %3585 = vmatprep.subr.mxu0 0.0
    %3586 = vmatpush2.msra.mxu0 0.0
    %3587 = vmatprep.subr.mxu0 0.0
    %3588 = vmatpush2.msra.mxu0 0.0
    %3589 = vmatprep.subr.mxu0 0.0
    %3590 = vmatpush2.msra.mxu0 0.0
    %3591 = vmatprep.subr.mxu0 0.0
    %3592 = vmatpush2.msra.mxu0 0.0
    %3593 = vmatprep.subr.mxu0 0.0
    %3594 = vmatpush2.msra.mxu0 0.0
    %3595 = vmatprep.mubr.f32.mxu0 0.0
    %3596 = vmatmul.mubr.f32.gmra.mxu0 %v3529
    %v3597 = vpop.f32.mrf.mxu0
    %v3598 = vadd.f32 0.0, %v3597
    %v3599 = vpop.f32.mrf.mxu0
    %3600 = vdwg.mxu0
    %v3602 = vrot.slane %v3528, 3
    %v3603 = vsel %vm3127, %v3602, 0
    %3605 = vmatprep.subr.mxu0 0.0
    %3606 = vmatpush1.msra.mxu0 0.0
    %3607 = vmatprep.subr.mxu0 0.0
    %3608 = vmatpush1.msra.mxu0 0.0
    %3609 = vmatprep.subr.mxu0 0.0
    %3610 = vmatpush1.msra.mxu0 0.0
    %3611 = vmatprep.subr.mxu0 0.0
    %3612 = vmatpush1.msra.mxu0 0.0
    %3613 = vmatprep.subr.mxu0 0.0
    %3614 = vmatpush1.msra.mxu0 0.0
    %3615 = vmatprep.subr.mxu0 0.0
    %3616 = vmatpush1.msra.mxu0 0.0
    %3617 = vmatprep.subr.mxu0 0.0
    %3618 = vmatpush1.msra.mxu0 0.0
    %3619 = vmatprep.subr.mxu0 0.0
    %3620 = vmatpush1.msra.mxu0 0.0
    %3621 = vmatprep.subr.mxu0 0.0
    %3622 = vmatpush1.msra.mxu0 0.0
    %3623 = vmatprep.subr.mxu0 0.0
    %3624 = vmatpush1.msra.mxu0 0.0
    %3625 = vmatprep.subr.mxu0 0.0
    %3626 = vmatpush1.msra.mxu0 0.0
    %3627 = vmatprep.subr.mxu0 0.0
    %3628 = vmatpush1.msra.mxu0 0.0
    %3629 = vmatprep.subr.mxu0 0.0
    %3630 = vmatpush1.msra.mxu0 0.0
    %3631 = vmatprep.subr.mxu0 0.0
    %3632 = vmatpush1.msra.mxu0 0.0
    %3633 = vmatprep.subr.mxu0 0.0
    %3634 = vmatpush1.msra.mxu0 0.0
    %3635 = vmatprep.subr.mxu0 0.0
    %3636 = vmatpush1.msra.mxu0 %v2855
    %3637 = vmatprep.subr.mxu0 0.0
    %3638 = vmatpush2.msra.mxu0 0.0
    %3639 = vmatprep.subr.mxu0 0.0
    %3640 = vmatpush2.msra.mxu0 0.0
    %3641 = vmatprep.subr.mxu0 0.0
    %3642 = vmatpush2.msra.mxu0 0.0
    %3643 = vmatprep.subr.mxu0 0.0
    %3644 = vmatpush2.msra.mxu0 0.0
    %3645 = vmatprep.subr.mxu0 0.0
    %3646 = vmatpush2.msra.mxu0 0.0
    %3647 = vmatprep.subr.mxu0 0.0
    %3648 = vmatpush2.msra.mxu0 0.0
    %3649 = vmatprep.subr.mxu0 0.0
    %3650 = vmatpush2.msra.mxu0 0.0
    %3651 = vmatprep.subr.mxu0 0.0
    %3652 = vmatpush2.msra.mxu0 0.0
    %3653 = vmatprep.subr.mxu0 0.0
    %3654 = vmatpush2.msra.mxu0 0.0
    %3655 = vmatprep.subr.mxu0 0.0
    %3656 = vmatpush2.msra.mxu0 0.0
    %3657 = vmatprep.subr.mxu0 0.0
    %3658 = vmatpush2.msra.mxu0 0.0
    %3659 = vmatprep.subr.mxu0 0.0
    %3660 = vmatpush2.msra.mxu0 0.0
    %3661 = vmatprep.subr.mxu0 0.0
    %3662 = vmatpush2.msra.mxu0 0.0
    %3663 = vmatprep.subr.mxu0 0.0
    %3664 = vmatpush2.msra.mxu0 0.0
    %3665 = vmatprep.subr.mxu0 0.0
    %3666 = vmatpush2.msra.mxu0 0.0
    %3667 = vmatprep.subr.mxu0 0.0
    %3668 = vmatpush2.msra.mxu0 0.0
    %3669 = vmatprep.mubr.f32.mxu0 0.0
    %3670 = vmatmul.mubr.f32.gmra.mxu0 %v3603
    %v3671 = vpop.f32.mrf.mxu0
    %v3672 = vadd.f32 0.0, %v3671
    %v3673 = vpop.f32.mrf.mxu0
    %3674 = vdwg.mxu0
    %v3675 = vlaneseq
    %v3676 = vshrl.u32 %v3675, 7
    %v3677 = vsub.s32 0, %v3676
    %v3678 = vrot.slane %v3598, %v3677
    %v3679 = vmul.f32 %v3353, %v3678
    %v3680 = vlaneseq
    %v3681 = vshrl.u32 %v3680, 7
    %v3682 = vsub.s32 0, %v3681
    %v3683 = vrot.slane %v3672, %v3682
    %v3684 = vadd.f32 %v3679, %v3683
    %v3685 = vadd.f32 %v3684, %v2836
    %v3686 = vmax.f32 %v3685, 0.0
    %s3687 = scalar_lea.vmem %s7, 256
    %v3688 = vld [vmem:[%s3687] sm:$0xff]
    %v3689 = vld [vmem:[%s3687 + $0x8] sm:$0xff]
    %v3690 = vld [vmem:[%s3687 + $0x10] sm:$0xff]
    %v3691 = vld [vmem:[%s3687 + $0x18] sm:$0xff]
    %v3692 = vld [vmem:[%s3687 + $0x20] sm:$0xff]
    %v3693 = vld [vmem:[%s3687 + $0x28] sm:$0xff]
    %v3694 = vld [vmem:[%s3687 + $0x30] sm:$0xff]
    %v3695 = vld [vmem:[%s3687 + $0x38] sm:$0xff]
    %v3696 = vld [vmem:[%s3687 + $0x40] sm:$0xff]
    %v3697 = vld [vmem:[%s3687 + $0x48] sm:$0xff]
    %v3698 = vld [vmem:[%s3687 + $0x50] sm:$0xff]
    %v3699 = vld [vmem:[%s3687 + $0x58] sm:$0xff]
    %v3700 = vld [vmem:[%s3687 + $0x60] sm:$0xff]
    %v3701 = vld [vmem:[%s3687 + $0x68] sm:$0xff]
    %v3702 = vld [vmem:[%s3687 + $0x70] sm:$0xff]
    %v3703 = vld [vmem:[%s3687 + $0x78] sm:$0xff]
    %s3704 = scalar_lea.vmem %s7, 384
    %v3705 = vld [vmem:[%s3704] sm:$0xff]
    %v3706 = vld [vmem:[%s3704 + $0x8] sm:$0xff]
    %v3707 = vld [vmem:[%s3704 + $0x10] sm:$0xff]
    %v3708 = vld [vmem:[%s3704 + $0x18] sm:$0xff]
    %v3709 = vld [vmem:[%s3704 + $0x20] sm:$0xff]
    %v3710 = vld [vmem:[%s3704 + $0x28] sm:$0xff]
    %v3711 = vld [vmem:[%s3704 + $0x30] sm:$0xff]
    %v3712 = vld [vmem:[%s3704 + $0x38] sm:$0xff]
    %v3713 = vld [vmem:[%s3704 + $0x40] sm:$0xff]
    %v3714 = vld [vmem:[%s3704 + $0x48] sm:$0xff]
    %v3715 = vld [vmem:[%s3704 + $0x50] sm:$0xff]
    %v3716 = vld [vmem:[%s3704 + $0x58] sm:$0xff]
    %v3717 = vld [vmem:[%s3704 + $0x60] sm:$0xff]
    %v3718 = vld [vmem:[%s3704 + $0x68] sm:$0xff]
    %v3719 = vld [vmem:[%s3704 + $0x70] sm:$0xff]
    %v3720 = vld [vmem:[%s3704 + $0x78] sm:$0xff]
    %s3721 = scalar_lea.vmem %s8, 4
    %v3722 = vld [vmem:[%s3721] sm:$0xf]
    %3723 = vmatprep.subr.mxu0 0.0
    %3724 = vmatpush1.msra.mxu0 %v3703
    %3725 = vmatprep.subr.mxu0 0.0
    %3726 = vmatpush1.msra.mxu0 %v3702
    %3727 = vmatprep.subr.mxu0 0.0
    %3728 = vmatpush1.msra.mxu0 %v3701
    %3729 = vmatprep.subr.mxu0 0.0
    %3730 = vmatpush1.msra.mxu0 %v3700
    %3731 = vmatprep.subr.mxu0 0.0
    %3732 = vmatpush1.msra.mxu0 %v3699
    %3733 = vmatprep.subr.mxu0 0.0
    %3734 = vmatpush1.msra.mxu0 %v3698
    %3735 = vmatprep.subr.mxu0 0.0
    %3736 = vmatpush1.msra.mxu0 %v3697
    %3737 = vmatprep.subr.mxu0 0.0
    %3738 = vmatpush1.msra.mxu0 %v3696
    %3739 = vmatprep.subr.mxu0 0.0
    %3740 = vmatpush1.msra.mxu0 %v3695
    %3741 = vmatprep.subr.mxu0 0.0
    %3742 = vmatpush1.msra.mxu0 %v3694
    %3743 = vmatprep.subr.mxu0 0.0
    %3744 = vmatpush1.msra.mxu0 %v3693
    %3745 = vmatprep.subr.mxu0 0.0
    %3746 = vmatpush1.msra.mxu0 %v3692
    %3747 = vmatprep.subr.mxu0 0.0
    %3748 = vmatpush1.msra.mxu0 %v3691
    %3749 = vmatprep.subr.mxu0 0.0
    %3750 = vmatpush1.msra.mxu0 %v3690
    %3751 = vmatprep.subr.mxu0 0.0
    %3752 = vmatpush1.msra.mxu0 %v3689
    %3753 = vmatprep.subr.mxu0 0.0
    %3754 = vmatpush1.msra.mxu0 %v3688
    %3755 = vmatprep.subr.mxu0 0.0
    %3756 = vmatpush2.msra.mxu0 0.0
    %3757 = vmatprep.subr.mxu0 0.0
    %3758 = vmatpush2.msra.mxu0 0.0
    %3759 = vmatprep.subr.mxu0 0.0
    %3760 = vmatpush2.msra.mxu0 0.0
    %3761 = vmatprep.subr.mxu0 0.0
    %3762 = vmatpush2.msra.mxu0 0.0
    %3763 = vmatprep.subr.mxu0 0.0
    %3764 = vmatpush2.msra.mxu0 0.0
    %3765 = vmatprep.subr.mxu0 0.0
    %3766 = vmatpush2.msra.mxu0 0.0
    %3767 = vmatprep.subr.mxu0 0.0
    %3768 = vmatpush2.msra.mxu0 0.0
    %3769 = vmatprep.subr.mxu0 0.0
    %3770 = vmatpush2.msra.mxu0 0.0
    %3771 = vmatprep.subr.mxu0 0.0
    %3772 = vmatpush2.msra.mxu0 0.0
    %3773 = vmatprep.subr.mxu0 0.0
    %3774 = vmatpush2.msra.mxu0 0.0
    %3775 = vmatprep.subr.mxu0 0.0
    %3776 = vmatpush2.msra.mxu0 0.0
    %3777 = vmatprep.subr.mxu0 0.0
    %3778 = vmatpush2.msra.mxu0 0.0
    %3779 = vmatprep.subr.mxu0 0.0
    %3780 = vmatpush2.msra.mxu0 0.0
    %3781 = vmatprep.subr.mxu0 0.0
    %3782 = vmatpush2.msra.mxu0 0.0
    %3783 = vmatprep.subr.mxu0 0.0
    %3784 = vmatpush2.msra.mxu0 0.0
    %3785 = vmatprep.subr.mxu0 0.0
    %3786 = vmatpush2.msra.mxu0 0.0
    %3787 = vmatprep.mubr.f32.mxu0 0.0
    %3788 = vmatmul.mubr.f32.gmra.mxu0 %v3686
    %v3789 = vpop.f32.mrf.mxu0
    %v3790 = vadd.f32 0.0, %v3789
    %v3791 = vpop.f32.mrf.mxu0
    %3792 = vdwg.mxu0
    %v3793 = vsel %vm957, %v3790, 0.0
    %v3794 = vrot.slane %v3793, 4
    %v3795 = vadd.f32 %v3793, %v3794
    %v3796 = vrot.slane %v3795, 2
    %v3797 = vadd.f32 %v3795, %v3796
    %v3798 = vrot.slane %v3797, 1
    %v3799 = vadd.f32 %v3797, %v3798
    %3800 = vmatprep.subr.mxu0 0.0
    %3801 = vmatpush1.msra.mxu0 %v2854
    %3802 = vmatprep.subr.mxu0 0.0
    %3803 = vmatpush1.msra.mxu0 %v2853
    %3804 = vmatprep.subr.mxu0 0.0
    %3805 = vmatpush1.msra.mxu0 %v2852
    %3806 = vmatprep.subr.mxu0 0.0
    %3807 = vmatpush1.msra.mxu0 %v2851
    %3808 = vmatprep.subr.mxu0 0.0
    %3809 = vmatpush1.msra.mxu0 %v2850
    %3810 = vmatprep.subr.mxu0 0.0
    %3811 = vmatpush1.msra.mxu0 %v2849
    %3812 = vmatprep.subr.mxu0 0.0
    %3813 = vmatpush1.msra.mxu0 %v2848
    %3814 = vmatprep.subr.mxu0 0.0
    %3815 = vmatpush1.msra.mxu0 %v2847
    %3816 = vmatprep.subr.mxu0 0.0
    %3817 = vmatpush1.msra.mxu0 %v2846
    %3818 = vmatprep.subr.mxu0 0.0
    %3819 = vmatpush1.msra.mxu0 %v2845
    %3820 = vmatprep.subr.mxu0 0.0
    %3821 = vmatpush1.msra.mxu0 %v2844
    %3822 = vmatprep.subr.mxu0 0.0
    %3823 = vmatpush1.msra.mxu0 %v2843
    %3824 = vmatprep.subr.mxu0 0.0
    %3825 = vmatpush1.msra.mxu0 %v2842
    %3826 = vmatprep.subr.mxu0 0.0
    %3827 = vmatpush1.msra.mxu0 %v2841
    %3828 = vmatprep.subr.mxu0 0.0
    %3829 = vmatpush1.msra.mxu0 %v2840
    %3830 = vmatprep.subr.mxu0 0.0
    %3831 = vmatpush1.msra.mxu0 %v2839
    %3832 = vmatprep.subr.mxu0 0.0
    %3833 = vmatpush2.msra.mxu0 0.0
    %3834 = vmatprep.subr.mxu0 0.0
    %3835 = vmatpush2.msra.mxu0 0.0
    %3836 = vmatprep.subr.mxu0 0.0
    %3837 = vmatpush2.msra.mxu0 0.0
    %3838 = vmatprep.subr.mxu0 0.0
    %3839 = vmatpush2.msra.mxu0 0.0
    %3840 = vmatprep.subr.mxu0 0.0
    %3841 = vmatpush2.msra.mxu0 0.0
    %3842 = vmatprep.subr.mxu0 0.0
    %3843 = vmatpush2.msra.mxu0 0.0
    %3844 = vmatprep.subr.mxu0 0.0
    %3845 = vmatpush2.msra.mxu0 0.0
    %3846 = vmatprep.subr.mxu0 0.0
    %3847 = vmatpush2.msra.mxu0 0.0
    %3848 = vmatprep.subr.mxu0 0.0
    %3849 = vmatpush2.msra.mxu0 0.0
    %3850 = vmatprep.subr.mxu0 0.0
    %3851 = vmatpush2.msra.mxu0 0.0
    %3852 = vmatprep.subr.mxu0 0.0
    %3853 = vmatpush2.msra.mxu0 0.0
    %3854 = vmatprep.subr.mxu0 0.0
    %3855 = vmatpush2.msra.mxu0 0.0
    %3856 = vmatprep.subr.mxu0 0.0
    %3857 = vmatpush2.msra.mxu0 0.0
    %3858 = vmatprep.subr.mxu0 0.0
    %3859 = vmatpush2.msra.mxu0 0.0
    %3860 = vmatprep.subr.mxu0 0.0
    %3861 = vmatpush2.msra.mxu0 0.0
    %3862 = vmatprep.subr.mxu0 0.0
    %3863 = vmatpush2.msra.mxu0 0.0
    %3864 = vmatprep.mubr.f32.mxu0 0.0
    %3865 = vmatmul.mubr.f32.gmra.mxu0 %v3799
    %v3866 = vpop.f32.mrf.mxu0
    %v3867 = vadd.f32 0.0, %v3866
    %v3868 = vpop.f32.mrf.mxu0
    %3869 = vdwg.mxu0
    %v3870 = vmul.f32 %v3867, 0.03125
    %v3871 = vmul.f32 %v3790, %v3790
    %v3872 = vsel %vm957, %v3871, 0.0
    %v3873 = vrot.slane %v3872, 4
    %v3874 = vadd.f32 %v3872, %v3873
    %v3875 = vrot.slane %v3874, 2
    %v3876 = vadd.f32 %v3874, %v3875
    %v3877 = vrot.slane %v3876, 1
    %v3878 = vadd.f32 %v3876, %v3877
    %3879 = vmatprep.subr.mxu0 0.0
    %3880 = vmatpush1.msra.mxu0 %v2854
    %3881 = vmatprep.subr.mxu0 0.0
    %3882 = vmatpush1.msra.mxu0 %v2853
    %3883 = vmatprep.subr.mxu0 0.0
    %3884 = vmatpush1.msra.mxu0 %v2852
    %3885 = vmatprep.subr.mxu0 0.0
    %3886 = vmatpush1.msra.mxu0 %v2851
    %3887 = vmatprep.subr.mxu0 0.0
    %3888 = vmatpush1.msra.mxu0 %v2850
    %3889 = vmatprep.subr.mxu0 0.0
    %3890 = vmatpush1.msra.mxu0 %v2849
    %3891 = vmatprep.subr.mxu0 0.0
    %3892 = vmatpush1.msra.mxu0 %v2848
    %3893 = vmatprep.subr.mxu0 0.0
    %3894 = vmatpush1.msra.mxu0 %v2847
    %3895 = vmatprep.subr.mxu0 0.0
    %3896 = vmatpush1.msra.mxu0 %v2846
    %3897 = vmatprep.subr.mxu0 0.0
    %3898 = vmatpush1.msra.mxu0 %v2845
    %3899 = vmatprep.subr.mxu0 0.0
    %3900 = vmatpush1.msra.mxu0 %v2844
    %3901 = vmatprep.subr.mxu0 0.0
    %3902 = vmatpush1.msra.mxu0 %v2843
    %3903 = vmatprep.subr.mxu0 0.0
    %3904 = vmatpush1.msra.mxu0 %v2842
    %3905 = vmatprep.subr.mxu0 0.0
    %3906 = vmatpush1.msra.mxu0 %v2841
    %3907 = vmatprep.subr.mxu0 0.0
    %3908 = vmatpush1.msra.mxu0 %v2840
    %3909 = vmatprep.subr.mxu0 0.0
    %3910 = vmatpush1.msra.mxu0 %v2839
    %3911 = vmatprep.subr.mxu0 0.0
    %3912 = vmatpush2.msra.mxu0 0.0
    %3913 = vmatprep.subr.mxu0 0.0
    %3914 = vmatpush2.msra.mxu0 0.0
    %3915 = vmatprep.subr.mxu0 0.0
    %3916 = vmatpush2.msra.mxu0 0.0
    %3917 = vmatprep.subr.mxu0 0.0
    %3918 = vmatpush2.msra.mxu0 0.0
    %3919 = vmatprep.subr.mxu0 0.0
    %3920 = vmatpush2.msra.mxu0 0.0
    %3921 = vmatprep.subr.mxu0 0.0
    %3922 = vmatpush2.msra.mxu0 0.0
    %3923 = vmatprep.subr.mxu0 0.0
    %3924 = vmatpush2.msra.mxu0 0.0
    %3925 = vmatprep.subr.mxu0 0.0
    %3926 = vmatpush2.msra.mxu0 0.0
    %3927 = vmatprep.subr.mxu0 0.0
    %3928 = vmatpush2.msra.mxu0 0.0
    %3929 = vmatprep.subr.mxu0 0.0
    %3930 = vmatpush2.msra.mxu0 0.0
    %3931 = vmatprep.subr.mxu0 0.0
    %3932 = vmatpush2.msra.mxu0 0.0
    %3933 = vmatprep.subr.mxu0 0.0
    %3934 = vmatpush2.msra.mxu0 0.0
    %3935 = vmatprep.subr.mxu0 0.0
    %3936 = vmatpush2.msra.mxu0 0.0
    %3937 = vmatprep.subr.mxu0 0.0
    %3938 = vmatpush2.msra.mxu0 0.0
    %3939 = vmatprep.subr.mxu0 0.0
    %3940 = vmatpush2.msra.mxu0 0.0
    %3941 = vmatprep.subr.mxu0 0.0
    %3942 = vmatpush2.msra.mxu0 0.0
    %3943 = vmatprep.mubr.f32.mxu0 0.0
    %3944 = vmatmul.mubr.f32.gmra.mxu0 %v3878
    %v3945 = vpop.f32.mrf.mxu0
    %v3946 = vadd.f32 0.0, %v3945
    %v3947 = vpop.f32.mrf.mxu0
    %3948 = vdwg.mxu0
    %v3949 = vmul.f32 %v3946, 0.03125
    %v3950 = vmul.f32 %v3870, %v3870
    %v3951 = vsub.f32 %v3949, %v3950
    %v3952 = vadd.f32 %v3951, 1e-05
    %v3953 = vrsqrt.pop %v3952
    %v3954 = vmul.f32 %v3722, %v3953
    %v3955 = vmul.f32 %v3870, %v3954
    %v3957 = vrot.slane %v3955, 7
    %v3959 = vsub.f32 %v3722, %v3957
    %v3961 = vsel %vm3127, %v3954, 0
    %3963 = vmatprep.subr.mxu0 0.0
    %3964 = vmatpush1.msra.mxu0 0.0
    %3965 = vmatprep.subr.mxu0 0.0
    %3966 = vmatpush1.msra.mxu0 0.0
    %3967 = vmatprep.subr.mxu0 0.0
    %3968 = vmatpush1.msra.mxu0 0.0
    %3969 = vmatprep.subr.mxu0 0.0
    %3970 = vmatpush1.msra.mxu0 0.0
    %3971 = vmatprep.subr.mxu0 0.0
    %3972 = vmatpush1.msra.mxu0 0.0
    %3973 = vmatprep.subr.mxu0 0.0
    %3974 = vmatpush1.msra.mxu0 0.0
    %3975 = vmatprep.subr.mxu0 0.0
    %3976 = vmatpush1.msra.mxu0 0.0
    %3977 = vmatprep.subr.mxu0 0.0
    %3978 = vmatpush1.msra.mxu0 0.0
    %3979 = vmatprep.subr.mxu0 0.0
    %3980 = vmatpush1.msra.mxu0 0.0
    %3981 = vmatprep.subr.mxu0 0.0
    %3982 = vmatpush1.msra.mxu0 0.0
    %3983 = vmatprep.subr.mxu0 0.0
    %3984 = vmatpush1.msra.mxu0 0.0
    %3985 = vmatprep.subr.mxu0 0.0
    %3986 = vmatpush1.msra.mxu0 0.0
    %3987 = vmatprep.subr.mxu0 0.0
    %3988 = vmatpush1.msra.mxu0 0.0
    %3989 = vmatprep.subr.mxu0 0.0
    %3990 = vmatpush1.msra.mxu0 0.0
    %3991 = vmatprep.subr.mxu0 0.0
    %3992 = vmatpush1.msra.mxu0 0.0
    %3993 = vmatprep.subr.mxu0 0.0
    %3994 = vmatpush1.msra.mxu0 %v2855
    %3995 = vmatprep.subr.mxu0 0.0
    %3996 = vmatpush2.msra.mxu0 0.0
    %3997 = vmatprep.subr.mxu0 0.0
    %3998 = vmatpush2.msra.mxu0 0.0
    %3999 = vmatprep.subr.mxu0 0.0
    %4000 = vmatpush2.msra.mxu0 0.0
    %4001 = vmatprep.subr.mxu0 0.0
    %4002 = vmatpush2.msra.mxu0 0.0
    %4003 = vmatprep.subr.mxu0 0.0
    %4004 = vmatpush2.msra.mxu0 0.0
    %4005 = vmatprep.subr.mxu0 0.0
    %4006 = vmatpush2.msra.mxu0 0.0
    %4007 = vmatprep.subr.mxu0 0.0
    %4008 = vmatpush2.msra.mxu0 0.0
    %4009 = vmatprep.subr.mxu0 0.0
    %4010 = vmatpush2.msra.mxu0 0.0
    %4011 = vmatprep.subr.mxu0 0.0
    %4012 = vmatpush2.msra.mxu0 0.0
    %4013 = vmatprep.subr.mxu0 0.0
    %4014 = vmatpush2.msra.mxu0 0.0
    %4015 = vmatprep.subr.mxu0 0.0
    %4016 = vmatpush2.msra.mxu0 0.0
    %4017 = vmatprep.subr.mxu0 0.0
    %4018 = vmatpush2.msra.mxu0 0.0
    %4019 = vmatprep.subr.mxu0 0.0
    %4020 = vmatpush2.msra.mxu0 0.0
    %4021 = vmatprep.subr.mxu0 0.0
    %4022 = vmatpush2.msra.mxu0 0.0
    %4023 = vmatprep.subr.mxu0 0.0
    %4024 = vmatpush2.msra.mxu0 0.0
    %4025 = vmatprep.subr.mxu0 0.0
    %4026 = vmatpush2.msra.mxu0 0.0
    %4027 = vmatprep.mubr.f32.mxu0 0.0
    %4028 = vmatmul.mubr.f32.gmra.mxu0 %v3961
    %v4029 = vpop.f32.mrf.mxu0
    %v4030 = vadd.f32 0.0, %v4029
    %v4031 = vpop.f32.mrf.mxu0
    %4032 = vdwg.mxu0
    %v4034 = vrot.slane %v3959, 1
    %v4035 = vsel %vm3127, %v4034, 0
    %4037 = vmatprep.subr.mxu0 0.0
    %4038 = vmatpush1.msra.mxu0 0.0
    %4039 = vmatprep.subr.mxu0 0.0
    %4040 = vmatpush1.msra.mxu0 0.0
    %4041 = vmatprep.subr.mxu0 0.0
    %4042 = vmatpush1.msra.mxu0 0.0
    %4043 = vmatprep.subr.mxu0 0.0
    %4044 = vmatpush1.msra.mxu0 0.0
    %4045 = vmatprep.subr.mxu0 0.0
    %4046 = vmatpush1.msra.mxu0 0.0
    %4047 = vmatprep.subr.mxu0 0.0
    %4048 = vmatpush1.msra.mxu0 0.0
    %4049 = vmatprep.subr.mxu0 0.0
    %4050 = vmatpush1.msra.mxu0 0.0
    %4051 = vmatprep.subr.mxu0 0.0
    %4052 = vmatpush1.msra.mxu0 0.0
    %4053 = vmatprep.subr.mxu0 0.0
    %4054 = vmatpush1.msra.mxu0 0.0
    %4055 = vmatprep.subr.mxu0 0.0
    %4056 = vmatpush1.msra.mxu0 0.0
    %4057 = vmatprep.subr.mxu0 0.0
    %4058 = vmatpush1.msra.mxu0 0.0
    %4059 = vmatprep.subr.mxu0 0.0
    %4060 = vmatpush1.msra.mxu0 0.0
    %4061 = vmatprep.subr.mxu0 0.0
    %4062 = vmatpush1.msra.mxu0 0.0
    %4063 = vmatprep.subr.mxu0 0.0
    %4064 = vmatpush1.msra.mxu0 0.0
    %4065 = vmatprep.subr.mxu0 0.0
    %4066 = vmatpush1.msra.mxu0 0.0
    %4067 = vmatprep.subr.mxu0 0.0
    %4068 = vmatpush1.msra.mxu0 %v2855
    %4069 = vmatprep.subr.mxu0 0.0
    %4070 = vmatpush2.msra.mxu0 0.0
    %4071 = vmatprep.subr.mxu0 0.0
    %4072 = vmatpush2.msra.mxu0 0.0
    %4073 = vmatprep.subr.mxu0 0.0
    %4074 = vmatpush2.msra.mxu0 0.0
    %4075 = vmatprep.subr.mxu0 0.0
    %4076 = vmatpush2.msra.mxu0 0.0
    %4077 = vmatprep.subr.mxu0 0.0
    %4078 = vmatpush2.msra.mxu0 0.0
    %4079 = vmatprep.subr.mxu0 0.0
    %4080 = vmatpush2.msra.mxu0 0.0
    %4081 = vmatprep.subr.mxu0 0.0
    %4082 = vmatpush2.msra.mxu0 0.0
    %4083 = vmatprep.subr.mxu0 0.0
    %4084 = vmatpush2.msra.mxu0 0.0
    %4085 = vmatprep.subr.mxu0 0.0
    %4086 = vmatpush2.msra.mxu0 0.0
    %4087 = vmatprep.subr.mxu0 0.0
    %4088 = vmatpush2.msra.mxu0 0.0
    %4089 = vmatprep.subr.mxu0 0.0
    %4090 = vmatpush2.msra.mxu0 0.0
    %4091 = vmatprep.subr.mxu0 0.0
    %4092 = vmatpush2.msra.mxu0 0.0
    %4093 = vmatprep.subr.mxu0 0.0
    %4094 = vmatpush2.msra.mxu0 0.0
    %4095 = vmatprep.subr.mxu0 0.0
    %4096 = vmatpush2.msra.mxu0 0.0
    %4097 = vmatprep.subr.mxu0 0.0
    %4098 = vmatpush2.msra.mxu0 0.0
    %4099 = vmatprep.subr.mxu0 0.0
    %4100 = vmatpush2.msra.mxu0 0.0
    %4101 = vmatprep.mubr.f32.mxu0 0.0
    %4102 = vmatmul.mubr.f32.gmra.mxu0 %v4035
    %v4103 = vpop.f32.mrf.mxu0
    %v4104 = vadd.f32 0.0, %v4103
    %v4105 = vpop.f32.mrf.mxu0
    %4106 = vdwg.mxu0
    %v4107 = vlaneseq
    %v4108 = vshrl.u32 %v4107, 7
    %v4109 = vsub.s32 0, %v4108
    %v4110 = vrot.slane %v4030, %v4109
    %v4111 = vmul.f32 %v3790, %v4110
    %v4112 = vlaneseq
    %v4113 = vshrl.u32 %v4112, 7
    %v4114 = vsub.s32 0, %v4113
    %v4115 = vrot.slane %v4104, %v4114
    %v4116 = vadd.f32 %v4111, %v4115
    %v4117 = vmax.f32 %v4116, 0.0
    %4118 = vmatprep.subr.mxu0 0.0
    %4119 = vmatpush1.msra.mxu0 %v3720
    %4120 = vmatprep.subr.mxu0 0.0
    %4121 = vmatpush1.msra.mxu0 %v3719
    %4122 = vmatprep.subr.mxu0 0.0
    %4123 = vmatpush1.msra.mxu0 %v3718
    %4124 = vmatprep.subr.mxu0 0.0
    %4125 = vmatpush1.msra.mxu0 %v3717
    %4126 = vmatprep.subr.mxu0 0.0
    %4127 = vmatpush1.msra.mxu0 %v3716
    %4128 = vmatprep.subr.mxu0 0.0
    %4129 = vmatpush1.msra.mxu0 %v3715
    %4130 = vmatprep.subr.mxu0 0.0
    %4131 = vmatpush1.msra.mxu0 %v3714
    %4132 = vmatprep.subr.mxu0 0.0
    %4133 = vmatpush1.msra.mxu0 %v3713
    %4134 = vmatprep.subr.mxu0 0.0
    %4135 = vmatpush1.msra.mxu0 %v3712
    %4136 = vmatprep.subr.mxu0 0.0
    %4137 = vmatpush1.msra.mxu0 %v3711
    %4138 = vmatprep.subr.mxu0 0.0
    %4139 = vmatpush1.msra.mxu0 %v3710
    %4140 = vmatprep.subr.mxu0 0.0
    %4141 = vmatpush1.msra.mxu0 %v3709
    %4142 = vmatprep.subr.mxu0 0.0
    %4143 = vmatpush1.msra.mxu0 %v3708
    %4144 = vmatprep.subr.mxu0 0.0
    %4145 = vmatpush1.msra.mxu0 %v3707
    %4146 = vmatprep.subr.mxu0 0.0
    %4147 = vmatpush1.msra.mxu0 %v3706
    %4148 = vmatprep.subr.mxu0 0.0
    %4149 = vmatpush1.msra.mxu0 %v3705
    %4150 = vmatprep.subr.mxu0 0.0
    %4151 = vmatpush2.msra.mxu0 0.0
    %4152 = vmatprep.subr.mxu0 0.0
    %4153 = vmatpush2.msra.mxu0 0.0
    %4154 = vmatprep.subr.mxu0 0.0
    %4155 = vmatpush2.msra.mxu0 0.0
    %4156 = vmatprep.subr.mxu0 0.0
    %4157 = vmatpush2.msra.mxu0 0.0
    %4158 = vmatprep.subr.mxu0 0.0
    %4159 = vmatpush2.msra.mxu0 0.0
    %4160 = vmatprep.subr.mxu0 0.0
    %4161 = vmatpush2.msra.mxu0 0.0
    %4162 = vmatprep.subr.mxu0 0.0
    %4163 = vmatpush2.msra.mxu0 0.0
    %4164 = vmatprep.subr.mxu0 0.0
    %4165 = vmatpush2.msra.mxu0 0.0
    %4166 = vmatprep.subr.mxu0 0.0
    %4167 = vmatpush2.msra.mxu0 0.0
    %4168 = vmatprep.subr.mxu0 0.0
    %4169 = vmatpush2.msra.mxu0 0.0
    %4170 = vmatprep.subr.mxu0 0.0
    %4171 = vmatpush2.msra.mxu0 0.0
    %4172 = vmatprep.subr.mxu0 0.0
    %4173 = vmatpush2.msra.mxu0 0.0
    %4174 = vmatprep.subr.mxu0 0.0
    %4175 = vmatpush2.msra.mxu0 0.0
    %4176 = vmatprep.subr.mxu0 0.0
    %4177 = vmatpush2.msra.mxu0 0.0
    %4178 = vmatprep.subr.mxu0 0.0
    %4179 = vmatpush2.msra.mxu0 0.0
    %4180 = vmatprep.subr.mxu0 0.0
    %4181 = vmatpush2.msra.mxu0 0.0
    %4182 = vmatprep.mubr.f32.mxu0 0.0
    %4183 = vmatmul.mubr.f32.gmra.mxu0 %v4117
    %v4184 = vpop.f32.mrf.mxu0
    %v4185 = vadd.f32 0.0, %v4184
    %v4186 = vpop.f32.mrf.mxu0
    %4187 = vdwg.mxu0
    %v4188 = vsel %vm957, %v4185, 0.0
    %v4189 = vrot.slane %v4188, 4
    %v4190 = vadd.f32 %v4188, %v4189
    %v4191 = vrot.slane %v4190, 2
    %v4192 = vadd.f32 %v4190, %v4191
    %v4193 = vrot.slane %v4192, 1
    %v4194 = vadd.f32 %v4192, %v4193
    %4195 = vmatprep.subr.mxu0 0.0
    %4196 = vmatpush1.msra.mxu0 %v2854
    %4197 = vmatprep.subr.mxu0 0.0
    %4198 = vmatpush1.msra.mxu0 %v2853
    %4199 = vmatprep.subr.mxu0 0.0
    %4200 = vmatpush1.msra.mxu0 %v2852
    %4201 = vmatprep.subr.mxu0 0.0
    %4202 = vmatpush1.msra.mxu0 %v2851
    %4203 = vmatprep.subr.mxu0 0.0
    %4204 = vmatpush1.msra.mxu0 %v2850
    %4205 = vmatprep.subr.mxu0 0.0
    %4206 = vmatpush1.msra.mxu0 %v2849
    %4207 = vmatprep.subr.mxu0 0.0
    %4208 = vmatpush1.msra.mxu0 %v2848
    %4209 = vmatprep.subr.mxu0 0.0
    %4210 = vmatpush1.msra.mxu0 %v2847
    %4211 = vmatprep.subr.mxu0 0.0
    %4212 = vmatpush1.msra.mxu0 %v2846
    %4213 = vmatprep.subr.mxu0 0.0
    %4214 = vmatpush1.msra.mxu0 %v2845
    %4215 = vmatprep.subr.mxu0 0.0
    %4216 = vmatpush1.msra.mxu0 %v2844
    %4217 = vmatprep.subr.mxu0 0.0
    %4218 = vmatpush1.msra.mxu0 %v2843
    %4219 = vmatprep.subr.mxu0 0.0
    %4220 = vmatpush1.msra.mxu0 %v2842
    %4221 = vmatprep.subr.mxu0 0.0
    %4222 = vmatpush1.msra.mxu0 %v2841
    %4223 = vmatprep.subr.mxu0 0.0
    %4224 = vmatpush1.msra.mxu0 %v2840
    %4225 = vmatprep.subr.mxu0 0.0
    %4226 = vmatpush1.msra.mxu0 %v2839
    %4227 = vmatprep.subr.mxu0 0.0
    %4228 = vmatpush2.msra.mxu0 0.0
    %4229 = vmatprep.subr.mxu0 0.0
    %4230 = vmatpush2.msra.mxu0 0.0
    %4231 = vmatprep.subr.mxu0 0.0
    %4232 = vmatpush2.msra.mxu0 0.0
    %4233 = vmatprep.subr.mxu0 0.0
    %4234 = vmatpush2.msra.mxu0 0.0
    %4235 = vmatprep.subr.mxu0 0.0
    %4236 = vmatpush2.msra.mxu0 0.0
    %4237 = vmatprep.subr.mxu0 0.0
    %4238 = vmatpush2.msra.mxu0 0.0
    %4239 = vmatprep.subr.mxu0 0.0
    %4240 = vmatpush2.msra.mxu0 0.0
    %4241 = vmatprep.subr.mxu0 0.0
    %4242 = vmatpush2.msra.mxu0 0.0
    %4243 = vmatprep.subr.mxu0 0.0
    %4244 = vmatpush2.msra.mxu0 0.0
    %4245 = vmatprep.subr.mxu0 0.0
    %4246 = vmatpush2.msra.mxu0 0.0
    %4247 = vmatprep.subr.mxu0 0.0
    %4248 = vmatpush2.msra.mxu0 0.0
    %4249 = vmatprep.subr.mxu0 0.0
    %4250 = vmatpush2.msra.mxu0 0.0
    %4251 = vmatprep.subr.mxu0 0.0
    %4252 = vmatpush2.msra.mxu0 0.0
    %4253 = vmatprep.subr.mxu0 0.0
    %4254 = vmatpush2.msra.mxu0 0.0
    %4255 = vmatprep.subr.mxu0 0.0
    %4256 = vmatpush2.msra.mxu0 0.0
    %4257 = vmatprep.subr.mxu0 0.0
    %4258 = vmatpush2.msra.mxu0 0.0
    %4259 = vmatprep.mubr.f32.mxu0 0.0
    %4260 = vmatmul.mubr.f32.gmra.mxu0 %v4194
    %v4261 = vpop.f32.mrf.mxu0
    %v4262 = vadd.f32 0.0, %v4261
    %v4263 = vpop.f32.mrf.mxu0
    %4264 = vdwg.mxu0
    %v4265 = vmul.f32 %v4262, 0.03125
    %v4266 = vmul.f32 %v4185, %v4185
    %v4267 = vsel %vm957, %v4266, 0.0
    %v4268 = vrot.slane %v4267, 4
    %v4269 = vadd.f32 %v4267, %v4268
    %v4270 = vrot.slane %v4269, 2
    %v4271 = vadd.f32 %v4269, %v4270
    %v4272 = vrot.slane %v4271, 1
    %v4273 = vadd.f32 %v4271, %v4272
    %4274 = vmatprep.subr.mxu0 0.0
    %4275 = vmatpush1.msra.mxu0 %v2854
    %4276 = vmatprep.subr.mxu0 0.0
    %4277 = vmatpush1.msra.mxu0 %v2853
    %4278 = vmatprep.subr.mxu0 0.0
    %4279 = vmatpush1.msra.mxu0 %v2852
    %4280 = vmatprep.subr.mxu0 0.0
    %4281 = vmatpush1.msra.mxu0 %v2851
    %4282 = vmatprep.subr.mxu0 0.0
    %4283 = vmatpush1.msra.mxu0 %v2850
    %4284 = vmatprep.subr.mxu0 0.0
    %4285 = vmatpush1.msra.mxu0 %v2849
    %4286 = vmatprep.subr.mxu0 0.0
    %4287 = vmatpush1.msra.mxu0 %v2848
    %4288 = vmatprep.subr.mxu0 0.0
    %4289 = vmatpush1.msra.mxu0 %v2847
    %4290 = vmatprep.subr.mxu0 0.0
    %4291 = vmatpush1.msra.mxu0 %v2846
    %4292 = vmatprep.subr.mxu0 0.0
    %4293 = vmatpush1.msra.mxu0 %v2845
    %4294 = vmatprep.subr.mxu0 0.0
    %4295 = vmatpush1.msra.mxu0 %v2844
    %4296 = vmatprep.subr.mxu0 0.0
    %4297 = vmatpush1.msra.mxu0 %v2843
    %4298 = vmatprep.subr.mxu0 0.0
    %4299 = vmatpush1.msra.mxu0 %v2842
    %4300 = vmatprep.subr.mxu0 0.0
    %4301 = vmatpush1.msra.mxu0 %v2841
    %4302 = vmatprep.subr.mxu0 0.0
    %4303 = vmatpush1.msra.mxu0 %v2840
    %4304 = vmatprep.subr.mxu0 0.0
    %4305 = vmatpush1.msra.mxu0 %v2839
    %4306 = vmatprep.subr.mxu0 0.0
    %4307 = vmatpush2.msra.mxu0 0.0
    %4308 = vmatprep.subr.mxu0 0.0
    %4309 = vmatpush2.msra.mxu0 0.0
    %4310 = vmatprep.subr.mxu0 0.0
    %4311 = vmatpush2.msra.mxu0 0.0
    %4312 = vmatprep.subr.mxu0 0.0
    %4313 = vmatpush2.msra.mxu0 0.0
    %4314 = vmatprep.subr.mxu0 0.0
    %4315 = vmatpush2.msra.mxu0 0.0
    %4316 = vmatprep.subr.mxu0 0.0
    %4317 = vmatpush2.msra.mxu0 0.0
    %4318 = vmatprep.subr.mxu0 0.0
    %4319 = vmatpush2.msra.mxu0 0.0
    %4320 = vmatprep.subr.mxu0 0.0
    %4321 = vmatpush2.msra.mxu0 0.0
    %4322 = vmatprep.subr.mxu0 0.0
    %4323 = vmatpush2.msra.mxu0 0.0
    %4324 = vmatprep.subr.mxu0 0.0
    %4325 = vmatpush2.msra.mxu0 0.0
    %4326 = vmatprep.subr.mxu0 0.0
    %4327 = vmatpush2.msra.mxu0 0.0
    %4328 = vmatprep.subr.mxu0 0.0
    %4329 = vmatpush2.msra.mxu0 0.0
    %4330 = vmatprep.subr.mxu0 0.0
    %4331 = vmatpush2.msra.mxu0 0.0
    %4332 = vmatprep.subr.mxu0 0.0
    %4333 = vmatpush2.msra.mxu0 0.0
    %4334 = vmatprep.subr.mxu0 0.0
    %4335 = vmatpush2.msra.mxu0 0.0
    %4336 = vmatprep.subr.mxu0 0.0
    %4337 = vmatpush2.msra.mxu0 0.0
    %4338 = vmatprep.mubr.f32.mxu0 0.0
    %4339 = vmatmul.mubr.f32.gmra.mxu0 %v4273
    %v4340 = vpop.f32.mrf.mxu0
    %v4341 = vadd.f32 0.0, %v4340
    %v4342 = vpop.f32.mrf.mxu0
    %4343 = vdwg.mxu0
    %v4344 = vmul.f32 %v4341, 0.03125
    %v4345 = vmul.f32 %v4265, %v4265
    %v4346 = vsub.f32 %v4344, %v4345
    %v4347 = vadd.f32 %v4346, 1e-05
    %v4348 = vrsqrt.pop %v4347
    %v4350 = vrot.slane %v4348, 6
    %v4352 = vmul.f32 %v3722, %v4350
    %v4354 = vrot.slane %v4352, 2
    %v4356 = vmul.f32 %v4265, %v4354
    %v4358 = vrot.slane %v4356, 5
    %v4360 = vsub.f32 %v3722, %v4358
    %v4361 = vsel %vm3127, %v4354, 0
    %4363 = vmatprep.subr.mxu0 0.0
    %4364 = vmatpush1.msra.mxu0 0.0
    %4365 = vmatprep.subr.mxu0 0.0
    %4366 = vmatpush1.msra.mxu0 0.0
    %4367 = vmatprep.subr.mxu0 0.0
    %4368 = vmatpush1.msra.mxu0 0.0
    %4369 = vmatprep.subr.mxu0 0.0
    %4370 = vmatpush1.msra.mxu0 0.0
    %4371 = vmatprep.subr.mxu0 0.0
    %4372 = vmatpush1.msra.mxu0 0.0
    %4373 = vmatprep.subr.mxu0 0.0
    %4374 = vmatpush1.msra.mxu0 0.0
    %4375 = vmatprep.subr.mxu0 0.0
    %4376 = vmatpush1.msra.mxu0 0.0
    %4377 = vmatprep.subr.mxu0 0.0
    %4378 = vmatpush1.msra.mxu0 0.0
    %4379 = vmatprep.subr.mxu0 0.0
    %4380 = vmatpush1.msra.mxu0 0.0
    %4381 = vmatprep.subr.mxu0 0.0
    %4382 = vmatpush1.msra.mxu0 0.0
    %4383 = vmatprep.subr.mxu0 0.0
    %4384 = vmatpush1.msra.mxu0 0.0
    %4385 = vmatprep.subr.mxu0 0.0
    %4386 = vmatpush1.msra.mxu0 0.0
    %4387 = vmatprep.subr.mxu0 0.0
    %4388 = vmatpush1.msra.mxu0 0.0
    %4389 = vmatprep.subr.mxu0 0.0
    %4390 = vmatpush1.msra.mxu0 0.0
    %4391 = vmatprep.subr.mxu0 0.0
    %4392 = vmatpush1.msra.mxu0 0.0
    %4393 = vmatprep.subr.mxu0 0.0
    %4394 = vmatpush1.msra.mxu0 %v2855
    %4395 = vmatprep.subr.mxu0 0.0
    %4396 = vmatpush2.msra.mxu0 0.0
    %4397 = vmatprep.subr.mxu0 0.0
    %4398 = vmatpush2.msra.mxu0 0.0
    %4399 = vmatprep.subr.mxu0 0.0
    %4400 = vmatpush2.msra.mxu0 0.0
    %4401 = vmatprep.subr.mxu0 0.0
    %4402 = vmatpush2.msra.mxu0 0.0
    %4403 = vmatprep.subr.mxu0 0.0
    %4404 = vmatpush2.msra.mxu0 0.0
    %4405 = vmatprep.subr.mxu0 0.0
    %4406 = vmatpush2.msra.mxu0 0.0
    %4407 = vmatprep.subr.mxu0 0.0
    %4408 = vmatpush2.msra.mxu0 0.0
    %4409 = vmatprep.subr.mxu0 0.0
    %4410 = vmatpush2.msra.mxu0 0.0
    %4411 = vmatprep.subr.mxu0 0.0
    %4412 = vmatpush2.msra.mxu0 0.0
    %4413 = vmatprep.subr.mxu0 0.0
    %4414 = vmatpush2.msra.mxu0 0.0
    %4415 = vmatprep.subr.mxu0 0.0
    %4416 = vmatpush2.msra.mxu0 0.0
    %4417 = vmatprep.subr.mxu0 0.0
    %4418 = vmatpush2.msra.mxu0 0.0
    %4419 = vmatprep.subr.mxu0 0.0
    %4420 = vmatpush2.msra.mxu0 0.0
    %4421 = vmatprep.subr.mxu0 0.0
    %4422 = vmatpush2.msra.mxu0 0.0
    %4423 = vmatprep.subr.mxu0 0.0
    %4424 = vmatpush2.msra.mxu0 0.0
    %4425 = vmatprep.subr.mxu0 0.0
    %4426 = vmatpush2.msra.mxu0 0.0
    %4427 = vmatprep.mubr.f32.mxu0 0.0
    %4428 = vmatmul.mubr.f32.gmra.mxu0 %v4361
    %v4429 = vpop.f32.mrf.mxu0
    %v4430 = vadd.f32 0.0, %v4429
    %v4431 = vpop.f32.mrf.mxu0
    %4432 = vdwg.mxu0
    %v4434 = vrot.slane %v4360, 3
    %v4435 = vsel %vm3127, %v4434, 0
    %4437 = vmatprep.subr.mxu0 0.0
    %4438 = vmatpush1.msra.mxu0 0.0
    %4439 = vmatprep.subr.mxu0 0.0
    %4440 = vmatpush1.msra.mxu0 0.0
    %4441 = vmatprep.subr.mxu0 0.0
    %4442 = vmatpush1.msra.mxu0 0.0
    %4443 = vmatprep.subr.mxu0 0.0
    %4444 = vmatpush1.msra.mxu0 0.0
    %4445 = vmatprep.subr.mxu0 0.0
    %4446 = vmatpush1.msra.mxu0 0.0
    %4447 = vmatprep.subr.mxu0 0.0
    %4448 = vmatpush1.msra.mxu0 0.0
    %4449 = vmatprep.subr.mxu0 0.0
    %4450 = vmatpush1.msra.mxu0 0.0
    %4451 = vmatprep.subr.mxu0 0.0
    %4452 = vmatpush1.msra.mxu0 0.0
    %4453 = vmatprep.subr.mxu0 0.0
    %4454 = vmatpush1.msra.mxu0 0.0
    %4455 = vmatprep.subr.mxu0 0.0
    %4456 = vmatpush1.msra.mxu0 0.0
    %4457 = vmatprep.subr.mxu0 0.0
    %4458 = vmatpush1.msra.mxu0 0.0
    %4459 = vmatprep.subr.mxu0 0.0
    %4460 = vmatpush1.msra.mxu0 0.0
    %4461 = vmatprep.subr.mxu0 0.0
    %4462 = vmatpush1.msra.mxu0 0.0
    %4463 = vmatprep.subr.mxu0 0.0
    %4464 = vmatpush1.msra.mxu0 0.0
    %4465 = vmatprep.subr.mxu0 0.0
    %4466 = vmatpush1.msra.mxu0 0.0
    %4467 = vmatprep.subr.mxu0 0.0
    %4468 = vmatpush1.msra.mxu0 %v2855
    %4469 = vmatprep.subr.mxu0 0.0
    %4470 = vmatpush2.msra.mxu0 0.0
    %4471 = vmatprep.subr.mxu0 0.0
    %4472 = vmatpush2.msra.mxu0 0.0
    %4473 = vmatprep.subr.mxu0 0.0
    %4474 = vmatpush2.msra.mxu0 0.0
    %4475 = vmatprep.subr.mxu0 0.0
    %4476 = vmatpush2.msra.mxu0 0.0
    %4477 = vmatprep.subr.mxu0 0.0
    %4478 = vmatpush2.msra.mxu0 0.0
    %4479 = vmatprep.subr.mxu0 0.0
    %4480 = vmatpush2.msra.mxu0 0.0
    %4481 = vmatprep.subr.mxu0 0.0
    %4482 = vmatpush2.msra.mxu0 0.0
    %4483 = vmatprep.subr.mxu0 0.0
    %4484 = vmatpush2.msra.mxu0 0.0
    %4485 = vmatprep.subr.mxu0 0.0
    %4486 = vmatpush2.msra.mxu0 0.0
    %4487 = vmatprep.subr.mxu0 0.0
    %4488 = vmatpush2.msra.mxu0 0.0
    %4489 = vmatprep.subr.mxu0 0.0
    %4490 = vmatpush2.msra.mxu0 0.0
    %4491 = vmatprep.subr.mxu0 0.0
    %4492 = vmatpush2.msra.mxu0 0.0
    %4493 = vmatprep.subr.mxu0 0.0
    %4494 = vmatpush2.msra.mxu0 0.0
    %4495 = vmatprep.subr.mxu0 0.0
    %4496 = vmatpush2.msra.mxu0 0.0
    %4497 = vmatprep.subr.mxu0 0.0
    %4498 = vmatpush2.msra.mxu0 0.0
    %4499 = vmatprep.subr.mxu0 0.0
    %4500 = vmatpush2.msra.mxu0 0.0
    %4501 = vmatprep.mubr.f32.mxu0 0.0
    %4502 = vmatmul.mubr.f32.gmra.mxu0 %v4435
    %v4503 = vpop.f32.mrf.mxu0
    %v4504 = vadd.f32 0.0, %v4503
    %v4505 = vpop.f32.mrf.mxu0
    %4506 = vdwg.mxu0
    %v4507 = vlaneseq
    %v4508 = vshrl.u32 %v4507, 7
    %v4509 = vsub.s32 0, %v4508
    %v4510 = vrot.slane %v4430, %v4509
    %v4511 = vmul.f32 %v4185, %v4510
    %v4512 = vlaneseq
    %v4513 = vshrl.u32 %v4512, 7
    %v4514 = vsub.s32 0, %v4513
    %v4515 = vrot.slane %v4504, %v4514
    %v4516 = vadd.f32 %v4511, %v4515
    %v4517 = vadd.f32 %v4516, %v3686
    %v4518 = vmax.f32 %v4517, 0.0
    %s4519 = scalar_lea.vmem %s7, 512
    %v4520 = vld [vmem:[%s4519] sm:$0xff]
    %v4521 = vld [vmem:[%s4519 + $0x8] sm:$0xff]
    %v4522 = vld [vmem:[%s4519 + $0x10] sm:$0xff]
    %v4523 = vld [vmem:[%s4519 + $0x18] sm:$0xff]
    %v4524 = vld [vmem:[%s4519 + $0x20] sm:$0xff]
    %v4525 = vld [vmem:[%s4519 + $0x28] sm:$0xff]
    %v4526 = vld [vmem:[%s4519 + $0x30] sm:$0xff]
    %v4527 = vld [vmem:[%s4519 + $0x38] sm:$0xff]
    %v4528 = vld [vmem:[%s4519 + $0x40] sm:$0xff]
    %v4529 = vld [vmem:[%s4519 + $0x48] sm:$0xff]
    %v4530 = vld [vmem:[%s4519 + $0x50] sm:$0xff]
    %v4531 = vld [vmem:[%s4519 + $0x58] sm:$0xff]
    %v4532 = vld [vmem:[%s4519 + $0x60] sm:$0xff]
    %v4533 = vld [vmem:[%s4519 + $0x68] sm:$0xff]
    %v4534 = vld [vmem:[%s4519 + $0x70] sm:$0xff]
    %v4535 = vld [vmem:[%s4519 + $0x78] sm:$0xff]
    %s4536 = scalar_lea.vmem %s7, 640
    %v4537 = vld [vmem:[%s4536] sm:$0xff]
    %v4538 = vld [vmem:[%s4536 + $0x8] sm:$0xff]
    %v4539 = vld [vmem:[%s4536 + $0x10] sm:$0xff]
    %v4540 = vld [vmem:[%s4536 + $0x18] sm:$0xff]
    %v4541 = vld [vmem:[%s4536 + $0x20] sm:$0xff]
    %v4542 = vld [vmem:[%s4536 + $0x28] sm:$0xff]
    %v4543 = vld [vmem:[%s4536 + $0x30] sm:$0xff]
    %v4544 = vld [vmem:[%s4536 + $0x38] sm:$0xff]
    %v4545 = vld [vmem:[%s4536 + $0x40] sm:$0xff]
    %v4546 = vld [vmem:[%s4536 + $0x48] sm:$0xff]
    %v4547 = vld [vmem:[%s4536 + $0x50] sm:$0xff]
    %v4548 = vld [vmem:[%s4536 + $0x58] sm:$0xff]
    %v4549 = vld [vmem:[%s4536 + $0x60] sm:$0xff]
    %v4550 = vld [vmem:[%s4536 + $0x68] sm:$0xff]
    %v4551 = vld [vmem:[%s4536 + $0x70] sm:$0xff]
    %v4552 = vld [vmem:[%s4536 + $0x78] sm:$0xff]
    %s4553 = scalar_lea.vmem %s8, 8
    %v4554 = vld [vmem:[%s4553] sm:$0xf]
    %4555 = vmatprep.subr.mxu0 0.0
    %4556 = vmatpush1.msra.mxu0 %v4535
    %4557 = vmatprep.subr.mxu0 0.0
    %4558 = vmatpush1.msra.mxu0 %v4534
    %4559 = vmatprep.subr.mxu0 0.0
    %4560 = vmatpush1.msra.mxu0 %v4533
    %4561 = vmatprep.subr.mxu0 0.0
    %4562 = vmatpush1.msra.mxu0 %v4532
    %4563 = vmatprep.subr.mxu0 0.0
    %4564 = vmatpush1.msra.mxu0 %v4531
    %4565 = vmatprep.subr.mxu0 0.0
    %4566 = vmatpush1.msra.mxu0 %v4530
    %4567 = vmatprep.subr.mxu0 0.0
    %4568 = vmatpush1.msra.mxu0 %v4529
    %4569 = vmatprep.subr.mxu0 0.0
    %4570 = vmatpush1.msra.mxu0 %v4528
    %4571 = vmatprep.subr.mxu0 0.0
    %4572 = vmatpush1.msra.mxu0 %v4527
    %4573 = vmatprep.subr.mxu0 0.0
    %4574 = vmatpush1.msra.mxu0 %v4526
    %4575 = vmatprep.subr.mxu0 0.0
    %4576 = vmatpush1.msra.mxu0 %v4525
    %4577 = vmatprep.subr.mxu0 0.0
    %4578 = vmatpush1.msra.mxu0 %v4524
    %4579 = vmatprep.subr.mxu0 0.0
    %4580 = vmatpush1.msra.mxu0 %v4523
    %4581 = vmatprep.subr.mxu0 0.0
    %4582 = vmatpush1.msra.mxu0 %v4522
    %4583 = vmatprep.subr.mxu0 0.0
    %4584 = vmatpush1.msra.mxu0 %v4521
    %4585 = vmatprep.subr.mxu0 0.0
    %4586 = vmatpush1.msra.mxu0 %v4520
    %4587 = vmatprep.subr.mxu0 0.0
    %4588 = vmatpush2.msra.mxu0 0.0
    %4589 = vmatprep.subr.mxu0 0.0
    %4590 = vmatpush2.msra.mxu0 0.0
    %4591 = vmatprep.subr.mxu0 0.0
    %4592 = vmatpush2.msra.mxu0 0.0
    %4593 = vmatprep.subr.mxu0 0.0
    %4594 = vmatpush2.msra.mxu0 0.0
    %4595 = vmatprep.subr.mxu0 0.0
    %4596 = vmatpush2.msra.mxu0 0.0
    %4597 = vmatprep.subr.mxu0 0.0
    %4598 = vmatpush2.msra.mxu0 0.0
    %4599 = vmatprep.subr.mxu0 0.0
    %4600 = vmatpush2.msra.mxu0 0.0
    %4601 = vmatprep.subr.mxu0 0.0
    %4602 = vmatpush2.msra.mxu0 0.0
    %4603 = vmatprep.subr.mxu0 0.0
    %4604 = vmatpush2.msra.mxu0 0.0
    %4605 = vmatprep.subr.mxu0 0.0
    %4606 = vmatpush2.msra.mxu0 0.0
    %4607 = vmatprep.subr.mxu0 0.0
    %4608 = vmatpush2.msra.mxu0 0.0
    %4609 = vmatprep.subr.mxu0 0.0
    %4610 = vmatpush2.msra.mxu0 0.0
    %4611 = vmatprep.subr.mxu0 0.0
    %4612 = vmatpush2.msra.mxu0 0.0
    %4613 = vmatprep.subr.mxu0 0.0
    %4614 = vmatpush2.msra.mxu0 0.0
    %4615 = vmatprep.subr.mxu0 0.0
    %4616 = vmatpush2.msra.mxu0 0.0
    %4617 = vmatprep.subr.mxu0 0.0
    %4618 = vmatpush2.msra.mxu0 0.0
    %4619 = vmatprep.mubr.f32.mxu0 0.0
    %4620 = vmatmul.mubr.f32.gmra.mxu0 %v4518
    %v4621 = vpop.f32.mrf.mxu0
    %v4622 = vadd.f32 0.0, %v4621
    %v4623 = vpop.f32.mrf.mxu0
    %4624 = vdwg.mxu0
    %v4625 = vsel %vm957, %v4622, 0.0
    %v4626 = vrot.slane %v4625, 4
    %v4627 = vadd.f32 %v4625, %v4626
    %v4628 = vrot.slane %v4627, 2
    %v4629 = vadd.f32 %v4627, %v4628
    %v4630 = vrot.slane %v4629, 1
    %v4631 = vadd.f32 %v4629, %v4630
    %4632 = vmatprep.subr.mxu0 0.0
    %4633 = vmatpush1.msra.mxu0 %v2854
    %4634 = vmatprep.subr.mxu0 0.0
    %4635 = vmatpush1.msra.mxu0 %v2853
    %4636 = vmatprep.subr.mxu0 0.0
    %4637 = vmatpush1.msra.mxu0 %v2852
    %4638 = vmatprep.subr.mxu0 0.0
    %4639 = vmatpush1.msra.mxu0 %v2851
    %4640 = vmatprep.subr.mxu0 0.0
    %4641 = vmatpush1.msra.mxu0 %v2850
    %4642 = vmatprep.subr.mxu0 0.0
    %4643 = vmatpush1.msra.mxu0 %v2849
    %4644 = vmatprep.subr.mxu0 0.0
    %4645 = vmatpush1.msra.mxu0 %v2848
    %4646 = vmatprep.subr.mxu0 0.0
    %4647 = vmatpush1.msra.mxu0 %v2847
    %4648 = vmatprep.subr.mxu0 0.0
    %4649 = vmatpush1.msra.mxu0 %v2846
    %4650 = vmatprep.subr.mxu0 0.0
    %4651 = vmatpush1.msra.mxu0 %v2845
    %4652 = vmatprep.subr.mxu0 0.0
    %4653 = vmatpush1.msra.mxu0 %v2844
    %4654 = vmatprep.subr.mxu0 0.0
    %4655 = vmatpush1.msra.mxu0 %v2843
    %4656 = vmatprep.subr.mxu0 0.0
    %4657 = vmatpush1.msra.mxu0 %v2842
    %4658 = vmatprep.subr.mxu0 0.0
    %4659 = vmatpush1.msra.mxu0 %v2841
    %4660 = vmatprep.subr.mxu0 0.0
    %4661 = vmatpush1.msra.mxu0 %v2840
    %4662 = vmatprep.subr.mxu0 0.0
    %4663 = vmatpush1.msra.mxu0 %v2839
    %4664 = vmatprep.subr.mxu0 0.0
    %4665 = vmatpush2.msra.mxu0 0.0
    %4666 = vmatprep.subr.mxu0 0.0
    %4667 = vmatpush2.msra.mxu0 0.0
    %4668 = vmatprep.subr.mxu0 0.0
    %4669 = vmatpush2.msra.mxu0 0.0
    %4670 = vmatprep.subr.mxu0 0.0
    %4671 = vmatpush2.msra.mxu0 0.0
    %4672 = vmatprep.subr.mxu0 0.0
    %4673 = vmatpush2.msra.mxu0 0.0
    %4674 = vmatprep.subr.mxu0 0.0
    %4675 = vmatpush2.msra.mxu0 0.0
    %4676 = vmatprep.subr.mxu0 0.0
    %4677 = vmatpush2.msra.mxu0 0.0
    %4678 = vmatprep.subr.mxu0 0.0
    %4679 = vmatpush2.msra.mxu0 0.0
    %4680 = vmatprep.subr.mxu0 0.0
    %4681 = vmatpush2.msra.mxu0 0.0
    %4682 = vmatprep.subr.mxu0 0.0
    %4683 = vmatpush2.msra.mxu0 0.0
    %4684 = vmatprep.subr.mxu0 0.0
    %4685 = vmatpush2.msra.mxu0 0.0
    %4686 = vmatprep.subr.mxu0 0.0
    %4687 = vmatpush2.msra.mxu0 0.0
    %4688 = vmatprep.subr.mxu0 0.0
    %4689 = vmatpush2.msra.mxu0 0.0
    %4690 = vmatprep.subr.mxu0 0.0
    %4691 = vmatpush2.msra.mxu0 0.0
    %4692 = vmatprep.subr.mxu0 0.0
    %4693 = vmatpush2.msra.mxu0 0.0
    %4694 = vmatprep.subr.mxu0 0.0
    %4695 = vmatpush2.msra.mxu0 0.0
    %4696 = vmatprep.mubr.f32.mxu0 0.0
    %4697 = vmatmul.mubr.f32.gmra.mxu0 %v4631
    %v4698 = vpop.f32.mrf.mxu0
    %v4699 = vadd.f32 0.0, %v4698
    %v4700 = vpop.f32.mrf.mxu0
    %4701 = vdwg.mxu0
    %v4702 = vmul.f32 %v4699, 0.03125
    %v4703 = vmul.f32 %v4622, %v4622
    %v4704 = vsel %vm957, %v4703, 0.0
    %v4705 = vrot.slane %v4704, 4
    %v4706 = vadd.f32 %v4704, %v4705
    %v4707 = vrot.slane %v4706, 2
    %v4708 = vadd.f32 %v4706, %v4707
    %v4709 = vrot.slane %v4708, 1
    %v4710 = vadd.f32 %v4708, %v4709
    %4711 = vmatprep.subr.mxu0 0.0
    %4712 = vmatpush1.msra.mxu0 %v2854
    %4713 = vmatprep.subr.mxu0 0.0
    %4714 = vmatpush1.msra.mxu0 %v2853
    %4715 = vmatprep.subr.mxu0 0.0
    %4716 = vmatpush1.msra.mxu0 %v2852
    %4717 = vmatprep.subr.mxu0 0.0
    %4718 = vmatpush1.msra.mxu0 %v2851
    %4719 = vmatprep.subr.mxu0 0.0
    %4720 = vmatpush1.msra.mxu0 %v2850
    %4721 = vmatprep.subr.mxu0 0.0
    %4722 = vmatpush1.msra.mxu0 %v2849
    %4723 = vmatprep.subr.mxu0 0.0
    %4724 = vmatpush1.msra.mxu0 %v2848
    %4725 = vmatprep.subr.mxu0 0.0
    %4726 = vmatpush1.msra.mxu0 %v2847
    %4727 = vmatprep.subr.mxu0 0.0
    %4728 = vmatpush1.msra.mxu0 %v2846
    %4729 = vmatprep.subr.mxu0 0.0
    %4730 = vmatpush1.msra.mxu0 %v2845
    %4731 = vmatprep.subr.mxu0 0.0
    %4732 = vmatpush1.msra.mxu0 %v2844
    %4733 = vmatprep.subr.mxu0 0.0
    %4734 = vmatpush1.msra.mxu0 %v2843
    %4735 = vmatprep.subr.mxu0 0.0
    %4736 = vmatpush1.msra.mxu0 %v2842
    %4737 = vmatprep.subr.mxu0 0.0
    %4738 = vmatpush1.msra.mxu0 %v2841
    %4739 = vmatprep.subr.mxu0 0.0
    %4740 = vmatpush1.msra.mxu0 %v2840
    %4741 = vmatprep.subr.mxu0 0.0
    %4742 = vmatpush1.msra.mxu0 %v2839
    %4743 = vmatprep.subr.mxu0 0.0
    %4744 = vmatpush2.msra.mxu0 0.0
    %4745 = vmatprep.subr.mxu0 0.0
    %4746 = vmatpush2.msra.mxu0 0.0
    %4747 = vmatprep.subr.mxu0 0.0
    %4748 = vmatpush2.msra.mxu0 0.0
    %4749 = vmatprep.subr.mxu0 0.0
    %4750 = vmatpush2.msra.mxu0 0.0
    %4751 = vmatprep.subr.mxu0 0.0
    %4752 = vmatpush2.msra.mxu0 0.0
    %4753 = vmatprep.subr.mxu0 0.0
    %4754 = vmatpush2.msra.mxu0 0.0
    %4755 = vmatprep.subr.mxu0 0.0
    %4756 = vmatpush2.msra.mxu0 0.0
    %4757 = vmatprep.subr.mxu0 0.0
    %4758 = vmatpush2.msra.mxu0 0.0
    %4759 = vmatprep.subr.mxu0 0.0
    %4760 = vmatpush2.msra.mxu0 0.0
    %4761 = vmatprep.subr.mxu0 0.0
    %4762 = vmatpush2.msra.mxu0 0.0
    %4763 = vmatprep.subr.mxu0 0.0
    %4764 = vmatpush2.msra.mxu0 0.0
    %4765 = vmatprep.subr.mxu0 0.0
    %4766 = vmatpush2.msra.mxu0 0.0
    %4767 = vmatprep.subr.mxu0 0.0
    %4768 = vmatpush2.msra.mxu0 0.0
    %4769 = vmatprep.subr.mxu0 0.0
    %4770 = vmatpush2.msra.mxu0 0.0
    %4771 = vmatprep.subr.mxu0 0.0
    %4772 = vmatpush2.msra.mxu0 0.0
    %4773 = vmatprep.subr.mxu0 0.0
    %4774 = vmatpush2.msra.mxu0 0.0
    %4775 = vmatprep.mubr.f32.mxu0 0.0
    %4776 = vmatmul.mubr.f32.gmra.mxu0 %v4710
    %v4777 = vpop.f32.mrf.mxu0
    %v4778 = vadd.f32 0.0, %v4777
    %v4779 = vpop.f32.mrf.mxu0
    %4780 = vdwg.mxu0
    %v4781 = vmul.f32 %v4778, 0.03125
    %v4782 = vmul.f32 %v4702, %v4702
    %v4783 = vsub.f32 %v4781, %v4782
    %v4784 = vadd.f32 %v4783, 1e-05
    %v4785 = vrsqrt.pop %v4784
    %v4786 = vmul.f32 %v4554, %v4785
    %v4787 = vmul.f32 %v4702, %v4786
    %v4789 = vrot.slane %v4787, 7
    %v4791 = vsub.f32 %v4554, %v4789
    %v4793 = vsel %vm3127, %v4786, 0
    %4795 = vmatprep.subr.mxu0 0.0
    %4796 = vmatpush1.msra.mxu0 0.0
    %4797 = vmatprep.subr.mxu0 0.0
    %4798 = vmatpush1.msra.mxu0 0.0
    %4799 = vmatprep.subr.mxu0 0.0
    %4800 = vmatpush1.msra.mxu0 0.0
    %4801 = vmatprep.subr.mxu0 0.0
    %4802 = vmatpush1.msra.mxu0 0.0
    %4803 = vmatprep.subr.mxu0 0.0
    %4804 = vmatpush1.msra.mxu0 0.0
    %4805 = vmatprep.subr.mxu0 0.0
    %4806 = vmatpush1.msra.mxu0 0.0
    %4807 = vmatprep.subr.mxu0 0.0
    %4808 = vmatpush1.msra.mxu0 0.0
    %4809 = vmatprep.subr.mxu0 0.0
    %4810 = vmatpush1.msra.mxu0 0.0
    %4811 = vmatprep.subr.mxu0 0.0
    %4812 = vmatpush1.msra.mxu0 0.0
    %4813 = vmatprep.subr.mxu0 0.0
    %4814 = vmatpush1.msra.mxu0 0.0
    %4815 = vmatprep.subr.mxu0 0.0
    %4816 = vmatpush1.msra.mxu0 0.0
    %4817 = vmatprep.subr.mxu0 0.0
    %4818 = vmatpush1.msra.mxu0 0.0
    %4819 = vmatprep.subr.mxu0 0.0
    %4820 = vmatpush1.msra.mxu0 0.0
    %4821 = vmatprep.subr.mxu0 0.0
    %4822 = vmatpush1.msra.mxu0 0.0
    %4823 = vmatprep.subr.mxu0 0.0
    %4824 = vmatpush1.msra.mxu0 0.0
    %4825 = vmatprep.subr.mxu0 0.0
    %4826 = vmatpush1.msra.mxu0 %v2855
    %4827 = vmatprep.subr.mxu0 0.0
    %4828 = vmatpush2.msra.mxu0 0.0
    %4829 = vmatprep.subr.mxu0 0.0
    %4830 = vmatpush2.msra.mxu0 0.0
    %4831 = vmatprep.subr.mxu0 0.0
    %4832 = vmatpush2.msra.mxu0 0.0
    %4833 = vmatprep.subr.mxu0 0.0
    %4834 = vmatpush2.msra.mxu0 0.0
    %4835 = vmatprep.subr.mxu0 0.0
    %4836 = vmatpush2.msra.mxu0 0.0
    %4837 = vmatprep.subr.mxu0 0.0
    %4838 = vmatpush2.msra.mxu0 0.0
    %4839 = vmatprep.subr.mxu0 0.0
    %4840 = vmatpush2.msra.mxu0 0.0
    %4841 = vmatprep.subr.mxu0 0.0
    %4842 = vmatpush2.msra.mxu0 0.0
    %4843 = vmatprep.subr.mxu0 0.0
    %4844 = vmatpush2.msra.mxu0 0.0
    %4845 = vmatprep.subr.mxu0 0.0
    %4846 = vmatpush2.msra.mxu0 0.0
    %4847 = vmatprep.subr.mxu0 0.0
    %4848 = vmatpush2.msra.mxu0 0.0
    %4849 = vmatprep.subr.mxu0 0.0
    %4850 = vmatpush2.msra.mxu0 0.0
    %4851 = vmatprep.subr.mxu0 0.0
    %4852 = vmatpush2.msra.mxu0 0.0
    %4853 = vmatprep.subr.mxu0 0.0
    %4854 = vmatpush2.msra.mxu0 0.0
    %4855 = vmatprep.subr.mxu0 0.0
    %4856 = vmatpush2.msra.mxu0 0.0
    %4857 = vmatprep.subr.mxu0 0.0
    %4858 = vmatpush2.msra.mxu0 0.0
    %4859 = vmatprep.mubr.f32.mxu0 0.0
    %4860 = vmatmul.mubr.f32.gmra.mxu0 %v4793
    %v4861 = vpop.f32.mrf.mxu0
    %v4862 = vadd.f32 0.0, %v4861
    %v4863 = vpop.f32.mrf.mxu0
    %4864 = vdwg.mxu0
    %v4866 = vrot.slane %v4791, 1
    %v4867 = vsel %vm3127, %v4866, 0
    %4869 = vmatprep.subr.mxu0 0.0
    %4870 = vmatpush1.msra.mxu0 0.0
    %4871 = vmatprep.subr.mxu0 0.0
    %4872 = vmatpush1.msra.mxu0 0.0
    %4873 = vmatprep.subr.mxu0 0.0
    %4874 = vmatpush1.msra.mxu0 0.0
    %4875 = vmatprep.subr.mxu0 0.0
    %4876 = vmatpush1.msra.mxu0 0.0
    %4877 = vmatprep.subr.mxu0 0.0
    %4878 = vmatpush1.msra.mxu0 0.0
    %4879 = vmatprep.subr.mxu0 0.0
    %4880 = vmatpush1.msra.mxu0 0.0
    %4881 = vmatprep.subr.mxu0 0.0
    %4882 = vmatpush1.msra.mxu0 0.0
    %4883 = vmatprep.subr.mxu0 0.0
    %4884 = vmatpush1.msra.mxu0 0.0
    %4885 = vmatprep.subr.mxu0 0.0
    %4886 = vmatpush1.msra.mxu0 0.0
    %4887 = vmatprep.subr.mxu0 0.0
    %4888 = vmatpush1.msra.mxu0 0.0
    %4889 = vmatprep.subr.mxu0 0.0
    %4890 = vmatpush1.msra.mxu0 0.0
    %4891 = vmatprep.subr.mxu0 0.0
    %4892 = vmatpush1.msra.mxu0 0.0
    %4893 = vmatprep.subr.mxu0 0.0
    %4894 = vmatpush1.msra.mxu0 0.0
    %4895 = vmatprep.subr.mxu0 0.0
    %4896 = vmatpush1.msra.mxu0 0.0
    %4897 = vmatprep.subr.mxu0 0.0
    %4898 = vmatpush1.msra.mxu0 0.0
    %4899 = vmatprep.subr.mxu0 0.0
    %4900 = vmatpush1.msra.mxu0 %v2855
    %4901 = vmatprep.subr.mxu0 0.0
    %4902 = vmatpush2.msra.mxu0 0.0
    %4903 = vmatprep.subr.mxu0 0.0
    %4904 = vmatpush2.msra.mxu0 0.0
    %4905 = vmatprep.subr.mxu0 0.0
    %4906 = vmatpush2.msra.mxu0 0.0
    %4907 = vmatprep.subr.mxu0 0.0
    %4908 = vmatpush2.msra.mxu0 0.0
    %4909 = vmatprep.subr.mxu0 0.0
    %4910 = vmatpush2.msra.mxu0 0.0
    %4911 = vmatprep.subr.mxu0 0.0
    %4912 = vmatpush2.msra.mxu0 0.0
    %4913 = vmatprep.subr.mxu0 0.0
    %4914 = vmatpush2.msra.mxu0 0.0
    %4915 = vmatprep.subr.mxu0 0.0
    %4916 = vmatpush2.msra.mxu0 0.0
    %4917 = vmatprep.subr.mxu0 0.0
    %4918 = vmatpush2.msra.mxu0 0.0
    %4919 = vmatprep.subr.mxu0 0.0
    %4920 = vmatpush2.msra.mxu0 0.0
    %4921 = vmatprep.subr.mxu0 0.0
    %4922 = vmatpush2.msra.mxu0 0.0
    %4923 = vmatprep.subr.mxu0 0.0
    %4924 = vmatpush2.msra.mxu0 0.0
    %4925 = vmatprep.subr.mxu0 0.0
    %4926 = vmatpush2.msra.mxu0 0.0
    %4927 = vmatprep.subr.mxu0 0.0
    %4928 = vmatpush2.msra.mxu0 0.0
    %4929 = vmatprep.subr.mxu0 0.0
    %4930 = vmatpush2.msra.mxu0 0.0
    %4931 = vmatprep.subr.mxu0 0.0
    %4932 = vmatpush2.msra.mxu0 0.0
    %4933 = vmatprep.mubr.f32.mxu0 0.0
    %4934 = vmatmul.mubr.f32.gmra.mxu0 %v4867
    %v4935 = vpop.f32.mrf.mxu0
    %v4936 = vadd.f32 0.0, %v4935
    %v4937 = vpop.f32.mrf.mxu0
    %4938 = vdwg.mxu0
    %v4939 = vlaneseq
    %v4940 = vshrl.u32 %v4939, 7
    %v4941 = vsub.s32 0, %v4940
    %v4942 = vrot.slane %v4862, %v4941
    %v4943 = vmul.f32 %v4622, %v4942
    %v4944 = vlaneseq
    %v4945 = vshrl.u32 %v4944, 7
    %v4946 = vsub.s32 0, %v4945
    %v4947 = vrot.slane %v4936, %v4946
    %v4948 = vadd.f32 %v4943, %v4947
    %v4949 = vmax.f32 %v4948, 0.0
    %4950 = vmatprep.subr.mxu0 0.0
    %4951 = vmatpush1.msra.mxu0 %v4552
    %4952 = vmatprep.subr.mxu0 0.0
    %4953 = vmatpush1.msra.mxu0 %v4551
    %4954 = vmatprep.subr.mxu0 0.0
    %4955 = vmatpush1.msra.mxu0 %v4550
    %4956 = vmatprep.subr.mxu0 0.0
    %4957 = vmatpush1.msra.mxu0 %v4549
    %4958 = vmatprep.subr.mxu0 0.0
    %4959 = vmatpush1.msra.mxu0 %v4548
    %4960 = vmatprep.subr.mxu0 0.0
    %4961 = vmatpush1.msra.mxu0 %v4547
    %4962 = vmatprep.subr.mxu0 0.0
    %4963 = vmatpush1.msra.mxu0 %v4546
    %4964 = vmatprep.subr.mxu0 0.0
    %4965 = vmatpush1.msra.mxu0 %v4545
    %4966 = vmatprep.subr.mxu0 0.0
    %4967 = vmatpush1.msra.mxu0 %v4544
    %4968 = vmatprep.subr.mxu0 0.0
    %4969 = vmatpush1.msra.mxu0 %v4543
    %4970 = vmatprep.subr.mxu0 0.0
    %4971 = vmatpush1.msra.mxu0 %v4542
    %4972 = vmatprep.subr.mxu0 0.0
    %4973 = vmatpush1.msra.mxu0 %v4541
    %4974 = vmatprep.subr.mxu0 0.0
    %4975 = vmatpush1.msra.mxu0 %v4540
    %4976 = vmatprep.subr.mxu0 0.0
    %4977 = vmatpush1.msra.mxu0 %v4539
    %4978 = vmatprep.subr.mxu0 0.0
    %4979 = vmatpush1.msra.mxu0 %v4538
    %4980 = vmatprep.subr.mxu0 0.0
    %4981 = vmatpush1.msra.mxu0 %v4537
    %4982 = vmatprep.subr.mxu0 0.0
    %4983 = vmatpush2.msra.mxu0 0.0
    %4984 = vmatprep.subr.mxu0 0.0
    %4985 = vmatpush2.msra.mxu0 0.0
    %4986 = vmatprep.subr.mxu0 0.0
    %4987 = vmatpush2.msra.mxu0 0.0
    %4988 = vmatprep.subr.mxu0 0.0
    %4989 = vmatpush2.msra.mxu0 0.0
    %4990 = vmatprep.subr.mxu0 0.0
    %4991 = vmatpush2.msra.mxu0 0.0
    %4992 = vmatprep.subr.mxu0 0.0
    %4993 = vmatpush2.msra.mxu0 0.0
    %4994 = vmatprep.subr.mxu0 0.0
    %4995 = vmatpush2.msra.mxu0 0.0
    %4996 = vmatprep.subr.mxu0 0.0
    %4997 = vmatpush2.msra.mxu0 0.0
    %4998 = vmatprep.subr.mxu0 0.0
    %4999 = vmatpush2.msra.mxu0 0.0
    %5000 = vmatprep.subr.mxu0 0.0
    %5001 = vmatpush2.msra.mxu0 0.0
    %5002 = vmatprep.subr.mxu0 0.0
    %5003 = vmatpush2.msra.mxu0 0.0
    %5004 = vmatprep.subr.mxu0 0.0
    %5005 = vmatpush2.msra.mxu0 0.0
    %5006 = vmatprep.subr.mxu0 0.0
    %5007 = vmatpush2.msra.mxu0 0.0
    %5008 = vmatprep.subr.mxu0 0.0
    %5009 = vmatpush2.msra.mxu0 0.0
    %5010 = vmatprep.subr.mxu0 0.0
    %5011 = vmatpush2.msra.mxu0 0.0
    %5012 = vmatprep.subr.mxu0 0.0
    %5013 = vmatpush2.msra.mxu0 0.0
    %5014 = vmatprep.mubr.f32.mxu0 0.0
    %5015 = vmatmul.mubr.f32.gmra.mxu0 %v4949
    %v5016 = vpop.f32.mrf.mxu0
    %v5017 = vadd.f32 0.0, %v5016
    %v5018 = vpop.f32.mrf.mxu0
    %5019 = vdwg.mxu0
    %v5020 = vsel %vm957, %v5017, 0.0
    %v5021 = vrot.slane %v5020, 4
    %v5022 = vadd.f32 %v5020, %v5021
    %v5023 = vrot.slane %v5022, 2
    %v5024 = vadd.f32 %v5022, %v5023
    %v5025 = vrot.slane %v5024, 1
    %v5026 = vadd.f32 %v5024, %v5025
    %5027 = vmatprep.subr.mxu0 0.0
    %5028 = vmatpush1.msra.mxu0 %v2854
    %5029 = vmatprep.subr.mxu0 0.0
    %5030 = vmatpush1.msra.mxu0 %v2853
    %5031 = vmatprep.subr.mxu0 0.0
    %5032 = vmatpush1.msra.mxu0 %v2852
    %5033 = vmatprep.subr.mxu0 0.0
    %5034 = vmatpush1.msra.mxu0 %v2851
    %5035 = vmatprep.subr.mxu0 0.0
    %5036 = vmatpush1.msra.mxu0 %v2850
    %5037 = vmatprep.subr.mxu0 0.0
    %5038 = vmatpush1.msra.mxu0 %v2849
    %5039 = vmatprep.subr.mxu0 0.0
    %5040 = vmatpush1.msra.mxu0 %v2848
    %5041 = vmatprep.subr.mxu0 0.0
    %5042 = vmatpush1.msra.mxu0 %v2847
    %5043 = vmatprep.subr.mxu0 0.0
    %5044 = vmatpush1.msra.mxu0 %v2846
    %5045 = vmatprep.subr.mxu0 0.0
    %5046 = vmatpush1.msra.mxu0 %v2845
    %5047 = vmatprep.subr.mxu0 0.0
    %5048 = vmatpush1.msra.mxu0 %v2844
    %5049 = vmatprep.subr.mxu0 0.0
    %5050 = vmatpush1.msra.mxu0 %v2843
    %5051 = vmatprep.subr.mxu0 0.0
    %5052 = vmatpush1.msra.mxu0 %v2842
    %5053 = vmatprep.subr.mxu0 0.0
    %5054 = vmatpush1.msra.mxu0 %v2841
    %5055 = vmatprep.subr.mxu0 0.0
    %5056 = vmatpush1.msra.mxu0 %v2840
    %5057 = vmatprep.subr.mxu0 0.0
    %5058 = vmatpush1.msra.mxu0 %v2839
    %5059 = vmatprep.subr.mxu0 0.0
    %5060 = vmatpush2.msra.mxu0 0.0
    %5061 = vmatprep.subr.mxu0 0.0
    %5062 = vmatpush2.msra.mxu0 0.0
    %5063 = vmatprep.subr.mxu0 0.0
    %5064 = vmatpush2.msra.mxu0 0.0
    %5065 = vmatprep.subr.mxu0 0.0
    %5066 = vmatpush2.msra.mxu0 0.0
    %5067 = vmatprep.subr.mxu0 0.0
    %5068 = vmatpush2.msra.mxu0 0.0
    %5069 = vmatprep.subr.mxu0 0.0
    %5070 = vmatpush2.msra.mxu0 0.0
    %5071 = vmatprep.subr.mxu0 0.0
    %5072 = vmatpush2.msra.mxu0 0.0
    %5073 = vmatprep.subr.mxu0 0.0
    %5074 = vmatpush2.msra.mxu0 0.0
    %5075 = vmatprep.subr.mxu0 0.0
    %5076 = vmatpush2.msra.mxu0 0.0
    %5077 = vmatprep.subr.mxu0 0.0
    %5078 = vmatpush2.msra.mxu0 0.0
    %5079 = vmatprep.subr.mxu0 0.0
    %5080 = vmatpush2.msra.mxu0 0.0
    %5081 = vmatprep.subr.mxu0 0.0
    %5082 = vmatpush2.msra.mxu0 0.0
    %5083 = vmatprep.subr.mxu0 0.0
    %5084 = vmatpush2.msra.mxu0 0.0
    %5085 = vmatprep.subr.mxu0 0.0
    %5086 = vmatpush2.msra.mxu0 0.0
    %5087 = vmatprep.subr.mxu0 0.0
    %5088 = vmatpush2.msra.mxu0 0.0
    %5089 = vmatprep.subr.mxu0 0.0
    %5090 = vmatpush2.msra.mxu0 0.0
    %5091 = vmatprep.mubr.f32.mxu0 0.0
    %5092 = vmatmul.mubr.f32.gmra.mxu0 %v5026
    %v5093 = vpop.f32.mrf.mxu0
    %v5094 = vadd.f32 0.0, %v5093
    %v5095 = vpop.f32.mrf.mxu0
    %5096 = vdwg.mxu0
    %v5097 = vmul.f32 %v5094, 0.03125
    %v5098 = vmul.f32 %v5017, %v5017
    %v5099 = vsel %vm957, %v5098, 0.0
    %v5100 = vrot.slane %v5099, 4
    %v5101 = vadd.f32 %v5099, %v5100
    %v5102 = vrot.slane %v5101, 2
    %v5103 = vadd.f32 %v5101, %v5102
    %v5104 = vrot.slane %v5103, 1
    %v5105 = vadd.f32 %v5103, %v5104
    %5106 = vmatprep.subr.mxu0 0.0
    %5107 = vmatpush1.msra.mxu0 %v2854
    %5108 = vmatprep.subr.mxu0 0.0
    %5109 = vmatpush1.msra.mxu0 %v2853
    %5110 = vmatprep.subr.mxu0 0.0
    %5111 = vmatpush1.msra.mxu0 %v2852
    %5112 = vmatprep.subr.mxu0 0.0
    %5113 = vmatpush1.msra.mxu0 %v2851
    %5114 = vmatprep.subr.mxu0 0.0
    %5115 = vmatpush1.msra.mxu0 %v2850
    %5116 = vmatprep.subr.mxu0 0.0
    %5117 = vmatpush1.msra.mxu0 %v2849
    %5118 = vmatprep.subr.mxu0 0.0
    %5119 = vmatpush1.msra.mxu0 %v2848
    %5120 = vmatprep.subr.mxu0 0.0
    %5121 = vmatpush1.msra.mxu0 %v2847
    %5122 = vmatprep.subr.mxu0 0.0
    %5123 = vmatpush1.msra.mxu0 %v2846
    %5124 = vmatprep.subr.mxu0 0.0
    %5125 = vmatpush1.msra.mxu0 %v2845
    %5126 = vmatprep.subr.mxu0 0.0
    %5127 = vmatpush1.msra.mxu0 %v2844
    %5128 = vmatprep.subr.mxu0 0.0
    %5129 = vmatpush1.msra.mxu0 %v2843
    %5130 = vmatprep.subr.mxu0 0.0
    %5131 = vmatpush1.msra.mxu0 %v2842
    %5132 = vmatprep.subr.mxu0 0.0
    %5133 = vmatpush1.msra.mxu0 %v2841
    %5134 = vmatprep.subr.mxu0 0.0
    %5135 = vmatpush1.msra.mxu0 %v2840
    %5136 = vmatprep.subr.mxu0 0.0
    %5137 = vmatpush1.msra.mxu0 %v2839
    %5138 = vmatprep.subr.mxu0 0.0
    %5139 = vmatpush2.msra.mxu0 0.0
    %5140 = vmatprep.subr.mxu0 0.0
    %5141 = vmatpush2.msra.mxu0 0.0
    %5142 = vmatprep.subr.mxu0 0.0
    %5143 = vmatpush2.msra.mxu0 0.0
    %5144 = vmatprep.subr.mxu0 0.0
    %5145 = vmatpush2.msra.mxu0 0.0
    %5146 = vmatprep.subr.mxu0 0.0
    %5147 = vmatpush2.msra.mxu0 0.0
    %5148 = vmatprep.subr.mxu0 0.0
    %5149 = vmatpush2.msra.mxu0 0.0
    %5150 = vmatprep.subr.mxu0 0.0
    %5151 = vmatpush2.msra.mxu0 0.0
    %5152 = vmatprep.subr.mxu0 0.0
    %5153 = vmatpush2.msra.mxu0 0.0
    %5154 = vmatprep.subr.mxu0 0.0
    %5155 = vmatpush2.msra.mxu0 0.0
    %5156 = vmatprep.subr.mxu0 0.0
    %5157 = vmatpush2.msra.mxu0 0.0
    %5158 = vmatprep.subr.mxu0 0.0
    %5159 = vmatpush2.msra.mxu0 0.0
    %5160 = vmatprep.subr.mxu0 0.0
    %5161 = vmatpush2.msra.mxu0 0.0
    %5162 = vmatprep.subr.mxu0 0.0
    %5163 = vmatpush2.msra.mxu0 0.0
    %5164 = vmatprep.subr.mxu0 0.0
    %5165 = vmatpush2.msra.mxu0 0.0
    %5166 = vmatprep.subr.mxu0 0.0
    %5167 = vmatpush2.msra.mxu0 0.0
    %5168 = vmatprep.subr.mxu0 0.0
    %5169 = vmatpush2.msra.mxu0 0.0
    %5170 = vmatprep.mubr.f32.mxu0 0.0
    %5171 = vmatmul.mubr.f32.gmra.mxu0 %v5105
    %v5172 = vpop.f32.mrf.mxu0
    %v5173 = vadd.f32 0.0, %v5172
    %v5174 = vpop.f32.mrf.mxu0
    %5175 = vdwg.mxu0
    %v5176 = vmul.f32 %v5173, 0.03125
    %v5177 = vmul.f32 %v5097, %v5097
    %v5178 = vsub.f32 %v5176, %v5177
    %v5179 = vadd.f32 %v5178, 1e-05
    %v5180 = vrsqrt.pop %v5179
    %v5182 = vrot.slane %v5180, 6
    %v5184 = vmul.f32 %v4554, %v5182
    %v5186 = vrot.slane %v5184, 2
    %v5188 = vmul.f32 %v5097, %v5186
    %v5190 = vrot.slane %v5188, 5
    %v5192 = vsub.f32 %v4554, %v5190
    %v5193 = vsel %vm3127, %v5186, 0
    %5195 = vmatprep.subr.mxu0 0.0
    %5196 = vmatpush1.msra.mxu0 0.0
    %5197 = vmatprep.subr.mxu0 0.0
    %5198 = vmatpush1.msra.mxu0 0.0
    %5199 = vmatprep.subr.mxu0 0.0
    %5200 = vmatpush1.msra.mxu0 0.0
    %5201 = vmatprep.subr.mxu0 0.0
    %5202 = vmatpush1.msra.mxu0 0.0
    %5203 = vmatprep.subr.mxu0 0.0
    %5204 = vmatpush1.msra.mxu0 0.0
    %5205 = vmatprep.subr.mxu0 0.0
    %5206 = vmatpush1.msra.mxu0 0.0
    %5207 = vmatprep.subr.mxu0 0.0
    %5208 = vmatpush1.msra.mxu0 0.0
    %5209 = vmatprep.subr.mxu0 0.0
    %5210 = vmatpush1.msra.mxu0 0.0
    %5211 = vmatprep.subr.mxu0 0.0
    %5212 = vmatpush1.msra.mxu0 0.0
    %5213 = vmatprep.subr.mxu0 0.0
    %5214 = vmatpush1.msra.mxu0 0.0
    %5215 = vmatprep.subr.mxu0 0.0
    %5216 = vmatpush1.msra.mxu0 0.0
    %5217 = vmatprep.subr.mxu0 0.0
    %5218 = vmatpush1.msra.mxu0 0.0
    %5219 = vmatprep.subr.mxu0 0.0
    %5220 = vmatpush1.msra.mxu0 0.0
    %5221 = vmatprep.subr.mxu0 0.0
    %5222 = vmatpush1.msra.mxu0 0.0
    %5223 = vmatprep.subr.mxu0 0.0
    %5224 = vmatpush1.msra.mxu0 0.0
    %5225 = vmatprep.subr.mxu0 0.0
    %5226 = vmatpush1.msra.mxu0 %v2855
    %5227 = vmatprep.subr.mxu0 0.0
    %5228 = vmatpush2.msra.mxu0 0.0
    %5229 = vmatprep.subr.mxu0 0.0
    %5230 = vmatpush2.msra.mxu0 0.0
    %5231 = vmatprep.subr.mxu0 0.0
    %5232 = vmatpush2.msra.mxu0 0.0
    %5233 = vmatprep.subr.mxu0 0.0
    %5234 = vmatpush2.msra.mxu0 0.0
    %5235 = vmatprep.subr.mxu0 0.0
    %5236 = vmatpush2.msra.mxu0 0.0
    %5237 = vmatprep.subr.mxu0 0.0
    %5238 = vmatpush2.msra.mxu0 0.0
    %5239 = vmatprep.subr.mxu0 0.0
    %5240 = vmatpush2.msra.mxu0 0.0
    %5241 = vmatprep.subr.mxu0 0.0
    %5242 = vmatpush2.msra.mxu0 0.0
    %5243 = vmatprep.subr.mxu0 0.0
    %5244 = vmatpush2.msra.mxu0 0.0
    %5245 = vmatprep.subr.mxu0 0.0
    %5246 = vmatpush2.msra.mxu0 0.0
    %5247 = vmatprep.subr.mxu0 0.0
    %5248 = vmatpush2.msra.mxu0 0.0
    %5249 = vmatprep.subr.mxu0 0.0
    %5250 = vmatpush2.msra.mxu0 0.0
    %5251 = vmatprep.subr.mxu0 0.0
    %5252 = vmatpush2.msra.mxu0 0.0
    %5253 = vmatprep.subr.mxu0 0.0
    %5254 = vmatpush2.msra.mxu0 0.0
    %5255 = vmatprep.subr.mxu0 0.0
    %5256 = vmatpush2.msra.mxu0 0.0
    %5257 = vmatprep.subr.mxu0 0.0
    %5258 = vmatpush2.msra.mxu0 0.0
    %5259 = vmatprep.mubr.f32.mxu0 0.0
    %5260 = vmatmul.mubr.f32.gmra.mxu0 %v5193
    %v5261 = vpop.f32.mrf.mxu0
    %v5262 = vadd.f32 0.0, %v5261
    %v5263 = vpop.f32.mrf.mxu0
    %5264 = vdwg.mxu0
    %v5266 = vrot.slane %v5192, 3
    %v5267 = vsel %vm3127, %v5266, 0
    %5269 = vmatprep.subr.mxu0 0.0
    %5270 = vmatpush1.msra.mxu0 0.0
    %5271 = vmatprep.subr.mxu0 0.0
    %5272 = vmatpush1.msra.mxu0 0.0
    %5273 = vmatprep.subr.mxu0 0.0
    %5274 = vmatpush1.msra.mxu0 0.0
    %5275 = vmatprep.subr.mxu0 0.0
    %5276 = vmatpush1.msra.mxu0 0.0
    %5277 = vmatprep.subr.mxu0 0.0
    %5278 = vmatpush1.msra.mxu0 0.0
    %5279 = vmatprep.subr.mxu0 0.0
    %5280 = vmatpush1.msra.mxu0 0.0
    %5281 = vmatprep.subr.mxu0 0.0
    %5282 = vmatpush1.msra.mxu0 0.0
    %5283 = vmatprep.subr.mxu0 0.0
    %5284 = vmatpush1.msra.mxu0 0.0
    %5285 = vmatprep.subr.mxu0 0.0
    %5286 = vmatpush1.msra.mxu0 0.0
    %5287 = vmatprep.subr.mxu0 0.0
    %5288 = vmatpush1.msra.mxu0 0.0
    %5289 = vmatprep.subr.mxu0 0.0
    %5290 = vmatpush1.msra.mxu0 0.0
    %5291 = vmatprep.subr.mxu0 0.0
    %5292 = vmatpush1.msra.mxu0 0.0
    %5293 = vmatprep.subr.mxu0 0.0
    %5294 = vmatpush1.msra.mxu0 0.0
    %5295 = vmatprep.subr.mxu0 0.0
    %5296 = vmatpush1.msra.mxu0 0.0
    %5297 = vmatprep.subr.mxu0 0.0
    %5298 = vmatpush1.msra.mxu0 0.0
    %5299 = vmatprep.subr.mxu0 0.0
    %5300 = vmatpush1.msra.mxu0 %v2855
    %5301 = vmatprep.subr.mxu0 0.0
    %5302 = vmatpush2.msra.mxu0 0.0
    %5303 = vmatprep.subr.mxu0 0.0
    %5304 = vmatpush2.msra.mxu0 0.0
    %5305 = vmatprep.subr.mxu0 0.0
    %5306 = vmatpush2.msra.mxu0 0.0
    %5307 = vmatprep.subr.mxu0 0.0
    %5308 = vmatpush2.msra.mxu0 0.0
    %5309 = vmatprep.subr.mxu0 0.0
    %5310 = vmatpush2.msra.mxu0 0.0
    %5311 = vmatprep.subr.mxu0 0.0
    %5312 = vmatpush2.msra.mxu0 0.0
    %5313 = vmatprep.subr.mxu0 0.0
    %5314 = vmatpush2.msra.mxu0 0.0
    %5315 = vmatprep.subr.mxu0 0.0
    %5316 = vmatpush2.msra.mxu0 0.0
    %5317 = vmatprep.subr.mxu0 0.0
    %5318 = vmatpush2.msra.mxu0 0.0
    %5319 = vmatprep.subr.mxu0 0.0
    %5320 = vmatpush2.msra.mxu0 0.0
    %5321 = vmatprep.subr.mxu0 0.0
    %5322 = vmatpush2.msra.mxu0 0.0
    %5323 = vmatprep.subr.mxu0 0.0
    %5324 = vmatpush2.msra.mxu0 0.0
    %5325 = vmatprep.subr.mxu0 0.0
    %5326 = vmatpush2.msra.mxu0 0.0
    %5327 = vmatprep.subr.mxu0 0.0
    %5328 = vmatpush2.msra.mxu0 0.0
    %5329 = vmatprep.subr.mxu0 0.0
    %5330 = vmatpush2.msra.mxu0 0.0
    %5331 = vmatprep.subr.mxu0 0.0
    %5332 = vmatpush2.msra.mxu0 0.0
    %5333 = vmatprep.mubr.f32.mxu0 0.0
    %5334 = vmatmul.mubr.f32.gmra.mxu0 %v5267
    %v5335 = vpop.f32.mrf.mxu0
    %v5336 = vadd.f32 0.0, %v5335
    %v5337 = vpop.f32.mrf.mxu0
    %5338 = vdwg.mxu0
    %v5339 = vlaneseq
    %v5340 = vshrl.u32 %v5339, 7
    %v5341 = vsub.s32 0, %v5340
    %v5342 = vrot.slane %v5262, %v5341
    %v5343 = vmul.f32 %v5017, %v5342
    %v5344 = vlaneseq
    %v5345 = vshrl.u32 %v5344, 7
    %v5346 = vsub.s32 0, %v5345
    %v5347 = vrot.slane %v5336, %v5346
    %v5348 = vadd.f32 %v5343, %v5347
    %v5349 = vadd.f32 %v5348, %v4518
    %v5350 = vmax.f32 %v5349, 0.0
    %v5351 = vld [vmem:[%s3] sm:$0xff]
    %v5352 = vld [vmem:[%s3 + $0x8] sm:$0xff]
    %v5353 = vld [vmem:[%s3 + $0x10] sm:$0xff]
    %v5354 = vld [vmem:[%s3 + $0x18] sm:$0xff]
    %v5355 = vld [vmem:[%s3 + $0x20] sm:$0xff]
    %v5356 = vld [vmem:[%s3 + $0x28] sm:$0xff]
    %v5357 = vld [vmem:[%s3 + $0x30] sm:$0xff]
    %v5358 = vld [vmem:[%s3 + $0x38] sm:$0xff]
    %v5359 = vld [vmem:[%s3 + $0x40] sm:$0xff]
    %v5360 = vld [vmem:[%s3 + $0x48] sm:$0xff]
    %v5361 = vld [vmem:[%s3 + $0x50] sm:$0xff]
    %v5362 = vld [vmem:[%s3 + $0x58] sm:$0xff]
    %v5363 = vld [vmem:[%s3 + $0x60] sm:$0xff]
    %v5364 = vld [vmem:[%s3 + $0x68] sm:$0xff]
    %v5365 = vld [vmem:[%s3 + $0x70] sm:$0xff]
    %v5366 = vld [vmem:[%s3 + $0x78] sm:$0xff]
    %5367 = vmatprep.subr.mxu0 0.0
    %5368 = vmatpush1.msra.mxu0 %v5366
    %5369 = vmatprep.subr.mxu0 0.0
    %5370 = vmatpush1.msra.mxu0 %v5365
    %5371 = vmatprep.subr.mxu0 0.0
    %5372 = vmatpush1.msra.mxu0 %v5364
    %5373 = vmatprep.subr.mxu0 0.0
    %5374 = vmatpush1.msra.mxu0 %v5363
    %5375 = vmatprep.subr.mxu0 0.0
    %5376 = vmatpush1.msra.mxu0 %v5362
    %5377 = vmatprep.subr.mxu0 0.0
    %5378 = vmatpush1.msra.mxu0 %v5361
    %5379 = vmatprep.subr.mxu0 0.0
    %5380 = vmatpush1.msra.mxu0 %v5360
    %5381 = vmatprep.subr.mxu0 0.0
    %5382 = vmatpush1.msra.mxu0 %v5359
    %5383 = vmatprep.subr.mxu0 0.0
    %5384 = vmatpush1.msra.mxu0 %v5358
    %5385 = vmatprep.subr.mxu0 0.0
    %5386 = vmatpush1.msra.mxu0 %v5357
    %5387 = vmatprep.subr.mxu0 0.0
    %5388 = vmatpush1.msra.mxu0 %v5356
    %5389 = vmatprep.subr.mxu0 0.0
    %5390 = vmatpush1.msra.mxu0 %v5355
    %5391 = vmatprep.subr.mxu0 0.0
    %5392 = vmatpush1.msra.mxu0 %v5354
    %5393 = vmatprep.subr.mxu0 0.0
    %5394 = vmatpush1.msra.mxu0 %v5353
    %5395 = vmatprep.subr.mxu0 0.0
    %5396 = vmatpush1.msra.mxu0 %v5352
    %5397 = vmatprep.subr.mxu0 0.0
    %5398 = vmatpush1.msra.mxu0 %v5351
    %5399 = vmatprep.subr.mxu0 0.0
    %5400 = vmatpush2.msra.mxu0 0.0
    %5401 = vmatprep.subr.mxu0 0.0
    %5402 = vmatpush2.msra.mxu0 0.0
    %5403 = vmatprep.subr.mxu0 0.0
    %5404 = vmatpush2.msra.mxu0 0.0
    %5405 = vmatprep.subr.mxu0 0.0
    %5406 = vmatpush2.msra.mxu0 0.0
    %5407 = vmatprep.subr.mxu0 0.0
    %5408 = vmatpush2.msra.mxu0 0.0
    %5409 = vmatprep.subr.mxu0 0.0
    %5410 = vmatpush2.msra.mxu0 0.0
    %5411 = vmatprep.subr.mxu0 0.0
    %5412 = vmatpush2.msra.mxu0 0.0
    %5413 = vmatprep.subr.mxu0 0.0
    %5414 = vmatpush2.msra.mxu0 0.0
    %5415 = vmatprep.subr.mxu0 0.0
    %5416 = vmatpush2.msra.mxu0 0.0
    %5417 = vmatprep.subr.mxu0 0.0
    %5418 = vmatpush2.msra.mxu0 0.0
    %5419 = vmatprep.subr.mxu0 0.0
    %5420 = vmatpush2.msra.mxu0 0.0
    %5421 = vmatprep.subr.mxu0 0.0
    %5422 = vmatpush2.msra.mxu0 0.0
    %5423 = vmatprep.subr.mxu0 0.0
    %5424 = vmatpush2.msra.mxu0 0.0
    %5425 = vmatprep.subr.mxu0 0.0
    %5426 = vmatpush2.msra.mxu0 0.0
    %5427 = vmatprep.subr.mxu0 0.0
    %5428 = vmatpush2.msra.mxu0 0.0
    %5429 = vmatprep.subr.mxu0 0.0
    %5430 = vmatpush2.msra.mxu0 0.0
    %5431 = vmatprep.mubr.f32.mxu0 0.0
    %5432 = vmatmul.mubr.f32.gmra.mxu0 %v5350
    %v5433 = vpop.f32.mrf.mxu0
    %v5434 = vadd.f32 0.0, %v5433
    %v5435 = vpop.f32.mrf.mxu0
    %5436 = vdwg.mxu0
    %v5437 = vld [vmem:[%s15] sm:$0xff]
    %v5438 = vld [vmem:[%s15 + $0x8] sm:$0xff]
    %v5439 = vld [vmem:[%s15 + $0x10] sm:$0xff]
    %v5440 = vld [vmem:[%s15 + $0x18] sm:$0xff]
    %v5441 = vld [vmem:[%s16] sm:$0xff]
    %v5442 = vld [vmem:[#allocation10] sm:$0xff]
    %v5443 = vld [vmem:[#allocation10 + $0x8] sm:$0xff]
    %v5444 = vld [vmem:[#allocation10 + $0x10] sm:$0xff]
    %v5445 = vld [vmem:[#allocation10 + $0x18] sm:$0xff]
    %s5446 = scalar_lea.vmem [#allocation10], 32
    %v5447 = vld [vmem:[%s5446] sm:$0xff]
    %v5448 = vld [vmem:[%s5446 + $0x8] sm:$0xff]
    %v5449 = vld [vmem:[%s5446 + $0x10] sm:$0xff]
    %v5450 = vld [vmem:[%s5446 + $0x18] sm:$0xff]
    %v5451 = vld [vmem:[%s10] sm:$0xf]
    %vm5452 = vcmask 261120
    %v5454 = vsel %vm5452, %v5434, 0
    %5456 = vmatprep.subr.mxu0 0.0
    %5457 = vmatpush1.msra.mxu0 0.0
    %5458 = vmatprep.subr.mxu0 0.0
    %5459 = vmatpush1.msra.mxu0 0.0
    %5460 = vmatprep.subr.mxu0 0.0
    %5461 = vmatpush1.msra.mxu0 0.0
    %5462 = vmatprep.subr.mxu0 0.0
    %5463 = vmatpush1.msra.mxu0 0.0
    %5464 = vmatprep.subr.mxu0 0.0
    %5465 = vmatpush1.msra.mxu0 0.0
    %5466 = vmatprep.subr.mxu0 0.0
    %5467 = vmatpush1.msra.mxu0 0.0
    %5468 = vmatprep.subr.mxu0 0.0
    %5469 = vmatpush1.msra.mxu0 0.0
    %5470 = vmatprep.subr.mxu0 0.0
    %5471 = vmatpush1.msra.mxu0 0.0
    %5472 = vmatprep.subr.mxu0 0.0
    %5473 = vmatpush1.msra.mxu0 0.0
    %5474 = vmatprep.subr.mxu0 0.0
    %5475 = vmatpush1.msra.mxu0 0.0
    %5476 = vmatprep.subr.mxu0 0.0
    %5477 = vmatpush1.msra.mxu0 0.0
    %5478 = vmatprep.subr.mxu0 0.0
    %5479 = vmatpush1.msra.mxu0 0.0
    %5480 = vmatprep.subr.mxu0 0.0
    %5481 = vmatpush1.msra.mxu0 %v5445
    %5482 = vmatprep.subr.mxu0 0.0
    %5483 = vmatpush1.msra.mxu0 %v5444
    %5484 = vmatprep.subr.mxu0 0.0
    %5485 = vmatpush1.msra.mxu0 %v5443
    %5486 = vmatprep.subr.mxu0 0.0
    %5487 = vmatpush1.msra.mxu0 %v5442
    %5488 = vmatprep.subr.mxu0 0.0
    %5489 = vmatpush2.msra.mxu0 0.0
    %5490 = vmatprep.subr.mxu0 0.0
    %5491 = vmatpush2.msra.mxu0 0.0
    %5492 = vmatprep.subr.mxu0 0.0
    %5493 = vmatpush2.msra.mxu0 0.0
    %5494 = vmatprep.subr.mxu0 0.0
    %5495 = vmatpush2.msra.mxu0 0.0
    %5496 = vmatprep.subr.mxu0 0.0
    %5497 = vmatpush2.msra.mxu0 0.0
    %5498 = vmatprep.subr.mxu0 0.0
    %5499 = vmatpush2.msra.mxu0 0.0
    %5500 = vmatprep.subr.mxu0 0.0
    %5501 = vmatpush2.msra.mxu0 0.0
    %5502 = vmatprep.subr.mxu0 0.0
    %5503 = vmatpush2.msra.mxu0 0.0
    %5504 = vmatprep.subr.mxu0 0.0
    %5505 = vmatpush2.msra.mxu0 0.0
    %5506 = vmatprep.subr.mxu0 0.0
    %5507 = vmatpush2.msra.mxu0 0.0
    %5508 = vmatprep.subr.mxu0 0.0
    %5509 = vmatpush2.msra.mxu0 0.0
    %5510 = vmatprep.subr.mxu0 0.0
    %5511 = vmatpush2.msra.mxu0 0.0
    %5512 = vmatprep.subr.mxu0 0.0
    %5513 = vmatpush2.msra.mxu0 0.0
    %5514 = vmatprep.subr.mxu0 0.0
    %5515 = vmatpush2.msra.mxu0 0.0
    %5516 = vmatprep.subr.mxu0 0.0
    %5517 = vmatpush2.msra.mxu0 0.0
    %5518 = vmatprep.subr.mxu0 0.0
    %5519 = vmatpush2.msra.mxu0 0.0
    %5520 = vmatprep.mubr.f32.mxu0 0.0
    %5521 = vmatmul.mubr.f32.gmra.mxu0 %v5454
    %v5522 = vpop.f32.mrf.mxu0
    %v5523 = vadd.f32 0.0, %v5522
    %v5524 = vpop.f32.mrf.mxu0
    %5525 = vdwg.mxu0
    %vm5526 = vcmask 254976
    %v5527 = vsel %vm5526, %v5523, 0.0
    %v5528 = vrot.slane %v5527, 4
    %v5529 = vadd.f32 %v5527, %v5528
    %v5530 = vrot.slane %v5529, 2
    %v5531 = vadd.f32 %v5529, %v5530
    %v5532 = vrot.slane %v5531, 1
    %v5533 = vadd.f32 %v5531, %v5532
    %v5535 = vsel %vm5452, %v5533, 0
    %5537 = vmatprep.subr.mxu0 0.0
    %5538 = vmatpush1.msra.mxu0 0.0
    %5539 = vmatprep.subr.mxu0 0.0
    %5540 = vmatpush1.msra.mxu0 0.0
    %5541 = vmatprep.subr.mxu0 0.0
    %5542 = vmatpush1.msra.mxu0 0.0
    %5543 = vmatprep.subr.mxu0 0.0
    %5544 = vmatpush1.msra.mxu0 0.0
    %5545 = vmatprep.subr.mxu0 0.0
    %5546 = vmatpush1.msra.mxu0 0.0
    %5547 = vmatprep.subr.mxu0 0.0
    %5548 = vmatpush1.msra.mxu0 0.0
    %5549 = vmatprep.subr.mxu0 0.0
    %5550 = vmatpush1.msra.mxu0 0.0
    %5551 = vmatprep.subr.mxu0 0.0
    %5552 = vmatpush1.msra.mxu0 0.0
    %5553 = vmatprep.subr.mxu0 0.0
    %5554 = vmatpush1.msra.mxu0 0.0
    %5555 = vmatprep.subr.mxu0 0.0
    %5556 = vmatpush1.msra.mxu0 0.0
    %5557 = vmatprep.subr.mxu0 0.0
    %5558 = vmatpush1.msra.mxu0 0.0
    %5559 = vmatprep.subr.mxu0 0.0
    %5560 = vmatpush1.msra.mxu0 0.0
    %5561 = vmatprep.subr.mxu0 0.0
    %5562 = vmatpush1.msra.mxu0 %v5440
    %5563 = vmatprep.subr.mxu0 0.0
    %5564 = vmatpush1.msra.mxu0 %v5439
    %5565 = vmatprep.subr.mxu0 0.0
    %5566 = vmatpush1.msra.mxu0 %v5438
    %5567 = vmatprep.subr.mxu0 0.0
    %5568 = vmatpush1.msra.mxu0 %v5437
    %5569 = vmatprep.subr.mxu0 0.0
    %5570 = vmatpush2.msra.mxu0 0.0
    %5571 = vmatprep.subr.mxu0 0.0
    %5572 = vmatpush2.msra.mxu0 0.0
    %5573 = vmatprep.subr.mxu0 0.0
    %5574 = vmatpush2.msra.mxu0 0.0
    %5575 = vmatprep.subr.mxu0 0.0
    %5576 = vmatpush2.msra.mxu0 0.0
    %5577 = vmatprep.subr.mxu0 0.0
    %5578 = vmatpush2.msra.mxu0 0.0
    %5579 = vmatprep.subr.mxu0 0.0
    %5580 = vmatpush2.msra.mxu0 0.0
    %5581 = vmatprep.subr.mxu0 0.0
    %5582 = vmatpush2.msra.mxu0 0.0
    %5583 = vmatprep.subr.mxu0 0.0
    %5584 = vmatpush2.msra.mxu0 0.0
    %5585 = vmatprep.subr.mxu0 0.0
    %5586 = vmatpush2.msra.mxu0 0.0
    %5587 = vmatprep.subr.mxu0 0.0
    %5588 = vmatpush2.msra.mxu0 0.0
    %5589 = vmatprep.subr.mxu0 0.0
    %5590 = vmatpush2.msra.mxu0 0.0
    %5591 = vmatprep.subr.mxu0 0.0
    %5592 = vmatpush2.msra.mxu0 0.0
    %5593 = vmatprep.subr.mxu0 0.0
    %5594 = vmatpush2.msra.mxu0 0.0
    %5595 = vmatprep.subr.mxu0 0.0
    %5596 = vmatpush2.msra.mxu0 0.0
    %5597 = vmatprep.subr.mxu0 0.0
    %5598 = vmatpush2.msra.mxu0 0.0
    %5599 = vmatprep.subr.mxu0 0.0
    %5600 = vmatpush2.msra.mxu0 0.0
    %5601 = vmatprep.mubr.f32.mxu0 0.0
    %5602 = vmatmul.mubr.f32.gmra.mxu0 %v5535
    %v5603 = vpop.f32.mrf.mxu0
    %v5604 = vadd.f32 0.0, %v5603
    %v5605 = vpop.f32.mrf.mxu0
    %5606 = vdwg.mxu0
    %v5607 = vmul.f32 %v5604, 0.125
    %v5608 = vmul.f32 %v5523, %v5523
    %v5609 = vsel %vm5526, %v5608, 0.0
    %v5610 = vrot.slane %v5609, 4
    %v5611 = vadd.f32 %v5609, %v5610
    %v5612 = vrot.slane %v5611, 2
    %v5613 = vadd.f32 %v5611, %v5612
    %v5614 = vrot.slane %v5613, 1
    %v5615 = vadd.f32 %v5613, %v5614
    %v5617 = vsel %vm5452, %v5615, 0
    %5619 = vmatprep.subr.mxu0 0.0
    %5620 = vmatpush1.msra.mxu0 0.0
    %5621 = vmatprep.subr.mxu0 0.0
    %5622 = vmatpush1.msra.mxu0 0.0
    %5623 = vmatprep.subr.mxu0 0.0
    %5624 = vmatpush1.msra.mxu0 0.0
    %5625 = vmatprep.subr.mxu0 0.0
    %5626 = vmatpush1.msra.mxu0 0.0
    %5627 = vmatprep.subr.mxu0 0.0
    %5628 = vmatpush1.msra.mxu0 0.0
    %5629 = vmatprep.subr.mxu0 0.0
    %5630 = vmatpush1.msra.mxu0 0.0
    %5631 = vmatprep.subr.mxu0 0.0
    %5632 = vmatpush1.msra.mxu0 0.0
    %5633 = vmatprep.subr.mxu0 0.0
    %5634 = vmatpush1.msra.mxu0 0.0
    %5635 = vmatprep.subr.mxu0 0.0
    %5636 = vmatpush1.msra.mxu0 0.0
    %5637 = vmatprep.subr.mxu0 0.0
    %5638 = vmatpush1.msra.mxu0 0.0
    %5639 = vmatprep.subr.mxu0 0.0
    %5640 = vmatpush1.msra.mxu0 0.0
    %5641 = vmatprep.subr.mxu0 0.0
    %5642 = vmatpush1.msra.mxu0 0.0
    %5643 = vmatprep.subr.mxu0 0.0
    %5644 = vmatpush1.msra.mxu0 %v5440
    %5645 = vmatprep.subr.mxu0 0.0
    %5646 = vmatpush1.msra.mxu0 %v5439
    %5647 = vmatprep.subr.mxu0 0.0
    %5648 = vmatpush1.msra.mxu0 %v5438
    %5649 = vmatprep.subr.mxu0 0.0
    %5650 = vmatpush1.msra.mxu0 %v5437
    %5651 = vmatprep.subr.mxu0 0.0
    %5652 = vmatpush2.msra.mxu0 0.0
    %5653 = vmatprep.subr.mxu0 0.0
    %5654 = vmatpush2.msra.mxu0 0.0
    %5655 = vmatprep.subr.mxu0 0.0
    %5656 = vmatpush2.msra.mxu0 0.0
    %5657 = vmatprep.subr.mxu0 0.0
    %5658 = vmatpush2.msra.mxu0 0.0
    %5659 = vmatprep.subr.mxu0 0.0
    %5660 = vmatpush2.msra.mxu0 0.0
    %5661 = vmatprep.subr.mxu0 0.0
    %5662 = vmatpush2.msra.mxu0 0.0
    %5663 = vmatprep.subr.mxu0 0.0
    %5664 = vmatpush2.msra.mxu0 0.0
    %5665 = vmatprep.subr.mxu0 0.0
    %5666 = vmatpush2.msra.mxu0 0.0
    %5667 = vmatprep.subr.mxu0 0.0
    %5668 = vmatpush2.msra.mxu0 0.0
    %5669 = vmatprep.subr.mxu0 0.0
    %5670 = vmatpush2.msra.mxu0 0.0
    %5671 = vmatprep.subr.mxu0 0.0
    %5672 = vmatpush2.msra.mxu0 0.0
    %5673 = vmatprep.subr.mxu0 0.0
    %5674 = vmatpush2.msra.mxu0 0.0
    %5675 = vmatprep.subr.mxu0 0.0
    %5676 = vmatpush2.msra.mxu0 0.0
    %5677 = vmatprep.subr.mxu0 0.0
    %5678 = vmatpush2.msra.mxu0 0.0
    %5679 = vmatprep.subr.mxu0 0.0
    %5680 = vmatpush2.msra.mxu0 0.0
    %5681 = vmatprep.subr.mxu0 0.0
    %5682 = vmatpush2.msra.mxu0 0.0
    %5683 = vmatprep.mubr.f32.mxu0 0.0
    %5684 = vmatmul.mubr.f32.gmra.mxu0 %v5617
    %v5685 = vpop.f32.mrf.mxu0
    %v5686 = vadd.f32 0.0, %v5685
    %v5687 = vpop.f32.mrf.mxu0
    %5688 = vdwg.mxu0
    %v5689 = vmul.f32 %v5686, 0.125
    %v5690 = vmul.f32 %v5607, %v5607
    %v5691 = vsub.f32 %v5689, %v5690
    %v5692 = vadd.f32 %v5691, 1e-05
    %v5693 = vrsqrt.pop %v5692
    %v5694 = vmul.f32 %v5451, %v5693
    %v5695 = vmul.f32 %v5607, %v5694
    %v5697 = vrot.slane %v5695, 7
    %v5699 = vsub.f32 %v5451, %v5697
    %v5701 = vsel %vm3127, %v5694, 0
    %5703 = vmatprep.subr.mxu0 0.0
    %5704 = vmatpush1.msra.mxu0 0.0
    %5705 = vmatprep.subr.mxu0 0.0
    %5706 = vmatpush1.msra.mxu0 0.0
    %5707 = vmatprep.subr.mxu0 0.0
    %5708 = vmatpush1.msra.mxu0 0.0
    %5709 = vmatprep.subr.mxu0 0.0
    %5710 = vmatpush1.msra.mxu0 0.0
    %5711 = vmatprep.subr.mxu0 0.0
    %5712 = vmatpush1.msra.mxu0 0.0
    %5713 = vmatprep.subr.mxu0 0.0
    %5714 = vmatpush1.msra.mxu0 0.0
    %5715 = vmatprep.subr.mxu0 0.0
    %5716 = vmatpush1.msra.mxu0 0.0
    %5717 = vmatprep.subr.mxu0 0.0
    %5718 = vmatpush1.msra.mxu0 0.0
    %5719 = vmatprep.subr.mxu0 0.0
    %5720 = vmatpush1.msra.mxu0 0.0
    %5721 = vmatprep.subr.mxu0 0.0
    %5722 = vmatpush1.msra.mxu0 0.0
    %5723 = vmatprep.subr.mxu0 0.0
    %5724 = vmatpush1.msra.mxu0 0.0
    %5725 = vmatprep.subr.mxu0 0.0
    %5726 = vmatpush1.msra.mxu0 0.0
    %5727 = vmatprep.subr.mxu0 0.0
    %5728 = vmatpush1.msra.mxu0 0.0
    %5729 = vmatprep.subr.mxu0 0.0
    %5730 = vmatpush1.msra.mxu0 0.0
    %5731 = vmatprep.subr.mxu0 0.0
    %5732 = vmatpush1.msra.mxu0 0.0
    %5733 = vmatprep.subr.mxu0 0.0
    %5734 = vmatpush1.msra.mxu0 %v5441
    %5735 = vmatprep.subr.mxu0 0.0
    %5736 = vmatpush2.msra.mxu0 0.0
    %5737 = vmatprep.subr.mxu0 0.0
    %5738 = vmatpush2.msra.mxu0 0.0
    %5739 = vmatprep.subr.mxu0 0.0
    %5740 = vmatpush2.msra.mxu0 0.0
    %5741 = vmatprep.subr.mxu0 0.0
    %5742 = vmatpush2.msra.mxu0 0.0
    %5743 = vmatprep.subr.mxu0 0.0
    %5744 = vmatpush2.msra.mxu0 0.0
    %5745 = vmatprep.subr.mxu0 0.0
    %5746 = vmatpush2.msra.mxu0 0.0
    %5747 = vmatprep.subr.mxu0 0.0
    %5748 = vmatpush2.msra.mxu0 0.0
    %5749 = vmatprep.subr.mxu0 0.0
    %5750 = vmatpush2.msra.mxu0 0.0
    %5751 = vmatprep.subr.mxu0 0.0
    %5752 = vmatpush2.msra.mxu0 0.0
    %5753 = vmatprep.subr.mxu0 0.0
    %5754 = vmatpush2.msra.mxu0 0.0
    %5755 = vmatprep.subr.mxu0 0.0
    %5756 = vmatpush2.msra.mxu0 0.0
    %5757 = vmatprep.subr.mxu0 0.0
    %5758 = vmatpush2.msra.mxu0 0.0
    %5759 = vmatprep.subr.mxu0 0.0
    %5760 = vmatpush2.msra.mxu0 0.0
    %5761 = vmatprep.subr.mxu0 0.0
    %5762 = vmatpush2.msra.mxu0 0.0
    %5763 = vmatprep.subr.mxu0 0.0
    %5764 = vmatpush2.msra.mxu0 0.0
    %5765 = vmatprep.subr.mxu0 0.0
    %5766 = vmatpush2.msra.mxu0 0.0
    %5767 = vmatprep.mubr.f32.mxu0 0.0
    %5768 = vmatmul.mubr.f32.gmra.mxu0 %v5701
    %v5769 = vpop.f32.mrf.mxu0
    %v5770 = vadd.f32 0.0, %v5769
    %v5771 = vpop.f32.mrf.mxu0
    %5772 = vdwg.mxu0
    %v5774 = vrot.slane %v5699, 1
    %v5775 = vsel %vm3127, %v5774, 0
    %5777 = vmatprep.subr.mxu0 0.0
    %5778 = vmatpush1.msra.mxu0 0.0
    %5779 = vmatprep.subr.mxu0 0.0
    %5780 = vmatpush1.msra.mxu0 0.0
    %5781 = vmatprep.subr.mxu0 0.0
    %5782 = vmatpush1.msra.mxu0 0.0
    %5783 = vmatprep.subr.mxu0 0.0
    %5784 = vmatpush1.msra.mxu0 0.0
    %5785 = vmatprep.subr.mxu0 0.0
    %5786 = vmatpush1.msra.mxu0 0.0
    %5787 = vmatprep.subr.mxu0 0.0
    %5788 = vmatpush1.msra.mxu0 0.0
    %5789 = vmatprep.subr.mxu0 0.0
    %5790 = vmatpush1.msra.mxu0 0.0
    %5791 = vmatprep.subr.mxu0 0.0
    %5792 = vmatpush1.msra.mxu0 0.0
    %5793 = vmatprep.subr.mxu0 0.0
    %5794 = vmatpush1.msra.mxu0 0.0
    %5795 = vmatprep.subr.mxu0 0.0
    %5796 = vmatpush1.msra.mxu0 0.0
    %5797 = vmatprep.subr.mxu0 0.0
    %5798 = vmatpush1.msra.mxu0 0.0
    %5799 = vmatprep.subr.mxu0 0.0
    %5800 = vmatpush1.msra.mxu0 0.0
    %5801 = vmatprep.subr.mxu0 0.0
    %5802 = vmatpush1.msra.mxu0 0.0
    %5803 = vmatprep.subr.mxu0 0.0
    %5804 = vmatpush1.msra.mxu0 0.0
    %5805 = vmatprep.subr.mxu0 0.0
    %5806 = vmatpush1.msra.mxu0 0.0
    %5807 = vmatprep.subr.mxu0 0.0
    %5808 = vmatpush1.msra.mxu0 %v5441
    %5809 = vmatprep.subr.mxu0 0.0
    %5810 = vmatpush2.msra.mxu0 0.0
    %5811 = vmatprep.subr.mxu0 0.0
    %5812 = vmatpush2.msra.mxu0 0.0
    %5813 = vmatprep.subr.mxu0 0.0
    %5814 = vmatpush2.msra.mxu0 0.0
    %5815 = vmatprep.subr.mxu0 0.0
    %5816 = vmatpush2.msra.mxu0 0.0
    %5817 = vmatprep.subr.mxu0 0.0
    %5818 = vmatpush2.msra.mxu0 0.0
    %5819 = vmatprep.subr.mxu0 0.0
    %5820 = vmatpush2.msra.mxu0 0.0
    %5821 = vmatprep.subr.mxu0 0.0
    %5822 = vmatpush2.msra.mxu0 0.0
    %5823 = vmatprep.subr.mxu0 0.0
    %5824 = vmatpush2.msra.mxu0 0.0
    %5825 = vmatprep.subr.mxu0 0.0
    %5826 = vmatpush2.msra.mxu0 0.0
    %5827 = vmatprep.subr.mxu0 0.0
    %5828 = vmatpush2.msra.mxu0 0.0
    %5829 = vmatprep.subr.mxu0 0.0
    %5830 = vmatpush2.msra.mxu0 0.0
    %5831 = vmatprep.subr.mxu0 0.0
    %5832 = vmatpush2.msra.mxu0 0.0
    %5833 = vmatprep.subr.mxu0 0.0
    %5834 = vmatpush2.msra.mxu0 0.0
    %5835 = vmatprep.subr.mxu0 0.0
    %5836 = vmatpush2.msra.mxu0 0.0
    %5837 = vmatprep.subr.mxu0 0.0
    %5838 = vmatpush2.msra.mxu0 0.0
    %5839 = vmatprep.subr.mxu0 0.0
    %5840 = vmatpush2.msra.mxu0 0.0
    %5841 = vmatprep.mubr.f32.mxu0 0.0
    %5842 = vmatmul.mubr.f32.gmra.mxu0 %v5775
    %v5843 = vpop.f32.mrf.mxu0
    %v5844 = vadd.f32 0.0, %v5843
    %v5845 = vpop.f32.mrf.mxu0
    %5846 = vdwg.mxu0
    %v5847 = vlaneseq
    %v5848 = vshrl.u32 %v5847, 7
    %v5849 = vsub.s32 0, %v5848
    %v5850 = vrot.slane %v5770, %v5849
    %v5851 = vmul.f32 %v5523, %v5850
    %v5852 = vlaneseq
    %v5853 = vshrl.u32 %v5852, 7
    %v5854 = vsub.s32 0, %v5853
    %v5855 = vrot.slane %v5844, %v5854
    %v5856 = vadd.f32 %v5851, %v5855
    %v5857 = vmax.f32 %v5856, 0.0
    %v5859 = vsel %vm5452, %v5857, 0
    %5861 = vmatprep.subr.mxu0 0.0
    %5862 = vmatpush1.msra.mxu0 0.0
    %5863 = vmatprep.subr.mxu0 0.0
    %5864 = vmatpush1.msra.mxu0 0.0
    %5865 = vmatprep.subr.mxu0 0.0
    %5866 = vmatpush1.msra.mxu0 0.0
    %5867 = vmatprep.subr.mxu0 0.0
    %5868 = vmatpush1.msra.mxu0 0.0
    %5869 = vmatprep.subr.mxu0 0.0
    %5870 = vmatpush1.msra.mxu0 0.0
    %5871 = vmatprep.subr.mxu0 0.0
    %5872 = vmatpush1.msra.mxu0 0.0
    %5873 = vmatprep.subr.mxu0 0.0
    %5874 = vmatpush1.msra.mxu0 0.0
    %5875 = vmatprep.subr.mxu0 0.0
    %5876 = vmatpush1.msra.mxu0 0.0
    %5877 = vmatprep.subr.mxu0 0.0
    %5878 = vmatpush1.msra.mxu0 0.0
    %5879 = vmatprep.subr.mxu0 0.0
    %5880 = vmatpush1.msra.mxu0 0.0
    %5881 = vmatprep.subr.mxu0 0.0
    %5882 = vmatpush1.msra.mxu0 0.0
    %5883 = vmatprep.subr.mxu0 0.0
    %5884 = vmatpush1.msra.mxu0 0.0
    %5885 = vmatprep.subr.mxu0 0.0
    %5886 = vmatpush1.msra.mxu0 %v5450
    %5887 = vmatprep.subr.mxu0 0.0
    %5888 = vmatpush1.msra.mxu0 %v5449
    %5889 = vmatprep.subr.mxu0 0.0
    %5890 = vmatpush1.msra.mxu0 %v5448
    %5891 = vmatprep.subr.mxu0 0.0
    %5892 = vmatpush1.msra.mxu0 %v5447
    %5893 = vmatprep.subr.mxu0 0.0
    %5894 = vmatpush2.msra.mxu0 0.0
    %5895 = vmatprep.subr.mxu0 0.0
    %5896 = vmatpush2.msra.mxu0 0.0
    %5897 = vmatprep.subr.mxu0 0.0
    %5898 = vmatpush2.msra.mxu0 0.0
    %5899 = vmatprep.subr.mxu0 0.0
    %5900 = vmatpush2.msra.mxu0 0.0
    %5901 = vmatprep.subr.mxu0 0.0
    %5902 = vmatpush2.msra.mxu0 0.0
    %5903 = vmatprep.subr.mxu0 0.0
    %5904 = vmatpush2.msra.mxu0 0.0
    %5905 = vmatprep.subr.mxu0 0.0
    %5906 = vmatpush2.msra.mxu0 0.0
    %5907 = vmatprep.subr.mxu0 0.0
    %5908 = vmatpush2.msra.mxu0 0.0
    %5909 = vmatprep.subr.mxu0 0.0
    %5910 = vmatpush2.msra.mxu0 0.0
    %5911 = vmatprep.subr.mxu0 0.0
    %5912 = vmatpush2.msra.mxu0 0.0
    %5913 = vmatprep.subr.mxu0 0.0
    %5914 = vmatpush2.msra.mxu0 0.0
    %5915 = vmatprep.subr.mxu0 0.0
    %5916 = vmatpush2.msra.mxu0 0.0
    %5917 = vmatprep.subr.mxu0 0.0
    %5918 = vmatpush2.msra.mxu0 0.0
    %5919 = vmatprep.subr.mxu0 0.0
    %5920 = vmatpush2.msra.mxu0 0.0
    %5921 = vmatprep.subr.mxu0 0.0
    %5922 = vmatpush2.msra.mxu0 0.0
    %5923 = vmatprep.subr.mxu0 0.0
    %5924 = vmatpush2.msra.mxu0 0.0
    %5925 = vmatprep.mubr.f32.mxu0 0.0
    %5926 = vmatmul.mubr.f32.gmra.mxu0 %v5859
    %v5927 = vpop.f32.mrf.mxu0
    %v5928 = vadd.f32 0.0, %v5927
    %v5929 = vpop.f32.mrf.mxu0
    %5930 = vdwg.mxu0
    %v5931 = vsel %vm5526, %v5928, 0.0
    %v5932 = vrot.slane %v5931, 4
    %v5933 = vadd.f32 %v5931, %v5932
    %v5934 = vrot.slane %v5933, 2
    %v5935 = vadd.f32 %v5933, %v5934
    %v5936 = vrot.slane %v5935, 1
    %v5937 = vadd.f32 %v5935, %v5936
    %v5939 = vsel %vm5452, %v5937, 0
    %5941 = vmatprep.subr.mxu0 0.0
    %5942 = vmatpush1.msra.mxu0 0.0
    %5943 = vmatprep.subr.mxu0 0.0
    %5944 = vmatpush1.msra.mxu0 0.0
    %5945 = vmatprep.subr.mxu0 0.0
    %5946 = vmatpush1.msra.mxu0 0.0
    %5947 = vmatprep.subr.mxu0 0.0
    %5948 = vmatpush1.msra.mxu0 0.0
    %5949 = vmatprep.subr.mxu0 0.0
    %5950 = vmatpush1.msra.mxu0 0.0
    %5951 = vmatprep.subr.mxu0 0.0
    %5952 = vmatpush1.msra.mxu0 0.0
    %5953 = vmatprep.subr.mxu0 0.0
    %5954 = vmatpush1.msra.mxu0 0.0
    %5955 = vmatprep.subr.mxu0 0.0
    %5956 = vmatpush1.msra.mxu0 0.0
    %5957 = vmatprep.subr.mxu0 0.0
    %5958 = vmatpush1.msra.mxu0 0.0
    %5959 = vmatprep.subr.mxu0 0.0
    %5960 = vmatpush1.msra.mxu0 0.0
    %5961 = vmatprep.subr.mxu0 0.0
    %5962 = vmatpush1.msra.mxu0 0.0
    %5963 = vmatprep.subr.mxu0 0.0
    %5964 = vmatpush1.msra.mxu0 0.0
    %5965 = vmatprep.subr.mxu0 0.0
    %5966 = vmatpush1.msra.mxu0 %v5440
    %5967 = vmatprep.subr.mxu0 0.0
    %5968 = vmatpush1.msra.mxu0 %v5439
    %5969 = vmatprep.subr.mxu0 0.0
    %5970 = vmatpush1.msra.mxu0 %v5438
    %5971 = vmatprep.subr.mxu0 0.0
    %5972 = vmatpush1.msra.mxu0 %v5437
    %5973 = vmatprep.subr.mxu0 0.0
    %5974 = vmatpush2.msra.mxu0 0.0
    %5975 = vmatprep.subr.mxu0 0.0
    %5976 = vmatpush2.msra.mxu0 0.0
    %5977 = vmatprep.subr.mxu0 0.0
    %5978 = vmatpush2.msra.mxu0 0.0
    %5979 = vmatprep.subr.mxu0 0.0
    %5980 = vmatpush2.msra.mxu0 0.0
    %5981 = vmatprep.subr.mxu0 0.0
    %5982 = vmatpush2.msra.mxu0 0.0
    %5983 = vmatprep.subr.mxu0 0.0
    %5984 = vmatpush2.msra.mxu0 0.0
    %5985 = vmatprep.subr.mxu0 0.0
    %5986 = vmatpush2.msra.mxu0 0.0
    %5987 = vmatprep.subr.mxu0 0.0
    %5988 = vmatpush2.msra.mxu0 0.0
    %5989 = vmatprep.subr.mxu0 0.0
    %5990 = vmatpush2.msra.mxu0 0.0
    %5991 = vmatprep.subr.mxu0 0.0
    %5992 = vmatpush2.msra.mxu0 0.0
    %5993 = vmatprep.subr.mxu0 0.0
    %5994 = vmatpush2.msra.mxu0 0.0
    %5995 = vmatprep.subr.mxu0 0.0
    %5996 = vmatpush2.msra.mxu0 0.0
    %5997 = vmatprep.subr.mxu0 0.0
    %5998 = vmatpush2.msra.mxu0 0.0
    %5999 = vmatprep.subr.mxu0 0.0
    %6000 = vmatpush2.msra.mxu0 0.0
    %6001 = vmatprep.subr.mxu0 0.0
    %6002 = vmatpush2.msra.mxu0 0.0
    %6003 = vmatprep.subr.mxu0 0.0
    %6004 = vmatpush2.msra.mxu0 0.0
    %6005 = vmatprep.mubr.f32.mxu0 0.0
    %6006 = vmatmul.mubr.f32.gmra.mxu0 %v5939
    %v6007 = vpop.f32.mrf.mxu0
    %v6008 = vadd.f32 0.0, %v6007
    %v6009 = vpop.f32.mrf.mxu0
    %6010 = vdwg.mxu0
    %v6011 = vmul.f32 %v6008, 0.125
    %v6012 = vmul.f32 %v5928, %v5928
    %v6013 = vsel %vm5526, %v6012, 0.0
    %v6014 = vrot.slane %v6013, 4
    %v6015 = vadd.f32 %v6013, %v6014
    %v6016 = vrot.slane %v6015, 2
    %v6017 = vadd.f32 %v6015, %v6016
    %v6018 = vrot.slane %v6017, 1
    %v6019 = vadd.f32 %v6017, %v6018
    %v6021 = vsel %vm5452, %v6019, 0
    %6023 = vmatprep.subr.mxu0 0.0
    %6024 = vmatpush1.msra.mxu0 0.0
    %6025 = vmatprep.subr.mxu0 0.0
    %6026 = vmatpush1.msra.mxu0 0.0
    %6027 = vmatprep.subr.mxu0 0.0
    %6028 = vmatpush1.msra.mxu0 0.0
    %6029 = vmatprep.subr.mxu0 0.0
    %6030 = vmatpush1.msra.mxu0 0.0
    %6031 = vmatprep.subr.mxu0 0.0
    %6032 = vmatpush1.msra.mxu0 0.0
    %6033 = vmatprep.subr.mxu0 0.0
    %6034 = vmatpush1.msra.mxu0 0.0
    %6035 = vmatprep.subr.mxu0 0.0
    %6036 = vmatpush1.msra.mxu0 0.0
    %6037 = vmatprep.subr.mxu0 0.0
    %6038 = vmatpush1.msra.mxu0 0.0
    %6039 = vmatprep.subr.mxu0 0.0
    %6040 = vmatpush1.msra.mxu0 0.0
    %6041 = vmatprep.subr.mxu0 0.0
    %6042 = vmatpush1.msra.mxu0 0.0
    %6043 = vmatprep.subr.mxu0 0.0
    %6044 = vmatpush1.msra.mxu0 0.0
    %6045 = vmatprep.subr.mxu0 0.0
    %6046 = vmatpush1.msra.mxu0 0.0
    %6047 = vmatprep.subr.mxu0 0.0
    %6048 = vmatpush1.msra.mxu0 %v5440
    %6049 = vmatprep.subr.mxu0 0.0
    %6050 = vmatpush1.msra.mxu0 %v5439
    %6051 = vmatprep.subr.mxu0 0.0
    %6052 = vmatpush1.msra.mxu0 %v5438
    %6053 = vmatprep.subr.mxu0 0.0
    %6054 = vmatpush1.msra.mxu0 %v5437
    %6055 = vmatprep.subr.mxu0 0.0
    %6056 = vmatpush2.msra.mxu0 0.0
    %6057 = vmatprep.subr.mxu0 0.0
    %6058 = vmatpush2.msra.mxu0 0.0
    %6059 = vmatprep.subr.mxu0 0.0
    %6060 = vmatpush2.msra.mxu0 0.0
    %6061 = vmatprep.subr.mxu0 0.0
    %6062 = vmatpush2.msra.mxu0 0.0
    %6063 = vmatprep.subr.mxu0 0.0
    %6064 = vmatpush2.msra.mxu0 0.0
    %6065 = vmatprep.subr.mxu0 0.0
    %6066 = vmatpush2.msra.mxu0 0.0
    %6067 = vmatprep.subr.mxu0 0.0
    %6068 = vmatpush2.msra.mxu0 0.0
    %6069 = vmatprep.subr.mxu0 0.0
    %6070 = vmatpush2.msra.mxu0 0.0
    %6071 = vmatprep.subr.mxu0 0.0
    %6072 = vmatpush2.msra.mxu0 0.0
    %6073 = vmatprep.subr.mxu0 0.0
    %6074 = vmatpush2.msra.mxu0 0.0
    %6075 = vmatprep.subr.mxu0 0.0
    %6076 = vmatpush2.msra.mxu0 0.0
    %6077 = vmatprep.subr.mxu0 0.0
    %6078 = vmatpush2.msra.mxu0 0.0
    %6079 = vmatprep.subr.mxu0 0.0
    %6080 = vmatpush2.msra.mxu0 0.0
    %6081 = vmatprep.subr.mxu0 0.0
    %6082 = vmatpush2.msra.mxu0 0.0
    %6083 = vmatprep.subr.mxu0 0.0
    %6084 = vmatpush2.msra.mxu0 0.0
    %6085 = vmatprep.subr.mxu0 0.0
    %6086 = vmatpush2.msra.mxu0 0.0
    %6087 = vmatprep.mubr.f32.mxu0 0.0
    %6088 = vmatmul.mubr.f32.gmra.mxu0 %v6021
    %v6089 = vpop.f32.mrf.mxu0
    %v6090 = vadd.f32 0.0, %v6089
    %v6091 = vpop.f32.mrf.mxu0
    %6092 = vdwg.mxu0
    %v6093 = vmul.f32 %v6090, 0.125
    %v6094 = vmul.f32 %v6011, %v6011
    %v6095 = vsub.f32 %v6093, %v6094
    %v6096 = vadd.f32 %v6095, 1e-05
    %v6097 = vrsqrt.pop %v6096
    %v6099 = vrot.slane %v6097, 6
    %v6101 = vmul.f32 %v5451, %v6099
    %v6103 = vrot.slane %v6101, 2
    %v6105 = vmul.f32 %v6011, %v6103
    %v6107 = vrot.slane %v6105, 5
    %v6109 = vsub.f32 %v5451, %v6107
    %v6110 = vsel %vm3127, %v6103, 0
    %6112 = vmatprep.subr.mxu0 0.0
    %6113 = vmatpush1.msra.mxu0 0.0
    %6114 = vmatprep.subr.mxu0 0.0
    %6115 = vmatpush1.msra.mxu0 0.0
    %6116 = vmatprep.subr.mxu0 0.0
    %6117 = vmatpush1.msra.mxu0 0.0
    %6118 = vmatprep.subr.mxu0 0.0
    %6119 = vmatpush1.msra.mxu0 0.0
    %6120 = vmatprep.subr.mxu0 0.0
    %6121 = vmatpush1.msra.mxu0 0.0
    %6122 = vmatprep.subr.mxu0 0.0
    %6123 = vmatpush1.msra.mxu0 0.0
    %6124 = vmatprep.subr.mxu0 0.0
    %6125 = vmatpush1.msra.mxu0 0.0
    %6126 = vmatprep.subr.mxu0 0.0
    %6127 = vmatpush1.msra.mxu0 0.0
    %6128 = vmatprep.subr.mxu0 0.0
    %6129 = vmatpush1.msra.mxu0 0.0
    %6130 = vmatprep.subr.mxu0 0.0
    %6131 = vmatpush1.msra.mxu0 0.0
    %6132 = vmatprep.subr.mxu0 0.0
    %6133 = vmatpush1.msra.mxu0 0.0
    %6134 = vmatprep.subr.mxu0 0.0
    %6135 = vmatpush1.msra.mxu0 0.0
    %6136 = vmatprep.subr.mxu0 0.0
    %6137 = vmatpush1.msra.mxu0 0.0
    %6138 = vmatprep.subr.mxu0 0.0
    %6139 = vmatpush1.msra.mxu0 0.0
    %6140 = vmatprep.subr.mxu0 0.0
    %6141 = vmatpush1.msra.mxu0 0.0
    %6142 = vmatprep.subr.mxu0 0.0
    %6143 = vmatpush1.msra.mxu0 %v5441
    %6144 = vmatprep.subr.mxu0 0.0
    %6145 = vmatpush2.msra.mxu0 0.0
    %6146 = vmatprep.subr.mxu0 0.0
    %6147 = vmatpush2.msra.mxu0 0.0
    %6148 = vmatprep.subr.mxu0 0.0
    %6149 = vmatpush2.msra.mxu0 0.0
    %6150 = vmatprep.subr.mxu0 0.0
    %6151 = vmatpush2.msra.mxu0 0.0
    %6152 = vmatprep.subr.mxu0 0.0
    %6153 = vmatpush2.msra.mxu0 0.0
    %6154 = vmatprep.subr.mxu0 0.0
    %6155 = vmatpush2.msra.mxu0 0.0
    %6156 = vmatprep.subr.mxu0 0.0
    %6157 = vmatpush2.msra.mxu0 0.0
    %6158 = vmatprep.subr.mxu0 0.0
    %6159 = vmatpush2.msra.mxu0 0.0
    %6160 = vmatprep.subr.mxu0 0.0
    %6161 = vmatpush2.msra.mxu0 0.0
    %6162 = vmatprep.subr.mxu0 0.0
    %6163 = vmatpush2.msra.mxu0 0.0
    %6164 = vmatprep.subr.mxu0 0.0
    %6165 = vmatpush2.msra.mxu0 0.0
    %6166 = vmatprep.subr.mxu0 0.0
    %6167 = vmatpush2.msra.mxu0 0.0
    %6168 = vmatprep.subr.mxu0 0.0
    %6169 = vmatpush2.msra.mxu0 0.0
    %6170 = vmatprep.subr.mxu0 0.0
    %6171 = vmatpush2.msra.mxu0 0.0
    %6172 = vmatprep.subr.mxu0 0.0
    %6173 = vmatpush2.msra.mxu0 0.0
    %6174 = vmatprep.subr.mxu0 0.0
    %6175 = vmatpush2.msra.mxu0 0.0
    %6176 = vmatprep.mubr.f32.mxu0 0.0
    %6177 = vmatmul.mubr.f32.gmra.mxu0 %v6110
    %v6178 = vpop.f32.mrf.mxu0
    %v6179 = vadd.f32 0.0, %v6178
    %v6180 = vpop.f32.mrf.mxu0
    %6181 = vdwg.mxu0
    %v6183 = vrot.slane %v6109, 3
    %v6184 = vsel %vm3127, %v6183, 0
    %6186 = vmatprep.subr.mxu0 0.0
    %6187 = vmatpush1.msra.mxu0 0.0
    %6188 = vmatprep.subr.mxu0 0.0
    %6189 = vmatpush1.msra.mxu0 0.0
    %6190 = vmatprep.subr.mxu0 0.0
    %6191 = vmatpush1.msra.mxu0 0.0
    %6192 = vmatprep.subr.mxu0 0.0
    %6193 = vmatpush1.msra.mxu0 0.0
    %6194 = vmatprep.subr.mxu0 0.0
    %6195 = vmatpush1.msra.mxu0 0.0
    %6196 = vmatprep.subr.mxu0 0.0
    %6197 = vmatpush1.msra.mxu0 0.0
    %6198 = vmatprep.subr.mxu0 0.0
    %6199 = vmatpush1.msra.mxu0 0.0
    %6200 = vmatprep.subr.mxu0 0.0
    %6201 = vmatpush1.msra.mxu0 0.0
    %6202 = vmatprep.subr.mxu0 0.0
    %6203 = vmatpush1.msra.mxu0 0.0
    %6204 = vmatprep.subr.mxu0 0.0
    %6205 = vmatpush1.msra.mxu0 0.0
    %6206 = vmatprep.subr.mxu0 0.0
    %6207 = vmatpush1.msra.mxu0 0.0
    %6208 = vmatprep.subr.mxu0 0.0
    %6209 = vmatpush1.msra.mxu0 0.0
    %6210 = vmatprep.subr.mxu0 0.0
    %6211 = vmatpush1.msra.mxu0 0.0
    %6212 = vmatprep.subr.mxu0 0.0
    %6213 = vmatpush1.msra.mxu0 0.0
    %6214 = vmatprep.subr.mxu0 0.0
    %6215 = vmatpush1.msra.mxu0 0.0
    %6216 = vmatprep.subr.mxu0 0.0
    %6217 = vmatpush1.msra.mxu0 %v5441
    %6218 = vmatprep.subr.mxu0 0.0
    %6219 = vmatpush2.msra.mxu0 0.0
    %6220 = vmatprep.subr.mxu0 0.0
    %6221 = vmatpush2.msra.mxu0 0.0
    %6222 = vmatprep.subr.mxu0 0.0
    %6223 = vmatpush2.msra.mxu0 0.0
    %6224 = vmatprep.subr.mxu0 0.0
    %6225 = vmatpush2.msra.mxu0 0.0
    %6226 = vmatprep.subr.mxu0 0.0
    %6227 = vmatpush2.msra.mxu0 0.0
    %6228 = vmatprep.subr.mxu0 0.0
    %6229 = vmatpush2.msra.mxu0 0.0
    %6230 = vmatprep.subr.mxu0 0.0
    %6231 = vmatpush2.msra.mxu0 0.0
    %6232 = vmatprep.subr.mxu0 0.0
    %6233 = vmatpush2.msra.mxu0 0.0
    %6234 = vmatprep.subr.mxu0 0.0
    %6235 = vmatpush2.msra.mxu0 0.0
    %6236 = vmatprep.subr.mxu0 0.0
    %6237 = vmatpush2.msra.mxu0 0.0
    %6238 = vmatprep.subr.mxu0 0.0
    %6239 = vmatpush2.msra.mxu0 0.0
    %6240 = vmatprep.subr.mxu0 0.0
    %6241 = vmatpush2.msra.mxu0 0.0
    %6242 = vmatprep.subr.mxu0 0.0
    %6243 = vmatpush2.msra.mxu0 0.0
    %6244 = vmatprep.subr.mxu0 0.0
    %6245 = vmatpush2.msra.mxu0 0.0
    %6246 = vmatprep.subr.mxu0 0.0
    %6247 = vmatpush2.msra.mxu0 0.0
    %6248 = vmatprep.subr.mxu0 0.0
    %6249 = vmatpush2.msra.mxu0 0.0
    %6250 = vmatprep.mubr.f32.mxu0 0.0
    %6251 = vmatmul.mubr.f32.gmra.mxu0 %v6184
    %v6252 = vpop.f32.mrf.mxu0
    %v6253 = vadd.f32 0.0, %v6252
    %v6254 = vpop.f32.mrf.mxu0
    %6255 = vdwg.mxu0
    %v6256 = vlaneseq
    %v6257 = vshrl.u32 %v6256, 7
    %v6258 = vsub.s32 0, %v6257
    %v6259 = vrot.slane %v6179, %v6258
    %v6260 = vmul.f32 %v5928, %v6259
    %v6261 = vlaneseq
    %v6262 = vshrl.u32 %v6261, 7
    %v6263 = vsub.s32 0, %v6262
    %v6264 = vrot.slane %v6253, %v6263
    %v6265 = vadd.f32 %v6260, %v6264
    %v6266 = vadd.f32 %v6265, %v5434
    %v6267 = vmax.f32 %v6266, 0.0
    %s6268 = scalar_lea.vmem [#allocation10], 64
    %v6269 = vld [vmem:[%s6268] sm:$0xff]
    %v6270 = vld [vmem:[%s6268 + $0x8] sm:$0xff]
    %v6271 = vld [vmem:[%s6268 + $0x10] sm:$0xff]
    %v6272 = vld [vmem:[%s6268 + $0x18] sm:$0xff]
    %s6273 = scalar_lea.vmem [#allocation10], 96
    %v6274 = vld [vmem:[%s6273] sm:$0xff]
    %v6275 = vld [vmem:[%s6273 + $0x8] sm:$0xff]
    %v6276 = vld [vmem:[%s6273 + $0x10] sm:$0xff]
    %v6277 = vld [vmem:[%s6273 + $0x18] sm:$0xff]
    %s6278 = scalar_lea.vmem %s10, 4
    %v6279 = vld [vmem:[%s6278] sm:$0xf]
    %v6281 = vsel %vm5452, %v6267, 0
    %6283 = vmatprep.subr.mxu0 0.0
    %6284 = vmatpush1.msra.mxu0 0.0
    %6285 = vmatprep.subr.mxu0 0.0
    %6286 = vmatpush1.msra.mxu0 0.0
    %6287 = vmatprep.subr.mxu0 0.0
    %6288 = vmatpush1.msra.mxu0 0.0
    %6289 = vmatprep.subr.mxu0 0.0
    %6290 = vmatpush1.msra.mxu0 0.0
    %6291 = vmatprep.subr.mxu0 0.0
    %6292 = vmatpush1.msra.mxu0 0.0
    %6293 = vmatprep.subr.mxu0 0.0
    %6294 = vmatpush1.msra.mxu0 0.0
    %6295 = vmatprep.subr.mxu0 0.0
    %6296 = vmatpush1.msra.mxu0 0.0
    %6297 = vmatprep.subr.mxu0 0.0
    %6298 = vmatpush1.msra.mxu0 0.0
    %6299 = vmatprep.subr.mxu0 0.0
    %6300 = vmatpush1.msra.mxu0 0.0
    %6301 = vmatprep.subr.mxu0 0.0
    %6302 = vmatpush1.msra.mxu0 0.0
    %6303 = vmatprep.subr.mxu0 0.0
    %6304 = vmatpush1.msra.mxu0 0.0
    %6305 = vmatprep.subr.mxu0 0.0
    %6306 = vmatpush1.msra.mxu0 0.0
    %6307 = vmatprep.subr.mxu0 0.0
    %6308 = vmatpush1.msra.mxu0 %v6272
    %6309 = vmatprep.subr.mxu0 0.0
    %6310 = vmatpush1.msra.mxu0 %v6271
    %6311 = vmatprep.subr.mxu0 0.0
    %6312 = vmatpush1.msra.mxu0 %v6270
    %6313 = vmatprep.subr.mxu0 0.0
    %6314 = vmatpush1.msra.mxu0 %v6269
    %6315 = vmatprep.subr.mxu0 0.0
    %6316 = vmatpush2.msra.mxu0 0.0
    %6317 = vmatprep.subr.mxu0 0.0
    %6318 = vmatpush2.msra.mxu0 0.0
    %6319 = vmatprep.subr.mxu0 0.0
    %6320 = vmatpush2.msra.mxu0 0.0
    %6321 = vmatprep.subr.mxu0 0.0
    %6322 = vmatpush2.msra.mxu0 0.0
    %6323 = vmatprep.subr.mxu0 0.0
    %6324 = vmatpush2.msra.mxu0 0.0
    %6325 = vmatprep.subr.mxu0 0.0
    %6326 = vmatpush2.msra.mxu0 0.0
    %6327 = vmatprep.subr.mxu0 0.0
    %6328 = vmatpush2.msra.mxu0 0.0
    %6329 = vmatprep.subr.mxu0 0.0
    %6330 = vmatpush2.msra.mxu0 0.0
    %6331 = vmatprep.subr.mxu0 0.0
    %6332 = vmatpush2.msra.mxu0 0.0
    %6333 = vmatprep.subr.mxu0 0.0
    %6334 = vmatpush2.msra.mxu0 0.0
    %6335 = vmatprep.subr.mxu0 0.0
    %6336 = vmatpush2.msra.mxu0 0.0
    %6337 = vmatprep.subr.mxu0 0.0
    %6338 = vmatpush2.msra.mxu0 0.0
    %6339 = vmatprep.subr.mxu0 0.0
    %6340 = vmatpush2.msra.mxu0 0.0
    %6341 = vmatprep.subr.mxu0 0.0
    %6342 = vmatpush2.msra.mxu0 0.0
    %6343 = vmatprep.subr.mxu0 0.0
    %6344 = vmatpush2.msra.mxu0 0.0
    %6345 = vmatprep.subr.mxu0 0.0
    %6346 = vmatpush2.msra.mxu0 0.0
    %6347 = vmatprep.mubr.f32.mxu0 0.0
    %6348 = vmatmul.mubr.f32.gmra.mxu0 %v6281
    %v6349 = vpop.f32.mrf.mxu0
    %v6350 = vadd.f32 0.0, %v6349
    %v6351 = vpop.f32.mrf.mxu0
    %6352 = vdwg.mxu0
    %v6353 = vsel %vm5526, %v6350, 0.0
    %v6354 = vrot.slane %v6353, 4
    %v6355 = vadd.f32 %v6353, %v6354
    %v6356 = vrot.slane %v6355, 2
    %v6357 = vadd.f32 %v6355, %v6356
    %v6358 = vrot.slane %v6357, 1
    %v6359 = vadd.f32 %v6357, %v6358
    %v6361 = vsel %vm5452, %v6359, 0
    %6363 = vmatprep.subr.mxu0 0.0
    %6364 = vmatpush1.msra.mxu0 0.0
    %6365 = vmatprep.subr.mxu0 0.0
    %6366 = vmatpush1.msra.mxu0 0.0
    %6367 = vmatprep.subr.mxu0 0.0
    %6368 = vmatpush1.msra.mxu0 0.0
    %6369 = vmatprep.subr.mxu0 0.0
    %6370 = vmatpush1.msra.mxu0 0.0
    %6371 = vmatprep.subr.mxu0 0.0
    %6372 = vmatpush1.msra.mxu0 0.0
    %6373 = vmatprep.subr.mxu0 0.0
    %6374 = vmatpush1.msra.mxu0 0.0
    %6375 = vmatprep.subr.mxu0 0.0
    %6376 = vmatpush1.msra.mxu0 0.0
    %6377 = vmatprep.subr.mxu0 0.0
    %6378 = vmatpush1.msra.mxu0 0.0
    %6379 = vmatprep.subr.mxu0 0.0
    %6380 = vmatpush1.msra.mxu0 0.0
    %6381 = vmatprep.subr.mxu0 0.0
    %6382 = vmatpush1.msra.mxu0 0.0
    %6383 = vmatprep.subr.mxu0 0.0
    %6384 = vmatpush1.msra.mxu0 0.0
    %6385 = vmatprep.subr.mxu0 0.0
    %6386 = vmatpush1.msra.mxu0 0.0
    %6387 = vmatprep.subr.mxu0 0.0
    %6388 = vmatpush1.msra.mxu0 %v5440
    %6389 = vmatprep.subr.mxu0 0.0
    %6390 = vmatpush1.msra.mxu0 %v5439
    %6391 = vmatprep.subr.mxu0 0.0
    %6392 = vmatpush1.msra.mxu0 %v5438
    %6393 = vmatprep.subr.mxu0 0.0
    %6394 = vmatpush1.msra.mxu0 %v5437
    %6395 = vmatprep.subr.mxu0 0.0
    %6396 = vmatpush2.msra.mxu0 0.0
    %6397 = vmatprep.subr.mxu0 0.0
    %6398 = vmatpush2.msra.mxu0 0.0
    %6399 = vmatprep.subr.mxu0 0.0
    %6400 = vmatpush2.msra.mxu0 0.0
    %6401 = vmatprep.subr.mxu0 0.0
    %6402 = vmatpush2.msra.mxu0 0.0
    %6403 = vmatprep.subr.mxu0 0.0
    %6404 = vmatpush2.msra.mxu0 0.0
    %6405 = vmatprep.subr.mxu0 0.0
    %6406 = vmatpush2.msra.mxu0 0.0
    %6407 = vmatprep.subr.mxu0 0.0
    %6408 = vmatpush2.msra.mxu0 0.0
    %6409 = vmatprep.subr.mxu0 0.0
    %6410 = vmatpush2.msra.mxu0 0.0
    %6411 = vmatprep.subr.mxu0 0.0
    %6412 = vmatpush2.msra.mxu0 0.0
    %6413 = vmatprep.subr.mxu0 0.0
    %6414 = vmatpush2.msra.mxu0 0.0
    %6415 = vmatprep.subr.mxu0 0.0
    %6416 = vmatpush2.msra.mxu0 0.0
    %6417 = vmatprep.subr.mxu0 0.0
    %6418 = vmatpush2.msra.mxu0 0.0
    %6419 = vmatprep.subr.mxu0 0.0
    %6420 = vmatpush2.msra.mxu0 0.0
    %6421 = vmatprep.subr.mxu0 0.0
    %6422 = vmatpush2.msra.mxu0 0.0
    %6423 = vmatprep.subr.mxu0 0.0
    %6424 = vmatpush2.msra.mxu0 0.0
    %6425 = vmatprep.subr.mxu0 0.0
    %6426 = vmatpush2.msra.mxu0 0.0
    %6427 = vmatprep.mubr.f32.mxu0 0.0
    %6428 = vmatmul.mubr.f32.gmra.mxu0 %v6361
    %v6429 = vpop.f32.mrf.mxu0
    %v6430 = vadd.f32 0.0, %v6429
    %v6431 = vpop.f32.mrf.mxu0
    %6432 = vdwg.mxu0
    %v6433 = vmul.f32 %v6430, 0.125
    %v6434 = vmul.f32 %v6350, %v6350
    %v6435 = vsel %vm5526, %v6434, 0.0
    %v6436 = vrot.slane %v6435, 4
    %v6437 = vadd.f32 %v6435, %v6436
    %v6438 = vrot.slane %v6437, 2
    %v6439 = vadd.f32 %v6437, %v6438
    %v6440 = vrot.slane %v6439, 1
    %v6441 = vadd.f32 %v6439, %v6440
    %v6443 = vsel %vm5452, %v6441, 0
    %6445 = vmatprep.subr.mxu0 0.0
    %6446 = vmatpush1.msra.mxu0 0.0
    %6447 = vmatprep.subr.mxu0 0.0
    %6448 = vmatpush1.msra.mxu0 0.0
    %6449 = vmatprep.subr.mxu0 0.0
    %6450 = vmatpush1.msra.mxu0 0.0
    %6451 = vmatprep.subr.mxu0 0.0
    %6452 = vmatpush1.msra.mxu0 0.0
    %6453 = vmatprep.subr.mxu0 0.0
    %6454 = vmatpush1.msra.mxu0 0.0
    %6455 = vmatprep.subr.mxu0 0.0
    %6456 = vmatpush1.msra.mxu0 0.0
    %6457 = vmatprep.subr.mxu0 0.0
    %6458 = vmatpush1.msra.mxu0 0.0
    %6459 = vmatprep.subr.mxu0 0.0
    %6460 = vmatpush1.msra.mxu0 0.0
    %6461 = vmatprep.subr.mxu0 0.0
    %6462 = vmatpush1.msra.mxu0 0.0
    %6463 = vmatprep.subr.mxu0 0.0
    %6464 = vmatpush1.msra.mxu0 0.0
    %6465 = vmatprep.subr.mxu0 0.0
    %6466 = vmatpush1.msra.mxu0 0.0
    %6467 = vmatprep.subr.mxu0 0.0
    %6468 = vmatpush1.msra.mxu0 0.0
    %6469 = vmatprep.subr.mxu0 0.0
    %6470 = vmatpush1.msra.mxu0 %v5440
    %6471 = vmatprep.subr.mxu0 0.0
    %6472 = vmatpush1.msra.mxu0 %v5439
    %6473 = vmatprep.subr.mxu0 0.0
    %6474 = vmatpush1.msra.mxu0 %v5438
    %6475 = vmatprep.subr.mxu0 0.0
    %6476 = vmatpush1.msra.mxu0 %v5437
    %6477 = vmatprep.subr.mxu0 0.0
    %6478 = vmatpush2.msra.mxu0 0.0
    %6479 = vmatprep.subr.mxu0 0.0
    %6480 = vmatpush2.msra.mxu0 0.0
    %6481 = vmatprep.subr.mxu0 0.0
    %6482 = vmatpush2.msra.mxu0 0.0
    %6483 = vmatprep.subr.mxu0 0.0
    %6484 = vmatpush2.msra.mxu0 0.0
    %6485 = vmatprep.subr.mxu0 0.0
    %6486 = vmatpush2.msra.mxu0 0.0
    %6487 = vmatprep.subr.mxu0 0.0
    %6488 = vmatpush2.msra.mxu0 0.0
    %6489 = vmatprep.subr.mxu0 0.0
    %6490 = vmatpush2.msra.mxu0 0.0
    %6491 = vmatprep.subr.mxu0 0.0
    %6492 = vmatpush2.msra.mxu0 0.0
    %6493 = vmatprep.subr.mxu0 0.0
    %6494 = vmatpush2.msra.mxu0 0.0
    %6495 = vmatprep.subr.mxu0 0.0
    %6496 = vmatpush2.msra.mxu0 0.0
    %6497 = vmatprep.subr.mxu0 0.0
    %6498 = vmatpush2.msra.mxu0 0.0
    %6499 = vmatprep.subr.mxu0 0.0
    %6500 = vmatpush2.msra.mxu0 0.0
    %6501 = vmatprep.subr.mxu0 0.0
    %6502 = vmatpush2.msra.mxu0 0.0
    %6503 = vmatprep.subr.mxu0 0.0
    %6504 = vmatpush2.msra.mxu0 0.0
    %6505 = vmatprep.subr.mxu0 0.0
    %6506 = vmatpush2.msra.mxu0 0.0
    %6507 = vmatprep.subr.mxu0 0.0
    %6508 = vmatpush2.msra.mxu0 0.0
    %6509 = vmatprep.mubr.f32.mxu0 0.0
    %6510 = vmatmul.mubr.f32.gmra.mxu0 %v6443
    %v6511 = vpop.f32.mrf.mxu0
    %v6512 = vadd.f32 0.0, %v6511
    %v6513 = vpop.f32.mrf.mxu0
    %6514 = vdwg.mxu0
    %v6515 = vmul.f32 %v6512, 0.125
    %v6516 = vmul.f32 %v6433, %v6433
    %v6517 = vsub.f32 %v6515, %v6516
    %v6518 = vadd.f32 %v6517, 1e-05
    %v6519 = vrsqrt.pop %v6518
    %v6520 = vmul.f32 %v6279, %v6519
    %v6521 = vmul.f32 %v6433, %v6520
    %v6523 = vrot.slane %v6521, 7
    %v6525 = vsub.f32 %v6279, %v6523
    %v6527 = vsel %vm3127, %v6520, 0
    %6529 = vmatprep.subr.mxu0 0.0
    %6530 = vmatpush1.msra.mxu0 0.0
    %6531 = vmatprep.subr.mxu0 0.0
    %6532 = vmatpush1.msra.mxu0 0.0
    %6533 = vmatprep.subr.mxu0 0.0
    %6534 = vmatpush1.msra.mxu0 0.0
    %6535 = vmatprep.subr.mxu0 0.0
    %6536 = vmatpush1.msra.mxu0 0.0
    %6537 = vmatprep.subr.mxu0 0.0
    %6538 = vmatpush1.msra.mxu0 0.0
    %6539 = vmatprep.subr.mxu0 0.0
    %6540 = vmatpush1.msra.mxu0 0.0
    %6541 = vmatprep.subr.mxu0 0.0
    %6542 = vmatpush1.msra.mxu0 0.0
    %6543 = vmatprep.subr.mxu0 0.0
    %6544 = vmatpush1.msra.mxu0 0.0
    %6545 = vmatprep.subr.mxu0 0.0
    %6546 = vmatpush1.msra.mxu0 0.0
    %6547 = vmatprep.subr.mxu0 0.0
    %6548 = vmatpush1.msra.mxu0 0.0
    %6549 = vmatprep.subr.mxu0 0.0
    %6550 = vmatpush1.msra.mxu0 0.0
    %6551 = vmatprep.subr.mxu0 0.0
    %6552 = vmatpush1.msra.mxu0 0.0
    %6553 = vmatprep.subr.mxu0 0.0
    %6554 = vmatpush1.msra.mxu0 0.0
    %6555 = vmatprep.subr.mxu0 0.0
    %6556 = vmatpush1.msra.mxu0 0.0
    %6557 = vmatprep.subr.mxu0 0.0
    %6558 = vmatpush1.msra.mxu0 0.0
    %6559 = vmatprep.subr.mxu0 0.0
    %6560 = vmatpush1.msra.mxu0 %v5441
    %6561 = vmatprep.subr.mxu0 0.0
    %6562 = vmatpush2.msra.mxu0 0.0
    %6563 = vmatprep.subr.mxu0 0.0
    %6564 = vmatpush2.msra.mxu0 0.0
    %6565 = vmatprep.subr.mxu0 0.0
    %6566 = vmatpush2.msra.mxu0 0.0
    %6567 = vmatprep.subr.mxu0 0.0
    %6568 = vmatpush2.msra.mxu0 0.0
    %6569 = vmatprep.subr.mxu0 0.0
    %6570 = vmatpush2.msra.mxu0 0.0
    %6571 = vmatprep.subr.mxu0 0.0
    %6572 = vmatpush2.msra.mxu0 0.0
    %6573 = vmatprep.subr.mxu0 0.0
    %6574 = vmatpush2.msra.mxu0 0.0
    %6575 = vmatprep.subr.mxu0 0.0
    %6576 = vmatpush2.msra.mxu0 0.0
    %6577 = vmatprep.subr.mxu0 0.0
    %6578 = vmatpush2.msra.mxu0 0.0
    %6579 = vmatprep.subr.mxu0 0.0
    %6580 = vmatpush2.msra.mxu0 0.0
    %6581 = vmatprep.subr.mxu0 0.0
    %6582 = vmatpush2.msra.mxu0 0.0
    %6583 = vmatprep.subr.mxu0 0.0
    %6584 = vmatpush2.msra.mxu0 0.0
    %6585 = vmatprep.subr.mxu0 0.0
    %6586 = vmatpush2.msra.mxu0 0.0
    %6587 = vmatprep.subr.mxu0 0.0
    %6588 = vmatpush2.msra.mxu0 0.0
    %6589 = vmatprep.subr.mxu0 0.0
    %6590 = vmatpush2.msra.mxu0 0.0
    %6591 = vmatprep.subr.mxu0 0.0
    %6592 = vmatpush2.msra.mxu0 0.0
    %6593 = vmatprep.mubr.f32.mxu0 0.0
    %6594 = vmatmul.mubr.f32.gmra.mxu0 %v6527
    %v6595 = vpop.f32.mrf.mxu0
    %v6596 = vadd.f32 0.0, %v6595
    %v6597 = vpop.f32.mrf.mxu0
    %6598 = vdwg.mxu0
    %v6600 = vrot.slane %v6525, 1
    %v6601 = vsel %vm3127, %v6600, 0
    %6603 = vmatprep.subr.mxu0 0.0
    %6604 = vmatpush1.msra.mxu0 0.0
    %6605 = vmatprep.subr.mxu0 0.0
    %6606 = vmatpush1.msra.mxu0 0.0
    %6607 = vmatprep.subr.mxu0 0.0
    %6608 = vmatpush1.msra.mxu0 0.0
    %6609 = vmatprep.subr.mxu0 0.0
    %6610 = vmatpush1.msra.mxu0 0.0
    %6611 = vmatprep.subr.mxu0 0.0
    %6612 = vmatpush1.msra.mxu0 0.0
    %6613 = vmatprep.subr.mxu0 0.0
    %6614 = vmatpush1.msra.mxu0 0.0
    %6615 = vmatprep.subr.mxu0 0.0
    %6616 = vmatpush1.msra.mxu0 0.0
    %6617 = vmatprep.subr.mxu0 0.0
    %6618 = vmatpush1.msra.mxu0 0.0
    %6619 = vmatprep.subr.mxu0 0.0
    %6620 = vmatpush1.msra.mxu0 0.0
    %6621 = vmatprep.subr.mxu0 0.0
    %6622 = vmatpush1.msra.mxu0 0.0
    %6623 = vmatprep.subr.mxu0 0.0
    %6624 = vmatpush1.msra.mxu0 0.0
    %6625 = vmatprep.subr.mxu0 0.0
    %6626 = vmatpush1.msra.mxu0 0.0
    %6627 = vmatprep.subr.mxu0 0.0
    %6628 = vmatpush1.msra.mxu0 0.0
    %6629 = vmatprep.subr.mxu0 0.0
    %6630 = vmatpush1.msra.mxu0 0.0
    %6631 = vmatprep.subr.mxu0 0.0
    %6632 = vmatpush1.msra.mxu0 0.0
    %6633 = vmatprep.subr.mxu0 0.0
    %6634 = vmatpush1.msra.mxu0 %v5441
    %6635 = vmatprep.subr.mxu0 0.0
    %6636 = vmatpush2.msra.mxu0 0.0
    %6637 = vmatprep.subr.mxu0 0.0
    %6638 = vmatpush2.msra.mxu0 0.0
    %6639 = vmatprep.subr.mxu0 0.0
    %6640 = vmatpush2.msra.mxu0 0.0
    %6641 = vmatprep.subr.mxu0 0.0
    %6642 = vmatpush2.msra.mxu0 0.0
    %6643 = vmatprep.subr.mxu0 0.0
    %6644 = vmatpush2.msra.mxu0 0.0
    %6645 = vmatprep.subr.mxu0 0.0
    %6646 = vmatpush2.msra.mxu0 0.0
    %6647 = vmatprep.subr.mxu0 0.0
    %6648 = vmatpush2.msra.mxu0 0.0
    %6649 = vmatprep.subr.mxu0 0.0
    %6650 = vmatpush2.msra.mxu0 0.0
    %6651 = vmatprep.subr.mxu0 0.0
    %6652 = vmatpush2.msra.mxu0 0.0
    %6653 = vmatprep.subr.mxu0 0.0
    %6654 = vmatpush2.msra.mxu0 0.0
    %6655 = vmatprep.subr.mxu0 0.0
    %6656 = vmatpush2.msra.mxu0 0.0
    %6657 = vmatprep.subr.mxu0 0.0
    %6658 = vmatpush2.msra.mxu0 0.0
    %6659 = vmatprep.subr.mxu0 0.0
    %6660 = vmatpush2.msra.mxu0 0.0
    %6661 = vmatprep.subr.mxu0 0.0
    %6662 = vmatpush2.msra.mxu0 0.0
    %6663 = vmatprep.subr.mxu0 0.0
    %6664 = vmatpush2.msra.mxu0 0.0
    %6665 = vmatprep.subr.mxu0 0.0
    %6666 = vmatpush2.msra.mxu0 0.0
    %6667 = vmatprep.mubr.f32.mxu0 0.0
    %6668 = vmatmul.mubr.f32.gmra.mxu0 %v6601
    %v6669 = vpop.f32.mrf.mxu0
    %v6670 = vadd.f32 0.0, %v6669
    %v6671 = vpop.f32.mrf.mxu0
    %6672 = vdwg.mxu0
    %v6673 = vlaneseq
    %v6674 = vshrl.u32 %v6673, 7
    %v6675 = vsub.s32 0, %v6674
    %v6676 = vrot.slane %v6596, %v6675
    %v6677 = vmul.f32 %v6350, %v6676
    %v6678 = vlaneseq
    %v6679 = vshrl.u32 %v6678, 7
    %v6680 = vsub.s32 0, %v6679
    %v6681 = vrot.slane %v6670, %v6680
    %v6682 = vadd.f32 %v6677, %v6681
    %v6683 = vmax.f32 %v6682, 0.0
    %v6685 = vsel %vm5452, %v6683, 0
    %6687 = vmatprep.subr.mxu0 0.0
    %6688 = vmatpush1.msra.mxu0 0.0
    %6689 = vmatprep.subr.mxu0 0.0
    %6690 = vmatpush1.msra.mxu0 0.0
    %6691 = vmatprep.subr.mxu0 0.0
    %6692 = vmatpush1.msra.mxu0 0.0
    %6693 = vmatprep.subr.mxu0 0.0
    %6694 = vmatpush1.msra.mxu0 0.0
    %6695 = vmatprep.subr.mxu0 0.0
    %6696 = vmatpush1.msra.mxu0 0.0
    %6697 = vmatprep.subr.mxu0 0.0
    %6698 = vmatpush1.msra.mxu0 0.0
    %6699 = vmatprep.subr.mxu0 0.0
    %6700 = vmatpush1.msra.mxu0 0.0
    %6701 = vmatprep.subr.mxu0 0.0
    %6702 = vmatpush1.msra.mxu0 0.0
    %6703 = vmatprep.subr.mxu0 0.0
    %6704 = vmatpush1.msra.mxu0 0.0
    %6705 = vmatprep.subr.mxu0 0.0
    %6706 = vmatpush1.msra.mxu0 0.0
    %6707 = vmatprep.subr.mxu0 0.0
    %6708 = vmatpush1.msra.mxu0 0.0
    %6709 = vmatprep.subr.mxu0 0.0
    %6710 = vmatpush1.msra.mxu0 0.0
    %6711 = vmatprep.subr.mxu0 0.0
    %6712 = vmatpush1.msra.mxu0 %v6277
    %6713 = vmatprep.subr.mxu0 0.0
    %6714 = vmatpush1.msra.mxu0 %v6276
    %6715 = vmatprep.subr.mxu0 0.0
    %6716 = vmatpush1.msra.mxu0 %v6275
    %6717 = vmatprep.subr.mxu0 0.0
    %6718 = vmatpush1.msra.mxu0 %v6274
    %6719 = vmatprep.subr.mxu0 0.0
    %6720 = vmatpush2.msra.mxu0 0.0
    %6721 = vmatprep.subr.mxu0 0.0
    %6722 = vmatpush2.msra.mxu0 0.0
    %6723 = vmatprep.subr.mxu0 0.0
    %6724 = vmatpush2.msra.mxu0 0.0
    %6725 = vmatprep.subr.mxu0 0.0
    %6726 = vmatpush2.msra.mxu0 0.0
    %6727 = vmatprep.subr.mxu0 0.0
    %6728 = vmatpush2.msra.mxu0 0.0
    %6729 = vmatprep.subr.mxu0 0.0
    %6730 = vmatpush2.msra.mxu0 0.0
    %6731 = vmatprep.subr.mxu0 0.0
    %6732 = vmatpush2.msra.mxu0 0.0
    %6733 = vmatprep.subr.mxu0 0.0
    %6734 = vmatpush2.msra.mxu0 0.0
    %6735 = vmatprep.subr.mxu0 0.0
    %6736 = vmatpush2.msra.mxu0 0.0
    %6737 = vmatprep.subr.mxu0 0.0
    %6738 = vmatpush2.msra.mxu0 0.0
    %6739 = vmatprep.subr.mxu0 0.0
    %6740 = vmatpush2.msra.mxu0 0.0
    %6741 = vmatprep.subr.mxu0 0.0
    %6742 = vmatpush2.msra.mxu0 0.0
    %6743 = vmatprep.subr.mxu0 0.0
    %6744 = vmatpush2.msra.mxu0 0.0
    %6745 = vmatprep.subr.mxu0 0.0
    %6746 = vmatpush2.msra.mxu0 0.0
    %6747 = vmatprep.subr.mxu0 0.0
    %6748 = vmatpush2.msra.mxu0 0.0
    %6749 = vmatprep.subr.mxu0 0.0
    %6750 = vmatpush2.msra.mxu0 0.0
    %6751 = vmatprep.mubr.f32.mxu0 0.0
    %6752 = vmatmul.mubr.f32.gmra.mxu0 %v6685
    %v6753 = vpop.f32.mrf.mxu0
    %v6754 = vadd.f32 0.0, %v6753
    %v6755 = vpop.f32.mrf.mxu0
    %6756 = vdwg.mxu0
    %v6757 = vsel %vm5526, %v6754, 0.0
    %v6758 = vrot.slane %v6757, 4
    %v6759 = vadd.f32 %v6757, %v6758
    %v6760 = vrot.slane %v6759, 2
    %v6761 = vadd.f32 %v6759, %v6760
    %v6762 = vrot.slane %v6761, 1
    %v6763 = vadd.f32 %v6761, %v6762
    %v6765 = vsel %vm5452, %v6763, 0
    %6767 = vmatprep.subr.mxu0 0.0
    %6768 = vmatpush1.msra.mxu0 0.0
    %6769 = vmatprep.subr.mxu0 0.0
    %6770 = vmatpush1.msra.mxu0 0.0
    %6771 = vmatprep.subr.mxu0 0.0
    %6772 = vmatpush1.msra.mxu0 0.0
    %6773 = vmatprep.subr.mxu0 0.0
    %6774 = vmatpush1.msra.mxu0 0.0
    %6775 = vmatprep.subr.mxu0 0.0
    %6776 = vmatpush1.msra.mxu0 0.0
    %6777 = vmatprep.subr.mxu0 0.0
    %6778 = vmatpush1.msra.mxu0 0.0
    %6779 = vmatprep.subr.mxu0 0.0
    %6780 = vmatpush1.msra.mxu0 0.0
    %6781 = vmatprep.subr.mxu0 0.0
    %6782 = vmatpush1.msra.mxu0 0.0
    %6783 = vmatprep.subr.mxu0 0.0
    %6784 = vmatpush1.msra.mxu0 0.0
    %6785 = vmatprep.subr.mxu0 0.0
    %6786 = vmatpush1.msra.mxu0 0.0
    %6787 = vmatprep.subr.mxu0 0.0
    %6788 = vmatpush1.msra.mxu0 0.0
    %6789 = vmatprep.subr.mxu0 0.0
    %6790 = vmatpush1.msra.mxu0 0.0
    %6791 = vmatprep.subr.mxu0 0.0
    %6792 = vmatpush1.msra.mxu0 %v5440
    %6793 = vmatprep.subr.mxu0 0.0
    %6794 = vmatpush1.msra.mxu0 %v5439
    %6795 = vmatprep.subr.mxu0 0.0
    %6796 = vmatpush1.msra.mxu0 %v5438
    %6797 = vmatprep.subr.mxu0 0.0
    %6798 = vmatpush1.msra.mxu0 %v5437
    %6799 = vmatprep.subr.mxu0 0.0
    %6800 = vmatpush2.msra.mxu0 0.0
    %6801 = vmatprep.subr.mxu0 0.0
    %6802 = vmatpush2.msra.mxu0 0.0
    %6803 = vmatprep.subr.mxu0 0.0
    %6804 = vmatpush2.msra.mxu0 0.0
    %6805 = vmatprep.subr.mxu0 0.0
    %6806 = vmatpush2.msra.mxu0 0.0
    %6807 = vmatprep.subr.mxu0 0.0
    %6808 = vmatpush2.msra.mxu0 0.0
    %6809 = vmatprep.subr.mxu0 0.0
    %6810 = vmatpush2.msra.mxu0 0.0
    %6811 = vmatprep.subr.mxu0 0.0
    %6812 = vmatpush2.msra.mxu0 0.0
    %6813 = vmatprep.subr.mxu0 0.0
    %6814 = vmatpush2.msra.mxu0 0.0
    %6815 = vmatprep.subr.mxu0 0.0
    %6816 = vmatpush2.msra.mxu0 0.0
    %6817 = vmatprep.subr.mxu0 0.0
    %6818 = vmatpush2.msra.mxu0 0.0
    %6819 = vmatprep.subr.mxu0 0.0
    %6820 = vmatpush2.msra.mxu0 0.0
    %6821 = vmatprep.subr.mxu0 0.0
    %6822 = vmatpush2.msra.mxu0 0.0
    %6823 = vmatprep.subr.mxu0 0.0
    %6824 = vmatpush2.msra.mxu0 0.0
    %6825 = vmatprep.subr.mxu0 0.0
    %6826 = vmatpush2.msra.mxu0 0.0
    %6827 = vmatprep.subr.mxu0 0.0
    %6828 = vmatpush2.msra.mxu0 0.0
    %6829 = vmatprep.subr.mxu0 0.0
    %6830 = vmatpush2.msra.mxu0 0.0
    %6831 = vmatprep.mubr.f32.mxu0 0.0
    %6832 = vmatmul.mubr.f32.gmra.mxu0 %v6765
    %v6833 = vpop.f32.mrf.mxu0
    %v6834 = vadd.f32 0.0, %v6833
    %v6835 = vpop.f32.mrf.mxu0
    %6836 = vdwg.mxu0
    %v6837 = vmul.f32 %v6834, 0.125
    %v6838 = vmul.f32 %v6754, %v6754
    %v6839 = vsel %vm5526, %v6838, 0.0
    %v6840 = vrot.slane %v6839, 4
    %v6841 = vadd.f32 %v6839, %v6840
    %v6842 = vrot.slane %v6841, 2
    %v6843 = vadd.f32 %v6841, %v6842
    %v6844 = vrot.slane %v6843, 1
    %v6845 = vadd.f32 %v6843, %v6844
    %v6847 = vsel %vm5452, %v6845, 0
    %6849 = vmatprep.subr.mxu0 0.0
    %6850 = vmatpush1.msra.mxu0 0.0
    %6851 = vmatprep.subr.mxu0 0.0
    %6852 = vmatpush1.msra.mxu0 0.0
    %6853 = vmatprep.subr.mxu0 0.0
    %6854 = vmatpush1.msra.mxu0 0.0
    %6855 = vmatprep.subr.mxu0 0.0
    %6856 = vmatpush1.msra.mxu0 0.0
    %6857 = vmatprep.subr.mxu0 0.0
    %6858 = vmatpush1.msra.mxu0 0.0
    %6859 = vmatprep.subr.mxu0 0.0
    %6860 = vmatpush1.msra.mxu0 0.0
    %6861 = vmatprep.subr.mxu0 0.0
    %6862 = vmatpush1.msra.mxu0 0.0
    %6863 = vmatprep.subr.mxu0 0.0
    %6864 = vmatpush1.msra.mxu0 0.0
    %6865 = vmatprep.subr.mxu0 0.0
    %6866 = vmatpush1.msra.mxu0 0.0
    %6867 = vmatprep.subr.mxu0 0.0
    %6868 = vmatpush1.msra.mxu0 0.0
    %6869 = vmatprep.subr.mxu0 0.0
    %6870 = vmatpush1.msra.mxu0 0.0
    %6871 = vmatprep.subr.mxu0 0.0
    %6872 = vmatpush1.msra.mxu0 0.0
    %6873 = vmatprep.subr.mxu0 0.0
    %6874 = vmatpush1.msra.mxu0 %v5440
    %6875 = vmatprep.subr.mxu0 0.0
    %6876 = vmatpush1.msra.mxu0 %v5439
    %6877 = vmatprep.subr.mxu0 0.0
    %6878 = vmatpush1.msra.mxu0 %v5438
    %6879 = vmatprep.subr.mxu0 0.0
    %6880 = vmatpush1.msra.mxu0 %v5437
    %6881 = vmatprep.subr.mxu0 0.0
    %6882 = vmatpush2.msra.mxu0 0.0
    %6883 = vmatprep.subr.mxu0 0.0
    %6884 = vmatpush2.msra.mxu0 0.0
    %6885 = vmatprep.subr.mxu0 0.0
    %6886 = vmatpush2.msra.mxu0 0.0
    %6887 = vmatprep.subr.mxu0 0.0
    %6888 = vmatpush2.msra.mxu0 0.0
    %6889 = vmatprep.subr.mxu0 0.0
    %6890 = vmatpush2.msra.mxu0 0.0
    %6891 = vmatprep.subr.mxu0 0.0
    %6892 = vmatpush2.msra.mxu0 0.0
    %6893 = vmatprep.subr.mxu0 0.0
    %6894 = vmatpush2.msra.mxu0 0.0
    %6895 = vmatprep.subr.mxu0 0.0
    %6896 = vmatpush2.msra.mxu0 0.0
    %6897 = vmatprep.subr.mxu0 0.0
    %6898 = vmatpush2.msra.mxu0 0.0
    %6899 = vmatprep.subr.mxu0 0.0
    %6900 = vmatpush2.msra.mxu0 0.0
    %6901 = vmatprep.subr.mxu0 0.0
    %6902 = vmatpush2.msra.mxu0 0.0
    %6903 = vmatprep.subr.mxu0 0.0
    %6904 = vmatpush2.msra.mxu0 0.0
    %6905 = vmatprep.subr.mxu0 0.0
    %6906 = vmatpush2.msra.mxu0 0.0
    %6907 = vmatprep.subr.mxu0 0.0
    %6908 = vmatpush2.msra.mxu0 0.0
    %6909 = vmatprep.subr.mxu0 0.0
    %6910 = vmatpush2.msra.mxu0 0.0
    %6911 = vmatprep.subr.mxu0 0.0
    %6912 = vmatpush2.msra.mxu0 0.0
    %6913 = vmatprep.mubr.f32.mxu0 0.0
    %6914 = vmatmul.mubr.f32.gmra.mxu0 %v6847
    %v6915 = vpop.f32.mrf.mxu0
    %v6916 = vadd.f32 0.0, %v6915
    %v6917 = vpop.f32.mrf.mxu0
    %6918 = vdwg.mxu0
    %v6919 = vmul.f32 %v6916, 0.125
    %v6920 = vmul.f32 %v6837, %v6837
    %v6921 = vsub.f32 %v6919, %v6920
    %v6922 = vadd.f32 %v6921, 1e-05
    %v6923 = vrsqrt.pop %v6922
    %v6925 = vrot.slane %v6923, 6
    %v6927 = vmul.f32 %v6279, %v6925
    %v6929 = vrot.slane %v6927, 2
    %v6931 = vmul.f32 %v6837, %v6929
    %v6933 = vrot.slane %v6931, 5
    %v6935 = vsub.f32 %v6279, %v6933
    %v6936 = vsel %vm3127, %v6929, 0
    %6938 = vmatprep.subr.mxu0 0.0
    %6939 = vmatpush1.msra.mxu0 0.0
    %6940 = vmatprep.subr.mxu0 0.0
    %6941 = vmatpush1.msra.mxu0 0.0
    %6942 = vmatprep.subr.mxu0 0.0
    %6943 = vmatpush1.msra.mxu0 0.0
    %6944 = vmatprep.subr.mxu0 0.0
    %6945 = vmatpush1.msra.mxu0 0.0
    %6946 = vmatprep.subr.mxu0 0.0
    %6947 = vmatpush1.msra.mxu0 0.0
    %6948 = vmatprep.subr.mxu0 0.0
    %6949 = vmatpush1.msra.mxu0 0.0
    %6950 = vmatprep.subr.mxu0 0.0
    %6951 = vmatpush1.msra.mxu0 0.0
    %6952 = vmatprep.subr.mxu0 0.0
    %6953 = vmatpush1.msra.mxu0 0.0
    %6954 = vmatprep.subr.mxu0 0.0
    %6955 = vmatpush1.msra.mxu0 0.0
    %6956 = vmatprep.subr.mxu0 0.0
    %6957 = vmatpush1.msra.mxu0 0.0
    %6958 = vmatprep.subr.mxu0 0.0
    %6959 = vmatpush1.msra.mxu0 0.0
    %6960 = vmatprep.subr.mxu0 0.0
    %6961 = vmatpush1.msra.mxu0 0.0
    %6962 = vmatprep.subr.mxu0 0.0
    %6963 = vmatpush1.msra.mxu0 0.0
    %6964 = vmatprep.subr.mxu0 0.0
    %6965 = vmatpush1.msra.mxu0 0.0
    %6966 = vmatprep.subr.mxu0 0.0
    %6967 = vmatpush1.msra.mxu0 0.0
    %6968 = vmatprep.subr.mxu0 0.0
    %6969 = vmatpush1.msra.mxu0 %v5441
    %6970 = vmatprep.subr.mxu0 0.0
    %6971 = vmatpush2.msra.mxu0 0.0
    %6972 = vmatprep.subr.mxu0 0.0
    %6973 = vmatpush2.msra.mxu0 0.0
    %6974 = vmatprep.subr.mxu0 0.0
    %6975 = vmatpush2.msra.mxu0 0.0
    %6976 = vmatprep.subr.mxu0 0.0
    %6977 = vmatpush2.msra.mxu0 0.0
    %6978 = vmatprep.subr.mxu0 0.0
    %6979 = vmatpush2.msra.mxu0 0.0
    %6980 = vmatprep.subr.mxu0 0.0
    %6981 = vmatpush2.msra.mxu0 0.0
    %6982 = vmatprep.subr.mxu0 0.0
    %6983 = vmatpush2.msra.mxu0 0.0
    %6984 = vmatprep.subr.mxu0 0.0
    %6985 = vmatpush2.msra.mxu0 0.0
    %6986 = vmatprep.subr.mxu0 0.0
    %6987 = vmatpush2.msra.mxu0 0.0
    %6988 = vmatprep.subr.mxu0 0.0
    %6989 = vmatpush2.msra.mxu0 0.0
    %6990 = vmatprep.subr.mxu0 0.0
    %6991 = vmatpush2.msra.mxu0 0.0
    %6992 = vmatprep.subr.mxu0 0.0
    %6993 = vmatpush2.msra.mxu0 0.0
    %6994 = vmatprep.subr.mxu0 0.0
    %6995 = vmatpush2.msra.mxu0 0.0
    %6996 = vmatprep.subr.mxu0 0.0
    %6997 = vmatpush2.msra.mxu0 0.0
    %6998 = vmatprep.subr.mxu0 0.0
    %6999 = vmatpush2.msra.mxu0 0.0
    %7000 = vmatprep.subr.mxu0 0.0
    %7001 = vmatpush2.msra.mxu0 0.0
    %7002 = vmatprep.mubr.f32.mxu0 0.0
    %7003 = vmatmul.mubr.f32.gmra.mxu0 %v6936
    %v7004 = vpop.f32.mrf.mxu0
    %v7005 = vadd.f32 0.0, %v7004
    %v7006 = vpop.f32.mrf.mxu0
    %7007 = vdwg.mxu0
    %v7009 = vrot.slane %v6935, 3
    %v7010 = vsel %vm3127, %v7009, 0
    %7012 = vmatprep.subr.mxu0 0.0
    %7013 = vmatpush1.msra.mxu0 0.0
    %7014 = vmatprep.subr.mxu0 0.0
    %7015 = vmatpush1.msra.mxu0 0.0
    %7016 = vmatprep.subr.mxu0 0.0
    %7017 = vmatpush1.msra.mxu0 0.0
    %7018 = vmatprep.subr.mxu0 0.0
    %7019 = vmatpush1.msra.mxu0 0.0
    %7020 = vmatprep.subr.mxu0 0.0
    %7021 = vmatpush1.msra.mxu0 0.0
    %7022 = vmatprep.subr.mxu0 0.0
    %7023 = vmatpush1.msra.mxu0 0.0
    %7024 = vmatprep.subr.mxu0 0.0
    %7025 = vmatpush1.msra.mxu0 0.0
    %7026 = vmatprep.subr.mxu0 0.0
    %7027 = vmatpush1.msra.mxu0 0.0
    %7028 = vmatprep.subr.mxu0 0.0
    %7029 = vmatpush1.msra.mxu0 0.0
    %7030 = vmatprep.subr.mxu0 0.0
    %7031 = vmatpush1.msra.mxu0 0.0
    %7032 = vmatprep.subr.mxu0 0.0
    %7033 = vmatpush1.msra.mxu0 0.0
    %7034 = vmatprep.subr.mxu0 0.0
    %7035 = vmatpush1.msra.mxu0 0.0
    %7036 = vmatprep.subr.mxu0 0.0
    %7037 = vmatpush1.msra.mxu0 0.0
    %7038 = vmatprep.subr.mxu0 0.0
    %7039 = vmatpush1.msra.mxu0 0.0
    %7040 = vmatprep.subr.mxu0 0.0
    %7041 = vmatpush1.msra.mxu0 0.0
    %7042 = vmatprep.subr.mxu0 0.0
    %7043 = vmatpush1.msra.mxu0 %v5441
    %7044 = vmatprep.subr.mxu0 0.0
    %7045 = vmatpush2.msra.mxu0 0.0
    %7046 = vmatprep.subr.mxu0 0.0
    %7047 = vmatpush2.msra.mxu0 0.0
    %7048 = vmatprep.subr.mxu0 0.0
    %7049 = vmatpush2.msra.mxu0 0.0
    %7050 = vmatprep.subr.mxu0 0.0
    %7051 = vmatpush2.msra.mxu0 0.0
    %7052 = vmatprep.subr.mxu0 0.0
    %7053 = vmatpush2.msra.mxu0 0.0
    %7054 = vmatprep.subr.mxu0 0.0
    %7055 = vmatpush2.msra.mxu0 0.0
    %7056 = vmatprep.subr.mxu0 0.0
    %7057 = vmatpush2.msra.mxu0 0.0
    %7058 = vmatprep.subr.mxu0 0.0
    %7059 = vmatpush2.msra.mxu0 0.0
    %7060 = vmatprep.subr.mxu0 0.0
    %7061 = vmatpush2.msra.mxu0 0.0
    %7062 = vmatprep.subr.mxu0 0.0
    %7063 = vmatpush2.msra.mxu0 0.0
    %7064 = vmatprep.subr.mxu0 0.0
    %7065 = vmatpush2.msra.mxu0 0.0
    %7066 = vmatprep.subr.mxu0 0.0
    %7067 = vmatpush2.msra.mxu0 0.0
    %7068 = vmatprep.subr.mxu0 0.0
    %7069 = vmatpush2.msra.mxu0 0.0
    %7070 = vmatprep.subr.mxu0 0.0
    %7071 = vmatpush2.msra.mxu0 0.0
    %7072 = vmatprep.subr.mxu0 0.0
    %7073 = vmatpush2.msra.mxu0 0.0
    %7074 = vmatprep.subr.mxu0 0.0
    %7075 = vmatpush2.msra.mxu0 0.0
    %7076 = vmatprep.mubr.f32.mxu0 0.0
    %7077 = vmatmul.mubr.f32.gmra.mxu0 %v7010
    %v7078 = vpop.f32.mrf.mxu0
    %v7079 = vadd.f32 0.0, %v7078
    %v7080 = vpop.f32.mrf.mxu0
    %7081 = vdwg.mxu0
    %v7082 = vlaneseq
    %v7083 = vshrl.u32 %v7082, 7
    %v7084 = vsub.s32 0, %v7083
    %v7085 = vrot.slane %v7005, %v7084
    %v7086 = vmul.f32 %v6754, %v7085
    %v7087 = vlaneseq
    %v7088 = vshrl.u32 %v7087, 7
    %v7089 = vsub.s32 0, %v7088
    %v7090 = vrot.slane %v7079, %v7089
    %v7091 = vadd.f32 %v7086, %v7090
    %v7092 = vadd.f32 %v7091, %v6267
    %v7093 = vmax.f32 %v7092, 0.0
    %s7094 = scalar_lea.vmem [#allocation10], 128
    %v7095 = vld [vmem:[%s7094] sm:$0xff]
    %v7096 = vld [vmem:[%s7094 + $0x8] sm:$0xff]
    %v7097 = vld [vmem:[%s7094 + $0x10] sm:$0xff]
    %v7098 = vld [vmem:[%s7094 + $0x18] sm:$0xff]
    %s7099 = scalar_lea.vmem [#allocation10], 160
    %v7100 = vld [vmem:[%s7099] sm:$0xff]
    %v7101 = vld [vmem:[%s7099 + $0x8] sm:$0xff]
    %v7102 = vld [vmem:[%s7099 + $0x10] sm:$0xff]
    %v7103 = vld [vmem:[%s7099 + $0x18] sm:$0xff]
    %s7104 = scalar_lea.vmem %s10, 8
    %v7105 = vld [vmem:[%s7104] sm:$0xf]
    %v7107 = vsel %vm5452, %v7093, 0
    %7109 = vmatprep.subr.mxu0 0.0
    %7110 = vmatpush1.msra.mxu0 0.0
    %7111 = vmatprep.subr.mxu0 0.0
    %7112 = vmatpush1.msra.mxu0 0.0
    %7113 = vmatprep.subr.mxu0 0.0
    %7114 = vmatpush1.msra.mxu0 0.0
    %7115 = vmatprep.subr.mxu0 0.0
    %7116 = vmatpush1.msra.mxu0 0.0
    %7117 = vmatprep.subr.mxu0 0.0
    %7118 = vmatpush1.msra.mxu0 0.0
    %7119 = vmatprep.subr.mxu0 0.0
    %7120 = vmatpush1.msra.mxu0 0.0
    %7121 = vmatprep.subr.mxu0 0.0
    %7122 = vmatpush1.msra.mxu0 0.0
    %7123 = vmatprep.subr.mxu0 0.0
    %7124 = vmatpush1.msra.mxu0 0.0
    %7125 = vmatprep.subr.mxu0 0.0
    %7126 = vmatpush1.msra.mxu0 0.0
    %7127 = vmatprep.subr.mxu0 0.0
    %7128 = vmatpush1.msra.mxu0 0.0
    %7129 = vmatprep.subr.mxu0 0.0
    %7130 = vmatpush1.msra.mxu0 0.0
    %7131 = vmatprep.subr.mxu0 0.0
    %7132 = vmatpush1.msra.mxu0 0.0
    %7133 = vmatprep.subr.mxu0 0.0
    %7134 = vmatpush1.msra.mxu0 %v7098
    %7135 = vmatprep.subr.mxu0 0.0
    %7136 = vmatpush1.msra.mxu0 %v7097
    %7137 = vmatprep.subr.mxu0 0.0
    %7138 = vmatpush1.msra.mxu0 %v7096
    %7139 = vmatprep.subr.mxu0 0.0
    %7140 = vmatpush1.msra.mxu0 %v7095
    %7141 = vmatprep.subr.mxu0 0.0
    %7142 = vmatpush2.msra.mxu0 0.0
    %7143 = vmatprep.subr.mxu0 0.0
    %7144 = vmatpush2.msra.mxu0 0.0
    %7145 = vmatprep.subr.mxu0 0.0
    %7146 = vmatpush2.msra.mxu0 0.0
    %7147 = vmatprep.subr.mxu0 0.0
    %7148 = vmatpush2.msra.mxu0 0.0
    %7149 = vmatprep.subr.mxu0 0.0
    %7150 = vmatpush2.msra.mxu0 0.0
    %7151 = vmatprep.subr.mxu0 0.0
    %7152 = vmatpush2.msra.mxu0 0.0
    %7153 = vmatprep.subr.mxu0 0.0
    %7154 = vmatpush2.msra.mxu0 0.0
    %7155 = vmatprep.subr.mxu0 0.0
    %7156 = vmatpush2.msra.mxu0 0.0
    %7157 = vmatprep.subr.mxu0 0.0
    %7158 = vmatpush2.msra.mxu0 0.0
    %7159 = vmatprep.subr.mxu0 0.0
    %7160 = vmatpush2.msra.mxu0 0.0
    %7161 = vmatprep.subr.mxu0 0.0
    %7162 = vmatpush2.msra.mxu0 0.0
    %7163 = vmatprep.subr.mxu0 0.0
    %7164 = vmatpush2.msra.mxu0 0.0
    %7165 = vmatprep.subr.mxu0 0.0
    %7166 = vmatpush2.msra.mxu0 0.0
    %7167 = vmatprep.subr.mxu0 0.0
    %7168 = vmatpush2.msra.mxu0 0.0
    %7169 = vmatprep.subr.mxu0 0.0
    %7170 = vmatpush2.msra.mxu0 0.0
    %7171 = vmatprep.subr.mxu0 0.0
    %7172 = vmatpush2.msra.mxu0 0.0
    %7173 = vmatprep.mubr.f32.mxu0 0.0
    %7174 = vmatmul.mubr.f32.gmra.mxu0 %v7107
    %v7175 = vpop.f32.mrf.mxu0
    %v7176 = vadd.f32 0.0, %v7175
    %v7177 = vpop.f32.mrf.mxu0
    %7178 = vdwg.mxu0
    %v7179 = vsel %vm5526, %v7176, 0.0
    %v7180 = vrot.slane %v7179, 4
    %v7181 = vadd.f32 %v7179, %v7180
    %v7182 = vrot.slane %v7181, 2
    %v7183 = vadd.f32 %v7181, %v7182
    %v7184 = vrot.slane %v7183, 1
    %v7185 = vadd.f32 %v7183, %v7184
    %v7187 = vsel %vm5452, %v7185, 0
    %7189 = vmatprep.subr.mxu0 0.0
    %7190 = vmatpush1.msra.mxu0 0.0
    %7191 = vmatprep.subr.mxu0 0.0
    %7192 = vmatpush1.msra.mxu0 0.0
    %7193 = vmatprep.subr.mxu0 0.0
    %7194 = vmatpush1.msra.mxu0 0.0
    %7195 = vmatprep.subr.mxu0 0.0
    %7196 = vmatpush1.msra.mxu0 0.0
    %7197 = vmatprep.subr.mxu0 0.0
    %7198 = vmatpush1.msra.mxu0 0.0
    %7199 = vmatprep.subr.mxu0 0.0
    %7200 = vmatpush1.msra.mxu0 0.0
    %7201 = vmatprep.subr.mxu0 0.0
    %7202 = vmatpush1.msra.mxu0 0.0
    %7203 = vmatprep.subr.mxu0 0.0
    %7204 = vmatpush1.msra.mxu0 0.0
    %7205 = vmatprep.subr.mxu0 0.0
    %7206 = vmatpush1.msra.mxu0 0.0
    %7207 = vmatprep.subr.mxu0 0.0
    %7208 = vmatpush1.msra.mxu0 0.0
    %7209 = vmatprep.subr.mxu0 0.0
    %7210 = vmatpush1.msra.mxu0 0.0
    %7211 = vmatprep.subr.mxu0 0.0
    %7212 = vmatpush1.msra.mxu0 0.0
    %7213 = vmatprep.subr.mxu0 0.0
    %7214 = vmatpush1.msra.mxu0 %v5440
    %7215 = vmatprep.subr.mxu0 0.0
    %7216 = vmatpush1.msra.mxu0 %v5439
    %7217 = vmatprep.subr.mxu0 0.0
    %7218 = vmatpush1.msra.mxu0 %v5438
    %7219 = vmatprep.subr.mxu0 0.0
    %7220 = vmatpush1.msra.mxu0 %v5437
    %7221 = vmatprep.subr.mxu0 0.0
    %7222 = vmatpush2.msra.mxu0 0.0
    %7223 = vmatprep.subr.mxu0 0.0
    %7224 = vmatpush2.msra.mxu0 0.0
    %7225 = vmatprep.subr.mxu0 0.0
    %7226 = vmatpush2.msra.mxu0 0.0
    %7227 = vmatprep.subr.mxu0 0.0
    %7228 = vmatpush2.msra.mxu0 0.0
    %7229 = vmatprep.subr.mxu0 0.0
    %7230 = vmatpush2.msra.mxu0 0.0
    %7231 = vmatprep.subr.mxu0 0.0
    %7232 = vmatpush2.msra.mxu0 0.0
    %7233 = vmatprep.subr.mxu0 0.0
    %7234 = vmatpush2.msra.mxu0 0.0
    %7235 = vmatprep.subr.mxu0 0.0
    %7236 = vmatpush2.msra.mxu0 0.0
    %7237 = vmatprep.subr.mxu0 0.0
    %7238 = vmatpush2.msra.mxu0 0.0
    %7239 = vmatprep.subr.mxu0 0.0
    %7240 = vmatpush2.msra.mxu0 0.0
    %7241 = vmatprep.subr.mxu0 0.0
    %7242 = vmatpush2.msra.mxu0 0.0
    %7243 = vmatprep.subr.mxu0 0.0
    %7244 = vmatpush2.msra.mxu0 0.0
    %7245 = vmatprep.subr.mxu0 0.0
    %7246 = vmatpush2.msra.mxu0 0.0
    %7247 = vmatprep.subr.mxu0 0.0
    %7248 = vmatpush2.msra.mxu0 0.0
    %7249 = vmatprep.subr.mxu0 0.0
    %7250 = vmatpush2.msra.mxu0 0.0
    %7251 = vmatprep.subr.mxu0 0.0
    %7252 = vmatpush2.msra.mxu0 0.0
    %7253 = vmatprep.mubr.f32.mxu0 0.0
    %7254 = vmatmul.mubr.f32.gmra.mxu0 %v7187
    %v7255 = vpop.f32.mrf.mxu0
    %v7256 = vadd.f32 0.0, %v7255
    %v7257 = vpop.f32.mrf.mxu0
    %7258 = vdwg.mxu0
    %v7259 = vmul.f32 %v7256, 0.125
    %v7260 = vmul.f32 %v7176, %v7176
    %v7261 = vsel %vm5526, %v7260, 0.0
    %v7262 = vrot.slane %v7261, 4
    %v7263 = vadd.f32 %v7261, %v7262
    %v7264 = vrot.slane %v7263, 2
    %v7265 = vadd.f32 %v7263, %v7264
    %v7266 = vrot.slane %v7265, 1
    %v7267 = vadd.f32 %v7265, %v7266
    %v7269 = vsel %vm5452, %v7267, 0
    %7271 = vmatprep.subr.mxu0 0.0
    %7272 = vmatpush1.msra.mxu0 0.0
    %7273 = vmatprep.subr.mxu0 0.0
    %7274 = vmatpush1.msra.mxu0 0.0
    %7275 = vmatprep.subr.mxu0 0.0
    %7276 = vmatpush1.msra.mxu0 0.0
    %7277 = vmatprep.subr.mxu0 0.0
    %7278 = vmatpush1.msra.mxu0 0.0
    %7279 = vmatprep.subr.mxu0 0.0
    %7280 = vmatpush1.msra.mxu0 0.0
    %7281 = vmatprep.subr.mxu0 0.0
    %7282 = vmatpush1.msra.mxu0 0.0
    %7283 = vmatprep.subr.mxu0 0.0
    %7284 = vmatpush1.msra.mxu0 0.0
    %7285 = vmatprep.subr.mxu0 0.0
    %7286 = vmatpush1.msra.mxu0 0.0
    %7287 = vmatprep.subr.mxu0 0.0
    %7288 = vmatpush1.msra.mxu0 0.0
    %7289 = vmatprep.subr.mxu0 0.0
    %7290 = vmatpush1.msra.mxu0 0.0
    %7291 = vmatprep.subr.mxu0 0.0
    %7292 = vmatpush1.msra.mxu0 0.0
    %7293 = vmatprep.subr.mxu0 0.0
    %7294 = vmatpush1.msra.mxu0 0.0
    %7295 = vmatprep.subr.mxu0 0.0
    %7296 = vmatpush1.msra.mxu0 %v5440
    %7297 = vmatprep.subr.mxu0 0.0
    %7298 = vmatpush1.msra.mxu0 %v5439
    %7299 = vmatprep.subr.mxu0 0.0
    %7300 = vmatpush1.msra.mxu0 %v5438
    %7301 = vmatprep.subr.mxu0 0.0
    %7302 = vmatpush1.msra.mxu0 %v5437
    %7303 = vmatprep.subr.mxu0 0.0
    %7304 = vmatpush2.msra.mxu0 0.0
    %7305 = vmatprep.subr.mxu0 0.0
    %7306 = vmatpush2.msra.mxu0 0.0
    %7307 = vmatprep.subr.mxu0 0.0
    %7308 = vmatpush2.msra.mxu0 0.0
    %7309 = vmatprep.subr.mxu0 0.0
    %7310 = vmatpush2.msra.mxu0 0.0
    %7311 = vmatprep.subr.mxu0 0.0
    %7312 = vmatpush2.msra.mxu0 0.0
    %7313 = vmatprep.subr.mxu0 0.0
    %7314 = vmatpush2.msra.mxu0 0.0
    %7315 = vmatprep.subr.mxu0 0.0
    %7316 = vmatpush2.msra.mxu0 0.0
    %7317 = vmatprep.subr.mxu0 0.0
    %7318 = vmatpush2.msra.mxu0 0.0
    %7319 = vmatprep.subr.mxu0 0.0
    %7320 = vmatpush2.msra.mxu0 0.0
    %7321 = vmatprep.subr.mxu0 0.0
    %7322 = vmatpush2.msra.mxu0 0.0
    %7323 = vmatprep.subr.mxu0 0.0
    %7324 = vmatpush2.msra.mxu0 0.0
    %7325 = vmatprep.subr.mxu0 0.0
    %7326 = vmatpush2.msra.mxu0 0.0
    %7327 = vmatprep.subr.mxu0 0.0
    %7328 = vmatpush2.msra.mxu0 0.0
    %7329 = vmatprep.subr.mxu0 0.0
    %7330 = vmatpush2.msra.mxu0 0.0
    %7331 = vmatprep.subr.mxu0 0.0
    %7332 = vmatpush2.msra.mxu0 0.0
    %7333 = vmatprep.subr.mxu0 0.0
    %7334 = vmatpush2.msra.mxu0 0.0
    %7335 = vmatprep.mubr.f32.mxu0 0.0
    %7336 = vmatmul.mubr.f32.gmra.mxu0 %v7269
    %v7337 = vpop.f32.mrf.mxu0
    %v7338 = vadd.f32 0.0, %v7337
    %v7339 = vpop.f32.mrf.mxu0
    %7340 = vdwg.mxu0
    %v7341 = vmul.f32 %v7338, 0.125
    %v7342 = vmul.f32 %v7259, %v7259
    %v7343 = vsub.f32 %v7341, %v7342
    %v7344 = vadd.f32 %v7343, 1e-05
    %v7345 = vrsqrt.pop %v7344
    %v7346 = vmul.f32 %v7105, %v7345
    %v7347 = vmul.f32 %v7259, %v7346
    %v7349 = vrot.slane %v7347, 7
    %v7351 = vsub.f32 %v7105, %v7349
    %v7353 = vsel %vm3127, %v7346, 0
    %7355 = vmatprep.subr.mxu0 0.0
    %7356 = vmatpush1.msra.mxu0 0.0
    %7357 = vmatprep.subr.mxu0 0.0
    %7358 = vmatpush1.msra.mxu0 0.0
    %7359 = vmatprep.subr.mxu0 0.0
    %7360 = vmatpush1.msra.mxu0 0.0
    %7361 = vmatprep.subr.mxu0 0.0
    %7362 = vmatpush1.msra.mxu0 0.0
    %7363 = vmatprep.subr.mxu0 0.0
    %7364 = vmatpush1.msra.mxu0 0.0
    %7365 = vmatprep.subr.mxu0 0.0
    %7366 = vmatpush1.msra.mxu0 0.0
    %7367 = vmatprep.subr.mxu0 0.0
    %7368 = vmatpush1.msra.mxu0 0.0
    %7369 = vmatprep.subr.mxu0 0.0
    %7370 = vmatpush1.msra.mxu0 0.0
    %7371 = vmatprep.subr.mxu0 0.0
    %7372 = vmatpush1.msra.mxu0 0.0
    %7373 = vmatprep.subr.mxu0 0.0
    %7374 = vmatpush1.msra.mxu0 0.0
    %7375 = vmatprep.subr.mxu0 0.0
    %7376 = vmatpush1.msra.mxu0 0.0
    %7377 = vmatprep.subr.mxu0 0.0
    %7378 = vmatpush1.msra.mxu0 0.0
    %7379 = vmatprep.subr.mxu0 0.0
    %7380 = vmatpush1.msra.mxu0 0.0
    %7381 = vmatprep.subr.mxu0 0.0
    %7382 = vmatpush1.msra.mxu0 0.0
    %7383 = vmatprep.subr.mxu0 0.0
    %7384 = vmatpush1.msra.mxu0 0.0
    %7385 = vmatprep.subr.mxu0 0.0
    %7386 = vmatpush1.msra.mxu0 %v5441
    %7387 = vmatprep.subr.mxu0 0.0
    %7388 = vmatpush2.msra.mxu0 0.0
    %7389 = vmatprep.subr.mxu0 0.0
    %7390 = vmatpush2.msra.mxu0 0.0
    %7391 = vmatprep.subr.mxu0 0.0
    %7392 = vmatpush2.msra.mxu0 0.0
    %7393 = vmatprep.subr.mxu0 0.0
    %7394 = vmatpush2.msra.mxu0 0.0
    %7395 = vmatprep.subr.mxu0 0.0
    %7396 = vmatpush2.msra.mxu0 0.0
    %7397 = vmatprep.subr.mxu0 0.0
    %7398 = vmatpush2.msra.mxu0 0.0
    %7399 = vmatprep.subr.mxu0 0.0
    %7400 = vmatpush2.msra.mxu0 0.0
    %7401 = vmatprep.subr.mxu0 0.0
    %7402 = vmatpush2.msra.mxu0 0.0
    %7403 = vmatprep.subr.mxu0 0.0
    %7404 = vmatpush2.msra.mxu0 0.0
    %7405 = vmatprep.subr.mxu0 0.0
    %7406 = vmatpush2.msra.mxu0 0.0
    %7407 = vmatprep.subr.mxu0 0.0
    %7408 = vmatpush2.msra.mxu0 0.0
    %7409 = vmatprep.subr.mxu0 0.0
    %7410 = vmatpush2.msra.mxu0 0.0
    %7411 = vmatprep.subr.mxu0 0.0
    %7412 = vmatpush2.msra.mxu0 0.0
    %7413 = vmatprep.subr.mxu0 0.0
    %7414 = vmatpush2.msra.mxu0 0.0
    %7415 = vmatprep.subr.mxu0 0.0
    %7416 = vmatpush2.msra.mxu0 0.0
    %7417 = vmatprep.subr.mxu0 0.0
    %7418 = vmatpush2.msra.mxu0 0.0
    %7419 = vmatprep.mubr.f32.mxu0 0.0
    %7420 = vmatmul.mubr.f32.gmra.mxu0 %v7353
    %v7421 = vpop.f32.mrf.mxu0
    %v7422 = vadd.f32 0.0, %v7421
    %v7423 = vpop.f32.mrf.mxu0
    %7424 = vdwg.mxu0
    %v7426 = vrot.slane %v7351, 1
    %v7427 = vsel %vm3127, %v7426, 0
    %7429 = vmatprep.subr.mxu0 0.0
    %7430 = vmatpush1.msra.mxu0 0.0
    %7431 = vmatprep.subr.mxu0 0.0
    %7432 = vmatpush1.msra.mxu0 0.0
    %7433 = vmatprep.subr.mxu0 0.0
    %7434 = vmatpush1.msra.mxu0 0.0
    %7435 = vmatprep.subr.mxu0 0.0
    %7436 = vmatpush1.msra.mxu0 0.0
    %7437 = vmatprep.subr.mxu0 0.0
    %7438 = vmatpush1.msra.mxu0 0.0
    %7439 = vmatprep.subr.mxu0 0.0
    %7440 = vmatpush1.msra.mxu0 0.0
    %7441 = vmatprep.subr.mxu0 0.0
    %7442 = vmatpush1.msra.mxu0 0.0
    %7443 = vmatprep.subr.mxu0 0.0
    %7444 = vmatpush1.msra.mxu0 0.0
    %7445 = vmatprep.subr.mxu0 0.0
    %7446 = vmatpush1.msra.mxu0 0.0
    %7447 = vmatprep.subr.mxu0 0.0
    %7448 = vmatpush1.msra.mxu0 0.0
    %7449 = vmatprep.subr.mxu0 0.0
    %7450 = vmatpush1.msra.mxu0 0.0
    %7451 = vmatprep.subr.mxu0 0.0
    %7452 = vmatpush1.msra.mxu0 0.0
    %7453 = vmatprep.subr.mxu0 0.0
    %7454 = vmatpush1.msra.mxu0 0.0
    %7455 = vmatprep.subr.mxu0 0.0
    %7456 = vmatpush1.msra.mxu0 0.0
    %7457 = vmatprep.subr.mxu0 0.0
    %7458 = vmatpush1.msra.mxu0 0.0
    %7459 = vmatprep.subr.mxu0 0.0
    %7460 = vmatpush1.msra.mxu0 %v5441
    %7461 = vmatprep.subr.mxu0 0.0
    %7462 = vmatpush2.msra.mxu0 0.0
    %7463 = vmatprep.subr.mxu0 0.0
    %7464 = vmatpush2.msra.mxu0 0.0
    %7465 = vmatprep.subr.mxu0 0.0
    %7466 = vmatpush2.msra.mxu0 0.0
    %7467 = vmatprep.subr.mxu0 0.0
    %7468 = vmatpush2.msra.mxu0 0.0
    %7469 = vmatprep.subr.mxu0 0.0
    %7470 = vmatpush2.msra.mxu0 0.0
    %7471 = vmatprep.subr.mxu0 0.0
    %7472 = vmatpush2.msra.mxu0 0.0
    %7473 = vmatprep.subr.mxu0 0.0
    %7474 = vmatpush2.msra.mxu0 0.0
    %7475 = vmatprep.subr.mxu0 0.0
    %7476 = vmatpush2.msra.mxu0 0.0
    %7477 = vmatprep.subr.mxu0 0.0
    %7478 = vmatpush2.msra.mxu0 0.0
    %7479 = vmatprep.subr.mxu0 0.0
    %7480 = vmatpush2.msra.mxu0 0.0
    %7481 = vmatprep.subr.mxu0 0.0
    %7482 = vmatpush2.msra.mxu0 0.0
    %7483 = vmatprep.subr.mxu0 0.0
    %7484 = vmatpush2.msra.mxu0 0.0
    %7485 = vmatprep.subr.mxu0 0.0
    %7486 = vmatpush2.msra.mxu0 0.0
    %7487 = vmatprep.subr.mxu0 0.0
    %7488 = vmatpush2.msra.mxu0 0.0
    %7489 = vmatprep.subr.mxu0 0.0
    %7490 = vmatpush2.msra.mxu0 0.0
    %7491 = vmatprep.subr.mxu0 0.0
    %7492 = vmatpush2.msra.mxu0 0.0
    %7493 = vmatprep.mubr.f32.mxu0 0.0
    %7494 = vmatmul.mubr.f32.gmra.mxu0 %v7427
    %v7495 = vpop.f32.mrf.mxu0
    %v7496 = vadd.f32 0.0, %v7495
    %v7497 = vpop.f32.mrf.mxu0
    %7498 = vdwg.mxu0
    %v7499 = vlaneseq
    %v7500 = vshrl.u32 %v7499, 7
    %v7501 = vsub.s32 0, %v7500
    %v7502 = vrot.slane %v7422, %v7501
    %v7503 = vmul.f32 %v7176, %v7502
    %v7504 = vlaneseq
    %v7505 = vshrl.u32 %v7504, 7
    %v7506 = vsub.s32 0, %v7505
    %v7507 = vrot.slane %v7496, %v7506
    %v7508 = vadd.f32 %v7503, %v7507
    %v7509 = vmax.f32 %v7508, 0.0
    %v7511 = vsel %vm5452, %v7509, 0
    %7513 = vmatprep.subr.mxu0 0.0
    %7514 = vmatpush1.msra.mxu0 0.0
    %7515 = vmatprep.subr.mxu0 0.0
    %7516 = vmatpush1.msra.mxu0 0.0
    %7517 = vmatprep.subr.mxu0 0.0
    %7518 = vmatpush1.msra.mxu0 0.0
    %7519 = vmatprep.subr.mxu0 0.0
    %7520 = vmatpush1.msra.mxu0 0.0
    %7521 = vmatprep.subr.mxu0 0.0
    %7522 = vmatpush1.msra.mxu0 0.0
    %7523 = vmatprep.subr.mxu0 0.0
    %7524 = vmatpush1.msra.mxu0 0.0
    %7525 = vmatprep.subr.mxu0 0.0
    %7526 = vmatpush1.msra.mxu0 0.0
    %7527 = vmatprep.subr.mxu0 0.0
    %7528 = vmatpush1.msra.mxu0 0.0
    %7529 = vmatprep.subr.mxu0 0.0
    %7530 = vmatpush1.msra.mxu0 0.0
    %7531 = vmatprep.subr.mxu0 0.0
    %7532 = vmatpush1.msra.mxu0 0.0
    %7533 = vmatprep.subr.mxu0 0.0
    %7534 = vmatpush1.msra.mxu0 0.0
    %7535 = vmatprep.subr.mxu0 0.0
    %7536 = vmatpush1.msra.mxu0 0.0
    %7537 = vmatprep.subr.mxu0 0.0
    %7538 = vmatpush1.msra.mxu0 %v7103
    %7539 = vmatprep.subr.mxu0 0.0
    %7540 = vmatpush1.msra.mxu0 %v7102
    %7541 = vmatprep.subr.mxu0 0.0
    %7542 = vmatpush1.msra.mxu0 %v7101
    %7543 = vmatprep.subr.mxu0 0.0
    %7544 = vmatpush1.msra.mxu0 %v7100
    %7545 = vmatprep.subr.mxu0 0.0
    %7546 = vmatpush2.msra.mxu0 0.0
    %7547 = vmatprep.subr.mxu0 0.0
    %7548 = vmatpush2.msra.mxu0 0.0
    %7549 = vmatprep.subr.mxu0 0.0
    %7550 = vmatpush2.msra.mxu0 0.0
    %7551 = vmatprep.subr.mxu0 0.0
    %7552 = vmatpush2.msra.mxu0 0.0
    %7553 = vmatprep.subr.mxu0 0.0
    %7554 = vmatpush2.msra.mxu0 0.0
    %7555 = vmatprep.subr.mxu0 0.0
    %7556 = vmatpush2.msra.mxu0 0.0
    %7557 = vmatprep.subr.mxu0 0.0
    %7558 = vmatpush2.msra.mxu0 0.0
    %7559 = vmatprep.subr.mxu0 0.0
    %7560 = vmatpush2.msra.mxu0 0.0
    %7561 = vmatprep.subr.mxu0 0.0
    %7562 = vmatpush2.msra.mxu0 0.0
    %7563 = vmatprep.subr.mxu0 0.0
    %7564 = vmatpush2.msra.mxu0 0.0
    %7565 = vmatprep.subr.mxu0 0.0
    %7566 = vmatpush2.msra.mxu0 0.0
    %7567 = vmatprep.subr.mxu0 0.0
    %7568 = vmatpush2.msra.mxu0 0.0
    %7569 = vmatprep.subr.mxu0 0.0
    %7570 = vmatpush2.msra.mxu0 0.0
    %7571 = vmatprep.subr.mxu0 0.0
    %7572 = vmatpush2.msra.mxu0 0.0
    %7573 = vmatprep.subr.mxu0 0.0
    %7574 = vmatpush2.msra.mxu0 0.0
    %7575 = vmatprep.subr.mxu0 0.0
    %7576 = vmatpush2.msra.mxu0 0.0
    %7577 = vmatprep.mubr.f32.mxu0 0.0
    %7578 = vmatmul.mubr.f32.gmra.mxu0 %v7511
    %v7579 = vpop.f32.mrf.mxu0
    %v7580 = vadd.f32 0.0, %v7579
    %v7581 = vpop.f32.mrf.mxu0
    %7582 = vdwg.mxu0
    %v7583 = vsel %vm5526, %v7580, 0.0
    %v7584 = vrot.slane %v7583, 4
    %v7585 = vadd.f32 %v7583, %v7584
    %v7586 = vrot.slane %v7585, 2
    %v7587 = vadd.f32 %v7585, %v7586
    %v7588 = vrot.slane %v7587, 1
    %v7589 = vadd.f32 %v7587, %v7588
    %v7591 = vsel %vm5452, %v7589, 0
    %7593 = vmatprep.subr.mxu0 0.0
    %7594 = vmatpush1.msra.mxu0 0.0
    %7595 = vmatprep.subr.mxu0 0.0
    %7596 = vmatpush1.msra.mxu0 0.0
    %7597 = vmatprep.subr.mxu0 0.0
    %7598 = vmatpush1.msra.mxu0 0.0
    %7599 = vmatprep.subr.mxu0 0.0
    %7600 = vmatpush1.msra.mxu0 0.0
    %7601 = vmatprep.subr.mxu0 0.0
    %7602 = vmatpush1.msra.mxu0 0.0
    %7603 = vmatprep.subr.mxu0 0.0
    %7604 = vmatpush1.msra.mxu0 0.0
    %7605 = vmatprep.subr.mxu0 0.0
    %7606 = vmatpush1.msra.mxu0 0.0
    %7607 = vmatprep.subr.mxu0 0.0
    %7608 = vmatpush1.msra.mxu0 0.0
    %7609 = vmatprep.subr.mxu0 0.0
    %7610 = vmatpush1.msra.mxu0 0.0
    %7611 = vmatprep.subr.mxu0 0.0
    %7612 = vmatpush1.msra.mxu0 0.0
    %7613 = vmatprep.subr.mxu0 0.0
    %7614 = vmatpush1.msra.mxu0 0.0
    %7615 = vmatprep.subr.mxu0 0.0
    %7616 = vmatpush1.msra.mxu0 0.0
    %7617 = vmatprep.subr.mxu0 0.0
    %7618 = vmatpush1.msra.mxu0 %v5440
    %7619 = vmatprep.subr.mxu0 0.0
    %7620 = vmatpush1.msra.mxu0 %v5439
    %7621 = vmatprep.subr.mxu0 0.0
    %7622 = vmatpush1.msra.mxu0 %v5438
    %7623 = vmatprep.subr.mxu0 0.0
    %7624 = vmatpush1.msra.mxu0 %v5437
    %7625 = vmatprep.subr.mxu0 0.0
    %7626 = vmatpush2.msra.mxu0 0.0
    %7627 = vmatprep.subr.mxu0 0.0
    %7628 = vmatpush2.msra.mxu0 0.0
    %7629 = vmatprep.subr.mxu0 0.0
    %7630 = vmatpush2.msra.mxu0 0.0
    %7631 = vmatprep.subr.mxu0 0.0
    %7632 = vmatpush2.msra.mxu0 0.0
    %7633 = vmatprep.subr.mxu0 0.0
    %7634 = vmatpush2.msra.mxu0 0.0
    %7635 = vmatprep.subr.mxu0 0.0
    %7636 = vmatpush2.msra.mxu0 0.0
    %7637 = vmatprep.subr.mxu0 0.0
    %7638 = vmatpush2.msra.mxu0 0.0
    %7639 = vmatprep.subr.mxu0 0.0
    %7640 = vmatpush2.msra.mxu0 0.0
    %7641 = vmatprep.subr.mxu0 0.0
    %7642 = vmatpush2.msra.mxu0 0.0
    %7643 = vmatprep.subr.mxu0 0.0
    %7644 = vmatpush2.msra.mxu0 0.0
    %7645 = vmatprep.subr.mxu0 0.0
    %7646 = vmatpush2.msra.mxu0 0.0
    %7647 = vmatprep.subr.mxu0 0.0
    %7648 = vmatpush2.msra.mxu0 0.0
    %7649 = vmatprep.subr.mxu0 0.0
    %7650 = vmatpush2.msra.mxu0 0.0
    %7651 = vmatprep.subr.mxu0 0.0
    %7652 = vmatpush2.msra.mxu0 0.0
    %7653 = vmatprep.subr.mxu0 0.0
    %7654 = vmatpush2.msra.mxu0 0.0
    %7655 = vmatprep.subr.mxu0 0.0
    %7656 = vmatpush2.msra.mxu0 0.0
    %7657 = vmatprep.mubr.f32.mxu0 0.0
    %7658 = vmatmul.mubr.f32.gmra.mxu0 %v7591
    %v7659 = vpop.f32.mrf.mxu0
    %v7660 = vadd.f32 0.0, %v7659
    %v7661 = vpop.f32.mrf.mxu0
    %7662 = vdwg.mxu0
    %v7663 = vmul.f32 %v7660, 0.125
    %v7664 = vmul.f32 %v7580, %v7580
    %v7665 = vsel %vm5526, %v7664, 0.0
    %v7666 = vrot.slane %v7665, 4
    %v7667 = vadd.f32 %v7665, %v7666
    %v7668 = vrot.slane %v7667, 2
    %v7669 = vadd.f32 %v7667, %v7668
    %v7670 = vrot.slane %v7669, 1
    %v7671 = vadd.f32 %v7669, %v7670
    %v7673 = vsel %vm5452, %v7671, 0
    %7675 = vmatprep.subr.mxu0 0.0
    %7676 = vmatpush1.msra.mxu0 0.0
    %7677 = vmatprep.subr.mxu0 0.0
    %7678 = vmatpush1.msra.mxu0 0.0
    %7679 = vmatprep.subr.mxu0 0.0
    %7680 = vmatpush1.msra.mxu0 0.0
    %7681 = vmatprep.subr.mxu0 0.0
    %7682 = vmatpush1.msra.mxu0 0.0
    %7683 = vmatprep.subr.mxu0 0.0
    %7684 = vmatpush1.msra.mxu0 0.0
    %7685 = vmatprep.subr.mxu0 0.0
    %7686 = vmatpush1.msra.mxu0 0.0
    %7687 = vmatprep.subr.mxu0 0.0
    %7688 = vmatpush1.msra.mxu0 0.0
    %7689 = vmatprep.subr.mxu0 0.0
    %7690 = vmatpush1.msra.mxu0 0.0
    %7691 = vmatprep.subr.mxu0 0.0
    %7692 = vmatpush1.msra.mxu0 0.0
    %7693 = vmatprep.subr.mxu0 0.0
    %7694 = vmatpush1.msra.mxu0 0.0
    %7695 = vmatprep.subr.mxu0 0.0
    %7696 = vmatpush1.msra.mxu0 0.0
    %7697 = vmatprep.subr.mxu0 0.0
    %7698 = vmatpush1.msra.mxu0 0.0
    %7699 = vmatprep.subr.mxu0 0.0
    %7700 = vmatpush1.msra.mxu0 %v5440
    %7701 = vmatprep.subr.mxu0 0.0
    %7702 = vmatpush1.msra.mxu0 %v5439
    %7703 = vmatprep.subr.mxu0 0.0
    %7704 = vmatpush1.msra.mxu0 %v5438
    %7705 = vmatprep.subr.mxu0 0.0
    %7706 = vmatpush1.msra.mxu0 %v5437
    %7707 = vmatprep.subr.mxu0 0.0
    %7708 = vmatpush2.msra.mxu0 0.0
    %7709 = vmatprep.subr.mxu0 0.0
    %7710 = vmatpush2.msra.mxu0 0.0
    %7711 = vmatprep.subr.mxu0 0.0
    %7712 = vmatpush2.msra.mxu0 0.0
    %7713 = vmatprep.subr.mxu0 0.0
    %7714 = vmatpush2.msra.mxu0 0.0
    %7715 = vmatprep.subr.mxu0 0.0
    %7716 = vmatpush2.msra.mxu0 0.0
    %7717 = vmatprep.subr.mxu0 0.0
    %7718 = vmatpush2.msra.mxu0 0.0
    %7719 = vmatprep.subr.mxu0 0.0
    %7720 = vmatpush2.msra.mxu0 0.0
    %7721 = vmatprep.subr.mxu0 0.0
    %7722 = vmatpush2.msra.mxu0 0.0
    %7723 = vmatprep.subr.mxu0 0.0
    %7724 = vmatpush2.msra.mxu0 0.0
    %7725 = vmatprep.subr.mxu0 0.0
    %7726 = vmatpush2.msra.mxu0 0.0
    %7727 = vmatprep.subr.mxu0 0.0
    %7728 = vmatpush2.msra.mxu0 0.0
    %7729 = vmatprep.subr.mxu0 0.0
    %7730 = vmatpush2.msra.mxu0 0.0
    %7731 = vmatprep.subr.mxu0 0.0
    %7732 = vmatpush2.msra.mxu0 0.0
    %7733 = vmatprep.subr.mxu0 0.0
    %7734 = vmatpush2.msra.mxu0 0.0
    %7735 = vmatprep.subr.mxu0 0.0
    %7736 = vmatpush2.msra.mxu0 0.0
    %7737 = vmatprep.subr.mxu0 0.0
    %7738 = vmatpush2.msra.mxu0 0.0
    %7739 = vmatprep.mubr.f32.mxu0 0.0
    %7740 = vmatmul.mubr.f32.gmra.mxu0 %v7673
    %v7741 = vpop.f32.mrf.mxu0
    %v7742 = vadd.f32 0.0, %v7741
    %v7743 = vpop.f32.mrf.mxu0
    %7744 = vdwg.mxu0
    %v7745 = vmul.f32 %v7742, 0.125
    %v7746 = vmul.f32 %v7663, %v7663
    %v7747 = vsub.f32 %v7745, %v7746
    %v7748 = vadd.f32 %v7747, 1e-05
    %v7749 = vrsqrt.pop %v7748
    %v7751 = vrot.slane %v7749, 6
    %v7753 = vmul.f32 %v7105, %v7751
    %v7755 = vrot.slane %v7753, 2
    %v7757 = vmul.f32 %v7663, %v7755
    %v7759 = vrot.slane %v7757, 5
    %v7761 = vsub.f32 %v7105, %v7759
    %v7762 = vsel %vm3127, %v7755, 0
    %7764 = vmatprep.subr.mxu0 0.0
    %7765 = vmatpush1.msra.mxu0 0.0
    %7766 = vmatprep.subr.mxu0 0.0
    %7767 = vmatpush1.msra.mxu0 0.0
    %7768 = vmatprep.subr.mxu0 0.0
    %7769 = vmatpush1.msra.mxu0 0.0
    %7770 = vmatprep.subr.mxu0 0.0
    %7771 = vmatpush1.msra.mxu0 0.0
    %7772 = vmatprep.subr.mxu0 0.0
    %7773 = vmatpush1.msra.mxu0 0.0
    %7774 = vmatprep.subr.mxu0 0.0
    %7775 = vmatpush1.msra.mxu0 0.0
    %7776 = vmatprep.subr.mxu0 0.0
    %7777 = vmatpush1.msra.mxu0 0.0
    %7778 = vmatprep.subr.mxu0 0.0
    %7779 = vmatpush1.msra.mxu0 0.0
    %7780 = vmatprep.subr.mxu0 0.0
    %7781 = vmatpush1.msra.mxu0 0.0
    %7782 = vmatprep.subr.mxu0 0.0
    %7783 = vmatpush1.msra.mxu0 0.0
    %7784 = vmatprep.subr.mxu0 0.0
    %7785 = vmatpush1.msra.mxu0 0.0
    %7786 = vmatprep.subr.mxu0 0.0
    %7787 = vmatpush1.msra.mxu0 0.0
    %7788 = vmatprep.subr.mxu0 0.0
    %7789 = vmatpush1.msra.mxu0 0.0
    %7790 = vmatprep.subr.mxu0 0.0
    %7791 = vmatpush1.msra.mxu0 0.0
    %7792 = vmatprep.subr.mxu0 0.0
    %7793 = vmatpush1.msra.mxu0 0.0
    %7794 = vmatprep.subr.mxu0 0.0
    %7795 = vmatpush1.msra.mxu0 %v5441
    %7796 = vmatprep.subr.mxu0 0.0
    %7797 = vmatpush2.msra.mxu0 0.0
    %7798 = vmatprep.subr.mxu0 0.0
    %7799 = vmatpush2.msra.mxu0 0.0
    %7800 = vmatprep.subr.mxu0 0.0
    %7801 = vmatpush2.msra.mxu0 0.0
    %7802 = vmatprep.subr.mxu0 0.0
    %7803 = vmatpush2.msra.mxu0 0.0
    %7804 = vmatprep.subr.mxu0 0.0
    %7805 = vmatpush2.msra.mxu0 0.0
    %7806 = vmatprep.subr.mxu0 0.0
    %7807 = vmatpush2.msra.mxu0 0.0
    %7808 = vmatprep.subr.mxu0 0.0
    %7809 = vmatpush2.msra.mxu0 0.0
    %7810 = vmatprep.subr.mxu0 0.0
    %7811 = vmatpush2.msra.mxu0 0.0
    %7812 = vmatprep.subr.mxu0 0.0
    %7813 = vmatpush2.msra.mxu0 0.0
    %7814 = vmatprep.subr.mxu0 0.0
    %7815 = vmatpush2.msra.mxu0 0.0
    %7816 = vmatprep.subr.mxu0 0.0
    %7817 = vmatpush2.msra.mxu0 0.0
    %7818 = vmatprep.subr.mxu0 0.0
    %7819 = vmatpush2.msra.mxu0 0.0
    %7820 = vmatprep.subr.mxu0 0.0
    %7821 = vmatpush2.msra.mxu0 0.0
    %7822 = vmatprep.subr.mxu0 0.0
    %7823 = vmatpush2.msra.mxu0 0.0
    %7824 = vmatprep.subr.mxu0 0.0
    %7825 = vmatpush2.msra.mxu0 0.0
    %7826 = vmatprep.subr.mxu0 0.0
    %7827 = vmatpush2.msra.mxu0 0.0
    %7828 = vmatprep.mubr.f32.mxu0 0.0
    %7829 = vmatmul.mubr.f32.gmra.mxu0 %v7762
    %v7830 = vpop.f32.mrf.mxu0
    %v7831 = vadd.f32 0.0, %v7830
    %v7832 = vpop.f32.mrf.mxu0
    %7833 = vdwg.mxu0
    %v7835 = vrot.slane %v7761, 3
    %v7836 = vsel %vm3127, %v7835, 0
    %7838 = vmatprep.subr.mxu0 0.0
    %7839 = vmatpush1.msra.mxu0 0.0
    %7840 = vmatprep.subr.mxu0 0.0
    %7841 = vmatpush1.msra.mxu0 0.0
    %7842 = vmatprep.subr.mxu0 0.0
    %7843 = vmatpush1.msra.mxu0 0.0
    %7844 = vmatprep.subr.mxu0 0.0
    %7845 = vmatpush1.msra.mxu0 0.0
    %7846 = vmatprep.subr.mxu0 0.0
    %7847 = vmatpush1.msra.mxu0 0.0
    %7848 = vmatprep.subr.mxu0 0.0
    %7849 = vmatpush1.msra.mxu0 0.0
    %7850 = vmatprep.subr.mxu0 0.0
    %7851 = vmatpush1.msra.mxu0 0.0
    %7852 = vmatprep.subr.mxu0 0.0
    %7853 = vmatpush1.msra.mxu0 0.0
    %7854 = vmatprep.subr.mxu0 0.0
    %7855 = vmatpush1.msra.mxu0 0.0
    %7856 = vmatprep.subr.mxu0 0.0
    %7857 = vmatpush1.msra.mxu0 0.0
    %7858 = vmatprep.subr.mxu0 0.0
    %7859 = vmatpush1.msra.mxu0 0.0
    %7860 = vmatprep.subr.mxu0 0.0
    %7861 = vmatpush1.msra.mxu0 0.0
    %7862 = vmatprep.subr.mxu0 0.0
    %7863 = vmatpush1.msra.mxu0 0.0
    %7864 = vmatprep.subr.mxu0 0.0
    %7865 = vmatpush1.msra.mxu0 0.0
    %7866 = vmatprep.subr.mxu0 0.0
    %7867 = vmatpush1.msra.mxu0 0.0
    %7868 = vmatprep.subr.mxu0 0.0
    %7869 = vmatpush1.msra.mxu0 %v5441
    %7870 = vmatprep.subr.mxu0 0.0
    %7871 = vmatpush2.msra.mxu0 0.0
    %7872 = vmatprep.subr.mxu0 0.0
    %7873 = vmatpush2.msra.mxu0 0.0
    %7874 = vmatprep.subr.mxu0 0.0
    %7875 = vmatpush2.msra.mxu0 0.0
    %7876 = vmatprep.subr.mxu0 0.0
    %7877 = vmatpush2.msra.mxu0 0.0
    %7878 = vmatprep.subr.mxu0 0.0
    %7879 = vmatpush2.msra.mxu0 0.0
    %7880 = vmatprep.subr.mxu0 0.0
    %7881 = vmatpush2.msra.mxu0 0.0
    %7882 = vmatprep.subr.mxu0 0.0
    %7883 = vmatpush2.msra.mxu0 0.0
    %7884 = vmatprep.subr.mxu0 0.0
    %7885 = vmatpush2.msra.mxu0 0.0
    %7886 = vmatprep.subr.mxu0 0.0
    %7887 = vmatpush2.msra.mxu0 0.0
    %7888 = vmatprep.subr.mxu0 0.0
    %7889 = vmatpush2.msra.mxu0 0.0
    %7890 = vmatprep.subr.mxu0 0.0
    %7891 = vmatpush2.msra.mxu0 0.0
    %7892 = vmatprep.subr.mxu0 0.0
    %7893 = vmatpush2.msra.mxu0 0.0
    %7894 = vmatprep.subr.mxu0 0.0
    %7895 = vmatpush2.msra.mxu0 0.0
    %7896 = vmatprep.subr.mxu0 0.0
    %7897 = vmatpush2.msra.mxu0 0.0
    %7898 = vmatprep.subr.mxu0 0.0
    %7899 = vmatpush2.msra.mxu0 0.0
    %7900 = vmatprep.subr.mxu0 0.0
    %7901 = vmatpush2.msra.mxu0 0.0
    %7902 = vmatprep.mubr.f32.mxu0 0.0
    %7903 = vmatmul.mubr.f32.gmra.mxu0 %v7836
    %v7904 = vpop.f32.mrf.mxu0
    %v7905 = vadd.f32 0.0, %v7904
    %v7906 = vpop.f32.mrf.mxu0
    %7907 = vdwg.mxu0
    %v7908 = vlaneseq
    %v7909 = vshrl.u32 %v7908, 7
    %v7910 = vsub.s32 0, %v7909
    %v7911 = vrot.slane %v7831, %v7910
    %v7912 = vmul.f32 %v7580, %v7911
    %v7913 = vlaneseq
    %v7914 = vshrl.u32 %v7913, 7
    %v7915 = vsub.s32 0, %v7914
    %v7916 = vrot.slane %v7905, %v7915
    %v7917 = vadd.f32 %v7912, %v7916
    %v7918 = vadd.f32 %v7917, %v7093
    %v7919 = vmax.f32 %v7918, 0.0
    %v7920 = vld [vmem:[%s4] sm:$0xff]
    %v7921 = vld [vmem:[%s4 + $0x8] sm:$0xff]
    %v7922 = vld [vmem:[%s4 + $0x10] sm:$0xff]
    %v7923 = vld [vmem:[%s4 + $0x18] sm:$0xff]
    %v7925 = vsel %vm5452, %v7919, 0
    %7927 = vmatprep.subr.mxu0 0.0
    %7928 = vmatpush1.msra.mxu0 0.0
    %7929 = vmatprep.subr.mxu0 0.0
    %7930 = vmatpush1.msra.mxu0 0.0
    %7931 = vmatprep.subr.mxu0 0.0
    %7932 = vmatpush1.msra.mxu0 0.0
    %7933 = vmatprep.subr.mxu0 0.0
    %7934 = vmatpush1.msra.mxu0 0.0
    %7935 = vmatprep.subr.mxu0 0.0
    %7936 = vmatpush1.msra.mxu0 0.0
    %7937 = vmatprep.subr.mxu0 0.0
    %7938 = vmatpush1.msra.mxu0 0.0
    %7939 = vmatprep.subr.mxu0 0.0
    %7940 = vmatpush1.msra.mxu0 0.0
    %7941 = vmatprep.subr.mxu0 0.0
    %7942 = vmatpush1.msra.mxu0 0.0
    %7943 = vmatprep.subr.mxu0 0.0
    %7944 = vmatpush1.msra.mxu0 0.0
    %7945 = vmatprep.subr.mxu0 0.0
    %7946 = vmatpush1.msra.mxu0 0.0
    %7947 = vmatprep.subr.mxu0 0.0
    %7948 = vmatpush1.msra.mxu0 0.0
    %7949 = vmatprep.subr.mxu0 0.0
    %7950 = vmatpush1.msra.mxu0 0.0
    %7951 = vmatprep.subr.mxu0 0.0
    %7952 = vmatpush1.msra.mxu0 %v7923
    %7953 = vmatprep.subr.mxu0 0.0
    %7954 = vmatpush1.msra.mxu0 %v7922
    %7955 = vmatprep.subr.mxu0 0.0
    %7956 = vmatpush1.msra.mxu0 %v7921
    %7957 = vmatprep.subr.mxu0 0.0
    %7958 = vmatpush1.msra.mxu0 %v7920
    %7959 = vmatprep.subr.mxu0 0.0
    %7960 = vmatpush2.msra.mxu0 0.0
    %7961 = vmatprep.subr.mxu0 0.0
    %7962 = vmatpush2.msra.mxu0 0.0
    %7963 = vmatprep.subr.mxu0 0.0
    %7964 = vmatpush2.msra.mxu0 0.0
    %7965 = vmatprep.subr.mxu0 0.0
    %7966 = vmatpush2.msra.mxu0 0.0
    %7967 = vmatprep.subr.mxu0 0.0
    %7968 = vmatpush2.msra.mxu0 0.0
    %7969 = vmatprep.subr.mxu0 0.0
    %7970 = vmatpush2.msra.mxu0 0.0
    %7971 = vmatprep.subr.mxu0 0.0
    %7972 = vmatpush2.msra.mxu0 0.0
    %7973 = vmatprep.subr.mxu0 0.0
    %7974 = vmatpush2.msra.mxu0 0.0
    %7975 = vmatprep.subr.mxu0 0.0
    %7976 = vmatpush2.msra.mxu0 0.0
    %7977 = vmatprep.subr.mxu0 0.0
    %7978 = vmatpush2.msra.mxu0 0.0
    %7979 = vmatprep.subr.mxu0 0.0
    %7980 = vmatpush2.msra.mxu0 0.0
    %7981 = vmatprep.subr.mxu0 0.0
    %7982 = vmatpush2.msra.mxu0 0.0
    %7983 = vmatprep.subr.mxu0 0.0
    %7984 = vmatpush2.msra.mxu0 0.0
    %7985 = vmatprep.subr.mxu0 0.0
    %7986 = vmatpush2.msra.mxu0 0.0
    %7987 = vmatprep.subr.mxu0 0.0
    %7988 = vmatpush2.msra.mxu0 0.0
    %7989 = vmatprep.subr.mxu0 0.0
    %7990 = vmatpush2.msra.mxu0 0.0
    %7991 = vmatprep.mubr.f32.mxu0 0.0
    %7992 = vmatmul.mubr.f32.gmra.mxu0 %v7925
    %v7993 = vpop.f32.mrf.mxu0
    %v7994 = vadd.f32 0.0, %v7993
    %v7995 = vpop.f32.mrf.mxu0
    %7996 = vdwg.mxu0
    %vm7997 = vcmask 58368
    %7998 = vst.msk [vmem:[#allocation13] sm:$0x3] %vm7997, %v7994
    // Predicated region
    $region94: #{downsample_forward.1} parent=1 // pred_check
      _
    $region95: #{downsample_forward.1} parent=1 // pred_check_branch
      %8000 = sbr.rel (0) target = $region97
    $region96: #{downsample_forward.1} parent=1 // pred_region
      %s8002 = ssub.s32 32, 32
      %8003 = vsyncadd [#allocation4], %s8002
      %s8005 = sshll.u32 [#allocation13], 4
      %s8006 = int_to_ptr.vmem [resolvable:$true] %s8005
      %8008 = dma.vmem_to_hbm [thread:$0]  %s8006, 32, %s17, [#allocation4]
    $region97: #{downsample_forward.1} parent=1 // pred_fallthru
      _
    // Predicated region
    $region98: #{downsample_forward.1} parent=1 // pred_check
      _
    $region99: #{downsample_forward.1} parent=1 // pred_check_branch
      %8010 = sbr.rel (0) target = $region101
    $region100: #{downsample_forward.1} parent=1 // pred_region
      %8011 = dma.done [#allocation4], 32
    $region101: #{downsample_forward.1} parent=1 // pred_fallthru
      _
    %8012 = vsyncpa [#allocation3], 1
    %8013 = vsyncpa [#allocation6], 1
    %8014 = vsyncpa [#allocation9], 1
    %8015 = vsyncpa [#allocation12], 1
    %8016 = vsyncpa [#allocation4], 1

</llo_original>
